<compile_context>
chip_gen: v7x
topology: tpu7x:2x2x1
jax: 0.10.0
libtpu: 0.0.40
codegen_flags: <defaults>
</compile_context>

<pallas_src>
import jax
import jax.numpy as jnp
from jax import lax
from jax.experimental import pallas as pl
from jax.experimental.pallas import tpu as pltpu

EPS = 1e-5
LANE = 128  # pad matmul K / output-channel dims to multiples of this on every generation


def _round_up(x, m):
    return (x + m - 1) // m * m


def _vgg_block_kernel(x_ref, w1_ref, g1_ref, be1_ref, w2_ref, g2_ref, be2_ref,
                      o_ref, xpad_ref, mid_ref):
    # x_ref   : (N, H, W, Cin)          f32  input (unpadded channels)
    # w1_ref  : (K1p, Cmid_p)           bf16 (9*Cin rows zero-padded to K1p)
    # w2_ref  : (9*Cmid_p, Cout_p)      bf16
    # g*/be*  : (1, Cmid_p)/(1, Cout_p) f32  (zero-padded gamma/beta)
    # o_ref   : (N, H, W, Cout)         f32
    # xpad_ref: (N, H+2, W+2, Cin)      bf16 scratch (zero-padded input, MXU staging)
    # mid_ref : (N, H+2, W+2, Cmid_p)   bf16 scratch (zero-padded intermediate)
    N, H, W, Cin = x_ref.shape
    Hp, Wp = H + 2, W + 2
    K1p, Cmid_p = w1_ref.shape
    Cout_p = w2_ref.shape[-1]
    Cout = o_ref.shape[-1]
    rows = N * H * W
    inv_rows = 1.0 / float(rows)

    def pad_into(ref, interior, C):
        # bf16 staging.  3 stores: top halo row, bottom halo row, and one (N, H, Wp, C)
        # interior slab whose W-edge columns are zeroed in registers (no per-row
        # 1-wide masked W-edge stores).
        zrow = jnp.zeros((N, 1, Wp, C), ref.dtype)
        zcol = jnp.zeros((N, H, 1, C), ref.dtype)
        ref[:, 0:1, :, :] = zrow
        ref[:, H + 1:H + 2, :, :] = zrow
        ref[:, 1:H + 1, :, :] = jnp.concatenate(
            [zcol, interior.astype(ref.dtype), zcol], axis=2)

    def im2col(padded, C, Kp):
        # (N, Hp, Wp, C) bf16 -> (rows, Kp) bf16: nine shifted slices concatenated on
        # the lane axis in (ky, kx, c) order (matches w.reshape(9*C, Co)), plus one
        # trailing zero block padding the contraction dim up to Kp (lane-dense MXU K).
        cols = [padded[:, ky:ky + H, kx:kx + W, :]
                for ky in range(3) for kx in range(3)]
        if Kp > 9 * C:
            cols.append(jnp.zeros((N, H, W, Kp - 9 * C), padded.dtype))
        return jnp.concatenate(cols, axis=-1).reshape(rows, Kp)

    def bn_relu(acc, gamma, beta):
        # Training-mode BatchNorm (batch stats over N*H*W, biased variance) + ReLU,
        # all in f32.  Two-pass centered variance (numerically robust vs E[x^2]-E[x]^2).
        mean = jnp.sum(acc, axis=0, keepdims=True) * inv_rows
        d = acc - mean
        var = jnp.sum(d * d, axis=0, keepdims=True) * inv_rows
        scale = gamma * lax.rsqrt(var + EPS)
        return jnp.maximum(d * scale + beta, 0.0)

    # ---- conv1: one lane-dense MXU matmul over bf16 im2col patches (f32 acc) ----
    pad_into(xpad_ref, x_ref[...], Cin)
    acc1 = jnp.dot(im2col(xpad_ref[...], Cin, K1p), w1_ref[...],
                   preferred_element_type=jnp.float32)
    # conv bias omitted: exactly cancelled by the batch-mean subtraction in bn_relu.
    y1 = bn_relu(acc1, g1_ref[...], be1_ref[...])          # (rows, Cmid_p) f32

    # ---- conv2 on the zero-padded bf16 intermediate (Cmid_p is lane-dense) ----
    pad_into(mid_ref, y1.reshape(N, H, W, Cmid_p), Cmid_p)
    acc2 = jnp.dot(im2col(mid_ref[...], Cmid_p, 9 * Cmid_p), w2_ref[...],
                   preferred_element_type=jnp.float32)
    y2 = bn_relu(acc2, g2_ref[...], be2_ref[...])          # (rows, Cout_p) f32

    # Store only the real output channels (padded lanes are exactly zero / unused),
    # keeping the HBM write at its minimal size.
    o_ref[...] = y2[:, :Cout].reshape(N, H, W, Cout).astype(o_ref.dtype)


def vgg_block_nhwc(x_nhwc, params):
    """Native NHWC entry point: (N, H, W, Cin) f32 -> (N, H, W, Cout) f32."""
    w1, b1, g1, be1, w2, b2, g2, be2 = params
    # Conv biases are accepted for interface parity with the PyTorch module but are
    # mathematically cancelled by the training-mode BN mean subtraction.
    del b1, b2

    N, H, W, Cin = x_nhwc.shape
    Cmid = w1.shape[-1]
    Cout = w2.shape[-1]
    Hp, Wp = H + 2, W + 2
    rows = N * H * W

    # Lane-dense MXU dims.
    Cmid_p = _round_up(Cmid, LANE)
    Cout_p = _round_up(Cout, LANE)
    K1p = _round_up(9 * Cin, LANE)
    K2p = 9 * Cmid_p  # already a multiple of LANE

    def pad_w(w, ci, ci_p, co, co_p, kp):
        # (3,3,ci,co) -> zero-pad channels -> (9*ci_p, co_p) -> zero-pad rows to kp, bf16.
        wp = jnp.pad(w, ((0, 0), (0, 0), (0, ci_p - ci), (0, co_p - co)))
        wp = wp.reshape(9 * ci_p, co_p)
        return jnp.pad(wp, ((0, kp - 9 * ci_p), (0, 0))).astype(jnp.bfloat16)

    w1r = pad_w(w1, Cin, Cin, Cmid, Cmid_p, K1p)
    w2r = pad_w(w2, Cmid, Cmid_p, Cout, Cout_p, K2p)

    def pad_v(v, cp):  # gamma/beta zero-padded -> padded channels stay exactly 0
        return jnp.pad(v, (0, cp - v.shape[0])).reshape(1, cp).astype(jnp.float32)

    # Generation-aware VMEM budget (v7x: 64 MiB per TensorCore; v5e/v6e: 128 MiB).
    try:
        vmem_cap = int(pltpu.get_tpu_info().vmem_capacity_bytes)
    except Exception:
        vmem_cap = 64 * 1024 * 1024  # conservative fallback (v7x per-core)

    f32, bf16 = 4, 2
    vmem_needed = (
        rows * Cin * f32 + rows * Cout * f32                 # kernel input / output
        + (K1p * Cmid_p + K2p * Cout_p) * bf16               # bf16 weights
        + N * Hp * Wp * (Cin + Cmid_p) * bf16                # bf16 padded staging scratch
        + 2 * rows * (K1p + K2p) * bf16                      # patch matrices + slice temps
        + 2 * rows * (Cmid_p + Cout_p) * f32                 # f32 accumulators / BN temps
    )
    if vmem_needed > int(0.45 * vmem_cap):
        # TODO(synk): fall back to the tiled two-phase-BN variant for production shapes.
        raise NotImplementedError(
            "shape too large for the whole-block-in-VMEM VGGBlock kernel")
    vmem_limit = int(min(max(2 * vmem_needed, 8 * 1024 * 1024), int(0.75 * vmem_cap)))

    vmem = pl.BlockSpec(memory_space=pltpu.MemorySpace.VMEM)
    out = pl.pallas_call(
        _vgg_block_kernel,
        out_shape=jax.ShapeDtypeStruct((N, H, W, Cout), jnp.float32),
        in_specs=[vmem] * 7,
        out_specs=vmem,
        scratch_shapes=[pltpu.VMEM((N, Hp, Wp, Cin), jnp.bfloat16),
                        pltpu.VMEM((N, Hp, Wp, Cmid_p), jnp.bfloat16)],
        compiler_params=pltpu.CompilerParams(vmem_limit_bytes=vmem_limit),
    )(x_nhwc.astype(jnp.float32), w1r,
      pad_v(g1, Cmid_p), pad_v(be1, Cmid_p),
      w2r, pad_v(g2, Cout_p), pad_v(be2, Cout_p))
    return out


def vgg_block(x_nchw, params):
    """PyTorch-style interface: (N, Cin, H, W) f32 -> (N, Cout, H, W) f32."""
    x_nhwc = jnp.transpose(x_nchw, (0, 2, 3, 1))
    out = vgg_block_nhwc(x_nhwc, params)
    return jnp.transpose(out, (0, 3, 1, 2))


def vgg_block_reference(x_nchw, params):
    """Pure-JAX reference of the PyTorch module (training-mode BN), f32 throughout."""
    w1, b1, g1, be1, w2, b2, g2, be2 = params

    def conv_bn_relu(x, w, b, g, be):
        y = lax.conv_general_dilated(x, w, (1, 1), "SAME",
                                     dimension_numbers=("NCHW", "HWIO", "NCHW"))
        y = y + b.reshape(1, -1, 1, 1)
        mean = jnp.mean(y, axis=(0, 2, 3), keepdims=True)
        var = jnp.mean((y - mean) ** 2, axis=(0, 2, 3), keepdims=True)
        y = (y - mean) * lax.rsqrt(var + EPS) * g.reshape(1, -1, 1, 1) + be.reshape(1, -1, 1, 1)
        return jnp.maximum(y, 0.0)

    y = conv_bn_relu(x_nchw, w1, b1, g1, be1)
    return conv_bn_relu(y, w2, b2, g2, be2)


def init_params(key, in_channels, middle_channels, out_channels):
    ks = jax.random.split(key, 8)
    w1 = 0.1 * jax.random.normal(ks[0], (3, 3, in_channels, middle_channels), jnp.float32)
    b1 = 0.05 * jax.random.normal(ks[1], (middle_channels,), jnp.float32)
    g1 = 1.0 + 0.1 * jax.random.normal(ks[2], (middle_channels,), jnp.float32)
    be1 = 0.05 * jax.random.normal(ks[3], (middle_channels,), jnp.float32)
    w2 = 0.1 * jax.random.normal(ks[4], (3, 3, middle_channels, out_channels), jnp.float32)
    b2 = 0.05 * jax.random.normal(ks[5], (out_channels,), jnp.float32)
    g2 = 1.0 + 0.1 * jax.random.normal(ks[6], (out_channels,), jnp.float32)
    be2 = 0.05 * jax.random.normal(ks[7], (out_channels,), jnp.float32)
    return (w1, b1, g1, be1, w2, b2, g2, be2)


if __name__ == "__main__":
    key = jax.random.PRNGKey(0)
    k_x, k_p = jax.random.split(key)

    N, Cin, H, W = 2, 4, 16, 16
    Cmid, Cout = 8, 8

    x = jax.random.normal(k_x, (N, Cin, H, W), jnp.float32)
    params = init_params(k_p, Cin, Cmid, Cout)

    y = jax.block_until_ready(vgg_block(x, params))

    assert y.shape == (N, Cout, H, W)
    assert bool(jnp.all(jnp.isfinite(y)))
    assert bool(jnp.all(y >= 0.0))  # final ReLU

    # Numerical check vs. an f32 reference (bf16 MXU operands -> loose tolerance).
    y_ref = jax.block_until_ready(vgg_block_reference(x, params))
    assert bool(jnp.allclose(y, y_ref, atol=8e-2, rtol=5e-2)), \
        float(jnp.max(jnp.abs(y - y_ref)))

    print("KERNEL_OK")
</pallas_src>

<mosaic_0001>
module attributes {stable_mosaic.version = 11 : i64} {
  func.func @_vgg_block_kernel(%arg0: memref<2x16x16x4xf32, #tpu.memory_space<vmem>>, %arg1: memref<128x128xbf16, #tpu.memory_space<vmem>>, %arg2: memref<1x128xf32, #tpu.memory_space<vmem>>, %arg3: memref<1x128xf32, #tpu.memory_space<vmem>>, %arg4: memref<1152x128xbf16, #tpu.memory_space<vmem>>, %arg5: memref<1x128xf32, #tpu.memory_space<vmem>>, %arg6: memref<1x128xf32, #tpu.memory_space<vmem>>, %arg7: memref<2x16x16x8xf32, #tpu.memory_space<vmem>>, %arg8: memref<2x18x18x4xbf16, #tpu.memory_space<vmem>>, %arg9: memref<2x18x18x128xbf16, #tpu.memory_space<vmem>>) attributes {dimension_semantics = [], scalar_prefetch = 0 : i64, scratch_operands = 2 : i64, tpu.core_type = #tpu.core_type<tc>} {
    %c0 = arith.constant 0 : index
    %c0_0 = arith.constant 0 : index
    %c0_1 = arith.constant 0 : index
    %c0_2 = arith.constant 0 : index
    %0 = vector.load %arg0[%c0, %c0_0, %c0_1, %c0_2] : memref<2x16x16x4xf32, #tpu.memory_space<vmem>>, vector<2x16x16x4xf32>
    %cst = arith.constant 0.000000e+00 : bf16
    %1 = vector.broadcast %cst : bf16 to vector<2x1x18x4xbf16>
    %cst_3 = arith.constant 0.000000e+00 : bf16
    %2 = vector.broadcast %cst_3 : bf16 to vector<2x16x1x4xbf16>
    %c0_4 = arith.constant 0 : index
    %c0_5 = arith.constant 0 : index
    %c0_6 = arith.constant 0 : index
    %c0_7 = arith.constant 0 : index
    %3 = vector.load %arg8[%c0_4, %c0_5, %c0_6, %c0_7] : memref<2x18x18x4xbf16, #tpu.memory_space<vmem>>, vector<2x1x18x4xbf16>
    tpu.vector_store %arg8[%c0_4, %c0_5, %c0_6, %c0_7], %1 {strides = array<i32>} : memref<2x18x18x4xbf16, #tpu.memory_space<vmem>>, vector<2x1x18x4xbf16>,
    %c0_8 = arith.constant 0 : index
    %c17 = arith.constant 17 : index
    %c0_9 = arith.constant 0 : index
    %c0_10 = arith.constant 0 : index
    %4 = vector.load %arg8[%c0_8, %c17, %c0_9, %c0_10] : memref<2x18x18x4xbf16, #tpu.memory_space<vmem>>, vector<2x1x18x4xbf16>
    tpu.vector_store %arg8[%c0_8, %c17, %c0_9, %c0_10], %1 {strides = array<i32>} : memref<2x18x18x4xbf16, #tpu.memory_space<vmem>>, vector<2x1x18x4xbf16>,
    %5 = arith.truncf %0 : vector<2x16x16x4xf32> to vector<2x16x16x4xbf16>
    %6 = tpu.concatenate %2, %5, %2 in 2 : vector<2x16x1x4xbf16>, vector<2x16x16x4xbf16>, vector<2x16x1x4xbf16> -> vector<2x16x18x4xbf16>
    %c0_11 = arith.constant 0 : index
    %c1 = arith.constant 1 : index
    %c0_12 = arith.constant 0 : index
    %c0_13 = arith.constant 0 : index
    %7 = vector.load %arg8[%c0_11, %c1, %c0_12, %c0_13] : memref<2x18x18x4xbf16, #tpu.memory_space<vmem>>, vector<2x16x18x4xbf16>
    tpu.vector_store %arg8[%c0_11, %c1, %c0_12, %c0_13], %6 {strides = array<i32>} : memref<2x18x18x4xbf16, #tpu.memory_space<vmem>>, vector<2x16x18x4xbf16>,
    %c0_14 = arith.constant 0 : index
    %c0_15 = arith.constant 0 : index
    %c0_16 = arith.constant 0 : index
    %c0_17 = arith.constant 0 : index
    %8 = vector.load %arg8[%c0_14, %c0_15, %c0_16, %c0_17] : memref<2x18x18x4xbf16, #tpu.memory_space<vmem>>, vector<2x18x18x4xbf16>
    %9 = vector.extract_strided_slice %8 {offsets = [0, 0, 0, 0], sizes = [2, 16, 16, 4], strides = [1, 1, 1, 1]} : vector<2x18x18x4xbf16> to vector<2x16x16x4xbf16>
    %10 = vector.extract_strided_slice %8 {offsets = [0, 0, 1, 0], sizes = [2, 16, 16, 4], strides = [1, 1, 1, 1]} : vector<2x18x18x4xbf16> to vector<2x16x16x4xbf16>
    %11 = vector.extract_strided_slice %8 {offsets = [0, 0, 2, 0], sizes = [2, 16, 16, 4], strides = [1, 1, 1, 1]} : vector<2x18x18x4xbf16> to vector<2x16x16x4xbf16>
    %12 = vector.extract_strided_slice %8 {offsets = [0, 1, 0, 0], sizes = [2, 16, 16, 4], strides = [1, 1, 1, 1]} : vector<2x18x18x4xbf16> to vector<2x16x16x4xbf16>
    %13 = vector.extract_strided_slice %8 {offsets = [0, 1, 1, 0], sizes = [2, 16, 16, 4], strides = [1, 1, 1, 1]} : vector<2x18x18x4xbf16> to vector<2x16x16x4xbf16>
    %14 = vector.extract_strided_slice %8 {offsets = [0, 1, 2, 0], sizes = [2, 16, 16, 4], strides = [1, 1, 1, 1]} : vector<2x18x18x4xbf16> to vector<2x16x16x4xbf16>
    %15 = vector.extract_strided_slice %8 {offsets = [0, 2, 0, 0], sizes = [2, 16, 16, 4], strides = [1, 1, 1, 1]} : vector<2x18x18x4xbf16> to vector<2x16x16x4xbf16>
    %16 = vector.extract_strided_slice %8 {offsets = [0, 2, 1, 0], sizes = [2, 16, 16, 4], strides = [1, 1, 1, 1]} : vector<2x18x18x4xbf16> to vector<2x16x16x4xbf16>
    %17 = vector.extract_strided_slice %8 {offsets = [0, 2, 2, 0], sizes = [2, 16, 16, 4], strides = [1, 1, 1, 1]} : vector<2x18x18x4xbf16> to vector<2x16x16x4xbf16>
    %cst_18 = arith.constant 0.000000e+00 : bf16
    %18 = vector.broadcast %cst_18 : bf16 to vector<2x16x16x92xbf16>
    %19 = tpu.concatenate %9, %10, %11, %12, %13, %14, %15, %16, %17, %18 in 3 : vector<2x16x16x4xbf16>, vector<2x16x16x4xbf16>, vector<2x16x16x4xbf16>, vector<2x16x16x4xbf16>, vector<2x16x16x4xbf16>, vector<2x16x16x4xbf16>, vector<2x16x16x4xbf16>, vector<2x16x16x4xbf16>, vector<2x16x16x4xbf16>, vector<2x16x16x92xbf16> -> vector<2x16x16x128xbf16>
    %20 = vector.shape_cast %19 : vector<2x16x16x128xbf16> to vector<512x128xbf16>
    %c0_19 = arith.constant 0 : index
    %c0_20 = arith.constant 0 : index
    %21 = vector.load %arg1[%c0_19, %c0_20] : memref<128x128xbf16, #tpu.memory_space<vmem>>, vector<128x128xbf16>
    %cst_21 = arith.constant dense<0.000000e+00> : vector<512x128xf32>
    %22 = tpu.matmul %20, %21, %cst_21 {dimension_numbers = #tpu.dot_dimension_numbers<[1], [0], [0], [1], [0, 0, 1, 1], [], []>} : vector<512x128xbf16>, vector<128x128xbf16>, vector<512x128xf32> -> vector<512x128xf32>
    %c0_22 = arith.constant 0 : index
    %c0_23 = arith.constant 0 : index
    %23 = vector.load %arg2[%c0_22, %c0_23] : memref<1x128xf32, #tpu.memory_space<vmem>>, vector<1x128xf32>
    %c0_24 = arith.constant 0 : index
    %c0_25 = arith.constant 0 : index
    %24 = vector.load %arg3[%c0_24, %c0_25] : memref<1x128xf32, #tpu.memory_space<vmem>>, vector<1x128xf32>
    %cst_26 = arith.constant dense<0.000000e+00> : vector<128xf32>
    %25 = vector.multi_reduction <add>, %22, %cst_26 [0] : vector<512x128xf32> to vector<128xf32>
    %26 = vector.shape_cast %25 : vector<128xf32> to vector<1x128xf32>
    %cst_27 = arith.constant 0.001953125 : f32
    %27 = vector.broadcast %cst_27 : f32 to vector<1x128xf32>
    %28 = arith.mulf %26, %27 : vector<1x128xf32>
    %29 = vector.broadcast %28 : vector<1x128xf32> to vector<512x128xf32>
    %30 = arith.subf %22, %29 : vector<512x128xf32>
    %31 = arith.mulf %30, %30 : vector<512x128xf32>
    %cst_28 = arith.constant dense<0.000000e+00> : vector<128xf32>
    %32 = vector.multi_reduction <add>, %31, %cst_28 [0] : vector<512x128xf32> to vector<128xf32>
    %33 = vector.shape_cast %32 : vector<128xf32> to vector<1x128xf32>
    %cst_29 = arith.constant 0.001953125 : f32
    %34 = vector.broadcast %cst_29 : f32 to vector<1x128xf32>
    %35 = arith.mulf %33, %34 : vector<1x128xf32>
    %cst_30 = arith.constant 9.99999974E-6 : f32
    %36 = vector.broadcast %cst_30 : f32 to vector<1x128xf32>
    %37 = arith.addf %35, %36 : vector<1x128xf32>
    %38 = math.rsqrt %37 : vector<1x128xf32>
    %39 = arith.mulf %23, %38 : vector<1x128xf32>
    %40 = vector.broadcast %39 : vector<1x128xf32> to vector<512x128xf32>
    %41 = arith.mulf %30, %40 : vector<512x128xf32>
    %42 = vector.broadcast %24 : vector<1x128xf32> to vector<512x128xf32>
    %43 = arith.addf %41, %42 : vector<512x128xf32>
    %cst_31 = arith.constant 0.000000e+00 : f32
    %44 = vector.broadcast %cst_31 : f32 to vector<512x128xf32>
    %45 = arith.maximumf %43, %44 : vector<512x128xf32>
    %46 = vector.shape_cast %45 : vector<512x128xf32> to vector<2x16x16x128xf32>
    %cst_32 = arith.constant 0.000000e+00 : bf16
    %47 = vector.broadcast %cst_32 : bf16 to vector<2x1x18x128xbf16>
    %cst_33 = arith.constant 0.000000e+00 : bf16
    %48 = vector.broadcast %cst_33 : bf16 to vector<2x16x1x128xbf16>
    %c0_34 = arith.constant 0 : index
    %c0_35 = arith.constant 0 : index
    %c0_36 = arith.constant 0 : index
    %c0_37 = arith.constant 0 : index
    %49 = vector.load %arg9[%c0_34, %c0_35, %c0_36, %c0_37] : memref<2x18x18x128xbf16, #tpu.memory_space<vmem>>, vector<2x1x18x128xbf16>
    tpu.vector_store %arg9[%c0_34, %c0_35, %c0_36, %c0_37], %47 {strides = array<i32>} : memref<2x18x18x128xbf16, #tpu.memory_space<vmem>>, vector<2x1x18x128xbf16>,
    %c0_38 = arith.constant 0 : index
    %c17_39 = arith.constant 17 : index
    %c0_40 = arith.constant 0 : index
    %c0_41 = arith.constant 0 : index
    %50 = vector.load %arg9[%c0_38, %c17_39, %c0_40, %c0_41] : memref<2x18x18x128xbf16, #tpu.memory_space<vmem>>, vector<2x1x18x128xbf16>
    tpu.vector_store %arg9[%c0_38, %c17_39, %c0_40, %c0_41], %47 {strides = array<i32>} : memref<2x18x18x128xbf16, #tpu.memory_space<vmem>>, vector<2x1x18x128xbf16>,
    %51 = arith.truncf %46 : vector<2x16x16x128xf32> to vector<2x16x16x128xbf16>
    %52 = tpu.concatenate %48, %51, %48 in 2 : vector<2x16x1x128xbf16>, vector<2x16x16x128xbf16>, vector<2x16x1x128xbf16> -> vector<2x16x18x128xbf16>
    %c0_42 = arith.constant 0 : index
    %c1_43 = arith.constant 1 : index
    %c0_44 = arith.constant 0 : index
    %c0_45 = arith.constant 0 : index
    %53 = vector.load %arg9[%c0_42, %c1_43, %c0_44, %c0_45] : memref<2x18x18x128xbf16, #tpu.memory_space<vmem>>, vector<2x16x18x128xbf16>
    tpu.vector_store %arg9[%c0_42, %c1_43, %c0_44, %c0_45], %52 {strides = array<i32>} : memref<2x18x18x128xbf16, #tpu.memory_space<vmem>>, vector<2x16x18x128xbf16>,
    %c0_46 = arith.constant 0 : index
    %c0_47 = arith.constant 0 : index
    %c0_48 = arith.constant 0 : index
    %c0_49 = arith.constant 0 : index
    %54 = vector.load %arg9[%c0_46, %c0_47, %c0_48, %c0_49] : memref<2x18x18x128xbf16, #tpu.memory_space<vmem>>, vector<2x18x18x128xbf16>
    %55 = vector.extract_strided_slice %54 {offsets = [0, 0, 0, 0], sizes = [2, 16, 16, 128], strides = [1, 1, 1, 1]} : vector<2x18x18x128xbf16> to vector<2x16x16x128xbf16>
    %56 = vector.extract_strided_slice %54 {offsets = [0, 0, 1, 0], sizes = [2, 16, 16, 128], strides = [1, 1, 1, 1]} : vector<2x18x18x128xbf16> to vector<2x16x16x128xbf16>
    %57 = vector.extract_strided_slice %54 {offsets = [0, 0, 2, 0], sizes = [2, 16, 16, 128], strides = [1, 1, 1, 1]} : vector<2x18x18x128xbf16> to vector<2x16x16x128xbf16>
    %58 = vector.extract_strided_slice %54 {offsets = [0, 1, 0, 0], sizes = [2, 16, 16, 128], strides = [1, 1, 1, 1]} : vector<2x18x18x128xbf16> to vector<2x16x16x128xbf16>
    %59 = vector.extract_strided_slice %54 {offsets = [0, 1, 1, 0], sizes = [2, 16, 16, 128], strides = [1, 1, 1, 1]} : vector<2x18x18x128xbf16> to vector<2x16x16x128xbf16>
    %60 = vector.extract_strided_slice %54 {offsets = [0, 1, 2, 0], sizes = [2, 16, 16, 128], strides = [1, 1, 1, 1]} : vector<2x18x18x128xbf16> to vector<2x16x16x128xbf16>
    %61 = vector.extract_strided_slice %54 {offsets = [0, 2, 0, 0], sizes = [2, 16, 16, 128], strides = [1, 1, 1, 1]} : vector<2x18x18x128xbf16> to vector<2x16x16x128xbf16>
    %62 = vector.extract_strided_slice %54 {offsets = [0, 2, 1, 0], sizes = [2, 16, 16, 128], strides = [1, 1, 1, 1]} : vector<2x18x18x128xbf16> to vector<2x16x16x128xbf16>
    %63 = vector.extract_strided_slice %54 {offsets = [0, 2, 2, 0], sizes = [2, 16, 16, 128], strides = [1, 1, 1, 1]} : vector<2x18x18x128xbf16> to vector<2x16x16x128xbf16>
    %64 = tpu.concatenate %55, %56, %57, %58, %59, %60, %61, %62, %63 in 3 : vector<2x16x16x128xbf16>, vector<2x16x16x128xbf16>, vector<2x16x16x128xbf16>, vector<2x16x16x128xbf16>, vector<2x16x16x128xbf16>, vector<2x16x16x128xbf16>, vector<2x16x16x128xbf16>, vector<2x16x16x128xbf16>, vector<2x16x16x128xbf16> -> vector<2x16x16x1152xbf16>
    %65 = vector.shape_cast %64 : vector<2x16x16x1152xbf16> to vector<512x1152xbf16>
    %c0_50 = arith.constant 0 : index
    %c0_51 = arith.constant 0 : index
    %66 = vector.load %arg4[%c0_50, %c0_51] : memref<1152x128xbf16, #tpu.memory_space<vmem>>, vector<1152x128xbf16>
    %cst_52 = arith.constant dense<0.000000e+00> : vector<512x128xf32>
    %67 = tpu.matmul %65, %66, %cst_52 {dimension_numbers = #tpu.dot_dimension_numbers<[1], [0], [0], [1], [0, 0, 1, 1], [], []>} : vector<512x1152xbf16>, vector<1152x128xbf16>, vector<512x128xf32> -> vector<512x128xf32>
    %c0_53 = arith.constant 0 : index
    %c0_54 = arith.constant 0 : index
    %68 = vector.load %arg5[%c0_53, %c0_54] : memref<1x128xf32, #tpu.memory_space<vmem>>, vector<1x128xf32>
    %c0_55 = arith.constant 0 : index
    %c0_56 = arith.constant 0 : index
    %69 = vector.load %arg6[%c0_55, %c0_56] : memref<1x128xf32, #tpu.memory_space<vmem>>, vector<1x128xf32>
    %cst_57 = arith.constant dense<0.000000e+00> : vector<128xf32>
    %70 = vector.multi_reduction <add>, %67, %cst_57 [0] : vector<512x128xf32> to vector<128xf32>
    %71 = vector.shape_cast %70 : vector<128xf32> to vector<1x128xf32>
    %cst_58 = arith.constant 0.001953125 : f32
    %72 = vector.broadcast %cst_58 : f32 to vector<1x128xf32>
    %73 = arith.mulf %71, %72 : vector<1x128xf32>
    %74 = vector.broadcast %73 : vector<1x128xf32> to vector<512x128xf32>
    %75 = arith.subf %67, %74 : vector<512x128xf32>
    %76 = arith.mulf %75, %75 : vector<512x128xf32>
    %cst_59 = arith.constant dense<0.000000e+00> : vector<128xf32>
    %77 = vector.multi_reduction <add>, %76, %cst_59 [0] : vector<512x128xf32> to vector<128xf32>
    %78 = vector.shape_cast %77 : vector<128xf32> to vector<1x128xf32>
    %cst_60 = arith.constant 0.001953125 : f32
    %79 = vector.broadcast %cst_60 : f32 to vector<1x128xf32>
    %80 = arith.mulf %78, %79 : vector<1x128xf32>
    %cst_61 = arith.constant 9.99999974E-6 : f32
    %81 = vector.broadcast %cst_61 : f32 to vector<1x128xf32>
    %82 = arith.addf %80, %81 : vector<1x128xf32>
    %83 = math.rsqrt %82 : vector<1x128xf32>
    %84 = arith.mulf %68, %83 : vector<1x128xf32>
    %85 = vector.broadcast %84 : vector<1x128xf32> to vector<512x128xf32>
    %86 = arith.mulf %75, %85 : vector<512x128xf32>
    %87 = vector.broadcast %69 : vector<1x128xf32> to vector<512x128xf32>
    %88 = arith.addf %86, %87 : vector<512x128xf32>
    %cst_62 = arith.constant 0.000000e+00 : f32
    %89 = vector.broadcast %cst_62 : f32 to vector<512x128xf32>
    %90 = arith.maximumf %88, %89 : vector<512x128xf32>
    %91 = vector.extract_strided_slice %90 {offsets = [0, 0], sizes = [512, 8], strides = [1, 1]} : vector<512x128xf32> to vector<512x8xf32>
    %92 = vector.shape_cast %91 : vector<512x8xf32> to vector<2x16x16x8xf32>
    %c0_63 = arith.constant 0 : index
    %c0_64 = arith.constant 0 : index
    %c0_65 = arith.constant 0 : index
    %c0_66 = arith.constant 0 : index
    %93 = vector.load %arg7[%c0_63, %c0_64, %c0_65, %c0_66] : memref<2x16x16x8xf32, #tpu.memory_space<vmem>>, vector<2x16x16x8xf32>
    tpu.vector_store %arg7[%c0_63, %c0_64, %c0_65, %c0_66], %92 {strides = array<i32>} : memref<2x16x16x8xf32, #tpu.memory_space<vmem>>, vector<2x16x16x8xf32>,
    return
  }
}

</mosaic_0001>

<llo_original>
// kernel: tpu_custom_call.1
$region0: #{tpu_custom_call.1}
  #allocation0 [shape = 'u32[]', space=smem, size = 0x4, offset = 0x4, fixed_abs, tag = 'smem constant byte address 0x4 - core index']
  #allocation1 [shape = 'u32[144,128]{1,0:T(1,128)}', space=vmem, size = 0x12000, scoped, tag = 'internal scratch']
  #allocation2 [shape = 'bf16[2,18,18,4]{3,2,1,0:T(8,128)(2,1)}', space=vmem, size = 0x36000, scoped, tag = 'scratch operand']
  #allocation3 [shape = 'bf16[2,18,18,128]{3,2,1,0:T(8,128)(2,1)}', space=vmem, size = 0x36000, scoped, tag = 'scratch operand']
  %s0 = inlined_call_operand.vmem [shape: f32[2,16,16,4], index: 0, kind: input, shape index: {}]
  %s1 = inlined_call_operand.vmem [shape: bf16[128,128], index: 1, kind: input, shape index: {}]
  %s2 = inlined_call_operand.vmem [shape: f32[1,128], index: 2, kind: input, shape index: {}]
  %s3 = inlined_call_operand.vmem [shape: f32[1,128], index: 3, kind: input, shape index: {}]
  %s4 = inlined_call_operand.vmem [shape: bf16[1152,128], index: 4, kind: input, shape index: {}]
  %s5 = inlined_call_operand.vmem [shape: f32[1,128], index: 5, kind: input, shape index: {}]
  %s6 = inlined_call_operand.vmem [shape: f32[1,128], index: 6, kind: input, shape index: {}]
  %s7 = inlined_call_operand.vmem [shape: f32[2,16,16,8], index: 7, kind: output, shape index: {}]
  %s8 = sld [smem:[#allocation0]]
  $region38: #{tpu_custom_call.1} parent=0
    _
  %s10 = ssub.s32 1, %s8
  %s11 = scalar_select 0, %s10, %s8
  // Predicated region
  $region2: #{tpu_custom_call.1} parent=0 // pred_check
    _
  $region3: #{tpu_custom_call.1} parent=0 // pred_check_branch
    %13 = sbr.rel (0) target = $region5
  $region4: #{tpu_custom_call.1} parent=0 // pred_region
    _
  $region5: #{tpu_custom_call.1} parent=0 // pred_fallthru
    _
  // Predicated region
  $region6: #{tpu_custom_call.1} parent=0 // pred_check
    _
  $region7: #{tpu_custom_call.1} parent=0 // pred_check_branch
    %15 = sbr.rel (0) target = $region9
  $region8: #{tpu_custom_call.1} parent=0 // pred_region
    _
  $region9: #{tpu_custom_call.1} parent=0 // pred_fallthru
    _
  // Predicated region
  $region10: #{tpu_custom_call.1} parent=0 // pred_check
    _
  $region11: #{tpu_custom_call.1} parent=0 // pred_check_branch
    %17 = sbr.rel (0) target = $region13
  $region12: #{tpu_custom_call.1} parent=0 // pred_region
    _
  $region13: #{tpu_custom_call.1} parent=0 // pred_fallthru
    _
  // Predicated region
  $region14: #{tpu_custom_call.1} parent=0 // pred_check
    _
  $region15: #{tpu_custom_call.1} parent=0 // pred_check_branch
    %19 = sbr.rel (0) target = $region17
  $region16: #{tpu_custom_call.1} parent=0 // pred_region
    _
  $region17: #{tpu_custom_call.1} parent=0 // pred_fallthru
    _
  // Predicated region
  $region18: #{tpu_custom_call.1} parent=0 // pred_check
    _
  $region19: #{tpu_custom_call.1} parent=0 // pred_check_branch
    %21 = sbr.rel (0) target = $region21
  $region20: #{tpu_custom_call.1} parent=0 // pred_region
    _
  $region21: #{tpu_custom_call.1} parent=0 // pred_fallthru
    _
  // Predicated region
  $region22: #{tpu_custom_call.1} parent=0 // pred_check
    _
  $region23: #{tpu_custom_call.1} parent=0 // pred_check_branch
    %23 = sbr.rel (0) target = $region25
  $region24: #{tpu_custom_call.1} parent=0 // pred_region
    _
  $region25: #{tpu_custom_call.1} parent=0 // pred_fallthru
    _
  // Predicated region
  $region26: #{tpu_custom_call.1} parent=0 // pred_check
    _
  $region27: #{tpu_custom_call.1} parent=0 // pred_check_branch
    %25 = sbr.rel (0) target = $region29
  $region28: #{tpu_custom_call.1} parent=0 // pred_region
    _
  $region29: #{tpu_custom_call.1} parent=0 // pred_fallthru
    _
  %v27 = vld [vmem:[%s0] sm:$0xff]
  %v28 = vld [vmem:[%s0 + $0x8] sm:$0xff]
  %v29 = vld [vmem:[%s0 + $0x10] sm:$0xff]
  %v30 = vld [vmem:[%s0 + $0x18] sm:$0xff]
  %v31 = vld [vmem:[%s0 + $0x20] sm:$0xff]
  %v32 = vld [vmem:[%s0 + $0x28] sm:$0xff]
  %v33 = vld [vmem:[%s0 + $0x30] sm:$0xff]
  %v34 = vld [vmem:[%s0 + $0x38] sm:$0xff]
  %v35 = vld [vmem:[%s0 + $0x40] sm:$0xff]
  %v36 = vld [vmem:[%s0 + $0x48] sm:$0xff]
  %v37 = vld [vmem:[%s0 + $0x50] sm:$0xff]
  %v38 = vld [vmem:[%s0 + $0x58] sm:$0xff]
  %v39 = vld [vmem:[%s0 + $0x60] sm:$0xff]
  %v40 = vld [vmem:[%s0 + $0x68] sm:$0xff]
  %v41 = vld [vmem:[%s0 + $0x70] sm:$0xff]
  %v42 = vld [vmem:[%s0 + $0x78] sm:$0xff]
  %v43 = vld [vmem:[%s0 + $0x80] sm:$0xff]
  %v44 = vld [vmem:[%s0 + $0x88] sm:$0xff]
  %v45 = vld [vmem:[%s0 + $0x90] sm:$0xff]
  %v46 = vld [vmem:[%s0 + $0x98] sm:$0xff]
  %v47 = vld [vmem:[%s0 + $0xa0] sm:$0xff]
  %v48 = vld [vmem:[%s0 + $0xa8] sm:$0xff]
  %v49 = vld [vmem:[%s0 + $0xb0] sm:$0xff]
  %v50 = vld [vmem:[%s0 + $0xb8] sm:$0xff]
  %v51 = vld [vmem:[%s0 + $0xc0] sm:$0xff]
  %v52 = vld [vmem:[%s0 + $0xc8] sm:$0xff]
  %v53 = vld [vmem:[%s0 + $0xd0] sm:$0xff]
  %v54 = vld [vmem:[%s0 + $0xd8] sm:$0xff]
  %v55 = vld [vmem:[%s0 + $0xe0] sm:$0xff]
  %v56 = vld [vmem:[%s0 + $0xe8] sm:$0xff]
  %v57 = vld [vmem:[%s0 + $0xf0] sm:$0xff]
  %v58 = vld [vmem:[%s0 + $0xf8] sm:$0xff]
  %v59 = vld [vmem:[%s0 + $0x100] sm:$0xff]
  %v60 = vld [vmem:[%s0 + $0x108] sm:$0xff]
  %v61 = vld [vmem:[%s0 + $0x110] sm:$0xff]
  %v62 = vld [vmem:[%s0 + $0x118] sm:$0xff]
  %v63 = vld [vmem:[%s0 + $0x120] sm:$0xff]
  %v64 = vld [vmem:[%s0 + $0x128] sm:$0xff]
  %v65 = vld [vmem:[%s0 + $0x130] sm:$0xff]
  %v66 = vld [vmem:[%s0 + $0x138] sm:$0xff]
  %v67 = vld [vmem:[%s0 + $0x140] sm:$0xff]
  %v68 = vld [vmem:[%s0 + $0x148] sm:$0xff]
  %v69 = vld [vmem:[%s0 + $0x150] sm:$0xff]
  %v70 = vld [vmem:[%s0 + $0x158] sm:$0xff]
  %v71 = vld [vmem:[%s0 + $0x160] sm:$0xff]
  %v72 = vld [vmem:[%s0 + $0x168] sm:$0xff]
  %v73 = vld [vmem:[%s0 + $0x170] sm:$0xff]
  %v74 = vld [vmem:[%s0 + $0x178] sm:$0xff]
  %v75 = vld [vmem:[%s0 + $0x180] sm:$0xff]
  %v76 = vld [vmem:[%s0 + $0x188] sm:$0xff]
  %v77 = vld [vmem:[%s0 + $0x190] sm:$0xff]
  %v78 = vld [vmem:[%s0 + $0x198] sm:$0xff]
  %v79 = vld [vmem:[%s0 + $0x1a0] sm:$0xff]
  %v80 = vld [vmem:[%s0 + $0x1a8] sm:$0xff]
  %v81 = vld [vmem:[%s0 + $0x1b0] sm:$0xff]
  %v82 = vld [vmem:[%s0 + $0x1b8] sm:$0xff]
  %v83 = vld [vmem:[%s0 + $0x1c0] sm:$0xff]
  %v84 = vld [vmem:[%s0 + $0x1c8] sm:$0xff]
  %v85 = vld [vmem:[%s0 + $0x1d0] sm:$0xff]
  %v86 = vld [vmem:[%s0 + $0x1d8] sm:$0xff]
  %v87 = vld [vmem:[%s0 + $0x1e0] sm:$0xff]
  %v88 = vld [vmem:[%s0 + $0x1e8] sm:$0xff]
  %v89 = vld [vmem:[%s0 + $0x1f0] sm:$0xff]
  %v90 = vld [vmem:[%s0 + $0x1f8] sm:$0xff]
  %vm91 = vcmask 27648
  %92 = vst.msk [vmem:[#allocation2] sm:$0xf] %vm91, 0
  %93 = vst.msk [vmem:[#allocation2 + $0x4] sm:$0xf] %vm91, 0
  %vm94 = vcmask 24576
  %95 = vst.msk [vmem:[#allocation2 + $0x8] sm:$0x1] %vm94, 0
  %96 = vst.msk [vmem:[#allocation2 + $0xd8] sm:$0xf] %vm91, 0
  %97 = vst.msk [vmem:[#allocation2 + $0xdc] sm:$0xf] %vm91, 0
  %98 = vst.msk [vmem:[#allocation2 + $0xe0] sm:$0x1] %vm94, 0
  %s99 = scalar_lea.vmem [#allocation2], 204
  %100 = vst.msk [vmem:[%s99] sm:$0xf] %vm91, 0
  %101 = vst.msk [vmem:[%s99 + $0x4] sm:$0xf] %vm91, 0
  %102 = vst.msk [vmem:[%s99 + $0x8] sm:$0x1] %vm94, 0
  %103 = vst.msk [vmem:[%s99 + $0xd8] sm:$0xf] %vm91, 0
  %104 = vst.msk [vmem:[%s99 + $0xdc] sm:$0xf] %vm91, 0
  %105 = vst.msk [vmem:[%s99 + $0xe0] sm:$0x1] %vm94, 0
  %v106 = vpack.c.bf16 %v28, %v27
  %v107 = vpack.c.bf16 %v30, %v29
  %v108 = vpack.c.bf16 %v32, %v31
  %v109 = vpack.c.bf16 %v34, %v33
  %v110 = vpack.c.bf16 %v36, %v35
  %v111 = vpack.c.bf16 %v38, %v37
  %v112 = vpack.c.bf16 %v40, %v39
  %v113 = vpack.c.bf16 %v42, %v41
  %v114 = vpack.c.bf16 %v44, %v43
  %v115 = vpack.c.bf16 %v46, %v45
  %v116 = vpack.c.bf16 %v48, %v47
  %v117 = vpack.c.bf16 %v50, %v49
  %v118 = vpack.c.bf16 %v52, %v51
  %v119 = vpack.c.bf16 %v54, %v53
  %v120 = vpack.c.bf16 %v56, %v55
  %v121 = vpack.c.bf16 %v58, %v57
  %v122 = vpack.c.bf16 %v60, %v59
  %v123 = vpack.c.bf16 %v62, %v61
  %v124 = vpack.c.bf16 %v64, %v63
  %v125 = vpack.c.bf16 %v66, %v65
  %v126 = vpack.c.bf16 %v68, %v67
  %v127 = vpack.c.bf16 %v70, %v69
  %v128 = vpack.c.bf16 %v72, %v71
  %v129 = vpack.c.bf16 %v74, %v73
  %v130 = vpack.c.bf16 %v76, %v75
  %v131 = vpack.c.bf16 %v78, %v77
  %v132 = vpack.c.bf16 %v80, %v79
  %v133 = vpack.c.bf16 %v82, %v81
  %v134 = vpack.c.bf16 %v84, %v83
  %v135 = vpack.c.bf16 %v86, %v85
  %v136 = vpack.c.bf16 %v88, %v87
  %v137 = vpack.c.bf16 %v90, %v89
  %v139 = vshrl.u32 %v106, 16
  %v141 = vrot.slane %v139, 7
  %v142 = vshll.u32 %v106, 16
  %v144 = vor.u32 %v141, %v142
  %v146 = vshrl.u32 %v107, 16
  %v148 = vrot.slane %v146, 7
  %v149 = vshll.u32 %v107, 16
  %v151 = vor.u32 %v148, %v149
  %v153 = vshrl.u32 %v108, 16
  %v155 = vrot.slane %v153, 7
  %v156 = vshll.u32 %v108, 16
  %v158 = vor.u32 %v155, %v156
  %v160 = vshrl.u32 %v109, 16
  %v162 = vrot.slane %v160, 7
  %v163 = vshll.u32 %v109, 16
  %v165 = vor.u32 %v162, %v163
  %v167 = vshrl.u32 %v110, 16
  %v169 = vrot.slane %v167, 7
  %v170 = vshll.u32 %v110, 16
  %v172 = vor.u32 %v169, %v170
  %v174 = vshrl.u32 %v111, 16
  %v176 = vrot.slane %v174, 7
  %v177 = vshll.u32 %v111, 16
  %v179 = vor.u32 %v176, %v177
  %v181 = vshrl.u32 %v112, 16
  %v183 = vrot.slane %v181, 7
  %v184 = vshll.u32 %v112, 16
  %v186 = vor.u32 %v183, %v184
  %v188 = vshrl.u32 %v113, 16
  %v190 = vrot.slane %v188, 7
  %v191 = vshll.u32 %v113, 16
  %v193 = vor.u32 %v190, %v191
  %v195 = vshrl.u32 %v114, 16
  %v197 = vrot.slane %v195, 7
  %v198 = vshll.u32 %v114, 16
  %v200 = vor.u32 %v197, %v198
  %v202 = vshrl.u32 %v115, 16
  %v204 = vrot.slane %v202, 7
  %v205 = vshll.u32 %v115, 16
  %v207 = vor.u32 %v204, %v205
  %v209 = vshrl.u32 %v116, 16
  %v211 = vrot.slane %v209, 7
  %v212 = vshll.u32 %v116, 16
  %v214 = vor.u32 %v211, %v212
  %v216 = vshrl.u32 %v117, 16
  %v218 = vrot.slane %v216, 7
  %v219 = vshll.u32 %v117, 16
  %v221 = vor.u32 %v218, %v219
  %v223 = vshrl.u32 %v118, 16
  %v225 = vrot.slane %v223, 7
  %v226 = vshll.u32 %v118, 16
  %v228 = vor.u32 %v225, %v226
  %v230 = vshrl.u32 %v119, 16
  %v232 = vrot.slane %v230, 7
  %v233 = vshll.u32 %v119, 16
  %v235 = vor.u32 %v232, %v233
  %v237 = vshrl.u32 %v120, 16
  %v239 = vrot.slane %v237, 7
  %v240 = vshll.u32 %v120, 16
  %v242 = vor.u32 %v239, %v240
  %v244 = vshrl.u32 %v121, 16
  %v246 = vrot.slane %v244, 7
  %v247 = vshll.u32 %v121, 16
  %v249 = vor.u32 %v246, %v247
  %v251 = vshrl.u32 %v122, 16
  %v253 = vrot.slane %v251, 7
  %v254 = vshll.u32 %v122, 16
  %v256 = vor.u32 %v253, %v254
  %v258 = vshrl.u32 %v123, 16
  %v260 = vrot.slane %v258, 7
  %v261 = vshll.u32 %v123, 16
  %v263 = vor.u32 %v260, %v261
  %v265 = vshrl.u32 %v124, 16
  %v267 = vrot.slane %v265, 7
  %v268 = vshll.u32 %v124, 16
  %v270 = vor.u32 %v267, %v268
  %v272 = vshrl.u32 %v125, 16
  %v274 = vrot.slane %v272, 7
  %v275 = vshll.u32 %v125, 16
  %v277 = vor.u32 %v274, %v275
  %v279 = vshrl.u32 %v126, 16
  %v281 = vrot.slane %v279, 7
  %v282 = vshll.u32 %v126, 16
  %v284 = vor.u32 %v281, %v282
  %v286 = vshrl.u32 %v127, 16
  %v288 = vrot.slane %v286, 7
  %v289 = vshll.u32 %v127, 16
  %v291 = vor.u32 %v288, %v289
  %v293 = vshrl.u32 %v128, 16
  %v295 = vrot.slane %v293, 7
  %v296 = vshll.u32 %v128, 16
  %v298 = vor.u32 %v295, %v296
  %v300 = vshrl.u32 %v129, 16
  %v302 = vrot.slane %v300, 7
  %v303 = vshll.u32 %v129, 16
  %v305 = vor.u32 %v302, %v303
  %v307 = vshrl.u32 %v130, 16
  %v309 = vrot.slane %v307, 7
  %v310 = vshll.u32 %v130, 16
  %v312 = vor.u32 %v309, %v310
  %v314 = vshrl.u32 %v131, 16
  %v316 = vrot.slane %v314, 7
  %v317 = vshll.u32 %v131, 16
  %v319 = vor.u32 %v316, %v317
  %v321 = vshrl.u32 %v132, 16
  %v323 = vrot.slane %v321, 7
  %v324 = vshll.u32 %v132, 16
  %v326 = vor.u32 %v323, %v324
  %v328 = vshrl.u32 %v133, 16
  %v330 = vrot.slane %v328, 7
  %v331 = vshll.u32 %v133, 16
  %v333 = vor.u32 %v330, %v331
  %v335 = vshrl.u32 %v134, 16
  %v337 = vrot.slane %v335, 7
  %v338 = vshll.u32 %v134, 16
  %v340 = vor.u32 %v337, %v338
  %v342 = vshrl.u32 %v135, 16
  %v344 = vrot.slane %v342, 7
  %v345 = vshll.u32 %v135, 16
  %v347 = vor.u32 %v344, %v345
  %v349 = vshrl.u32 %v136, 16
  %v351 = vrot.slane %v349, 7
  %v352 = vshll.u32 %v136, 16
  %v354 = vor.u32 %v351, %v352
  %v356 = vshrl.u32 %v137, 16
  %v358 = vrot.slane %v356, 7
  %v359 = vshll.u32 %v137, 16
  %v361 = vor.u32 %v358, %v359
  %vm426 = vcmask 1040384
  %vm427 = vsmask.f32 256
  %vm428 = vmand %vm426, %vm427
  %v429 = vsel %vm428, 0, %v144
  %v430 = vsel %vm428, 0, %v151
  %v431 = vsel %vm428, 0, %v158
  %v432 = vsel %vm428, 0, %v165
  %v433 = vsel %vm428, 0, %v172
  %v434 = vsel %vm428, 0, %v179
  %v435 = vsel %vm428, 0, %v186
  %v436 = vsel %vm428, 0, %v193
  %v437 = vsel %vm428, 0, %v200
  %v438 = vsel %vm428, 0, %v207
  %v439 = vsel %vm428, 0, %v214
  %v440 = vsel %vm428, 0, %v221
  %v441 = vsel %vm428, 0, %v228
  %v442 = vsel %vm428, 0, %v235
  %v443 = vsel %vm428, 0, %v242
  %v444 = vsel %vm428, 0, %v249
  %v445 = vsel %vm428, 0, %v256
  %v446 = vsel %vm428, 0, %v263
  %v447 = vsel %vm428, 0, %v270
  %v448 = vsel %vm428, 0, %v277
  %v449 = vsel %vm428, 0, %v284
  %v450 = vsel %vm428, 0, %v291
  %v451 = vsel %vm428, 0, %v298
  %v452 = vsel %vm428, 0, %v305
  %v453 = vsel %vm428, 0, %v312
  %v454 = vsel %vm428, 0, %v319
  %v455 = vsel %vm428, 0, %v326
  %v456 = vsel %vm428, 0, %v333
  %v457 = vsel %vm428, 0, %v340
  %v458 = vsel %vm428, 0, %v347
  %v459 = vsel %vm428, 0, %v354
  %v460 = vsel %vm428, 0, %v361
  %v461 = vsel %vm428, %v141, 0
  %v462 = vsel %vm428, %v148, 0
  %v463 = vsel %vm428, %v155, 0
  %v464 = vsel %vm428, %v162, 0
  %v465 = vsel %vm428, %v169, 0
  %v466 = vsel %vm428, %v176, 0
  %v467 = vsel %vm428, %v183, 0
  %v468 = vsel %vm428, %v190, 0
  %v469 = vsel %vm428, %v197, 0
  %v470 = vsel %vm428, %v204, 0
  %v471 = vsel %vm428, %v211, 0
  %v472 = vsel %vm428, %v218, 0
  %v473 = vsel %vm428, %v225, 0
  %v474 = vsel %vm428, %v232, 0
  %v475 = vsel %vm428, %v239, 0
  %v476 = vsel %vm428, %v246, 0
  %v477 = vsel %vm428, %v253, 0
  %v478 = vsel %vm428, %v260, 0
  %v479 = vsel %vm428, %v267, 0
  %v480 = vsel %vm428, %v274, 0
  %v481 = vsel %vm428, %v281, 0
  %v482 = vsel %vm428, %v288, 0
  %v483 = vsel %vm428, %v295, 0
  %v484 = vsel %vm428, %v302, 0
  %v485 = vsel %vm428, %v309, 0
  %v486 = vsel %vm428, %v316, 0
  %v487 = vsel %vm428, %v323, 0
  %v488 = vsel %vm428, %v330, 0
  %v489 = vsel %vm428, %v337, 0
  %v490 = vsel %vm428, %v344, 0
  %v491 = vsel %vm428, %v351, 0
  %v492 = vsel %vm428, %v358, 0
  %v557 = vunpack.c.l.b16 %v429
  %v558 = vunpack.c.h.b16 %v429
  %v559 = vunpack.c.l.b16 %v461
  %v560 = vunpack.c.l.b16 %v430
  %v561 = vunpack.c.h.b16 %v430
  %v562 = vunpack.c.l.b16 %v462
  %v563 = vunpack.c.l.b16 %v431
  %v564 = vunpack.c.h.b16 %v431
  %v565 = vunpack.c.l.b16 %v463
  %v566 = vunpack.c.l.b16 %v432
  %v567 = vunpack.c.h.b16 %v432
  %v568 = vunpack.c.l.b16 %v464
  %v569 = vunpack.c.l.b16 %v433
  %v570 = vunpack.c.h.b16 %v433
  %v571 = vunpack.c.l.b16 %v465
  %v572 = vunpack.c.l.b16 %v434
  %v573 = vunpack.c.h.b16 %v434
  %v574 = vunpack.c.l.b16 %v466
  %v575 = vunpack.c.l.b16 %v435
  %v576 = vunpack.c.h.b16 %v435
  %v577 = vunpack.c.l.b16 %v467
  %v578 = vunpack.c.l.b16 %v436
  %v579 = vunpack.c.h.b16 %v436
  %v580 = vunpack.c.l.b16 %v468
  %v581 = vunpack.c.l.b16 %v437
  %v582 = vunpack.c.h.b16 %v437
  %v583 = vunpack.c.l.b16 %v469
  %v584 = vunpack.c.l.b16 %v438
  %v585 = vunpack.c.h.b16 %v438
  %v586 = vunpack.c.l.b16 %v470
  %v587 = vunpack.c.l.b16 %v439
  %v588 = vunpack.c.h.b16 %v439
  %v589 = vunpack.c.l.b16 %v471
  %v590 = vunpack.c.l.b16 %v440
  %v591 = vunpack.c.h.b16 %v440
  %v592 = vunpack.c.l.b16 %v472
  %v593 = vunpack.c.l.b16 %v441
  %v594 = vunpack.c.h.b16 %v441
  %v595 = vunpack.c.l.b16 %v473
  %v596 = vunpack.c.l.b16 %v442
  %v597 = vunpack.c.h.b16 %v442
  %v598 = vunpack.c.l.b16 %v474
  %v599 = vunpack.c.l.b16 %v443
  %v600 = vunpack.c.h.b16 %v443
  %v601 = vunpack.c.l.b16 %v475
  %v602 = vunpack.c.l.b16 %v444
  %v603 = vunpack.c.h.b16 %v444
  %v604 = vunpack.c.l.b16 %v476
  %v605 = vunpack.c.l.b16 %v445
  %v606 = vunpack.c.h.b16 %v445
  %v607 = vunpack.c.l.b16 %v477
  %v608 = vunpack.c.l.b16 %v446
  %v609 = vunpack.c.h.b16 %v446
  %v610 = vunpack.c.l.b16 %v478
  %v611 = vunpack.c.l.b16 %v447
  %v612 = vunpack.c.h.b16 %v447
  %v613 = vunpack.c.l.b16 %v479
  %v614 = vunpack.c.l.b16 %v448
  %v615 = vunpack.c.h.b16 %v448
  %v616 = vunpack.c.l.b16 %v480
  %v617 = vunpack.c.l.b16 %v449
  %v618 = vunpack.c.h.b16 %v449
  %v619 = vunpack.c.l.b16 %v481
  %v620 = vunpack.c.l.b16 %v450
  %v621 = vunpack.c.h.b16 %v450
  %v622 = vunpack.c.l.b16 %v482
  %v623 = vunpack.c.l.b16 %v451
  %v624 = vunpack.c.h.b16 %v451
  %v625 = vunpack.c.l.b16 %v483
  %v626 = vunpack.c.l.b16 %v452
  %v627 = vunpack.c.h.b16 %v452
  %v628 = vunpack.c.l.b16 %v484
  %v629 = vunpack.c.l.b16 %v453
  %v630 = vunpack.c.h.b16 %v453
  %v631 = vunpack.c.l.b16 %v485
  %v632 = vunpack.c.l.b16 %v454
  %v633 = vunpack.c.h.b16 %v454
  %v634 = vunpack.c.l.b16 %v486
  %v635 = vunpack.c.l.b16 %v455
  %v636 = vunpack.c.h.b16 %v455
  %v637 = vunpack.c.l.b16 %v487
  %v638 = vunpack.c.l.b16 %v456
  %v639 = vunpack.c.h.b16 %v456
  %v640 = vunpack.c.l.b16 %v488
  %v641 = vunpack.c.l.b16 %v457
  %v642 = vunpack.c.h.b16 %v457
  %v643 = vunpack.c.l.b16 %v489
  %v644 = vunpack.c.l.b16 %v458
  %v645 = vunpack.c.h.b16 %v458
  %v646 = vunpack.c.l.b16 %v490
  %v647 = vunpack.c.l.b16 %v459
  %v648 = vunpack.c.h.b16 %v459
  %v649 = vunpack.c.l.b16 %v491
  %v650 = vunpack.c.l.b16 %v460
  %v651 = vunpack.c.h.b16 %v460
  %v652 = vunpack.c.l.b16 %v492
  %v653 = vpack.c.b16 %v557, %v557
  %v654 = vpack.c.b16 %v558, %v558
  %v655 = vpack.c.b16 %v559, %v559
  %v656 = vpack.c.b16 %v560, %v560
  %v657 = vpack.c.b16 %v561, %v561
  %v658 = vpack.c.b16 %v562, %v562
  %v659 = vpack.c.b16 %v563, %v563
  %v660 = vpack.c.b16 %v564, %v564
  %v661 = vpack.c.b16 %v565, %v565
  %v662 = vpack.c.b16 %v566, %v566
  %v663 = vpack.c.b16 %v567, %v567
  %v664 = vpack.c.b16 %v568, %v568
  %v665 = vpack.c.b16 %v569, %v569
  %v666 = vpack.c.b16 %v570, %v570
  %v667 = vpack.c.b16 %v571, %v571
  %v668 = vpack.c.b16 %v572, %v572
  %v669 = vpack.c.b16 %v573, %v573
  %v670 = vpack.c.b16 %v574, %v574
  %v671 = vpack.c.b16 %v575, %v575
  %v672 = vpack.c.b16 %v576, %v576
  %v673 = vpack.c.b16 %v577, %v577
  %v674 = vpack.c.b16 %v578, %v578
  %v675 = vpack.c.b16 %v579, %v579
  %v676 = vpack.c.b16 %v580, %v580
  %v677 = vpack.c.b16 %v581, %v581
  %v678 = vpack.c.b16 %v582, %v582
  %v679 = vpack.c.b16 %v583, %v583
  %v680 = vpack.c.b16 %v584, %v584
  %v681 = vpack.c.b16 %v585, %v585
  %v682 = vpack.c.b16 %v586, %v586
  %v683 = vpack.c.b16 %v587, %v587
  %v684 = vpack.c.b16 %v588, %v588
  %v685 = vpack.c.b16 %v589, %v589
  %v686 = vpack.c.b16 %v590, %v590
  %v687 = vpack.c.b16 %v591, %v591
  %v688 = vpack.c.b16 %v592, %v592
  %v689 = vpack.c.b16 %v593, %v593
  %v690 = vpack.c.b16 %v594, %v594
  %v691 = vpack.c.b16 %v595, %v595
  %v692 = vpack.c.b16 %v596, %v596
  %v693 = vpack.c.b16 %v597, %v597
  %v694 = vpack.c.b16 %v598, %v598
  %v695 = vpack.c.b16 %v599, %v599
  %v696 = vpack.c.b16 %v600, %v600
  %v697 = vpack.c.b16 %v601, %v601
  %v698 = vpack.c.b16 %v602, %v602
  %v699 = vpack.c.b16 %v603, %v603
  %v700 = vpack.c.b16 %v604, %v604
  %v701 = vpack.c.b16 %v605, %v605
  %v702 = vpack.c.b16 %v606, %v606
  %v703 = vpack.c.b16 %v607, %v607
  %v704 = vpack.c.b16 %v608, %v608
  %v705 = vpack.c.b16 %v609, %v609
  %v706 = vpack.c.b16 %v610, %v610
  %v707 = vpack.c.b16 %v611, %v611
  %v708 = vpack.c.b16 %v612, %v612
  %v709 = vpack.c.b16 %v613, %v613
  %v710 = vpack.c.b16 %v614, %v614
  %v711 = vpack.c.b16 %v615, %v615
  %v712 = vpack.c.b16 %v616, %v616
  %v713 = vpack.c.b16 %v617, %v617
  %v714 = vpack.c.b16 %v618, %v618
  %v715 = vpack.c.b16 %v619, %v619
  %v716 = vpack.c.b16 %v620, %v620
  %v717 = vpack.c.b16 %v621, %v621
  %v718 = vpack.c.b16 %v622, %v622
  %v719 = vpack.c.b16 %v623, %v623
  %v720 = vpack.c.b16 %v624, %v624
  %v721 = vpack.c.b16 %v625, %v625
  %v722 = vpack.c.b16 %v626, %v626
  %v723 = vpack.c.b16 %v627, %v627
  %v724 = vpack.c.b16 %v628, %v628
  %v725 = vpack.c.b16 %v629, %v629
  %v726 = vpack.c.b16 %v630, %v630
  %v727 = vpack.c.b16 %v631, %v631
  %v728 = vpack.c.b16 %v632, %v632
  %v729 = vpack.c.b16 %v633, %v633
  %v730 = vpack.c.b16 %v634, %v634
  %v731 = vpack.c.b16 %v635, %v635
  %v732 = vpack.c.b16 %v636, %v636
  %v733 = vpack.c.b16 %v637, %v637
  %v734 = vpack.c.b16 %v638, %v638
  %v735 = vpack.c.b16 %v639, %v639
  %v736 = vpack.c.b16 %v640, %v640
  %v737 = vpack.c.b16 %v641, %v641
  %v738 = vpack.c.b16 %v642, %v642
  %v739 = vpack.c.b16 %v643, %v643
  %v740 = vpack.c.b16 %v644, %v644
  %v741 = vpack.c.b16 %v645, %v645
  %v742 = vpack.c.b16 %v646, %v646
  %v743 = vpack.c.b16 %v647, %v647
  %v744 = vpack.c.b16 %v648, %v648
  %v745 = vpack.c.b16 %v649, %v649
  %v746 = vpack.c.b16 %v650, %v650
  %v747 = vpack.c.b16 %v651, %v651
  %v748 = vpack.c.b16 %v652, %v652
  %s845 = scalar_lea.vmem [#allocation2], 12
  %846 = vst.msk [vmem:[%s845] sm:$0xf] %vm91, %v653
  %847 = vst.msk [vmem:[%s845 + $0x4] sm:$0xf] %vm91, %v654
  %848 = vst.msk [vmem:[%s845 + $0x8] sm:$0x1] %vm94, %v655
  %849 = vst.msk [vmem:[%s845 + $0xc] sm:$0xf] %vm91, %v656
  %850 = vst.msk [vmem:[%s845 + $0x10] sm:$0xf] %vm91, %v657
  %851 = vst.msk [vmem:[%s845 + $0x14] sm:$0x1] %vm94, %v658
  %852 = vst.msk [vmem:[%s845 + $0x18] sm:$0xf] %vm91, %v659
  %853 = vst.msk [vmem:[%s845 + $0x1c] sm:$0xf] %vm91, %v660
  %854 = vst.msk [vmem:[%s845 + $0x20] sm:$0x1] %vm94, %v661
  %855 = vst.msk [vmem:[%s845 + $0x24] sm:$0xf] %vm91, %v662
  %856 = vst.msk [vmem:[%s845 + $0x28] sm:$0xf] %vm91, %v663
  %857 = vst.msk [vmem:[%s845 + $0x2c] sm:$0x1] %vm94, %v664
  %858 = vst.msk [vmem:[%s845 + $0x30] sm:$0xf] %vm91, %v665
  %859 = vst.msk [vmem:[%s845 + $0x34] sm:$0xf] %vm91, %v666
  %860 = vst.msk [vmem:[%s845 + $0x38] sm:$0x1] %vm94, %v667
  %861 = vst.msk [vmem:[%s845 + $0x3c] sm:$0xf] %vm91, %v668
  %862 = vst.msk [vmem:[%s845 + $0x40] sm:$0xf] %vm91, %v669
  %863 = vst.msk [vmem:[%s845 + $0x44] sm:$0x1] %vm94, %v670
  %864 = vst.msk [vmem:[%s845 + $0x48] sm:$0xf] %vm91, %v671
  %865 = vst.msk [vmem:[%s845 + $0x4c] sm:$0xf] %vm91, %v672
  %866 = vst.msk [vmem:[%s845 + $0x50] sm:$0x1] %vm94, %v673
  %867 = vst.msk [vmem:[%s845 + $0x54] sm:$0xf] %vm91, %v674
  %868 = vst.msk [vmem:[%s845 + $0x58] sm:$0xf] %vm91, %v675
  %869 = vst.msk [vmem:[%s845 + $0x5c] sm:$0x1] %vm94, %v676
  %870 = vst.msk [vmem:[%s845 + $0x60] sm:$0xf] %vm91, %v677
  %871 = vst.msk [vmem:[%s845 + $0x64] sm:$0xf] %vm91, %v678
  %872 = vst.msk [vmem:[%s845 + $0x68] sm:$0x1] %vm94, %v679
  %873 = vst.msk [vmem:[%s845 + $0x6c] sm:$0xf] %vm91, %v680
  %874 = vst.msk [vmem:[%s845 + $0x70] sm:$0xf] %vm91, %v681
  %875 = vst.msk [vmem:[%s845 + $0x74] sm:$0x1] %vm94, %v682
  %876 = vst.msk [vmem:[%s845 + $0x78] sm:$0xf] %vm91, %v683
  %877 = vst.msk [vmem:[%s845 + $0x7c] sm:$0xf] %vm91, %v684
  %878 = vst.msk [vmem:[%s845 + $0x80] sm:$0x1] %vm94, %v685
  %879 = vst.msk [vmem:[%s845 + $0x84] sm:$0xf] %vm91, %v686
  %880 = vst.msk [vmem:[%s845 + $0x88] sm:$0xf] %vm91, %v687
  %881 = vst.msk [vmem:[%s845 + $0x8c] sm:$0x1] %vm94, %v688
  %882 = vst.msk [vmem:[%s845 + $0x90] sm:$0xf] %vm91, %v689
  %883 = vst.msk [vmem:[%s845 + $0x94] sm:$0xf] %vm91, %v690
  %884 = vst.msk [vmem:[%s845 + $0x98] sm:$0x1] %vm94, %v691
  %885 = vst.msk [vmem:[%s845 + $0x9c] sm:$0xf] %vm91, %v692
  %886 = vst.msk [vmem:[%s845 + $0xa0] sm:$0xf] %vm91, %v693
  %887 = vst.msk [vmem:[%s845 + $0xa4] sm:$0x1] %vm94, %v694
  %888 = vst.msk [vmem:[%s845 + $0xa8] sm:$0xf] %vm91, %v695
  %889 = vst.msk [vmem:[%s845 + $0xac] sm:$0xf] %vm91, %v696
  %890 = vst.msk [vmem:[%s845 + $0xb0] sm:$0x1] %vm94, %v697
  %891 = vst.msk [vmem:[%s845 + $0xb4] sm:$0xf] %vm91, %v698
  %892 = vst.msk [vmem:[%s845 + $0xb8] sm:$0xf] %vm91, %v699
  %893 = vst.msk [vmem:[%s845 + $0xbc] sm:$0x1] %vm94, %v700
  %894 = vst.msk [vmem:[%s845 + $0xd8] sm:$0xf] %vm91, %v701
  %895 = vst.msk [vmem:[%s845 + $0xdc] sm:$0xf] %vm91, %v702
  %896 = vst.msk [vmem:[%s845 + $0xe0] sm:$0x1] %vm94, %v703
  %897 = vst.msk [vmem:[%s845 + $0xe4] sm:$0xf] %vm91, %v704
  %898 = vst.msk [vmem:[%s845 + $0xe8] sm:$0xf] %vm91, %v705
  %899 = vst.msk [vmem:[%s845 + $0xec] sm:$0x1] %vm94, %v706
  %900 = vst.msk [vmem:[%s845 + $0xf0] sm:$0xf] %vm91, %v707
  %901 = vst.msk [vmem:[%s845 + $0xf4] sm:$0xf] %vm91, %v708
  %902 = vst.msk [vmem:[%s845 + $0xf8] sm:$0x1] %vm94, %v709
  %903 = vst.msk [vmem:[%s845 + $0xfc] sm:$0xf] %vm91, %v710
  %904 = vst.msk [vmem:[%s845 + $0x100] sm:$0xf] %vm91, %v711
  %905 = vst.msk [vmem:[%s845 + $0x104] sm:$0x1] %vm94, %v712
  %906 = vst.msk [vmem:[%s845 + $0x108] sm:$0xf] %vm91, %v713
  %907 = vst.msk [vmem:[%s845 + $0x10c] sm:$0xf] %vm91, %v714
  %908 = vst.msk [vmem:[%s845 + $0x110] sm:$0x1] %vm94, %v715
  %909 = vst.msk [vmem:[%s845 + $0x114] sm:$0xf] %vm91, %v716
  %910 = vst.msk [vmem:[%s845 + $0x118] sm:$0xf] %vm91, %v717
  %911 = vst.msk [vmem:[%s845 + $0x11c] sm:$0x1] %vm94, %v718
  %912 = vst.msk [vmem:[%s845 + $0x120] sm:$0xf] %vm91, %v719
  %913 = vst.msk [vmem:[%s845 + $0x124] sm:$0xf] %vm91, %v720
  %914 = vst.msk [vmem:[%s845 + $0x128] sm:$0x1] %vm94, %v721
  %915 = vst.msk [vmem:[%s845 + $0x12c] sm:$0xf] %vm91, %v722
  %916 = vst.msk [vmem:[%s845 + $0x130] sm:$0xf] %vm91, %v723
  %917 = vst.msk [vmem:[%s845 + $0x134] sm:$0x1] %vm94, %v724
  %918 = vst.msk [vmem:[%s845 + $0x138] sm:$0xf] %vm91, %v725
  %919 = vst.msk [vmem:[%s845 + $0x13c] sm:$0xf] %vm91, %v726
  %920 = vst.msk [vmem:[%s845 + $0x140] sm:$0x1] %vm94, %v727
  %921 = vst.msk [vmem:[%s845 + $0x144] sm:$0xf] %vm91, %v728
  %922 = vst.msk [vmem:[%s845 + $0x148] sm:$0xf] %vm91, %v729
  %923 = vst.msk [vmem:[%s845 + $0x14c] sm:$0x1] %vm94, %v730
  %924 = vst.msk [vmem:[%s845 + $0x150] sm:$0xf] %vm91, %v731
  %925 = vst.msk [vmem:[%s845 + $0x154] sm:$0xf] %vm91, %v732
  %926 = vst.msk [vmem:[%s845 + $0x158] sm:$0x1] %vm94, %v733
  %927 = vst.msk [vmem:[%s845 + $0x15c] sm:$0xf] %vm91, %v734
  %928 = vst.msk [vmem:[%s845 + $0x160] sm:$0xf] %vm91, %v735
  %929 = vst.msk [vmem:[%s845 + $0x164] sm:$0x1] %vm94, %v736
  %930 = vst.msk [vmem:[%s845 + $0x168] sm:$0xf] %vm91, %v737
  %931 = vst.msk [vmem:[%s845 + $0x16c] sm:$0xf] %vm91, %v738
  %932 = vst.msk [vmem:[%s845 + $0x170] sm:$0x1] %vm94, %v739
  %933 = vst.msk [vmem:[%s845 + $0x174] sm:$0xf] %vm91, %v740
  %934 = vst.msk [vmem:[%s845 + $0x178] sm:$0xf] %vm91, %v741
  %935 = vst.msk [vmem:[%s845 + $0x17c] sm:$0x1] %vm94, %v742
  %936 = vst.msk [vmem:[%s845 + $0x180] sm:$0xf] %vm91, %v743
  %937 = vst.msk [vmem:[%s845 + $0x184] sm:$0xf] %vm91, %v744
  %938 = vst.msk [vmem:[%s845 + $0x188] sm:$0x1] %vm94, %v745
  %939 = vst.msk [vmem:[%s845 + $0x18c] sm:$0xf] %vm91, %v746
  %940 = vst.msk [vmem:[%s845 + $0x190] sm:$0xf] %vm91, %v747
  %941 = vst.msk [vmem:[%s845 + $0x194] sm:$0x1] %vm94, %v748
  %v942 = vld [vmem:[#allocation2] sm:$0xf]
  %v943 = vld [vmem:[#allocation2 + $0x4] sm:$0xf]
  %v944 = vld [vmem:[#allocation2 + $0x8] sm:$0x1]
  %v945 = vld [vmem:[#allocation2 + $0xc] sm:$0xf]
  %v946 = vld [vmem:[#allocation2 + $0x10] sm:$0xf]
  %v947 = vld [vmem:[#allocation2 + $0x14] sm:$0x1]
  %v948 = vld [vmem:[#allocation2 + $0x18] sm:$0xf]
  %v949 = vld [vmem:[#allocation2 + $0x1c] sm:$0xf]
  %v950 = vld [vmem:[#allocation2 + $0x20] sm:$0x1]
  %v951 = vld [vmem:[#allocation2 + $0x24] sm:$0xf]
  %v952 = vld [vmem:[#allocation2 + $0x28] sm:$0xf]
  %v953 = vld [vmem:[#allocation2 + $0x2c] sm:$0x1]
  %v954 = vld [vmem:[#allocation2 + $0x30] sm:$0xf]
  %v955 = vld [vmem:[#allocation2 + $0x34] sm:$0xf]
  %v956 = vld [vmem:[#allocation2 + $0x38] sm:$0x1]
  %v957 = vld [vmem:[#allocation2 + $0x3c] sm:$0xf]
  %v958 = vld [vmem:[#allocation2 + $0x40] sm:$0xf]
  %v959 = vld [vmem:[#allocation2 + $0x44] sm:$0x1]
  %v960 = vld [vmem:[#allocation2 + $0x48] sm:$0xf]
  %v961 = vld [vmem:[#allocation2 + $0x4c] sm:$0xf]
  %v962 = vld [vmem:[#allocation2 + $0x50] sm:$0x1]
  %v963 = vld [vmem:[#allocation2 + $0x54] sm:$0xf]
  %v964 = vld [vmem:[#allocation2 + $0x58] sm:$0xf]
  %v965 = vld [vmem:[#allocation2 + $0x5c] sm:$0x1]
  %v966 = vld [vmem:[#allocation2 + $0x60] sm:$0xf]
  %v967 = vld [vmem:[#allocation2 + $0x64] sm:$0xf]
  %v968 = vld [vmem:[#allocation2 + $0x68] sm:$0x1]
  %v969 = vld [vmem:[#allocation2 + $0x6c] sm:$0xf]
  %v970 = vld [vmem:[#allocation2 + $0x70] sm:$0xf]
  %v971 = vld [vmem:[#allocation2 + $0x74] sm:$0x1]
  %v972 = vld [vmem:[#allocation2 + $0x78] sm:$0xf]
  %v973 = vld [vmem:[#allocation2 + $0x7c] sm:$0xf]
  %v974 = vld [vmem:[#allocation2 + $0x80] sm:$0x1]
  %v975 = vld [vmem:[#allocation2 + $0x84] sm:$0xf]
  %v976 = vld [vmem:[#allocation2 + $0x88] sm:$0xf]
  %v977 = vld [vmem:[#allocation2 + $0x8c] sm:$0x1]
  %v978 = vld [vmem:[#allocation2 + $0x90] sm:$0xf]
  %v979 = vld [vmem:[#allocation2 + $0x94] sm:$0xf]
  %v980 = vld [vmem:[#allocation2 + $0x98] sm:$0x1]
  %v981 = vld [vmem:[#allocation2 + $0x9c] sm:$0xf]
  %v982 = vld [vmem:[#allocation2 + $0xa0] sm:$0xf]
  %v983 = vld [vmem:[#allocation2 + $0xa4] sm:$0x1]
  %v984 = vld [vmem:[#allocation2 + $0xa8] sm:$0xf]
  %v985 = vld [vmem:[#allocation2 + $0xac] sm:$0xf]
  %v986 = vld [vmem:[#allocation2 + $0xb0] sm:$0x1]
  %v987 = vld [vmem:[#allocation2 + $0xb4] sm:$0xf]
  %v988 = vld [vmem:[#allocation2 + $0xb8] sm:$0xf]
  %v989 = vld [vmem:[#allocation2 + $0xbc] sm:$0x1]
  %v990 = vld [vmem:[#allocation2 + $0xc0] sm:$0xf]
  %v991 = vld [vmem:[#allocation2 + $0xc4] sm:$0xf]
  %v992 = vld [vmem:[#allocation2 + $0xc8] sm:$0x1]
  %v993 = vld [vmem:[#allocation2 + $0xcc] sm:$0xf]
  %v994 = vld [vmem:[#allocation2 + $0xd0] sm:$0xf]
  %v995 = vld [vmem:[#allocation2 + $0xd4] sm:$0x1]
  %v996 = vld [vmem:[#allocation2 + $0xd8] sm:$0xf]
  %v997 = vld [vmem:[#allocation2 + $0xdc] sm:$0xf]
  %v998 = vld [vmem:[#allocation2 + $0xe0] sm:$0x1]
  %v999 = vld [vmem:[#allocation2 + $0xe4] sm:$0xf]
  %v1000 = vld [vmem:[#allocation2 + $0xe8] sm:$0xf]
  %v1001 = vld [vmem:[#allocation2 + $0xec] sm:$0x1]
  %v1002 = vld [vmem:[#allocation2 + $0xf0] sm:$0xf]
  %v1003 = vld [vmem:[#allocation2 + $0xf4] sm:$0xf]
  %v1004 = vld [vmem:[#allocation2 + $0xf8] sm:$0x1]
  %v1005 = vld [vmem:[#allocation2 + $0xfc] sm:$0xf]
  %v1006 = vld [vmem:[#allocation2 + $0x100] sm:$0xf]
  %v1007 = vld [vmem:[#allocation2 + $0x104] sm:$0x1]
  %v1008 = vld [vmem:[#allocation2 + $0x108] sm:$0xf]
  %v1009 = vld [vmem:[#allocation2 + $0x10c] sm:$0xf]
  %v1010 = vld [vmem:[#allocation2 + $0x110] sm:$0x1]
  %v1011 = vld [vmem:[#allocation2 + $0x114] sm:$0xf]
  %v1012 = vld [vmem:[#allocation2 + $0x118] sm:$0xf]
  %v1013 = vld [vmem:[#allocation2 + $0x11c] sm:$0x1]
  %v1014 = vld [vmem:[#allocation2 + $0x120] sm:$0xf]
  %v1015 = vld [vmem:[#allocation2 + $0x124] sm:$0xf]
  %v1016 = vld [vmem:[#allocation2 + $0x128] sm:$0x1]
  %v1017 = vld [vmem:[#allocation2 + $0x12c] sm:$0xf]
  %v1018 = vld [vmem:[#allocation2 + $0x130] sm:$0xf]
  %v1019 = vld [vmem:[#allocation2 + $0x134] sm:$0x1]
  %v1020 = vld [vmem:[#allocation2 + $0x138] sm:$0xf]
  %v1021 = vld [vmem:[#allocation2 + $0x13c] sm:$0xf]
  %v1022 = vld [vmem:[#allocation2 + $0x140] sm:$0x1]
  %v1023 = vld [vmem:[#allocation2 + $0x144] sm:$0xf]
  %v1024 = vld [vmem:[#allocation2 + $0x148] sm:$0xf]
  %v1025 = vld [vmem:[#allocation2 + $0x14c] sm:$0x1]
  %v1026 = vld [vmem:[#allocation2 + $0x150] sm:$0xf]
  %v1027 = vld [vmem:[#allocation2 + $0x154] sm:$0xf]
  %v1028 = vld [vmem:[#allocation2 + $0x158] sm:$0x1]
  %v1029 = vld [vmem:[#allocation2 + $0x15c] sm:$0xf]
  %v1030 = vld [vmem:[#allocation2 + $0x160] sm:$0xf]
  %v1031 = vld [vmem:[#allocation2 + $0x164] sm:$0x1]
  %v1032 = vld [vmem:[#allocation2 + $0x168] sm:$0xf]
  %v1033 = vld [vmem:[#allocation2 + $0x16c] sm:$0xf]
  %v1034 = vld [vmem:[#allocation2 + $0x170] sm:$0x1]
  %v1035 = vld [vmem:[#allocation2 + $0x174] sm:$0xf]
  %v1036 = vld [vmem:[#allocation2 + $0x178] sm:$0xf]
  %v1037 = vld [vmem:[#allocation2 + $0x17c] sm:$0x1]
  %v1038 = vld [vmem:[#allocation2 + $0x180] sm:$0xf]
  %v1039 = vld [vmem:[#allocation2 + $0x184] sm:$0xf]
  %v1040 = vld [vmem:[#allocation2 + $0x188] sm:$0x1]
  %v1041 = vld [vmem:[#allocation2 + $0x18c] sm:$0xf]
  %v1042 = vld [vmem:[#allocation2 + $0x190] sm:$0xf]
  %v1043 = vld [vmem:[#allocation2 + $0x194] sm:$0x1]
  %v1044 = vld [vmem:[#allocation2 + $0x198] sm:$0xf]
  %v1045 = vld [vmem:[#allocation2 + $0x19c] sm:$0xf]
  %v1046 = vld [vmem:[#allocation2 + $0x1a0] sm:$0x1]
  %v1047 = vld [vmem:[#allocation2 + $0x1a4] sm:$0xf]
  %v1048 = vld [vmem:[#allocation2 + $0x1a8] sm:$0xf]
  %v1049 = vld [vmem:[#allocation2 + $0x1ac] sm:$0x1]
  %v1114 = vunpack.c.l.b16 %v942
  %v1115 = vunpack.c.l.b16 %v943
  %v1116 = vunpack.c.l.b16 %v945
  %v1117 = vunpack.c.l.b16 %v946
  %v1118 = vunpack.c.l.b16 %v948
  %v1119 = vunpack.c.l.b16 %v949
  %v1120 = vunpack.c.l.b16 %v951
  %v1121 = vunpack.c.l.b16 %v952
  %v1122 = vunpack.c.l.b16 %v954
  %v1123 = vunpack.c.l.b16 %v955
  %v1124 = vunpack.c.l.b16 %v957
  %v1125 = vunpack.c.l.b16 %v958
  %v1126 = vunpack.c.l.b16 %v960
  %v1127 = vunpack.c.l.b16 %v961
  %v1128 = vunpack.c.l.b16 %v963
  %v1129 = vunpack.c.l.b16 %v964
  %v1130 = vunpack.c.l.b16 %v966
  %v1131 = vunpack.c.l.b16 %v967
  %v1132 = vunpack.c.l.b16 %v969
  %v1133 = vunpack.c.l.b16 %v970
  %v1134 = vunpack.c.l.b16 %v972
  %v1135 = vunpack.c.l.b16 %v973
  %v1136 = vunpack.c.l.b16 %v975
  %v1137 = vunpack.c.l.b16 %v976
  %v1138 = vunpack.c.l.b16 %v978
  %v1139 = vunpack.c.l.b16 %v979
  %v1140 = vunpack.c.l.b16 %v981
  %v1141 = vunpack.c.l.b16 %v982
  %v1142 = vunpack.c.l.b16 %v984
  %v1143 = vunpack.c.l.b16 %v985
  %v1144 = vunpack.c.l.b16 %v987
  %v1145 = vunpack.c.l.b16 %v988
  %v1146 = vunpack.c.l.b16 %v996
  %v1147 = vunpack.c.l.b16 %v997
  %v1148 = vunpack.c.l.b16 %v999
  %v1149 = vunpack.c.l.b16 %v1000
  %v1150 = vunpack.c.l.b16 %v1002
  %v1151 = vunpack.c.l.b16 %v1003
  %v1152 = vunpack.c.l.b16 %v1005
  %v1153 = vunpack.c.l.b16 %v1006
  %v1154 = vunpack.c.l.b16 %v1008
  %v1155 = vunpack.c.l.b16 %v1009
  %v1156 = vunpack.c.l.b16 %v1011
  %v1157 = vunpack.c.l.b16 %v1012
  %v1158 = vunpack.c.l.b16 %v1014
  %v1159 = vunpack.c.l.b16 %v1015
  %v1160 = vunpack.c.l.b16 %v1017
  %v1161 = vunpack.c.l.b16 %v1018
  %v1162 = vunpack.c.l.b16 %v1020
  %v1163 = vunpack.c.l.b16 %v1021
  %v1164 = vunpack.c.l.b16 %v1023
  %v1165 = vunpack.c.l.b16 %v1024
  %v1166 = vunpack.c.l.b16 %v1026
  %v1167 = vunpack.c.l.b16 %v1027
  %v1168 = vunpack.c.l.b16 %v1029
  %v1169 = vunpack.c.l.b16 %v1030
  %v1170 = vunpack.c.l.b16 %v1032
  %v1171 = vunpack.c.l.b16 %v1033
  %v1172 = vunpack.c.l.b16 %v1035
  %v1173 = vunpack.c.l.b16 %v1036
  %v1174 = vunpack.c.l.b16 %v1038
  %v1175 = vunpack.c.l.b16 %v1039
  %v1176 = vunpack.c.l.b16 %v1041
  %v1177 = vunpack.c.l.b16 %v1042
  %v1178 = vpack.c.b16 %v1115, %v1114
  %v1179 = vpack.c.b16 %v1117, %v1116
  %v1180 = vpack.c.b16 %v1119, %v1118
  %v1181 = vpack.c.b16 %v1121, %v1120
  %v1182 = vpack.c.b16 %v1123, %v1122
  %v1183 = vpack.c.b16 %v1125, %v1124
  %v1184 = vpack.c.b16 %v1127, %v1126
  %v1185 = vpack.c.b16 %v1129, %v1128
  %v1186 = vpack.c.b16 %v1131, %v1130
  %v1187 = vpack.c.b16 %v1133, %v1132
  %v1188 = vpack.c.b16 %v1135, %v1134
  %v1189 = vpack.c.b16 %v1137, %v1136
  %v1190 = vpack.c.b16 %v1139, %v1138
  %v1191 = vpack.c.b16 %v1141, %v1140
  %v1192 = vpack.c.b16 %v1143, %v1142
  %v1193 = vpack.c.b16 %v1145, %v1144
  %v1194 = vpack.c.b16 %v1147, %v1146
  %v1195 = vpack.c.b16 %v1149, %v1148
  %v1196 = vpack.c.b16 %v1151, %v1150
  %v1197 = vpack.c.b16 %v1153, %v1152
  %v1198 = vpack.c.b16 %v1155, %v1154
  %v1199 = vpack.c.b16 %v1157, %v1156
  %v1200 = vpack.c.b16 %v1159, %v1158
  %v1201 = vpack.c.b16 %v1161, %v1160
  %v1202 = vpack.c.b16 %v1163, %v1162
  %v1203 = vpack.c.b16 %v1165, %v1164
  %v1204 = vpack.c.b16 %v1167, %v1166
  %v1205 = vpack.c.b16 %v1169, %v1168
  %v1206 = vpack.c.b16 %v1171, %v1170
  %v1207 = vpack.c.b16 %v1173, %v1172
  %v1208 = vpack.c.b16 %v1175, %v1174
  %v1209 = vpack.c.b16 %v1177, %v1176
  %v1242 = vunpack.c.l.b16 %v944
  %v1243 = vunpack.c.l.b16 %v947
  %v1244 = vunpack.c.l.b16 %v950
  %v1245 = vunpack.c.l.b16 %v953
  %v1246 = vunpack.c.l.b16 %v956
  %v1247 = vunpack.c.l.b16 %v959
  %v1248 = vunpack.c.l.b16 %v962
  %v1249 = vunpack.c.l.b16 %v965
  %v1250 = vunpack.c.l.b16 %v968
  %v1251 = vunpack.c.l.b16 %v971
  %v1252 = vunpack.c.l.b16 %v974
  %v1253 = vunpack.c.l.b16 %v977
  %v1254 = vunpack.c.l.b16 %v980
  %v1255 = vunpack.c.l.b16 %v983
  %v1256 = vunpack.c.l.b16 %v986
  %v1257 = vunpack.c.l.b16 %v989
  %v1258 = vunpack.c.l.b16 %v998
  %v1259 = vunpack.c.l.b16 %v1001
  %v1260 = vunpack.c.l.b16 %v1004
  %v1261 = vunpack.c.l.b16 %v1007
  %v1262 = vunpack.c.l.b16 %v1010
  %v1263 = vunpack.c.l.b16 %v1013
  %v1264 = vunpack.c.l.b16 %v1016
  %v1265 = vunpack.c.l.b16 %v1019
  %v1266 = vunpack.c.l.b16 %v1022
  %v1267 = vunpack.c.l.b16 %v1025
  %v1268 = vunpack.c.l.b16 %v1028
  %v1269 = vunpack.c.l.b16 %v1031
  %v1270 = vunpack.c.l.b16 %v1034
  %v1271 = vunpack.c.l.b16 %v1037
  %v1272 = vunpack.c.l.b16 %v1040
  %v1273 = vunpack.c.l.b16 %v1043
  %v1274 = vpack.c.b16 %v1242, %v1242
  %v1275 = vpack.c.b16 %v1243, %v1243
  %v1276 = vpack.c.b16 %v1244, %v1244
  %v1277 = vpack.c.b16 %v1245, %v1245
  %v1278 = vpack.c.b16 %v1246, %v1246
  %v1279 = vpack.c.b16 %v1247, %v1247
  %v1280 = vpack.c.b16 %v1248, %v1248
  %v1281 = vpack.c.b16 %v1249, %v1249
  %v1282 = vpack.c.b16 %v1250, %v1250
  %v1283 = vpack.c.b16 %v1251, %v1251
  %v1284 = vpack.c.b16 %v1252, %v1252
  %v1285 = vpack.c.b16 %v1253, %v1253
  %v1286 = vpack.c.b16 %v1254, %v1254
  %v1287 = vpack.c.b16 %v1255, %v1255
  %v1288 = vpack.c.b16 %v1256, %v1256
  %v1289 = vpack.c.b16 %v1257, %v1257
  %v1290 = vpack.c.b16 %v1258, %v1258
  %v1291 = vpack.c.b16 %v1259, %v1259
  %v1292 = vpack.c.b16 %v1260, %v1260
  %v1293 = vpack.c.b16 %v1261, %v1261
  %v1294 = vpack.c.b16 %v1262, %v1262
  %v1295 = vpack.c.b16 %v1263, %v1263
  %v1296 = vpack.c.b16 %v1264, %v1264
  %v1297 = vpack.c.b16 %v1265, %v1265
  %v1298 = vpack.c.b16 %v1266, %v1266
  %v1299 = vpack.c.b16 %v1267, %v1267
  %v1300 = vpack.c.b16 %v1268, %v1268
  %v1301 = vpack.c.b16 %v1269, %v1269
  %v1302 = vpack.c.b16 %v1270, %v1270
  %v1303 = vpack.c.b16 %v1271, %v1271
  %v1304 = vpack.c.b16 %v1272, %v1272
  %v1305 = vpack.c.b16 %v1273, %v1273
  %vm1306 = vsmask.f32 7424
  %v1308 = vshrl.u32 %v1178, 16
  %v1310 = vshll.u32 %v1178, 16
  %v1312 = vrot.slane %v1310, 1
  %v1313 = vor.u32 %v1308, %v1312
  %v1315 = vshll.u32 %v1274, 16
  %v1317 = vrot.slane %v1315, 1
  %v1318 = vsel %vm1306, %v1313, %v1317
  %v1320 = vshrl.u32 %v1179, 16
  %v1322 = vshll.u32 %v1179, 16
  %v1324 = vrot.slane %v1322, 1
  %v1325 = vor.u32 %v1320, %v1324
  %v1327 = vshll.u32 %v1275, 16
  %v1329 = vrot.slane %v1327, 1
  %v1330 = vsel %vm1306, %v1325, %v1329
  %v1332 = vshrl.u32 %v1180, 16
  %v1334 = vshll.u32 %v1180, 16
  %v1336 = vrot.slane %v1334, 1
  %v1337 = vor.u32 %v1332, %v1336
  %v1339 = vshll.u32 %v1276, 16
  %v1341 = vrot.slane %v1339, 1
  %v1342 = vsel %vm1306, %v1337, %v1341
  %v1344 = vshrl.u32 %v1181, 16
  %v1346 = vshll.u32 %v1181, 16
  %v1348 = vrot.slane %v1346, 1
  %v1349 = vor.u32 %v1344, %v1348
  %v1351 = vshll.u32 %v1277, 16
  %v1353 = vrot.slane %v1351, 1
  %v1354 = vsel %vm1306, %v1349, %v1353
  %v1356 = vshrl.u32 %v1182, 16
  %v1358 = vshll.u32 %v1182, 16
  %v1360 = vrot.slane %v1358, 1
  %v1361 = vor.u32 %v1356, %v1360
  %v1363 = vshll.u32 %v1278, 16
  %v1365 = vrot.slane %v1363, 1
  %v1366 = vsel %vm1306, %v1361, %v1365
  %v1368 = vshrl.u32 %v1183, 16
  %v1370 = vshll.u32 %v1183, 16
  %v1372 = vrot.slane %v1370, 1
  %v1373 = vor.u32 %v1368, %v1372
  %v1375 = vshll.u32 %v1279, 16
  %v1377 = vrot.slane %v1375, 1
  %v1378 = vsel %vm1306, %v1373, %v1377
  %v1380 = vshrl.u32 %v1184, 16
  %v1382 = vshll.u32 %v1184, 16
  %v1384 = vrot.slane %v1382, 1
  %v1385 = vor.u32 %v1380, %v1384
  %v1387 = vshll.u32 %v1280, 16
  %v1389 = vrot.slane %v1387, 1
  %v1390 = vsel %vm1306, %v1385, %v1389
  %v1392 = vshrl.u32 %v1185, 16
  %v1394 = vshll.u32 %v1185, 16
  %v1396 = vrot.slane %v1394, 1
  %v1397 = vor.u32 %v1392, %v1396
  %v1399 = vshll.u32 %v1281, 16
  %v1401 = vrot.slane %v1399, 1
  %v1402 = vsel %vm1306, %v1397, %v1401
  %v1404 = vshrl.u32 %v1186, 16
  %v1406 = vshll.u32 %v1186, 16
  %v1408 = vrot.slane %v1406, 1
  %v1409 = vor.u32 %v1404, %v1408
  %v1411 = vshll.u32 %v1282, 16
  %v1413 = vrot.slane %v1411, 1
  %v1414 = vsel %vm1306, %v1409, %v1413
  %v1416 = vshrl.u32 %v1187, 16
  %v1418 = vshll.u32 %v1187, 16
  %v1420 = vrot.slane %v1418, 1
  %v1421 = vor.u32 %v1416, %v1420
  %v1423 = vshll.u32 %v1283, 16
  %v1425 = vrot.slane %v1423, 1
  %v1426 = vsel %vm1306, %v1421, %v1425
  %v1428 = vshrl.u32 %v1188, 16
  %v1430 = vshll.u32 %v1188, 16
  %v1432 = vrot.slane %v1430, 1
  %v1433 = vor.u32 %v1428, %v1432
  %v1435 = vshll.u32 %v1284, 16
  %v1437 = vrot.slane %v1435, 1
  %v1438 = vsel %vm1306, %v1433, %v1437
  %v1440 = vshrl.u32 %v1189, 16
  %v1442 = vshll.u32 %v1189, 16
  %v1444 = vrot.slane %v1442, 1
  %v1445 = vor.u32 %v1440, %v1444
  %v1447 = vshll.u32 %v1285, 16
  %v1449 = vrot.slane %v1447, 1
  %v1450 = vsel %vm1306, %v1445, %v1449
  %v1452 = vshrl.u32 %v1190, 16
  %v1454 = vshll.u32 %v1190, 16
  %v1456 = vrot.slane %v1454, 1
  %v1457 = vor.u32 %v1452, %v1456
  %v1459 = vshll.u32 %v1286, 16
  %v1461 = vrot.slane %v1459, 1
  %v1462 = vsel %vm1306, %v1457, %v1461
  %v1464 = vshrl.u32 %v1191, 16
  %v1466 = vshll.u32 %v1191, 16
  %v1468 = vrot.slane %v1466, 1
  %v1469 = vor.u32 %v1464, %v1468
  %v1471 = vshll.u32 %v1287, 16
  %v1473 = vrot.slane %v1471, 1
  %v1474 = vsel %vm1306, %v1469, %v1473
  %v1476 = vshrl.u32 %v1192, 16
  %v1478 = vshll.u32 %v1192, 16
  %v1480 = vrot.slane %v1478, 1
  %v1481 = vor.u32 %v1476, %v1480
  %v1483 = vshll.u32 %v1288, 16
  %v1485 = vrot.slane %v1483, 1
  %v1486 = vsel %vm1306, %v1481, %v1485
  %v1488 = vshrl.u32 %v1193, 16
  %v1490 = vshll.u32 %v1193, 16
  %v1492 = vrot.slane %v1490, 1
  %v1493 = vor.u32 %v1488, %v1492
  %v1495 = vshll.u32 %v1289, 16
  %v1497 = vrot.slane %v1495, 1
  %v1498 = vsel %vm1306, %v1493, %v1497
  %v1500 = vshrl.u32 %v1194, 16
  %v1502 = vshll.u32 %v1194, 16
  %v1504 = vrot.slane %v1502, 1
  %v1505 = vor.u32 %v1500, %v1504
  %v1507 = vshll.u32 %v1290, 16
  %v1509 = vrot.slane %v1507, 1
  %v1510 = vsel %vm1306, %v1505, %v1509
  %v1512 = vshrl.u32 %v1195, 16
  %v1514 = vshll.u32 %v1195, 16
  %v1516 = vrot.slane %v1514, 1
  %v1517 = vor.u32 %v1512, %v1516
  %v1519 = vshll.u32 %v1291, 16
  %v1521 = vrot.slane %v1519, 1
  %v1522 = vsel %vm1306, %v1517, %v1521
  %v1524 = vshrl.u32 %v1196, 16
  %v1526 = vshll.u32 %v1196, 16
  %v1528 = vrot.slane %v1526, 1
  %v1529 = vor.u32 %v1524, %v1528
  %v1531 = vshll.u32 %v1292, 16
  %v1533 = vrot.slane %v1531, 1
  %v1534 = vsel %vm1306, %v1529, %v1533
  %v1536 = vshrl.u32 %v1197, 16
  %v1538 = vshll.u32 %v1197, 16
  %v1540 = vrot.slane %v1538, 1
  %v1541 = vor.u32 %v1536, %v1540
  %v1543 = vshll.u32 %v1293, 16
  %v1545 = vrot.slane %v1543, 1
  %v1546 = vsel %vm1306, %v1541, %v1545
  %v1548 = vshrl.u32 %v1198, 16
  %v1550 = vshll.u32 %v1198, 16
  %v1552 = vrot.slane %v1550, 1
  %v1553 = vor.u32 %v1548, %v1552
  %v1555 = vshll.u32 %v1294, 16
  %v1557 = vrot.slane %v1555, 1
  %v1558 = vsel %vm1306, %v1553, %v1557
  %v1560 = vshrl.u32 %v1199, 16
  %v1562 = vshll.u32 %v1199, 16
  %v1564 = vrot.slane %v1562, 1
  %v1565 = vor.u32 %v1560, %v1564
  %v1567 = vshll.u32 %v1295, 16
  %v1569 = vrot.slane %v1567, 1
  %v1570 = vsel %vm1306, %v1565, %v1569
  %v1572 = vshrl.u32 %v1200, 16
  %v1574 = vshll.u32 %v1200, 16
  %v1576 = vrot.slane %v1574, 1
  %v1577 = vor.u32 %v1572, %v1576
  %v1579 = vshll.u32 %v1296, 16
  %v1581 = vrot.slane %v1579, 1
  %v1582 = vsel %vm1306, %v1577, %v1581
  %v1584 = vshrl.u32 %v1201, 16
  %v1586 = vshll.u32 %v1201, 16
  %v1588 = vrot.slane %v1586, 1
  %v1589 = vor.u32 %v1584, %v1588
  %v1591 = vshll.u32 %v1297, 16
  %v1593 = vrot.slane %v1591, 1
  %v1594 = vsel %vm1306, %v1589, %v1593
  %v1596 = vshrl.u32 %v1202, 16
  %v1598 = vshll.u32 %v1202, 16
  %v1600 = vrot.slane %v1598, 1
  %v1601 = vor.u32 %v1596, %v1600
  %v1603 = vshll.u32 %v1298, 16
  %v1605 = vrot.slane %v1603, 1
  %v1606 = vsel %vm1306, %v1601, %v1605
  %v1608 = vshrl.u32 %v1203, 16
  %v1610 = vshll.u32 %v1203, 16
  %v1612 = vrot.slane %v1610, 1
  %v1613 = vor.u32 %v1608, %v1612
  %v1615 = vshll.u32 %v1299, 16
  %v1617 = vrot.slane %v1615, 1
  %v1618 = vsel %vm1306, %v1613, %v1617
  %v1620 = vshrl.u32 %v1204, 16
  %v1622 = vshll.u32 %v1204, 16
  %v1624 = vrot.slane %v1622, 1
  %v1625 = vor.u32 %v1620, %v1624
  %v1627 = vshll.u32 %v1300, 16
  %v1629 = vrot.slane %v1627, 1
  %v1630 = vsel %vm1306, %v1625, %v1629
  %v1632 = vshrl.u32 %v1205, 16
  %v1634 = vshll.u32 %v1205, 16
  %v1636 = vrot.slane %v1634, 1
  %v1637 = vor.u32 %v1632, %v1636
  %v1639 = vshll.u32 %v1301, 16
  %v1641 = vrot.slane %v1639, 1
  %v1642 = vsel %vm1306, %v1637, %v1641
  %v1644 = vshrl.u32 %v1206, 16
  %v1646 = vshll.u32 %v1206, 16
  %v1648 = vrot.slane %v1646, 1
  %v1649 = vor.u32 %v1644, %v1648
  %v1651 = vshll.u32 %v1302, 16
  %v1653 = vrot.slane %v1651, 1
  %v1654 = vsel %vm1306, %v1649, %v1653
  %v1656 = vshrl.u32 %v1207, 16
  %v1658 = vshll.u32 %v1207, 16
  %v1660 = vrot.slane %v1658, 1
  %v1661 = vor.u32 %v1656, %v1660
  %v1663 = vshll.u32 %v1303, 16
  %v1665 = vrot.slane %v1663, 1
  %v1666 = vsel %vm1306, %v1661, %v1665
  %v1668 = vshrl.u32 %v1208, 16
  %v1670 = vshll.u32 %v1208, 16
  %v1672 = vrot.slane %v1670, 1
  %v1673 = vor.u32 %v1668, %v1672
  %v1675 = vshll.u32 %v1304, 16
  %v1677 = vrot.slane %v1675, 1
  %v1678 = vsel %vm1306, %v1673, %v1677
  %v1680 = vshrl.u32 %v1209, 16
  %v1682 = vshll.u32 %v1209, 16
  %v1684 = vrot.slane %v1682, 1
  %v1685 = vor.u32 %v1680, %v1684
  %v1687 = vshll.u32 %v1305, 16
  %v1689 = vrot.slane %v1687, 1
  %v1690 = vsel %vm1306, %v1685, %v1689
  %1691 = vrot.lane.b32.xlu0 %v1318, 4
  %v1692 = vpop.permute.xlu0 %1691
  %1693 = vrot.lane.b32.xlu0 %v1330, 4
  %v1694 = vpop.permute.xlu0 %1693
  %1695 = vrot.lane.b32.xlu0 %v1342, 4
  %v1696 = vpop.permute.xlu0 %1695
  %1697 = vrot.lane.b32.xlu0 %v1354, 4
  %v1698 = vpop.permute.xlu0 %1697
  %1699 = vrot.lane.b32.xlu0 %v1366, 4
  %v1700 = vpop.permute.xlu0 %1699
  %1701 = vrot.lane.b32.xlu0 %v1378, 4
  %v1702 = vpop.permute.xlu0 %1701
  %1703 = vrot.lane.b32.xlu0 %v1390, 4
  %v1704 = vpop.permute.xlu0 %1703
  %1705 = vrot.lane.b32.xlu0 %v1402, 4
  %v1706 = vpop.permute.xlu0 %1705
  %1707 = vrot.lane.b32.xlu0 %v1414, 4
  %v1708 = vpop.permute.xlu0 %1707
  %1709 = vrot.lane.b32.xlu0 %v1426, 4
  %v1710 = vpop.permute.xlu0 %1709
  %1711 = vrot.lane.b32.xlu0 %v1438, 4
  %v1712 = vpop.permute.xlu0 %1711
  %1713 = vrot.lane.b32.xlu0 %v1450, 4
  %v1714 = vpop.permute.xlu0 %1713
  %1715 = vrot.lane.b32.xlu0 %v1462, 4
  %v1716 = vpop.permute.xlu0 %1715
  %1717 = vrot.lane.b32.xlu0 %v1474, 4
  %v1718 = vpop.permute.xlu0 %1717
  %1719 = vrot.lane.b32.xlu0 %v1486, 4
  %v1720 = vpop.permute.xlu0 %1719
  %1721 = vrot.lane.b32.xlu0 %v1498, 4
  %v1722 = vpop.permute.xlu0 %1721
  %1723 = vrot.lane.b32.xlu0 %v1510, 4
  %v1724 = vpop.permute.xlu0 %1723
  %1725 = vrot.lane.b32.xlu0 %v1522, 4
  %v1726 = vpop.permute.xlu0 %1725
  %1727 = vrot.lane.b32.xlu0 %v1534, 4
  %v1728 = vpop.permute.xlu0 %1727
  %1729 = vrot.lane.b32.xlu0 %v1546, 4
  %v1730 = vpop.permute.xlu0 %1729
  %1731 = vrot.lane.b32.xlu0 %v1558, 4
  %v1732 = vpop.permute.xlu0 %1731
  %1733 = vrot.lane.b32.xlu0 %v1570, 4
  %v1734 = vpop.permute.xlu0 %1733
  %1735 = vrot.lane.b32.xlu0 %v1582, 4
  %v1736 = vpop.permute.xlu0 %1735
  %1737 = vrot.lane.b32.xlu0 %v1594, 4
  %v1738 = vpop.permute.xlu0 %1737
  %1739 = vrot.lane.b32.xlu0 %v1606, 4
  %v1740 = vpop.permute.xlu0 %1739
  %1741 = vrot.lane.b32.xlu0 %v1618, 4
  %v1742 = vpop.permute.xlu0 %1741
  %1743 = vrot.lane.b32.xlu0 %v1630, 4
  %v1744 = vpop.permute.xlu0 %1743
  %1745 = vrot.lane.b32.xlu0 %v1642, 4
  %v1746 = vpop.permute.xlu0 %1745
  %1747 = vrot.lane.b32.xlu0 %v1654, 4
  %v1748 = vpop.permute.xlu0 %1747
  %1749 = vrot.lane.b32.xlu0 %v1666, 4
  %v1750 = vpop.permute.xlu0 %1749
  %1751 = vrot.lane.b32.xlu0 %v1678, 4
  %v1752 = vpop.permute.xlu0 %1751
  %1753 = vrot.lane.b32.xlu0 %v1690, 4
  %v1754 = vpop.permute.xlu0 %1753
  %vm1755 = vcmask 1046528
  %v1756 = vrot.slane %v1178, 1
  %v1757 = vrot.slane %v1274, 1
  %v1758 = vsel %vm1755, %v1756, %v1757
  %v1759 = vrot.slane %v1179, 1
  %v1760 = vrot.slane %v1275, 1
  %v1761 = vsel %vm1755, %v1759, %v1760
  %v1762 = vrot.slane %v1180, 1
  %v1763 = vrot.slane %v1276, 1
  %v1764 = vsel %vm1755, %v1762, %v1763
  %v1765 = vrot.slane %v1181, 1
  %v1766 = vrot.slane %v1277, 1
  %v1767 = vsel %vm1755, %v1765, %v1766
  %v1768 = vrot.slane %v1182, 1
  %v1769 = vrot.slane %v1278, 1
  %v1770 = vsel %vm1755, %v1768, %v1769
  %v1771 = vrot.slane %v1183, 1
  %v1772 = vrot.slane %v1279, 1
  %v1773 = vsel %vm1755, %v1771, %v1772
  %v1774 = vrot.slane %v1184, 1
  %v1775 = vrot.slane %v1280, 1
  %v1776 = vsel %vm1755, %v1774, %v1775
  %v1777 = vrot.slane %v1185, 1
  %v1778 = vrot.slane %v1281, 1
  %v1779 = vsel %vm1755, %v1777, %v1778
  %v1780 = vrot.slane %v1186, 1
  %v1781 = vrot.slane %v1282, 1
  %v1782 = vsel %vm1755, %v1780, %v1781
  %v1783 = vrot.slane %v1187, 1
  %v1784 = vrot.slane %v1283, 1
  %v1785 = vsel %vm1755, %v1783, %v1784
  %v1786 = vrot.slane %v1188, 1
  %v1787 = vrot.slane %v1284, 1
  %v1788 = vsel %vm1755, %v1786, %v1787
  %v1789 = vrot.slane %v1189, 1
  %v1790 = vrot.slane %v1285, 1
  %v1791 = vsel %vm1755, %v1789, %v1790
  %v1792 = vrot.slane %v1190, 1
  %v1793 = vrot.slane %v1286, 1
  %v1794 = vsel %vm1755, %v1792, %v1793
  %v1795 = vrot.slane %v1191, 1
  %v1796 = vrot.slane %v1287, 1
  %v1797 = vsel %vm1755, %v1795, %v1796
  %v1798 = vrot.slane %v1192, 1
  %v1799 = vrot.slane %v1288, 1
  %v1800 = vsel %vm1755, %v1798, %v1799
  %v1801 = vrot.slane %v1193, 1
  %v1802 = vrot.slane %v1289, 1
  %v1803 = vsel %vm1755, %v1801, %v1802
  %v1804 = vrot.slane %v1194, 1
  %v1805 = vrot.slane %v1290, 1
  %v1806 = vsel %vm1755, %v1804, %v1805
  %v1807 = vrot.slane %v1195, 1
  %v1808 = vrot.slane %v1291, 1
  %v1809 = vsel %vm1755, %v1807, %v1808
  %v1810 = vrot.slane %v1196, 1
  %v1811 = vrot.slane %v1292, 1
  %v1812 = vsel %vm1755, %v1810, %v1811
  %v1813 = vrot.slane %v1197, 1
  %v1814 = vrot.slane %v1293, 1
  %v1815 = vsel %vm1755, %v1813, %v1814
  %v1816 = vrot.slane %v1198, 1
  %v1817 = vrot.slane %v1294, 1
  %v1818 = vsel %vm1755, %v1816, %v1817
  %v1819 = vrot.slane %v1199, 1
  %v1820 = vrot.slane %v1295, 1
  %v1821 = vsel %vm1755, %v1819, %v1820
  %v1822 = vrot.slane %v1200, 1
  %v1823 = vrot.slane %v1296, 1
  %v1824 = vsel %vm1755, %v1822, %v1823
  %v1825 = vrot.slane %v1201, 1
  %v1826 = vrot.slane %v1297, 1
  %v1827 = vsel %vm1755, %v1825, %v1826
  %v1828 = vrot.slane %v1202, 1
  %v1829 = vrot.slane %v1298, 1
  %v1830 = vsel %vm1755, %v1828, %v1829
  %v1831 = vrot.slane %v1203, 1
  %v1832 = vrot.slane %v1299, 1
  %v1833 = vsel %vm1755, %v1831, %v1832
  %v1834 = vrot.slane %v1204, 1
  %v1835 = vrot.slane %v1300, 1
  %v1836 = vsel %vm1755, %v1834, %v1835
  %v1837 = vrot.slane %v1205, 1
  %v1838 = vrot.slane %v1301, 1
  %v1839 = vsel %vm1755, %v1837, %v1838
  %v1840 = vrot.slane %v1206, 1
  %v1841 = vrot.slane %v1302, 1
  %v1842 = vsel %vm1755, %v1840, %v1841
  %v1843 = vrot.slane %v1207, 1
  %v1844 = vrot.slane %v1303, 1
  %v1845 = vsel %vm1755, %v1843, %v1844
  %v1846 = vrot.slane %v1208, 1
  %v1847 = vrot.slane %v1304, 1
  %v1848 = vsel %vm1755, %v1846, %v1847
  %v1849 = vrot.slane %v1209, 1
  %v1850 = vrot.slane %v1305, 1
  %v1851 = vsel %vm1755, %v1849, %v1850
  %1852 = vrot.lane.b32.xlu0 %v1758, 8
  %v1853 = vpop.permute.xlu0 %1852
  %1854 = vrot.lane.b32.xlu0 %v1761, 8
  %v1855 = vpop.permute.xlu0 %1854
  %1856 = vrot.lane.b32.xlu0 %v1764, 8
  %v1857 = vpop.permute.xlu0 %1856
  %1858 = vrot.lane.b32.xlu0 %v1767, 8
  %v1859 = vpop.permute.xlu0 %1858
  %1860 = vrot.lane.b32.xlu0 %v1770, 8
  %v1861 = vpop.permute.xlu0 %1860
  %1862 = vrot.lane.b32.xlu0 %v1773, 8
  %v1863 = vpop.permute.xlu0 %1862
  %1864 = vrot.lane.b32.xlu0 %v1776, 8
  %v1865 = vpop.permute.xlu0 %1864
  %1866 = vrot.lane.b32.xlu0 %v1779, 8
  %v1867 = vpop.permute.xlu0 %1866
  %1868 = vrot.lane.b32.xlu0 %v1782, 8
  %v1869 = vpop.permute.xlu0 %1868
  %1870 = vrot.lane.b32.xlu0 %v1785, 8
  %v1871 = vpop.permute.xlu0 %1870
  %1872 = vrot.lane.b32.xlu0 %v1788, 8
  %v1873 = vpop.permute.xlu0 %1872
  %1874 = vrot.lane.b32.xlu0 %v1791, 8
  %v1875 = vpop.permute.xlu0 %1874
  %1876 = vrot.lane.b32.xlu0 %v1794, 8
  %v1877 = vpop.permute.xlu0 %1876
  %1878 = vrot.lane.b32.xlu0 %v1797, 8
  %v1879 = vpop.permute.xlu0 %1878
  %1880 = vrot.lane.b32.xlu0 %v1800, 8
  %v1881 = vpop.permute.xlu0 %1880
  %1882 = vrot.lane.b32.xlu0 %v1803, 8
  %v1883 = vpop.permute.xlu0 %1882
  %1884 = vrot.lane.b32.xlu0 %v1806, 8
  %v1885 = vpop.permute.xlu0 %1884
  %1886 = vrot.lane.b32.xlu0 %v1809, 8
  %v1887 = vpop.permute.xlu0 %1886
  %1888 = vrot.lane.b32.xlu0 %v1812, 8
  %v1889 = vpop.permute.xlu0 %1888
  %1890 = vrot.lane.b32.xlu0 %v1815, 8
  %v1891 = vpop.permute.xlu0 %1890
  %1892 = vrot.lane.b32.xlu0 %v1818, 8
  %v1893 = vpop.permute.xlu0 %1892
  %1894 = vrot.lane.b32.xlu0 %v1821, 8
  %v1895 = vpop.permute.xlu0 %1894
  %1896 = vrot.lane.b32.xlu0 %v1824, 8
  %v1897 = vpop.permute.xlu0 %1896
  %1898 = vrot.lane.b32.xlu0 %v1827, 8
  %v1899 = vpop.permute.xlu0 %1898
  %1900 = vrot.lane.b32.xlu0 %v1830, 8
  %v1901 = vpop.permute.xlu0 %1900
  %1902 = vrot.lane.b32.xlu0 %v1833, 8
  %v1903 = vpop.permute.xlu0 %1902
  %1904 = vrot.lane.b32.xlu0 %v1836, 8
  %v1905 = vpop.permute.xlu0 %1904
  %1906 = vrot.lane.b32.xlu0 %v1839, 8
  %v1907 = vpop.permute.xlu0 %1906
  %1908 = vrot.lane.b32.xlu0 %v1842, 8
  %v1909 = vpop.permute.xlu0 %1908
  %1910 = vrot.lane.b32.xlu0 %v1845, 8
  %v1911 = vpop.permute.xlu0 %1910
  %1912 = vrot.lane.b32.xlu0 %v1848, 8
  %v1913 = vpop.permute.xlu0 %1912
  %1914 = vrot.lane.b32.xlu0 %v1851, 8
  %v1915 = vpop.permute.xlu0 %1914
  %v1920 = vunpack.c.l.b16 %v990
  %v1921 = vunpack.c.l.b16 %v991
  %v1922 = vunpack.c.l.b16 %v1044
  %v1923 = vunpack.c.l.b16 %v1045
  %v1924 = vpack.c.b16 %v1921, %v1920
  %v1925 = vpack.c.b16 %v1923, %v1922
  %1926 = vrot.lane.b32.xlu0 %v1179, 12
  %v1927 = vpop.permute.xlu0 %1926
  %1928 = vrot.lane.b32.xlu0 %v1180, 12
  %v1929 = vpop.permute.xlu0 %1928
  %1930 = vrot.lane.b32.xlu0 %v1181, 12
  %v1931 = vpop.permute.xlu0 %1930
  %1932 = vrot.lane.b32.xlu0 %v1182, 12
  %v1933 = vpop.permute.xlu0 %1932
  %1934 = vrot.lane.b32.xlu0 %v1183, 12
  %v1935 = vpop.permute.xlu0 %1934
  %1936 = vrot.lane.b32.xlu0 %v1184, 12
  %v1937 = vpop.permute.xlu0 %1936
  %1938 = vrot.lane.b32.xlu0 %v1185, 12
  %v1939 = vpop.permute.xlu0 %1938
  %1940 = vrot.lane.b32.xlu0 %v1186, 12
  %v1941 = vpop.permute.xlu0 %1940
  %1942 = vrot.lane.b32.xlu0 %v1187, 12
  %v1943 = vpop.permute.xlu0 %1942
  %1944 = vrot.lane.b32.xlu0 %v1188, 12
  %v1945 = vpop.permute.xlu0 %1944
  %1946 = vrot.lane.b32.xlu0 %v1189, 12
  %v1947 = vpop.permute.xlu0 %1946
  %1948 = vrot.lane.b32.xlu0 %v1190, 12
  %v1949 = vpop.permute.xlu0 %1948
  %1950 = vrot.lane.b32.xlu0 %v1191, 12
  %v1951 = vpop.permute.xlu0 %1950
  %1952 = vrot.lane.b32.xlu0 %v1192, 12
  %v1953 = vpop.permute.xlu0 %1952
  %1954 = vrot.lane.b32.xlu0 %v1193, 12
  %v1955 = vpop.permute.xlu0 %1954
  %1956 = vrot.lane.b32.xlu0 %v1924, 12
  %v1957 = vpop.permute.xlu0 %1956
  %1958 = vrot.lane.b32.xlu0 %v1195, 12
  %v1959 = vpop.permute.xlu0 %1958
  %1960 = vrot.lane.b32.xlu0 %v1196, 12
  %v1961 = vpop.permute.xlu0 %1960
  %1962 = vrot.lane.b32.xlu0 %v1197, 12
  %v1963 = vpop.permute.xlu0 %1962
  %1964 = vrot.lane.b32.xlu0 %v1198, 12
  %v1965 = vpop.permute.xlu0 %1964
  %1966 = vrot.lane.b32.xlu0 %v1199, 12
  %v1967 = vpop.permute.xlu0 %1966
  %1968 = vrot.lane.b32.xlu0 %v1200, 12
  %v1969 = vpop.permute.xlu0 %1968
  %1970 = vrot.lane.b32.xlu0 %v1201, 12
  %v1971 = vpop.permute.xlu0 %1970
  %1972 = vrot.lane.b32.xlu0 %v1202, 12
  %v1973 = vpop.permute.xlu0 %1972
  %1974 = vrot.lane.b32.xlu0 %v1203, 12
  %v1975 = vpop.permute.xlu0 %1974
  %1976 = vrot.lane.b32.xlu0 %v1204, 12
  %v1977 = vpop.permute.xlu0 %1976
  %1978 = vrot.lane.b32.xlu0 %v1205, 12
  %v1979 = vpop.permute.xlu0 %1978
  %1980 = vrot.lane.b32.xlu0 %v1206, 12
  %v1981 = vpop.permute.xlu0 %1980
  %1982 = vrot.lane.b32.xlu0 %v1207, 12
  %v1983 = vpop.permute.xlu0 %1982
  %1984 = vrot.lane.b32.xlu0 %v1208, 12
  %v1985 = vpop.permute.xlu0 %1984
  %1986 = vrot.lane.b32.xlu0 %v1209, 12
  %v1987 = vpop.permute.xlu0 %1986
  %1988 = vrot.lane.b32.xlu0 %v1925, 12
  %v1989 = vpop.permute.xlu0 %1988
  %v1992 = vunpack.c.l.b16 %v992
  %v1993 = vunpack.c.l.b16 %v1046
  %v1994 = vpack.c.b16 %v1992, %v1992
  %v1995 = vpack.c.b16 %v1993, %v1993
  %v1997 = vshrl.u32 %v1924, 16
  %v1999 = vshll.u32 %v1924, 16
  %v2001 = vrot.slane %v1999, 1
  %v2002 = vor.u32 %v1997, %v2001
  %v2004 = vshll.u32 %v1994, 16
  %v2006 = vrot.slane %v2004, 1
  %v2007 = vsel %vm1306, %v2002, %v2006
  %v2009 = vshrl.u32 %v1925, 16
  %v2011 = vshll.u32 %v1925, 16
  %v2013 = vrot.slane %v2011, 1
  %v2014 = vor.u32 %v2009, %v2013
  %v2016 = vshll.u32 %v1995, 16
  %v2018 = vrot.slane %v2016, 1
  %v2019 = vsel %vm1306, %v2014, %v2018
  %2020 = vrot.lane.b32.xlu0 %v1330, 16
  %v2021 = vpop.permute.xlu0 %2020
  %2022 = vrot.lane.b32.xlu0 %v1342, 16
  %v2023 = vpop.permute.xlu0 %2022
  %2024 = vrot.lane.b32.xlu0 %v1354, 16
  %v2025 = vpop.permute.xlu0 %2024
  %2026 = vrot.lane.b32.xlu0 %v1366, 16
  %v2027 = vpop.permute.xlu0 %2026
  %2028 = vrot.lane.b32.xlu0 %v1378, 16
  %v2029 = vpop.permute.xlu0 %2028
  %2030 = vrot.lane.b32.xlu0 %v1390, 16
  %v2031 = vpop.permute.xlu0 %2030
  %2032 = vrot.lane.b32.xlu0 %v1402, 16
  %v2033 = vpop.permute.xlu0 %2032
  %2034 = vrot.lane.b32.xlu0 %v1414, 16
  %v2035 = vpop.permute.xlu0 %2034
  %2036 = vrot.lane.b32.xlu0 %v1426, 16
  %v2037 = vpop.permute.xlu0 %2036
  %2038 = vrot.lane.b32.xlu0 %v1438, 16
  %v2039 = vpop.permute.xlu0 %2038
  %2040 = vrot.lane.b32.xlu0 %v1450, 16
  %v2041 = vpop.permute.xlu0 %2040
  %2042 = vrot.lane.b32.xlu0 %v1462, 16
  %v2043 = vpop.permute.xlu0 %2042
  %2044 = vrot.lane.b32.xlu0 %v1474, 16
  %v2045 = vpop.permute.xlu0 %2044
  %2046 = vrot.lane.b32.xlu0 %v1486, 16
  %v2047 = vpop.permute.xlu0 %2046
  %2048 = vrot.lane.b32.xlu0 %v1498, 16
  %v2049 = vpop.permute.xlu0 %2048
  %2050 = vrot.lane.b32.xlu0 %v2007, 16
  %v2051 = vpop.permute.xlu0 %2050
  %2052 = vrot.lane.b32.xlu0 %v1522, 16
  %v2053 = vpop.permute.xlu0 %2052
  %2054 = vrot.lane.b32.xlu0 %v1534, 16
  %v2055 = vpop.permute.xlu0 %2054
  %2056 = vrot.lane.b32.xlu0 %v1546, 16
  %v2057 = vpop.permute.xlu0 %2056
  %2058 = vrot.lane.b32.xlu0 %v1558, 16
  %v2059 = vpop.permute.xlu0 %2058
  %2060 = vrot.lane.b32.xlu0 %v1570, 16
  %v2061 = vpop.permute.xlu0 %2060
  %2062 = vrot.lane.b32.xlu0 %v1582, 16
  %v2063 = vpop.permute.xlu0 %2062
  %2064 = vrot.lane.b32.xlu0 %v1594, 16
  %v2065 = vpop.permute.xlu0 %2064
  %2066 = vrot.lane.b32.xlu0 %v1606, 16
  %v2067 = vpop.permute.xlu0 %2066
  %2068 = vrot.lane.b32.xlu0 %v1618, 16
  %v2069 = vpop.permute.xlu0 %2068
  %2070 = vrot.lane.b32.xlu0 %v1630, 16
  %v2071 = vpop.permute.xlu0 %2070
  %2072 = vrot.lane.b32.xlu0 %v1642, 16
  %v2073 = vpop.permute.xlu0 %2072
  %2074 = vrot.lane.b32.xlu0 %v1654, 16
  %v2075 = vpop.permute.xlu0 %2074
  %2076 = vrot.lane.b32.xlu0 %v1666, 16
  %v2077 = vpop.permute.xlu0 %2076
  %2078 = vrot.lane.b32.xlu0 %v1678, 16
  %v2079 = vpop.permute.xlu0 %2078
  %2080 = vrot.lane.b32.xlu0 %v1690, 16
  %v2081 = vpop.permute.xlu0 %2080
  %2082 = vrot.lane.b32.xlu0 %v2019, 16
  %v2083 = vpop.permute.xlu0 %2082
  %v2084 = vrot.slane %v1924, 1
  %v2085 = vrot.slane %v1994, 1
  %v2086 = vsel %vm1755, %v2084, %v2085
  %v2087 = vrot.slane %v1925, 1
  %v2088 = vrot.slane %v1995, 1
  %v2089 = vsel %vm1755, %v2087, %v2088
  %2090 = vrot.lane.b32.xlu0 %v1761, 20
  %v2091 = vpop.permute.xlu0 %2090
  %2092 = vrot.lane.b32.xlu0 %v1764, 20
  %v2093 = vpop.permute.xlu0 %2092
  %2094 = vrot.lane.b32.xlu0 %v1767, 20
  %v2095 = vpop.permute.xlu0 %2094
  %2096 = vrot.lane.b32.xlu0 %v1770, 20
  %v2097 = vpop.permute.xlu0 %2096
  %2098 = vrot.lane.b32.xlu0 %v1773, 20
  %v2099 = vpop.permute.xlu0 %2098
  %2100 = vrot.lane.b32.xlu0 %v1776, 20
  %v2101 = vpop.permute.xlu0 %2100
  %2102 = vrot.lane.b32.xlu0 %v1779, 20
  %v2103 = vpop.permute.xlu0 %2102
  %2104 = vrot.lane.b32.xlu0 %v1782, 20
  %v2105 = vpop.permute.xlu0 %2104
  %2106 = vrot.lane.b32.xlu0 %v1785, 20
  %v2107 = vpop.permute.xlu0 %2106
  %2108 = vrot.lane.b32.xlu0 %v1788, 20
  %v2109 = vpop.permute.xlu0 %2108
  %2110 = vrot.lane.b32.xlu0 %v1791, 20
  %v2111 = vpop.permute.xlu0 %2110
  %2112 = vrot.lane.b32.xlu0 %v1794, 20
  %v2113 = vpop.permute.xlu0 %2112
  %2114 = vrot.lane.b32.xlu0 %v1797, 20
  %v2115 = vpop.permute.xlu0 %2114
  %2116 = vrot.lane.b32.xlu0 %v1800, 20
  %v2117 = vpop.permute.xlu0 %2116
  %2118 = vrot.lane.b32.xlu0 %v1803, 20
  %v2119 = vpop.permute.xlu0 %2118
  %2120 = vrot.lane.b32.xlu0 %v2086, 20
  %v2121 = vpop.permute.xlu0 %2120
  %2122 = vrot.lane.b32.xlu0 %v1809, 20
  %v2123 = vpop.permute.xlu0 %2122
  %2124 = vrot.lane.b32.xlu0 %v1812, 20
  %v2125 = vpop.permute.xlu0 %2124
  %2126 = vrot.lane.b32.xlu0 %v1815, 20
  %v2127 = vpop.permute.xlu0 %2126
  %2128 = vrot.lane.b32.xlu0 %v1818, 20
  %v2129 = vpop.permute.xlu0 %2128
  %2130 = vrot.lane.b32.xlu0 %v1821, 20
  %v2131 = vpop.permute.xlu0 %2130
  %2132 = vrot.lane.b32.xlu0 %v1824, 20
  %v2133 = vpop.permute.xlu0 %2132
  %2134 = vrot.lane.b32.xlu0 %v1827, 20
  %v2135 = vpop.permute.xlu0 %2134
  %2136 = vrot.lane.b32.xlu0 %v1830, 20
  %v2137 = vpop.permute.xlu0 %2136
  %2138 = vrot.lane.b32.xlu0 %v1833, 20
  %v2139 = vpop.permute.xlu0 %2138
  %2140 = vrot.lane.b32.xlu0 %v1836, 20
  %v2141 = vpop.permute.xlu0 %2140
  %2142 = vrot.lane.b32.xlu0 %v1839, 20
  %v2143 = vpop.permute.xlu0 %2142
  %2144 = vrot.lane.b32.xlu0 %v1842, 20
  %v2145 = vpop.permute.xlu0 %2144
  %2146 = vrot.lane.b32.xlu0 %v1845, 20
  %v2147 = vpop.permute.xlu0 %2146
  %2148 = vrot.lane.b32.xlu0 %v1848, 20
  %v2149 = vpop.permute.xlu0 %2148
  %2150 = vrot.lane.b32.xlu0 %v1851, 20
  %v2151 = vpop.permute.xlu0 %2150
  %2152 = vrot.lane.b32.xlu0 %v2089, 20
  %v2153 = vpop.permute.xlu0 %2152
  %v2158 = vunpack.c.l.b16 %v993
  %v2159 = vunpack.c.l.b16 %v994
  %v2160 = vunpack.c.l.b16 %v1047
  %v2161 = vunpack.c.l.b16 %v1048
  %v2162 = vpack.c.b16 %v2159, %v2158
  %v2163 = vpack.c.b16 %v2161, %v2160
  %2164 = vrot.lane.b32.xlu0 %v1180, 24
  %v2165 = vpop.permute.xlu0 %2164
  %2166 = vrot.lane.b32.xlu0 %v1181, 24
  %v2167 = vpop.permute.xlu0 %2166
  %2168 = vrot.lane.b32.xlu0 %v1182, 24
  %v2169 = vpop.permute.xlu0 %2168
  %2170 = vrot.lane.b32.xlu0 %v1183, 24
  %v2171 = vpop.permute.xlu0 %2170
  %2172 = vrot.lane.b32.xlu0 %v1184, 24
  %v2173 = vpop.permute.xlu0 %2172
  %2174 = vrot.lane.b32.xlu0 %v1185, 24
  %v2175 = vpop.permute.xlu0 %2174
  %2176 = vrot.lane.b32.xlu0 %v1186, 24
  %v2177 = vpop.permute.xlu0 %2176
  %2178 = vrot.lane.b32.xlu0 %v1187, 24
  %v2179 = vpop.permute.xlu0 %2178
  %2180 = vrot.lane.b32.xlu0 %v1188, 24
  %v2181 = vpop.permute.xlu0 %2180
  %2182 = vrot.lane.b32.xlu0 %v1189, 24
  %v2183 = vpop.permute.xlu0 %2182
  %2184 = vrot.lane.b32.xlu0 %v1190, 24
  %v2185 = vpop.permute.xlu0 %2184
  %2186 = vrot.lane.b32.xlu0 %v1191, 24
  %v2187 = vpop.permute.xlu0 %2186
  %2188 = vrot.lane.b32.xlu0 %v1192, 24
  %v2189 = vpop.permute.xlu0 %2188
  %2190 = vrot.lane.b32.xlu0 %v1193, 24
  %v2191 = vpop.permute.xlu0 %2190
  %2192 = vrot.lane.b32.xlu0 %v1924, 24
  %v2193 = vpop.permute.xlu0 %2192
  %2194 = vrot.lane.b32.xlu0 %v2162, 24
  %v2195 = vpop.permute.xlu0 %2194
  %2196 = vrot.lane.b32.xlu0 %v1196, 24
  %v2197 = vpop.permute.xlu0 %2196
  %2198 = vrot.lane.b32.xlu0 %v1197, 24
  %v2199 = vpop.permute.xlu0 %2198
  %2200 = vrot.lane.b32.xlu0 %v1198, 24
  %v2201 = vpop.permute.xlu0 %2200
  %2202 = vrot.lane.b32.xlu0 %v1199, 24
  %v2203 = vpop.permute.xlu0 %2202
  %2204 = vrot.lane.b32.xlu0 %v1200, 24
  %v2205 = vpop.permute.xlu0 %2204
  %2206 = vrot.lane.b32.xlu0 %v1201, 24
  %v2207 = vpop.permute.xlu0 %2206
  %2208 = vrot.lane.b32.xlu0 %v1202, 24
  %v2209 = vpop.permute.xlu0 %2208
  %2210 = vrot.lane.b32.xlu0 %v1203, 24
  %v2211 = vpop.permute.xlu0 %2210
  %2212 = vrot.lane.b32.xlu0 %v1204, 24
  %v2213 = vpop.permute.xlu0 %2212
  %2214 = vrot.lane.b32.xlu0 %v1205, 24
  %v2215 = vpop.permute.xlu0 %2214
  %2216 = vrot.lane.b32.xlu0 %v1206, 24
  %v2217 = vpop.permute.xlu0 %2216
  %2218 = vrot.lane.b32.xlu0 %v1207, 24
  %v2219 = vpop.permute.xlu0 %2218
  %2220 = vrot.lane.b32.xlu0 %v1208, 24
  %v2221 = vpop.permute.xlu0 %2220
  %2222 = vrot.lane.b32.xlu0 %v1209, 24
  %v2223 = vpop.permute.xlu0 %2222
  %2224 = vrot.lane.b32.xlu0 %v1925, 24
  %v2225 = vpop.permute.xlu0 %2224
  %2226 = vrot.lane.b32.xlu0 %v2163, 24
  %v2227 = vpop.permute.xlu0 %2226
  %v2230 = vunpack.c.l.b16 %v995
  %v2231 = vunpack.c.l.b16 %v1049
  %v2232 = vpack.c.b16 %v2230, %v2230
  %v2233 = vpack.c.b16 %v2231, %v2231
  %v2235 = vshrl.u32 %v2162, 16
  %v2237 = vshll.u32 %v2162, 16
  %v2239 = vrot.slane %v2237, 1
  %v2240 = vor.u32 %v2235, %v2239
  %v2242 = vshll.u32 %v2232, 16
  %v2244 = vrot.slane %v2242, 1
  %v2245 = vsel %vm1306, %v2240, %v2244
  %v2247 = vshrl.u32 %v2163, 16
  %v2249 = vshll.u32 %v2163, 16
  %v2251 = vrot.slane %v2249, 1
  %v2252 = vor.u32 %v2247, %v2251
  %v2254 = vshll.u32 %v2233, 16
  %v2256 = vrot.slane %v2254, 1
  %v2257 = vsel %vm1306, %v2252, %v2256
  %2258 = vrot.lane.b32.xlu0 %v1342, 28
  %v2259 = vpop.permute.xlu0 %2258
  %2260 = vrot.lane.b32.xlu0 %v1354, 28
  %v2261 = vpop.permute.xlu0 %2260
  %2262 = vrot.lane.b32.xlu0 %v1366, 28
  %v2263 = vpop.permute.xlu0 %2262
  %2264 = vrot.lane.b32.xlu0 %v1378, 28
  %v2265 = vpop.permute.xlu0 %2264
  %2266 = vrot.lane.b32.xlu0 %v1390, 28
  %v2267 = vpop.permute.xlu0 %2266
  %2268 = vrot.lane.b32.xlu0 %v1402, 28
  %v2269 = vpop.permute.xlu0 %2268
  %2270 = vrot.lane.b32.xlu0 %v1414, 28
  %v2271 = vpop.permute.xlu0 %2270
  %2272 = vrot.lane.b32.xlu0 %v1426, 28
  %v2273 = vpop.permute.xlu0 %2272
  %2274 = vrot.lane.b32.xlu0 %v1438, 28
  %v2275 = vpop.permute.xlu0 %2274
  %2276 = vrot.lane.b32.xlu0 %v1450, 28
  %v2277 = vpop.permute.xlu0 %2276
  %2278 = vrot.lane.b32.xlu0 %v1462, 28
  %v2279 = vpop.permute.xlu0 %2278
  %2280 = vrot.lane.b32.xlu0 %v1474, 28
  %v2281 = vpop.permute.xlu0 %2280
  %2282 = vrot.lane.b32.xlu0 %v1486, 28
  %v2283 = vpop.permute.xlu0 %2282
  %2284 = vrot.lane.b32.xlu0 %v1498, 28
  %v2285 = vpop.permute.xlu0 %2284
  %2286 = vrot.lane.b32.xlu0 %v2007, 28
  %v2287 = vpop.permute.xlu0 %2286
  %2288 = vrot.lane.b32.xlu0 %v2245, 28
  %v2289 = vpop.permute.xlu0 %2288
  %2290 = vrot.lane.b32.xlu0 %v1534, 28
  %v2291 = vpop.permute.xlu0 %2290
  %2292 = vrot.lane.b32.xlu0 %v1546, 28
  %v2293 = vpop.permute.xlu0 %2292
  %2294 = vrot.lane.b32.xlu0 %v1558, 28
  %v2295 = vpop.permute.xlu0 %2294
  %2296 = vrot.lane.b32.xlu0 %v1570, 28
  %v2297 = vpop.permute.xlu0 %2296
  %2298 = vrot.lane.b32.xlu0 %v1582, 28
  %v2299 = vpop.permute.xlu0 %2298
  %2300 = vrot.lane.b32.xlu0 %v1594, 28
  %v2301 = vpop.permute.xlu0 %2300
  %2302 = vrot.lane.b32.xlu0 %v1606, 28
  %v2303 = vpop.permute.xlu0 %2302
  %2304 = vrot.lane.b32.xlu0 %v1618, 28
  %v2305 = vpop.permute.xlu0 %2304
  %2306 = vrot.lane.b32.xlu0 %v1630, 28
  %v2307 = vpop.permute.xlu0 %2306
  %2308 = vrot.lane.b32.xlu0 %v1642, 28
  %v2309 = vpop.permute.xlu0 %2308
  %2310 = vrot.lane.b32.xlu0 %v1654, 28
  %v2311 = vpop.permute.xlu0 %2310
  %2312 = vrot.lane.b32.xlu0 %v1666, 28
  %v2313 = vpop.permute.xlu0 %2312
  %2314 = vrot.lane.b32.xlu0 %v1678, 28
  %v2315 = vpop.permute.xlu0 %2314
  %2316 = vrot.lane.b32.xlu0 %v1690, 28
  %v2317 = vpop.permute.xlu0 %2316
  %2318 = vrot.lane.b32.xlu0 %v2019, 28
  %v2319 = vpop.permute.xlu0 %2318
  %2320 = vrot.lane.b32.xlu0 %v2257, 28
  %v2321 = vpop.permute.xlu0 %2320
  %v2322 = vrot.slane %v2162, 1
  %v2323 = vrot.slane %v2232, 1
  %v2324 = vsel %vm1755, %v2322, %v2323
  %v2325 = vrot.slane %v2163, 1
  %v2326 = vrot.slane %v2233, 1
  %v2327 = vsel %vm1755, %v2325, %v2326
  %2328 = vrot.lane.b32.xlu0 %v1764, 32
  %v2329 = vpop.permute.xlu0 %2328
  %2330 = vrot.lane.b32.xlu0 %v1767, 32
  %v2331 = vpop.permute.xlu0 %2330
  %2332 = vrot.lane.b32.xlu0 %v1770, 32
  %v2333 = vpop.permute.xlu0 %2332
  %2334 = vrot.lane.b32.xlu0 %v1773, 32
  %v2335 = vpop.permute.xlu0 %2334
  %2336 = vrot.lane.b32.xlu0 %v1776, 32
  %v2337 = vpop.permute.xlu0 %2336
  %2338 = vrot.lane.b32.xlu0 %v1779, 32
  %v2339 = vpop.permute.xlu0 %2338
  %2340 = vrot.lane.b32.xlu0 %v1782, 32
  %v2341 = vpop.permute.xlu0 %2340
  %2342 = vrot.lane.b32.xlu0 %v1785, 32
  %v2343 = vpop.permute.xlu0 %2342
  %2344 = vrot.lane.b32.xlu0 %v1788, 32
  %v2345 = vpop.permute.xlu0 %2344
  %2346 = vrot.lane.b32.xlu0 %v1791, 32
  %v2347 = vpop.permute.xlu0 %2346
  %2348 = vrot.lane.b32.xlu0 %v1794, 32
  %v2349 = vpop.permute.xlu0 %2348
  %2350 = vrot.lane.b32.xlu0 %v1797, 32
  %v2351 = vpop.permute.xlu0 %2350
  %2352 = vrot.lane.b32.xlu0 %v1800, 32
  %v2353 = vpop.permute.xlu0 %2352
  %2354 = vrot.lane.b32.xlu0 %v1803, 32
  %v2355 = vpop.permute.xlu0 %2354
  %2356 = vrot.lane.b32.xlu0 %v2086, 32
  %v2357 = vpop.permute.xlu0 %2356
  %2358 = vrot.lane.b32.xlu0 %v2324, 32
  %v2359 = vpop.permute.xlu0 %2358
  %2360 = vrot.lane.b32.xlu0 %v1812, 32
  %v2361 = vpop.permute.xlu0 %2360
  %2362 = vrot.lane.b32.xlu0 %v1815, 32
  %v2363 = vpop.permute.xlu0 %2362
  %2364 = vrot.lane.b32.xlu0 %v1818, 32
  %v2365 = vpop.permute.xlu0 %2364
  %2366 = vrot.lane.b32.xlu0 %v1821, 32
  %v2367 = vpop.permute.xlu0 %2366
  %2368 = vrot.lane.b32.xlu0 %v1824, 32
  %v2369 = vpop.permute.xlu0 %2368
  %2370 = vrot.lane.b32.xlu0 %v1827, 32
  %v2371 = vpop.permute.xlu0 %2370
  %2372 = vrot.lane.b32.xlu0 %v1830, 32
  %v2373 = vpop.permute.xlu0 %2372
  %2374 = vrot.lane.b32.xlu0 %v1833, 32
  %v2375 = vpop.permute.xlu0 %2374
  %2376 = vrot.lane.b32.xlu0 %v1836, 32
  %v2377 = vpop.permute.xlu0 %2376
  %2378 = vrot.lane.b32.xlu0 %v1839, 32
  %v2379 = vpop.permute.xlu0 %2378
  %2380 = vrot.lane.b32.xlu0 %v1842, 32
  %v2381 = vpop.permute.xlu0 %2380
  %2382 = vrot.lane.b32.xlu0 %v1845, 32
  %v2383 = vpop.permute.xlu0 %2382
  %2384 = vrot.lane.b32.xlu0 %v1848, 32
  %v2385 = vpop.permute.xlu0 %2384
  %2386 = vrot.lane.b32.xlu0 %v1851, 32
  %v2387 = vpop.permute.xlu0 %2386
  %2388 = vrot.lane.b32.xlu0 %v2089, 32
  %v2389 = vpop.permute.xlu0 %2388
  %2390 = vrot.lane.b32.xlu0 %v2327, 32
  %v2391 = vpop.permute.xlu0 %2390
  %vm2392 = vcmask 31744
  %v2394 = vsel %vm2392, %v1178, %v1692
  %v2396 = vsel %vm2392, %v1179, %v1694
  %v2398 = vsel %vm2392, %v1180, %v1696
  %v2400 = vsel %vm2392, %v1181, %v1698
  %v2402 = vsel %vm2392, %v1182, %v1700
  %v2404 = vsel %vm2392, %v1183, %v1702
  %v2406 = vsel %vm2392, %v1184, %v1704
  %v2408 = vsel %vm2392, %v1185, %v1706
  %v2410 = vsel %vm2392, %v1186, %v1708
  %v2412 = vsel %vm2392, %v1187, %v1710
  %v2414 = vsel %vm2392, %v1188, %v1712
  %v2416 = vsel %vm2392, %v1189, %v1714
  %v2418 = vsel %vm2392, %v1190, %v1716
  %v2420 = vsel %vm2392, %v1191, %v1718
  %v2422 = vsel %vm2392, %v1192, %v1720
  %v2424 = vsel %vm2392, %v1193, %v1722
  %v2426 = vsel %vm2392, %v1194, %v1724
  %v2428 = vsel %vm2392, %v1195, %v1726
  %v2430 = vsel %vm2392, %v1196, %v1728
  %v2432 = vsel %vm2392, %v1197, %v1730
  %v2434 = vsel %vm2392, %v1198, %v1732
  %v2436 = vsel %vm2392, %v1199, %v1734
  %v2438 = vsel %vm2392, %v1200, %v1736
  %v2440 = vsel %vm2392, %v1201, %v1738
  %v2442 = vsel %vm2392, %v1202, %v1740
  %v2444 = vsel %vm2392, %v1203, %v1742
  %v2446 = vsel %vm2392, %v1204, %v1744
  %v2448 = vsel %vm2392, %v1205, %v1746
  %v2450 = vsel %vm2392, %v1206, %v1748
  %v2452 = vsel %vm2392, %v1207, %v1750
  %v2454 = vsel %vm2392, %v1208, %v1752
  %v2456 = vsel %vm2392, %v1209, %v1754
  %vm2457 = vcmask 64512
  %v2459 = vsel %vm2457, %v2394, %v1853
  %v2461 = vsel %vm2457, %v2396, %v1855
  %v2463 = vsel %vm2457, %v2398, %v1857
  %v2465 = vsel %vm2457, %v2400, %v1859
  %v2467 = vsel %vm2457, %v2402, %v1861
  %v2469 = vsel %vm2457, %v2404, %v1863
  %v2471 = vsel %vm2457, %v2406, %v1865
  %v2473 = vsel %vm2457, %v2408, %v1867
  %v2475 = vsel %vm2457, %v2410, %v1869
  %v2477 = vsel %vm2457, %v2412, %v1871
  %v2479 = vsel %vm2457, %v2414, %v1873
  %v2481 = vsel %vm2457, %v2416, %v1875
  %v2483 = vsel %vm2457, %v2418, %v1877
  %v2485 = vsel %vm2457, %v2420, %v1879
  %v2487 = vsel %vm2457, %v2422, %v1881
  %v2489 = vsel %vm2457, %v2424, %v1883
  %v2491 = vsel %vm2457, %v2426, %v1885
  %v2493 = vsel %vm2457, %v2428, %v1887
  %v2495 = vsel %vm2457, %v2430, %v1889
  %v2497 = vsel %vm2457, %v2432, %v1891
  %v2499 = vsel %vm2457, %v2434, %v1893
  %v2501 = vsel %vm2457, %v2436, %v1895
  %v2503 = vsel %vm2457, %v2438, %v1897
  %v2505 = vsel %vm2457, %v2440, %v1899
  %v2507 = vsel %vm2457, %v2442, %v1901
  %v2509 = vsel %vm2457, %v2444, %v1903
  %v2511 = vsel %vm2457, %v2446, %v1905
  %v2513 = vsel %vm2457, %v2448, %v1907
  %v2515 = vsel %vm2457, %v2450, %v1909
  %v2517 = vsel %vm2457, %v2452, %v1911
  %v2519 = vsel %vm2457, %v2454, %v1913
  %v2521 = vsel %vm2457, %v2456, %v1915
  %vm2522 = vcmask 97280
  %v2524 = vsel %vm2522, %v2459, %v1927
  %v2526 = vsel %vm2522, %v2461, %v1929
  %v2528 = vsel %vm2522, %v2463, %v1931
  %v2530 = vsel %vm2522, %v2465, %v1933
  %v2532 = vsel %vm2522, %v2467, %v1935
  %v2534 = vsel %vm2522, %v2469, %v1937
  %v2536 = vsel %vm2522, %v2471, %v1939
  %v2538 = vsel %vm2522, %v2473, %v1941
  %v2540 = vsel %vm2522, %v2475, %v1943
  %v2542 = vsel %vm2522, %v2477, %v1945
  %v2544 = vsel %vm2522, %v2479, %v1947
  %v2546 = vsel %vm2522, %v2481, %v1949
  %v2548 = vsel %vm2522, %v2483, %v1951
  %v2550 = vsel %vm2522, %v2485, %v1953
  %v2552 = vsel %vm2522, %v2487, %v1955
  %v2554 = vsel %vm2522, %v2489, %v1957
  %v2556 = vsel %vm2522, %v2491, %v1959
  %v2558 = vsel %vm2522, %v2493, %v1961
  %v2560 = vsel %vm2522, %v2495, %v1963
  %v2562 = vsel %vm2522, %v2497, %v1965
  %v2564 = vsel %vm2522, %v2499, %v1967
  %v2566 = vsel %vm2522, %v2501, %v1969
  %v2568 = vsel %vm2522, %v2503, %v1971
  %v2570 = vsel %vm2522, %v2505, %v1973
  %v2572 = vsel %vm2522, %v2507, %v1975
  %v2574 = vsel %vm2522, %v2509, %v1977
  %v2576 = vsel %vm2522, %v2511, %v1979
  %v2578 = vsel %vm2522, %v2513, %v1981
  %v2580 = vsel %vm2522, %v2515, %v1983
  %v2582 = vsel %vm2522, %v2517, %v1985
  %v2584 = vsel %vm2522, %v2519, %v1987
  %v2586 = vsel %vm2522, %v2521, %v1989
  %vm2587 = vcmask 130048
  %v2589 = vsel %vm2587, %v2524, %v2021
  %v2591 = vsel %vm2587, %v2526, %v2023
  %v2593 = vsel %vm2587, %v2528, %v2025
  %v2595 = vsel %vm2587, %v2530, %v2027
  %v2597 = vsel %vm2587, %v2532, %v2029
  %v2599 = vsel %vm2587, %v2534, %v2031
  %v2601 = vsel %vm2587, %v2536, %v2033
  %v2603 = vsel %vm2587, %v2538, %v2035
  %v2605 = vsel %vm2587, %v2540, %v2037
  %v2607 = vsel %vm2587, %v2542, %v2039
  %v2609 = vsel %vm2587, %v2544, %v2041
  %v2611 = vsel %vm2587, %v2546, %v2043
  %v2613 = vsel %vm2587, %v2548, %v2045
  %v2615 = vsel %vm2587, %v2550, %v2047
  %v2617 = vsel %vm2587, %v2552, %v2049
  %v2619 = vsel %vm2587, %v2554, %v2051
  %v2621 = vsel %vm2587, %v2556, %v2053
  %v2623 = vsel %vm2587, %v2558, %v2055
  %v2625 = vsel %vm2587, %v2560, %v2057
  %v2627 = vsel %vm2587, %v2562, %v2059
  %v2629 = vsel %vm2587, %v2564, %v2061
  %v2631 = vsel %vm2587, %v2566, %v2063
  %v2633 = vsel %vm2587, %v2568, %v2065
  %v2635 = vsel %vm2587, %v2570, %v2067
  %v2637 = vsel %vm2587, %v2572, %v2069
  %v2639 = vsel %vm2587, %v2574, %v2071
  %v2641 = vsel %vm2587, %v2576, %v2073
  %v2643 = vsel %vm2587, %v2578, %v2075
  %v2645 = vsel %vm2587, %v2580, %v2077
  %v2647 = vsel %vm2587, %v2582, %v2079
  %v2649 = vsel %vm2587, %v2584, %v2081
  %v2651 = vsel %vm2587, %v2586, %v2083
  %vm2652 = vcmask 162816
  %v2654 = vsel %vm2652, %v2589, %v2091
  %v2656 = vsel %vm2652, %v2591, %v2093
  %v2658 = vsel %vm2652, %v2593, %v2095
  %v2660 = vsel %vm2652, %v2595, %v2097
  %v2662 = vsel %vm2652, %v2597, %v2099
  %v2664 = vsel %vm2652, %v2599, %v2101
  %v2666 = vsel %vm2652, %v2601, %v2103
  %v2668 = vsel %vm2652, %v2603, %v2105
  %v2670 = vsel %vm2652, %v2605, %v2107
  %v2672 = vsel %vm2652, %v2607, %v2109
  %v2674 = vsel %vm2652, %v2609, %v2111
  %v2676 = vsel %vm2652, %v2611, %v2113
  %v2678 = vsel %vm2652, %v2613, %v2115
  %v2680 = vsel %vm2652, %v2615, %v2117
  %v2682 = vsel %vm2652, %v2617, %v2119
  %v2684 = vsel %vm2652, %v2619, %v2121
  %v2686 = vsel %vm2652, %v2621, %v2123
  %v2688 = vsel %vm2652, %v2623, %v2125
  %v2690 = vsel %vm2652, %v2625, %v2127
  %v2692 = vsel %vm2652, %v2627, %v2129
  %v2694 = vsel %vm2652, %v2629, %v2131
  %v2696 = vsel %vm2652, %v2631, %v2133
  %v2698 = vsel %vm2652, %v2633, %v2135
  %v2700 = vsel %vm2652, %v2635, %v2137
  %v2702 = vsel %vm2652, %v2637, %v2139
  %v2704 = vsel %vm2652, %v2639, %v2141
  %v2706 = vsel %vm2652, %v2641, %v2143
  %v2708 = vsel %vm2652, %v2643, %v2145
  %v2710 = vsel %vm2652, %v2645, %v2147
  %v2712 = vsel %vm2652, %v2647, %v2149
  %v2714 = vsel %vm2652, %v2649, %v2151
  %v2716 = vsel %vm2652, %v2651, %v2153
  %vm2717 = vcmask 195584
  %v2719 = vsel %vm2717, %v2654, %v2165
  %v2721 = vsel %vm2717, %v2656, %v2167
  %v2723 = vsel %vm2717, %v2658, %v2169
  %v2725 = vsel %vm2717, %v2660, %v2171
  %v2727 = vsel %vm2717, %v2662, %v2173
  %v2729 = vsel %vm2717, %v2664, %v2175
  %v2731 = vsel %vm2717, %v2666, %v2177
  %v2733 = vsel %vm2717, %v2668, %v2179
  %v2735 = vsel %vm2717, %v2670, %v2181
  %v2737 = vsel %vm2717, %v2672, %v2183
  %v2739 = vsel %vm2717, %v2674, %v2185
  %v2741 = vsel %vm2717, %v2676, %v2187
  %v2743 = vsel %vm2717, %v2678, %v2189
  %v2745 = vsel %vm2717, %v2680, %v2191
  %v2747 = vsel %vm2717, %v2682, %v2193
  %v2749 = vsel %vm2717, %v2684, %v2195
  %v2751 = vsel %vm2717, %v2686, %v2197
  %v2753 = vsel %vm2717, %v2688, %v2199
  %v2755 = vsel %vm2717, %v2690, %v2201
  %v2757 = vsel %vm2717, %v2692, %v2203
  %v2759 = vsel %vm2717, %v2694, %v2205
  %v2761 = vsel %vm2717, %v2696, %v2207
  %v2763 = vsel %vm2717, %v2698, %v2209
  %v2765 = vsel %vm2717, %v2700, %v2211
  %v2767 = vsel %vm2717, %v2702, %v2213
  %v2769 = vsel %vm2717, %v2704, %v2215
  %v2771 = vsel %vm2717, %v2706, %v2217
  %v2773 = vsel %vm2717, %v2708, %v2219
  %v2775 = vsel %vm2717, %v2710, %v2221
  %v2777 = vsel %vm2717, %v2712, %v2223
  %v2779 = vsel %vm2717, %v2714, %v2225
  %v2781 = vsel %vm2717, %v2716, %v2227
  %vm2782 = vcmask 228352
  %v2784 = vsel %vm2782, %v2719, %v2259
  %v2786 = vsel %vm2782, %v2721, %v2261
  %v2788 = vsel %vm2782, %v2723, %v2263
  %v2790 = vsel %vm2782, %v2725, %v2265
  %v2792 = vsel %vm2782, %v2727, %v2267
  %v2794 = vsel %vm2782, %v2729, %v2269
  %v2796 = vsel %vm2782, %v2731, %v2271
  %v2798 = vsel %vm2782, %v2733, %v2273
  %v2800 = vsel %vm2782, %v2735, %v2275
  %v2802 = vsel %vm2782, %v2737, %v2277
  %v2804 = vsel %vm2782, %v2739, %v2279
  %v2806 = vsel %vm2782, %v2741, %v2281
  %v2808 = vsel %vm2782, %v2743, %v2283
  %v2810 = vsel %vm2782, %v2745, %v2285
  %v2812 = vsel %vm2782, %v2747, %v2287
  %v2814 = vsel %vm2782, %v2749, %v2289
  %v2816 = vsel %vm2782, %v2751, %v2291
  %v2818 = vsel %vm2782, %v2753, %v2293
  %v2820 = vsel %vm2782, %v2755, %v2295
  %v2822 = vsel %vm2782, %v2757, %v2297
  %v2824 = vsel %vm2782, %v2759, %v2299
  %v2826 = vsel %vm2782, %v2761, %v2301
  %v2828 = vsel %vm2782, %v2763, %v2303
  %v2830 = vsel %vm2782, %v2765, %v2305
  %v2832 = vsel %vm2782, %v2767, %v2307
  %v2834 = vsel %vm2782, %v2769, %v2309
  %v2836 = vsel %vm2782, %v2771, %v2311
  %v2838 = vsel %vm2782, %v2773, %v2313
  %v2840 = vsel %vm2782, %v2775, %v2315
  %v2842 = vsel %vm2782, %v2777, %v2317
  %v2844 = vsel %vm2782, %v2779, %v2319
  %v2846 = vsel %vm2782, %v2781, %v2321
  %vm2847 = vcmask 261120
  %v2849 = vsel %vm2847, %v2784, %v2329
  %v2851 = vsel %vm2847, %v2786, %v2331
  %v2853 = vsel %vm2847, %v2788, %v2333
  %v2855 = vsel %vm2847, %v2790, %v2335
  %v2857 = vsel %vm2847, %v2792, %v2337
  %v2859 = vsel %vm2847, %v2794, %v2339
  %v2861 = vsel %vm2847, %v2796, %v2341
  %v2863 = vsel %vm2847, %v2798, %v2343
  %v2865 = vsel %vm2847, %v2800, %v2345
  %v2867 = vsel %vm2847, %v2802, %v2347
  %v2869 = vsel %vm2847, %v2804, %v2349
  %v2871 = vsel %vm2847, %v2806, %v2351
  %v2873 = vsel %vm2847, %v2808, %v2353
  %v2875 = vsel %vm2847, %v2810, %v2355
  %v2877 = vsel %vm2847, %v2812, %v2357
  %v2879 = vsel %vm2847, %v2814, %v2359
  %v2881 = vsel %vm2847, %v2816, %v2361
  %v2883 = vsel %vm2847, %v2818, %v2363
  %v2885 = vsel %vm2847, %v2820, %v2365
  %v2887 = vsel %vm2847, %v2822, %v2367
  %v2889 = vsel %vm2847, %v2824, %v2369
  %v2891 = vsel %vm2847, %v2826, %v2371
  %v2893 = vsel %vm2847, %v2828, %v2373
  %v2895 = vsel %vm2847, %v2830, %v2375
  %v2897 = vsel %vm2847, %v2832, %v2377
  %v2899 = vsel %vm2847, %v2834, %v2379
  %v2901 = vsel %vm2847, %v2836, %v2381
  %v2903 = vsel %vm2847, %v2838, %v2383
  %v2905 = vsel %vm2847, %v2840, %v2385
  %v2907 = vsel %vm2847, %v2842, %v2387
  %v2909 = vsel %vm2847, %v2844, %v2389
  %v2911 = vsel %vm2847, %v2846, %v2391
  %vm2912 = vcmask 293888
  %v2914 = vsel %vm2912, %v2849, 0
  %v2916 = vsel %vm2912, %v2851, 0
  %v2918 = vsel %vm2912, %v2853, 0
  %v2920 = vsel %vm2912, %v2855, 0
  %v2922 = vsel %vm2912, %v2857, 0
  %v2924 = vsel %vm2912, %v2859, 0
  %v2926 = vsel %vm2912, %v2861, 0
  %v2928 = vsel %vm2912, %v2863, 0
  %v2930 = vsel %vm2912, %v2865, 0
  %v2932 = vsel %vm2912, %v2867, 0
  %v2934 = vsel %vm2912, %v2869, 0
  %v2936 = vsel %vm2912, %v2871, 0
  %v2938 = vsel %vm2912, %v2873, 0
  %v2940 = vsel %vm2912, %v2875, 0
  %v2942 = vsel %vm2912, %v2877, 0
  %v2944 = vsel %vm2912, %v2879, 0
  %v2946 = vsel %vm2912, %v2881, 0
  %v2948 = vsel %vm2912, %v2883, 0
  %v2950 = vsel %vm2912, %v2885, 0
  %v2952 = vsel %vm2912, %v2887, 0
  %v2954 = vsel %vm2912, %v2889, 0
  %v2956 = vsel %vm2912, %v2891, 0
  %v2958 = vsel %vm2912, %v2893, 0
  %v2960 = vsel %vm2912, %v2895, 0
  %v2962 = vsel %vm2912, %v2897, 0
  %v2964 = vsel %vm2912, %v2899, 0
  %v2966 = vsel %vm2912, %v2901, 0
  %v2968 = vsel %vm2912, %v2903, 0
  %v2970 = vsel %vm2912, %v2905, 0
  %v2972 = vsel %vm2912, %v2907, 0
  %v2974 = vsel %vm2912, %v2909, 0
  %v2976 = vsel %vm2912, %v2911, 0
  %v2978 = vld [vmem:[%s1] sm:$0xf]
  %v2979 = vld [vmem:[%s1 + $0x4] sm:$0xf]
  %v2980 = vld [vmem:[%s1 + $0x8] sm:$0xf]
  %v2981 = vld [vmem:[%s1 + $0xc] sm:$0xf]
  %v2982 = vld [vmem:[%s1 + $0x10] sm:$0xf]
  %v2983 = vld [vmem:[%s1 + $0x14] sm:$0xf]
  %v2984 = vld [vmem:[%s1 + $0x18] sm:$0xf]
  %v2985 = vld [vmem:[%s1 + $0x1c] sm:$0xf]
  %v2986 = vld [vmem:[%s1 + $0x20] sm:$0xf]
  %v2987 = vld [vmem:[%s1 + $0x24] sm:$0xf]
  %v2988 = vld [vmem:[%s1 + $0x28] sm:$0xf]
  %v2989 = vld [vmem:[%s1 + $0x2c] sm:$0xf]
  %v2990 = vld [vmem:[%s1 + $0x30] sm:$0xf]
  %v2991 = vld [vmem:[%s1 + $0x34] sm:$0xf]
  %v2992 = vld [vmem:[%s1 + $0x38] sm:$0xf]
  %v2993 = vld [vmem:[%s1 + $0x3c] sm:$0xf]
  %v3010 = vunpack.c.l.b16 %v2978
  %v3011 = vunpack.c.l.b16 %v2979
  %v3012 = vunpack.c.l.b16 %v2980
  %v3013 = vunpack.c.l.b16 %v2981
  %v3014 = vunpack.c.l.b16 %v2982
  %v3015 = vunpack.c.l.b16 %v2983
  %v3016 = vunpack.c.l.b16 %v2984
  %v3017 = vunpack.c.l.b16 %v2985
  %v3018 = vunpack.c.l.b16 %v2986
  %v3019 = vunpack.c.l.b16 %v2987
  %v3020 = vunpack.c.l.b16 %v2988
  %v3021 = vunpack.c.l.b16 %v2989
  %v3022 = vunpack.c.l.b16 %v2990
  %v3023 = vunpack.c.l.b16 %v2991
  %v3024 = vunpack.c.l.b16 %v2992
  %v3025 = vunpack.c.l.b16 %v2993
  %v3026 = vpack.c.b16 %v3011, %v3010
  %v3027 = vpack.c.b16 %v3013, %v3012
  %v3028 = vpack.c.b16 %v3015, %v3014
  %v3029 = vpack.c.b16 %v3017, %v3016
  %v3030 = vpack.c.b16 %v3019, %v3018
  %v3031 = vpack.c.b16 %v3021, %v3020
  %v3032 = vpack.c.b16 %v3023, %v3022
  %v3033 = vpack.c.b16 %v3025, %v3024
  %3042 = vmatprep.subr.bf16.mxu0 0
  %3043 = vmatpush1.bf16.msra.mxu0 %v3026
  %3044 = vmatprep.subr.bf16.mxu0 0
  %3045 = vmatpush1.bf16.msra.mxu0 %v3027
  %3046 = vmatprep.subr.bf16.mxu0 0
  %3047 = vmatpush1.bf16.msra.mxu0 %v3028
  %3048 = vmatprep.subr.bf16.mxu0 0
  %3049 = vmatpush1.bf16.msra.mxu0 %v3029
  %3050 = vmatprep.subr.bf16.mxu0 0
  %3051 = vmatpush1.bf16.msra.mxu0 %v3030
  %3052 = vmatprep.subr.bf16.mxu0 0
  %3053 = vmatpush1.bf16.msra.mxu0 %v3031
  %3054 = vmatprep.subr.bf16.mxu0 0
  %3055 = vmatpush1.bf16.msra.mxu0 %v3032
  %3056 = vmatprep.subr.bf16.mxu0 0
  %3057 = vmatpush1.bf16.msra.mxu0 %v3033
  %3058 = vmatprep.subr.bf16.mxu0 0
  %3059 = vmatpush1.bf16.msra.mxu0 0
  %3060 = vmatprep.subr.bf16.mxu0 0
  %3061 = vmatpush1.bf16.msra.mxu0 0
  %3062 = vmatprep.subr.bf16.mxu0 0
  %3063 = vmatpush1.bf16.msra.mxu0 0
  %3064 = vmatprep.subr.bf16.mxu0 0
  %3065 = vmatpush1.bf16.msra.mxu0 0
  %3066 = vmatprep.subr.bf16.mxu0 0
  %3067 = vmatpush1.bf16.msra.mxu0 0
  %3068 = vmatprep.subr.bf16.mxu0 0
  %3069 = vmatpush1.bf16.msra.mxu0 0
  %3070 = vmatprep.subr.bf16.mxu0 0
  %3071 = vmatpush1.bf16.msra.mxu0 0
  %3072 = vmatprep.subr.bf16.mxu0 0
  %3073 = vmatpush1.bf16.msra.mxu0 0
  %3074 = vmatprep.mubr.bf16.mxu0 0
  %3075 = vmatmul.mubr.bf16.gmra.mrb[0].mxu0 %v2914
  %v3076 = vpop.f32.mrb[0].mxu0
  %v3077 = vadd.f32 0.0, %v3076
  %v3078 = vpop.f32.mrb[0].mxu0
  %v3079 = vpop.f32.mrb[0].mxu0
  %v3080 = vadd.f32 0.0, %v3079
  %v3081 = vpop.f32.mrb[0].mxu0
  %3082 = vmatprep.mubr.bf16.mxu0 0
  %3083 = vmatmul.mubr.bf16.gmra.mrb[0].mxu0 %v2916
  %v3084 = vpop.f32.mrb[0].mxu0
  %v3085 = vadd.f32 0.0, %v3084
  %v3086 = vpop.f32.mrb[0].mxu0
  %v3087 = vpop.f32.mrb[0].mxu0
  %v3088 = vadd.f32 0.0, %v3087
  %v3089 = vpop.f32.mrb[0].mxu0
  %3090 = vmatprep.mubr.bf16.mxu0 0
  %3091 = vmatmul.mubr.bf16.gmra.mrb[0].mxu0 %v2918
  %v3092 = vpop.f32.mrb[0].mxu0
  %v3093 = vadd.f32 0.0, %v3092
  %v3094 = vpop.f32.mrb[0].mxu0
  %v3095 = vpop.f32.mrb[0].mxu0
  %v3096 = vadd.f32 0.0, %v3095
  %v3097 = vpop.f32.mrb[0].mxu0
  %3098 = vmatprep.mubr.bf16.mxu0 0
  %3099 = vmatmul.mubr.bf16.gmra.mrb[0].mxu0 %v2920
  %v3100 = vpop.f32.mrb[0].mxu0
  %v3101 = vadd.f32 0.0, %v3100
  %v3102 = vpop.f32.mrb[0].mxu0
  %v3103 = vpop.f32.mrb[0].mxu0
  %v3104 = vadd.f32 0.0, %v3103
  %v3105 = vpop.f32.mrb[0].mxu0
  %3106 = vmatprep.mubr.bf16.mxu0 0
  %3107 = vmatmul.mubr.bf16.gmra.mrb[0].mxu0 %v2922
  %v3108 = vpop.f32.mrb[0].mxu0
  %v3109 = vadd.f32 0.0, %v3108
  %v3110 = vpop.f32.mrb[0].mxu0
  %v3111 = vpop.f32.mrb[0].mxu0
  %v3112 = vadd.f32 0.0, %v3111
  %v3113 = vpop.f32.mrb[0].mxu0
  %3114 = vmatprep.mubr.bf16.mxu0 0
  %3115 = vmatmul.mubr.bf16.gmra.mrb[0].mxu0 %v2924
  %v3116 = vpop.f32.mrb[0].mxu0
  %v3117 = vadd.f32 0.0, %v3116
  %v3118 = vpop.f32.mrb[0].mxu0
  %v3119 = vpop.f32.mrb[0].mxu0
  %v3120 = vadd.f32 0.0, %v3119
  %v3121 = vpop.f32.mrb[0].mxu0
  %3122 = vmatprep.mubr.bf16.mxu0 0
  %3123 = vmatmul.mubr.bf16.gmra.mrb[0].mxu0 %v2926
  %v3124 = vpop.f32.mrb[0].mxu0
  %v3125 = vadd.f32 0.0, %v3124
  %v3126 = vpop.f32.mrb[0].mxu0
  %v3127 = vpop.f32.mrb[0].mxu0
  %v3128 = vadd.f32 0.0, %v3127
  %v3129 = vpop.f32.mrb[0].mxu0
  %3130 = vmatprep.mubr.bf16.mxu0 0
  %3131 = vmatmul.mubr.bf16.gmra.mrb[0].mxu0 %v2928
  %v3132 = vpop.f32.mrb[0].mxu0
  %v3133 = vadd.f32 0.0, %v3132
  %v3134 = vpop.f32.mrb[0].mxu0
  %v3135 = vpop.f32.mrb[0].mxu0
  %v3136 = vadd.f32 0.0, %v3135
  %v3137 = vpop.f32.mrb[0].mxu0
  %3138 = vmatprep.mubr.bf16.mxu0 0
  %3139 = vmatmul.mubr.bf16.gmra.mrb[0].mxu0 %v2930
  %v3140 = vpop.f32.mrb[0].mxu0
  %v3141 = vadd.f32 0.0, %v3140
  %v3142 = vpop.f32.mrb[0].mxu0
  %v3143 = vpop.f32.mrb[0].mxu0
  %v3144 = vadd.f32 0.0, %v3143
  %v3145 = vpop.f32.mrb[0].mxu0
  %3146 = vmatprep.mubr.bf16.mxu0 0
  %3147 = vmatmul.mubr.bf16.gmra.mrb[0].mxu0 %v2932
  %v3148 = vpop.f32.mrb[0].mxu0
  %v3149 = vadd.f32 0.0, %v3148
  %v3150 = vpop.f32.mrb[0].mxu0
  %v3151 = vpop.f32.mrb[0].mxu0
  %v3152 = vadd.f32 0.0, %v3151
  %v3153 = vpop.f32.mrb[0].mxu0
  %3154 = vmatprep.mubr.bf16.mxu0 0
  %3155 = vmatmul.mubr.bf16.gmra.mrb[0].mxu0 %v2934
  %v3156 = vpop.f32.mrb[0].mxu0
  %v3157 = vadd.f32 0.0, %v3156
  %v3158 = vpop.f32.mrb[0].mxu0
  %v3159 = vpop.f32.mrb[0].mxu0
  %v3160 = vadd.f32 0.0, %v3159
  %v3161 = vpop.f32.mrb[0].mxu0
  %3162 = vmatprep.mubr.bf16.mxu0 0
  %3163 = vmatmul.mubr.bf16.gmra.mrb[0].mxu0 %v2936
  %v3164 = vpop.f32.mrb[0].mxu0
  %v3165 = vadd.f32 0.0, %v3164
  %v3166 = vpop.f32.mrb[0].mxu0
  %v3167 = vpop.f32.mrb[0].mxu0
  %v3168 = vadd.f32 0.0, %v3167
  %v3169 = vpop.f32.mrb[0].mxu0
  %3170 = vmatprep.mubr.bf16.mxu0 0
  %3171 = vmatmul.mubr.bf16.gmra.mrb[0].mxu0 %v2938
  %v3172 = vpop.f32.mrb[0].mxu0
  %v3173 = vadd.f32 0.0, %v3172
  %v3174 = vpop.f32.mrb[0].mxu0
  %v3175 = vpop.f32.mrb[0].mxu0
  %v3176 = vadd.f32 0.0, %v3175
  %v3177 = vpop.f32.mrb[0].mxu0
  %3178 = vmatprep.mubr.bf16.mxu0 0
  %3179 = vmatmul.mubr.bf16.gmra.mrb[0].mxu0 %v2940
  %v3180 = vpop.f32.mrb[0].mxu0
  %v3181 = vadd.f32 0.0, %v3180
  %v3182 = vpop.f32.mrb[0].mxu0
  %v3183 = vpop.f32.mrb[0].mxu0
  %v3184 = vadd.f32 0.0, %v3183
  %v3185 = vpop.f32.mrb[0].mxu0
  %3186 = vmatprep.mubr.bf16.mxu0 0
  %3187 = vmatmul.mubr.bf16.gmra.mrb[0].mxu0 %v2942
  %v3188 = vpop.f32.mrb[0].mxu0
  %v3189 = vadd.f32 0.0, %v3188
  %v3190 = vpop.f32.mrb[0].mxu0
  %v3191 = vpop.f32.mrb[0].mxu0
  %v3192 = vadd.f32 0.0, %v3191
  %v3193 = vpop.f32.mrb[0].mxu0
  %3194 = vmatprep.mubr.bf16.mxu0 0
  %3195 = vmatmul.mubr.bf16.gmra.mrb[0].mxu0 %v2944
  %v3196 = vpop.f32.mrb[0].mxu0
  %v3197 = vadd.f32 0.0, %v3196
  %v3198 = vpop.f32.mrb[0].mxu0
  %v3199 = vpop.f32.mrb[0].mxu0
  %v3200 = vadd.f32 0.0, %v3199
  %v3201 = vpop.f32.mrb[0].mxu0
  %3202 = vmatprep.mubr.bf16.mxu0 0
  %3203 = vmatmul.mubr.bf16.gmra.mrb[0].mxu0 %v2946
  %v3204 = vpop.f32.mrb[0].mxu0
  %v3205 = vadd.f32 0.0, %v3204
  %v3206 = vpop.f32.mrb[0].mxu0
  %v3207 = vpop.f32.mrb[0].mxu0
  %v3208 = vadd.f32 0.0, %v3207
  %v3209 = vpop.f32.mrb[0].mxu0
  %3210 = vmatprep.mubr.bf16.mxu0 0
  %3211 = vmatmul.mubr.bf16.gmra.mrb[0].mxu0 %v2948
  %v3212 = vpop.f32.mrb[0].mxu0
  %v3213 = vadd.f32 0.0, %v3212
  %v3214 = vpop.f32.mrb[0].mxu0
  %v3215 = vpop.f32.mrb[0].mxu0
  %v3216 = vadd.f32 0.0, %v3215
  %v3217 = vpop.f32.mrb[0].mxu0
  %3218 = vmatprep.mubr.bf16.mxu0 0
  %3219 = vmatmul.mubr.bf16.gmra.mrb[0].mxu0 %v2950
  %v3220 = vpop.f32.mrb[0].mxu0
  %v3221 = vadd.f32 0.0, %v3220
  %v3222 = vpop.f32.mrb[0].mxu0
  %v3223 = vpop.f32.mrb[0].mxu0
  %v3224 = vadd.f32 0.0, %v3223
  %v3225 = vpop.f32.mrb[0].mxu0
  %3226 = vmatprep.mubr.bf16.mxu0 0
  %3227 = vmatmul.mubr.bf16.gmra.mrb[0].mxu0 %v2952
  %v3228 = vpop.f32.mrb[0].mxu0
  %v3229 = vadd.f32 0.0, %v3228
  %v3230 = vpop.f32.mrb[0].mxu0
  %v3231 = vpop.f32.mrb[0].mxu0
  %v3232 = vadd.f32 0.0, %v3231
  %v3233 = vpop.f32.mrb[0].mxu0
  %3234 = vmatprep.mubr.bf16.mxu0 0
  %3235 = vmatmul.mubr.bf16.gmra.mrb[0].mxu0 %v2954
  %v3236 = vpop.f32.mrb[0].mxu0
  %v3237 = vadd.f32 0.0, %v3236
  %v3238 = vpop.f32.mrb[0].mxu0
  %v3239 = vpop.f32.mrb[0].mxu0
  %v3240 = vadd.f32 0.0, %v3239
  %v3241 = vpop.f32.mrb[0].mxu0
  %3242 = vmatprep.mubr.bf16.mxu0 0
  %3243 = vmatmul.mubr.bf16.gmra.mrb[0].mxu0 %v2956
  %v3244 = vpop.f32.mrb[0].mxu0
  %v3245 = vadd.f32 0.0, %v3244
  %v3246 = vpop.f32.mrb[0].mxu0
  %v3247 = vpop.f32.mrb[0].mxu0
  %v3248 = vadd.f32 0.0, %v3247
  %v3249 = vpop.f32.mrb[0].mxu0
  %3250 = vmatprep.mubr.bf16.mxu0 0
  %3251 = vmatmul.mubr.bf16.gmra.mrb[0].mxu0 %v2958
  %v3252 = vpop.f32.mrb[0].mxu0
  %v3253 = vadd.f32 0.0, %v3252
  %v3254 = vpop.f32.mrb[0].mxu0
  %v3255 = vpop.f32.mrb[0].mxu0
  %v3256 = vadd.f32 0.0, %v3255
  %v3257 = vpop.f32.mrb[0].mxu0
  %3258 = vmatprep.mubr.bf16.mxu0 0
  %3259 = vmatmul.mubr.bf16.gmra.mrb[0].mxu0 %v2960
  %v3260 = vpop.f32.mrb[0].mxu0
  %v3261 = vadd.f32 0.0, %v3260
  %v3262 = vpop.f32.mrb[0].mxu0
  %v3263 = vpop.f32.mrb[0].mxu0
  %v3264 = vadd.f32 0.0, %v3263
  %v3265 = vpop.f32.mrb[0].mxu0
  %3266 = vmatprep.mubr.bf16.mxu0 0
  %3267 = vmatmul.mubr.bf16.gmra.mrb[0].mxu0 %v2962
  %v3268 = vpop.f32.mrb[0].mxu0
  %v3269 = vadd.f32 0.0, %v3268
  %v3270 = vpop.f32.mrb[0].mxu0
  %v3271 = vpop.f32.mrb[0].mxu0
  %v3272 = vadd.f32 0.0, %v3271
  %v3273 = vpop.f32.mrb[0].mxu0
  %3274 = vmatprep.mubr.bf16.mxu0 0
  %3275 = vmatmul.mubr.bf16.gmra.mrb[0].mxu0 %v2964
  %v3276 = vpop.f32.mrb[0].mxu0
  %v3277 = vadd.f32 0.0, %v3276
  %v3278 = vpop.f32.mrb[0].mxu0
  %v3279 = vpop.f32.mrb[0].mxu0
  %v3280 = vadd.f32 0.0, %v3279
  %v3281 = vpop.f32.mrb[0].mxu0
  %3282 = vmatprep.mubr.bf16.mxu0 0
  %3283 = vmatmul.mubr.bf16.gmra.mrb[0].mxu0 %v2966
  %v3284 = vpop.f32.mrb[0].mxu0
  %v3285 = vadd.f32 0.0, %v3284
  %v3286 = vpop.f32.mrb[0].mxu0
  %v3287 = vpop.f32.mrb[0].mxu0
  %v3288 = vadd.f32 0.0, %v3287
  %v3289 = vpop.f32.mrb[0].mxu0
  %3290 = vmatprep.mubr.bf16.mxu0 0
  %3291 = vmatmul.mubr.bf16.gmra.mrb[0].mxu0 %v2968
  %v3292 = vpop.f32.mrb[0].mxu0
  %v3293 = vadd.f32 0.0, %v3292
  %v3294 = vpop.f32.mrb[0].mxu0
  %v3295 = vpop.f32.mrb[0].mxu0
  %v3296 = vadd.f32 0.0, %v3295
  %v3297 = vpop.f32.mrb[0].mxu0
  %3298 = vmatprep.mubr.bf16.mxu0 0
  %3299 = vmatmul.mubr.bf16.gmra.mrb[0].mxu0 %v2970
  %v3300 = vpop.f32.mrb[0].mxu0
  %v3301 = vadd.f32 0.0, %v3300
  %v3302 = vpop.f32.mrb[0].mxu0
  %v3303 = vpop.f32.mrb[0].mxu0
  %v3304 = vadd.f32 0.0, %v3303
  %v3305 = vpop.f32.mrb[0].mxu0
  %3306 = vmatprep.mubr.bf16.mxu0 0
  %3307 = vmatmul.mubr.bf16.gmra.mrb[0].mxu0 %v2972
  %v3308 = vpop.f32.mrb[0].mxu0
  %v3309 = vadd.f32 0.0, %v3308
  %v3310 = vpop.f32.mrb[0].mxu0
  %v3311 = vpop.f32.mrb[0].mxu0
  %v3312 = vadd.f32 0.0, %v3311
  %v3313 = vpop.f32.mrb[0].mxu0
  %3314 = vmatprep.mubr.bf16.mxu0 0
  %3315 = vmatmul.mubr.bf16.gmra.mrb[0].mxu0 %v2974
  %v3316 = vpop.f32.mrb[0].mxu0
  %v3317 = vadd.f32 0.0, %v3316
  %v3318 = vpop.f32.mrb[0].mxu0
  %v3319 = vpop.f32.mrb[0].mxu0
  %v3320 = vadd.f32 0.0, %v3319
  %v3321 = vpop.f32.mrb[0].mxu0
  %3322 = vmatprep.mubr.bf16.mxu0 0
  %3323 = vmatmul.mubr.bf16.gmra.mrb[0].mxu0 %v2976
  %v3324 = vpop.f32.mrb[0].mxu0
  %v3325 = vadd.f32 0.0, %v3324
  %v3326 = vpop.f32.mrb[0].mxu0
  %v3327 = vpop.f32.mrb[0].mxu0
  %v3328 = vadd.f32 0.0, %v3327
  %v3329 = vpop.f32.mrb[0].mxu0
  %3330 = vdwg.mxu0
  %v3331 = vld [vmem:[%s2] sm:$0x1]
  %v3332 = vld [vmem:[%s3] sm:$0x1]
  %v3333 = vadd.f32 %v3077, %v3080
  %v3334 = vadd.f32 %v3333, %v3085
  %v3335 = vadd.f32 %v3334, %v3088
  %v3336 = vadd.f32 %v3335, %v3093
  %v3337 = vadd.f32 %v3336, %v3096
  %v3338 = vadd.f32 %v3337, %v3101
  %v3339 = vadd.f32 %v3338, %v3104
  %v3340 = vadd.f32 %v3339, %v3109
  %v3341 = vadd.f32 %v3340, %v3112
  %v3342 = vadd.f32 %v3341, %v3117
  %v3343 = vadd.f32 %v3342, %v3120
  %v3344 = vadd.f32 %v3343, %v3125
  %v3345 = vadd.f32 %v3344, %v3128
  %v3346 = vadd.f32 %v3345, %v3133
  %v3347 = vadd.f32 %v3346, %v3136
  %v3348 = vadd.f32 %v3347, %v3141
  %v3349 = vadd.f32 %v3348, %v3144
  %v3350 = vadd.f32 %v3349, %v3149
  %v3351 = vadd.f32 %v3350, %v3152
  %v3352 = vadd.f32 %v3351, %v3157
  %v3353 = vadd.f32 %v3352, %v3160
  %v3354 = vadd.f32 %v3353, %v3165
  %v3355 = vadd.f32 %v3354, %v3168
  %v3356 = vadd.f32 %v3355, %v3173
  %v3357 = vadd.f32 %v3356, %v3176
  %v3358 = vadd.f32 %v3357, %v3181
  %v3359 = vadd.f32 %v3358, %v3184
  %v3360 = vadd.f32 %v3359, %v3189
  %v3361 = vadd.f32 %v3360, %v3192
  %v3362 = vadd.f32 %v3361, %v3197
  %v3363 = vadd.f32 %v3362, %v3200
  %v3364 = vadd.f32 %v3363, %v3205
  %v3365 = vadd.f32 %v3364, %v3208
  %v3366 = vadd.f32 %v3365, %v3213
  %v3367 = vadd.f32 %v3366, %v3216
  %v3368 = vadd.f32 %v3367, %v3221
  %v3369 = vadd.f32 %v3368, %v3224
  %v3370 = vadd.f32 %v3369, %v3229
  %v3371 = vadd.f32 %v3370, %v3232
  %v3372 = vadd.f32 %v3371, %v3237
  %v3373 = vadd.f32 %v3372, %v3240
  %v3374 = vadd.f32 %v3373, %v3245
  %v3375 = vadd.f32 %v3374, %v3248
  %v3376 = vadd.f32 %v3375, %v3253
  %v3377 = vadd.f32 %v3376, %v3256
  %v3378 = vadd.f32 %v3377, %v3261
  %v3379 = vadd.f32 %v3378, %v3264
  %v3380 = vadd.f32 %v3379, %v3269
  %v3381 = vadd.f32 %v3380, %v3272
  %v3382 = vadd.f32 %v3381, %v3277
  %v3383 = vadd.f32 %v3382, %v3280
  %v3384 = vadd.f32 %v3383, %v3285
  %v3385 = vadd.f32 %v3384, %v3288
  %v3386 = vadd.f32 %v3385, %v3293
  %v3387 = vadd.f32 %v3386, %v3296
  %v3388 = vadd.f32 %v3387, %v3301
  %v3389 = vadd.f32 %v3388, %v3304
  %v3390 = vadd.f32 %v3389, %v3309
  %v3391 = vadd.f32 %v3390, %v3312
  %v3392 = vadd.f32 %v3391, %v3317
  %v3393 = vadd.f32 %v3392, %v3320
  %v3394 = vadd.f32 %v3393, %v3325
  %v3395 = vadd.f32 %v3394, %v3328
  %v3396 = vrot.slane %v3395, 4
  %v3397 = vadd.f32 %v3395, %v3396
  %v3398 = vrot.slane %v3397, 2
  %v3399 = vadd.f32 %v3397, %v3398
  %v3400 = vrot.slane %v3399, 1
  %v3401 = vadd.f32 %v3399, %v3400
  %v3402 = vmul.f32 %v3401, 0.001953125
  %v3403 = vsub.f32 %v3077, %v3402
  %v3404 = vsub.f32 %v3080, %v3402
  %v3405 = vsub.f32 %v3085, %v3402
  %v3406 = vsub.f32 %v3088, %v3402
  %v3407 = vsub.f32 %v3093, %v3402
  %v3408 = vsub.f32 %v3096, %v3402
  %v3409 = vsub.f32 %v3101, %v3402
  %v3410 = vsub.f32 %v3104, %v3402
  %v3411 = vsub.f32 %v3109, %v3402
  %v3412 = vsub.f32 %v3112, %v3402
  %v3413 = vsub.f32 %v3117, %v3402
  %v3414 = vsub.f32 %v3120, %v3402
  %v3415 = vsub.f32 %v3125, %v3402
  %v3416 = vsub.f32 %v3128, %v3402
  %v3417 = vsub.f32 %v3133, %v3402
  %v3418 = vsub.f32 %v3136, %v3402
  %v3419 = vsub.f32 %v3141, %v3402
  %v3420 = vsub.f32 %v3144, %v3402
  %v3421 = vsub.f32 %v3149, %v3402
  %v3422 = vsub.f32 %v3152, %v3402
  %v3423 = vsub.f32 %v3157, %v3402
  %v3424 = vsub.f32 %v3160, %v3402
  %v3425 = vsub.f32 %v3165, %v3402
  %v3426 = vsub.f32 %v3168, %v3402
  %v3427 = vsub.f32 %v3173, %v3402
  %v3428 = vsub.f32 %v3176, %v3402
  %v3429 = vsub.f32 %v3181, %v3402
  %v3430 = vsub.f32 %v3184, %v3402
  %v3431 = vsub.f32 %v3189, %v3402
  %v3432 = vsub.f32 %v3192, %v3402
  %v3433 = vsub.f32 %v3197, %v3402
  %v3434 = vsub.f32 %v3200, %v3402
  %v3435 = vsub.f32 %v3205, %v3402
  %v3436 = vsub.f32 %v3208, %v3402
  %v3437 = vsub.f32 %v3213, %v3402
  %v3438 = vsub.f32 %v3216, %v3402
  %v3439 = vsub.f32 %v3221, %v3402
  %v3440 = vsub.f32 %v3224, %v3402
  %v3441 = vsub.f32 %v3229, %v3402
  %v3442 = vsub.f32 %v3232, %v3402
  %v3443 = vsub.f32 %v3237, %v3402
  %v3444 = vsub.f32 %v3240, %v3402
  %v3445 = vsub.f32 %v3245, %v3402
  %v3446 = vsub.f32 %v3248, %v3402
  %v3447 = vsub.f32 %v3253, %v3402
  %v3448 = vsub.f32 %v3256, %v3402
  %v3449 = vsub.f32 %v3261, %v3402
  %v3450 = vsub.f32 %v3264, %v3402
  %v3451 = vsub.f32 %v3269, %v3402
  %v3452 = vsub.f32 %v3272, %v3402
  %v3453 = vsub.f32 %v3277, %v3402
  %v3454 = vsub.f32 %v3280, %v3402
  %v3455 = vsub.f32 %v3285, %v3402
  %v3456 = vsub.f32 %v3288, %v3402
  %v3457 = vsub.f32 %v3293, %v3402
  %v3458 = vsub.f32 %v3296, %v3402
  %v3459 = vsub.f32 %v3301, %v3402
  %v3460 = vsub.f32 %v3304, %v3402
  %v3461 = vsub.f32 %v3309, %v3402
  %v3462 = vsub.f32 %v3312, %v3402
  %v3463 = vsub.f32 %v3317, %v3402
  %v3464 = vsub.f32 %v3320, %v3402
  %v3465 = vsub.f32 %v3325, %v3402
  %v3466 = vsub.f32 %v3328, %v3402
  %v3467 = vmul.f32 %v3403, %v3403
  %v3468 = vmul.f32 %v3404, %v3404
  %v3469 = vmul.f32 %v3405, %v3405
  %v3470 = vmul.f32 %v3406, %v3406
  %v3471 = vmul.f32 %v3407, %v3407
  %v3472 = vmul.f32 %v3408, %v3408
  %v3473 = vmul.f32 %v3409, %v3409
  %v3474 = vmul.f32 %v3410, %v3410
  %v3475 = vmul.f32 %v3411, %v3411
  %v3476 = vmul.f32 %v3412, %v3412
  %v3477 = vmul.f32 %v3413, %v3413
  %v3478 = vmul.f32 %v3414, %v3414
  %v3479 = vmul.f32 %v3415, %v3415
  %v3480 = vmul.f32 %v3416, %v3416
  %v3481 = vmul.f32 %v3417, %v3417
  %v3482 = vmul.f32 %v3418, %v3418
  %v3483 = vmul.f32 %v3419, %v3419
  %v3484 = vmul.f32 %v3420, %v3420
  %v3485 = vmul.f32 %v3421, %v3421
  %v3486 = vmul.f32 %v3422, %v3422
  %v3487 = vmul.f32 %v3423, %v3423
  %v3488 = vmul.f32 %v3424, %v3424
  %v3489 = vmul.f32 %v3425, %v3425
  %v3490 = vmul.f32 %v3426, %v3426
  %v3491 = vmul.f32 %v3427, %v3427
  %v3492 = vmul.f32 %v3428, %v3428
  %v3493 = vmul.f32 %v3429, %v3429
  %v3494 = vmul.f32 %v3430, %v3430
  %v3495 = vmul.f32 %v3431, %v3431
  %v3496 = vmul.f32 %v3432, %v3432
  %v3497 = vmul.f32 %v3433, %v3433
  %v3498 = vmul.f32 %v3434, %v3434
  %v3499 = vmul.f32 %v3435, %v3435
  %v3500 = vmul.f32 %v3436, %v3436
  %v3501 = vmul.f32 %v3437, %v3437
  %v3502 = vmul.f32 %v3438, %v3438
  %v3503 = vmul.f32 %v3439, %v3439
  %v3504 = vmul.f32 %v3440, %v3440
  %v3505 = vmul.f32 %v3441, %v3441
  %v3506 = vmul.f32 %v3442, %v3442
  %v3507 = vmul.f32 %v3443, %v3443
  %v3508 = vmul.f32 %v3444, %v3444
  %v3509 = vmul.f32 %v3445, %v3445
  %v3510 = vmul.f32 %v3446, %v3446
  %v3511 = vmul.f32 %v3447, %v3447
  %v3512 = vmul.f32 %v3448, %v3448
  %v3513 = vmul.f32 %v3449, %v3449
  %v3514 = vmul.f32 %v3450, %v3450
  %v3515 = vmul.f32 %v3451, %v3451
  %v3516 = vmul.f32 %v3452, %v3452
  %v3517 = vmul.f32 %v3453, %v3453
  %v3518 = vmul.f32 %v3454, %v3454
  %v3519 = vmul.f32 %v3455, %v3455
  %v3520 = vmul.f32 %v3456, %v3456
  %v3521 = vmul.f32 %v3457, %v3457
  %v3522 = vmul.f32 %v3458, %v3458
  %v3523 = vmul.f32 %v3459, %v3459
  %v3524 = vmul.f32 %v3460, %v3460
  %v3525 = vmul.f32 %v3461, %v3461
  %v3526 = vmul.f32 %v3462, %v3462
  %v3527 = vmul.f32 %v3463, %v3463
  %v3528 = vmul.f32 %v3464, %v3464
  %v3529 = vmul.f32 %v3465, %v3465
  %v3530 = vmul.f32 %v3466, %v3466
  %v3531 = vadd.f32 %v3467, %v3468
  %v3532 = vadd.f32 %v3531, %v3469
  %v3533 = vadd.f32 %v3532, %v3470
  %v3534 = vadd.f32 %v3533, %v3471
  %v3535 = vadd.f32 %v3534, %v3472
  %v3536 = vadd.f32 %v3535, %v3473
  %v3537 = vadd.f32 %v3536, %v3474
  %v3538 = vadd.f32 %v3537, %v3475
  %v3539 = vadd.f32 %v3538, %v3476
  %v3540 = vadd.f32 %v3539, %v3477
  %v3541 = vadd.f32 %v3540, %v3478
  %v3542 = vadd.f32 %v3541, %v3479
  %v3543 = vadd.f32 %v3542, %v3480
  %v3544 = vadd.f32 %v3543, %v3481
  %v3545 = vadd.f32 %v3544, %v3482
  %v3546 = vadd.f32 %v3545, %v3483
  %v3547 = vadd.f32 %v3546, %v3484
  %v3548 = vadd.f32 %v3547, %v3485
  %v3549 = vadd.f32 %v3548, %v3486
  %v3550 = vadd.f32 %v3549, %v3487
  %v3551 = vadd.f32 %v3550, %v3488
  %v3552 = vadd.f32 %v3551, %v3489
  %v3553 = vadd.f32 %v3552, %v3490
  %v3554 = vadd.f32 %v3553, %v3491
  %v3555 = vadd.f32 %v3554, %v3492
  %v3556 = vadd.f32 %v3555, %v3493
  %v3557 = vadd.f32 %v3556, %v3494
  %v3558 = vadd.f32 %v3557, %v3495
  %v3559 = vadd.f32 %v3558, %v3496
  %v3560 = vadd.f32 %v3559, %v3497
  %v3561 = vadd.f32 %v3560, %v3498
  %v3562 = vadd.f32 %v3561, %v3499
  %v3563 = vadd.f32 %v3562, %v3500
  %v3564 = vadd.f32 %v3563, %v3501
  %v3565 = vadd.f32 %v3564, %v3502
  %v3566 = vadd.f32 %v3565, %v3503
  %v3567 = vadd.f32 %v3566, %v3504
  %v3568 = vadd.f32 %v3567, %v3505
  %v3569 = vadd.f32 %v3568, %v3506
  %v3570 = vadd.f32 %v3569, %v3507
  %v3571 = vadd.f32 %v3570, %v3508
  %v3572 = vadd.f32 %v3571, %v3509
  %v3573 = vadd.f32 %v3572, %v3510
  %v3574 = vadd.f32 %v3573, %v3511
  %v3575 = vadd.f32 %v3574, %v3512
  %v3576 = vadd.f32 %v3575, %v3513
  %v3577 = vadd.f32 %v3576, %v3514
  %v3578 = vadd.f32 %v3577, %v3515
  %v3579 = vadd.f32 %v3578, %v3516
  %v3580 = vadd.f32 %v3579, %v3517
  %v3581 = vadd.f32 %v3580, %v3518
  %v3582 = vadd.f32 %v3581, %v3519
  %v3583 = vadd.f32 %v3582, %v3520
  %v3584 = vadd.f32 %v3583, %v3521
  %v3585 = vadd.f32 %v3584, %v3522
  %v3586 = vadd.f32 %v3585, %v3523
  %v3587 = vadd.f32 %v3586, %v3524
  %v3588 = vadd.f32 %v3587, %v3525
  %v3589 = vadd.f32 %v3588, %v3526
  %v3590 = vadd.f32 %v3589, %v3527
  %v3591 = vadd.f32 %v3590, %v3528
  %v3592 = vadd.f32 %v3591, %v3529
  %v3593 = vadd.f32 %v3592, %v3530
  %v3594 = vrot.slane %v3593, 4
  %v3595 = vadd.f32 %v3593, %v3594
  %v3596 = vrot.slane %v3595, 2
  %v3597 = vadd.f32 %v3595, %v3596
  %v3598 = vrot.slane %v3597, 1
  %v3599 = vadd.f32 %v3597, %v3598
  %v3600 = vmul.f32 %v3599, 0.001953125
  %v3601 = vadd.f32 %v3600, 1e-05
  %v3602 = vrsqrt.pop %v3601
  %v3603 = vmul.f32 %v3331, %v3602
  %v3605 = vlaneseq
  %v3606 = vshrl.u32 %v3605, 7
  %v3607 = vsub.s32 0, %v3606
  %v3608 = vrot.slane %v3603, %v3607
  %v3610 = vmul.f32 %v3403, %v3608
  %v3611 = vmul.f32 %v3404, %v3608
  %v3612 = vmul.f32 %v3405, %v3608
  %v3613 = vmul.f32 %v3406, %v3608
  %v3614 = vmul.f32 %v3407, %v3608
  %v3615 = vmul.f32 %v3408, %v3608
  %v3616 = vmul.f32 %v3409, %v3608
  %v3617 = vmul.f32 %v3410, %v3608
  %v3618 = vmul.f32 %v3411, %v3608
  %v3619 = vmul.f32 %v3412, %v3608
  %v3620 = vmul.f32 %v3413, %v3608
  %v3621 = vmul.f32 %v3414, %v3608
  %v3622 = vmul.f32 %v3415, %v3608
  %v3623 = vmul.f32 %v3416, %v3608
  %v3624 = vmul.f32 %v3417, %v3608
  %v3625 = vmul.f32 %v3418, %v3608
  %v3626 = vmul.f32 %v3419, %v3608
  %v3627 = vmul.f32 %v3420, %v3608
  %v3628 = vmul.f32 %v3421, %v3608
  %v3629 = vmul.f32 %v3422, %v3608
  %v3630 = vmul.f32 %v3423, %v3608
  %v3631 = vmul.f32 %v3424, %v3608
  %v3632 = vmul.f32 %v3425, %v3608
  %v3633 = vmul.f32 %v3426, %v3608
  %v3634 = vmul.f32 %v3427, %v3608
  %v3635 = vmul.f32 %v3428, %v3608
  %v3636 = vmul.f32 %v3429, %v3608
  %v3637 = vmul.f32 %v3430, %v3608
  %v3638 = vmul.f32 %v3431, %v3608
  %v3639 = vmul.f32 %v3432, %v3608
  %v3640 = vmul.f32 %v3433, %v3608
  %v3641 = vmul.f32 %v3434, %v3608
  %v3642 = vmul.f32 %v3435, %v3608
  %v3643 = vmul.f32 %v3436, %v3608
  %v3644 = vmul.f32 %v3437, %v3608
  %v3645 = vmul.f32 %v3438, %v3608
  %v3646 = vmul.f32 %v3439, %v3608
  %v3647 = vmul.f32 %v3440, %v3608
  %v3648 = vmul.f32 %v3441, %v3608
  %v3649 = vmul.f32 %v3442, %v3608
  %v3650 = vmul.f32 %v3443, %v3608
  %v3651 = vmul.f32 %v3444, %v3608
  %v3652 = vmul.f32 %v3445, %v3608
  %v3653 = vmul.f32 %v3446, %v3608
  %v3654 = vmul.f32 %v3447, %v3608
  %v3655 = vmul.f32 %v3448, %v3608
  %v3656 = vmul.f32 %v3449, %v3608
  %v3657 = vmul.f32 %v3450, %v3608
  %v3658 = vmul.f32 %v3451, %v3608
  %v3659 = vmul.f32 %v3452, %v3608
  %v3660 = vmul.f32 %v3453, %v3608
  %v3661 = vmul.f32 %v3454, %v3608
  %v3662 = vmul.f32 %v3455, %v3608
  %v3663 = vmul.f32 %v3456, %v3608
  %v3664 = vmul.f32 %v3457, %v3608
  %v3665 = vmul.f32 %v3458, %v3608
  %v3666 = vmul.f32 %v3459, %v3608
  %v3667 = vmul.f32 %v3460, %v3608
  %v3668 = vmul.f32 %v3461, %v3608
  %v3669 = vmul.f32 %v3462, %v3608
  %v3670 = vmul.f32 %v3463, %v3608
  %v3671 = vmul.f32 %v3464, %v3608
  %v3672 = vmul.f32 %v3465, %v3608
  %v3673 = vmul.f32 %v3466, %v3608
  %v3675 = vlaneseq
  %v3676 = vshrl.u32 %v3675, 7
  %v3677 = vsub.s32 0, %v3676
  %v3678 = vrot.slane %v3332, %v3677
  %v3680 = vadd.f32 %v3610, %v3678
  %v3681 = vadd.f32 %v3611, %v3678
  %v3682 = vadd.f32 %v3612, %v3678
  %v3683 = vadd.f32 %v3613, %v3678
  %v3684 = vadd.f32 %v3614, %v3678
  %v3685 = vadd.f32 %v3615, %v3678
  %v3686 = vadd.f32 %v3616, %v3678
  %v3687 = vadd.f32 %v3617, %v3678
  %v3688 = vadd.f32 %v3618, %v3678
  %v3689 = vadd.f32 %v3619, %v3678
  %v3690 = vadd.f32 %v3620, %v3678
  %v3691 = vadd.f32 %v3621, %v3678
  %v3692 = vadd.f32 %v3622, %v3678
  %v3693 = vadd.f32 %v3623, %v3678
  %v3694 = vadd.f32 %v3624, %v3678
  %v3695 = vadd.f32 %v3625, %v3678
  %v3696 = vadd.f32 %v3626, %v3678
  %v3697 = vadd.f32 %v3627, %v3678
  %v3698 = vadd.f32 %v3628, %v3678
  %v3699 = vadd.f32 %v3629, %v3678
  %v3700 = vadd.f32 %v3630, %v3678
  %v3701 = vadd.f32 %v3631, %v3678
  %v3702 = vadd.f32 %v3632, %v3678
  %v3703 = vadd.f32 %v3633, %v3678
  %v3704 = vadd.f32 %v3634, %v3678
  %v3705 = vadd.f32 %v3635, %v3678
  %v3706 = vadd.f32 %v3636, %v3678
  %v3707 = vadd.f32 %v3637, %v3678
  %v3708 = vadd.f32 %v3638, %v3678
  %v3709 = vadd.f32 %v3639, %v3678
  %v3710 = vadd.f32 %v3640, %v3678
  %v3711 = vadd.f32 %v3641, %v3678
  %v3712 = vadd.f32 %v3642, %v3678
  %v3713 = vadd.f32 %v3643, %v3678
  %v3714 = vadd.f32 %v3644, %v3678
  %v3715 = vadd.f32 %v3645, %v3678
  %v3716 = vadd.f32 %v3646, %v3678
  %v3717 = vadd.f32 %v3647, %v3678
  %v3718 = vadd.f32 %v3648, %v3678
  %v3719 = vadd.f32 %v3649, %v3678
  %v3720 = vadd.f32 %v3650, %v3678
  %v3721 = vadd.f32 %v3651, %v3678
  %v3722 = vadd.f32 %v3652, %v3678
  %v3723 = vadd.f32 %v3653, %v3678
  %v3724 = vadd.f32 %v3654, %v3678
  %v3725 = vadd.f32 %v3655, %v3678
  %v3726 = vadd.f32 %v3656, %v3678
  %v3727 = vadd.f32 %v3657, %v3678
  %v3728 = vadd.f32 %v3658, %v3678
  %v3729 = vadd.f32 %v3659, %v3678
  %v3730 = vadd.f32 %v3660, %v3678
  %v3731 = vadd.f32 %v3661, %v3678
  %v3732 = vadd.f32 %v3662, %v3678
  %v3733 = vadd.f32 %v3663, %v3678
  %v3734 = vadd.f32 %v3664, %v3678
  %v3735 = vadd.f32 %v3665, %v3678
  %v3736 = vadd.f32 %v3666, %v3678
  %v3737 = vadd.f32 %v3667, %v3678
  %v3738 = vadd.f32 %v3668, %v3678
  %v3739 = vadd.f32 %v3669, %v3678
  %v3740 = vadd.f32 %v3670, %v3678
  %v3741 = vadd.f32 %v3671, %v3678
  %v3742 = vadd.f32 %v3672, %v3678
  %v3743 = vadd.f32 %v3673, %v3678
  %v3744 = vmax.f32 %v3680, 0.0
  %v3745 = vmax.f32 %v3681, 0.0
  %v3746 = vmax.f32 %v3682, 0.0
  %v3747 = vmax.f32 %v3683, 0.0
  %v3748 = vmax.f32 %v3684, 0.0
  %v3749 = vmax.f32 %v3685, 0.0
  %v3750 = vmax.f32 %v3686, 0.0
  %v3751 = vmax.f32 %v3687, 0.0
  %v3752 = vmax.f32 %v3688, 0.0
  %v3753 = vmax.f32 %v3689, 0.0
  %v3754 = vmax.f32 %v3690, 0.0
  %v3755 = vmax.f32 %v3691, 0.0
  %v3756 = vmax.f32 %v3692, 0.0
  %v3757 = vmax.f32 %v3693, 0.0
  %v3758 = vmax.f32 %v3694, 0.0
  %v3759 = vmax.f32 %v3695, 0.0
  %v3760 = vmax.f32 %v3696, 0.0
  %v3761 = vmax.f32 %v3697, 0.0
  %v3762 = vmax.f32 %v3698, 0.0
  %v3763 = vmax.f32 %v3699, 0.0
  %v3764 = vmax.f32 %v3700, 0.0
  %v3765 = vmax.f32 %v3701, 0.0
  %v3766 = vmax.f32 %v3702, 0.0
  %v3767 = vmax.f32 %v3703, 0.0
  %v3768 = vmax.f32 %v3704, 0.0
  %v3769 = vmax.f32 %v3705, 0.0
  %v3770 = vmax.f32 %v3706, 0.0
  %v3771 = vmax.f32 %v3707, 0.0
  %v3772 = vmax.f32 %v3708, 0.0
  %v3773 = vmax.f32 %v3709, 0.0
  %v3774 = vmax.f32 %v3710, 0.0
  %v3775 = vmax.f32 %v3711, 0.0
  %v3776 = vmax.f32 %v3712, 0.0
  %v3777 = vmax.f32 %v3713, 0.0
  %v3778 = vmax.f32 %v3714, 0.0
  %v3779 = vmax.f32 %v3715, 0.0
  %v3780 = vmax.f32 %v3716, 0.0
  %v3781 = vmax.f32 %v3717, 0.0
  %v3782 = vmax.f32 %v3718, 0.0
  %v3783 = vmax.f32 %v3719, 0.0
  %v3784 = vmax.f32 %v3720, 0.0
  %v3785 = vmax.f32 %v3721, 0.0
  %v3786 = vmax.f32 %v3722, 0.0
  %v3787 = vmax.f32 %v3723, 0.0
  %v3788 = vmax.f32 %v3724, 0.0
  %v3789 = vmax.f32 %v3725, 0.0
  %v3790 = vmax.f32 %v3726, 0.0
  %v3791 = vmax.f32 %v3727, 0.0
  %v3792 = vmax.f32 %v3728, 0.0
  %v3793 = vmax.f32 %v3729, 0.0
  %v3794 = vmax.f32 %v3730, 0.0
  %v3795 = vmax.f32 %v3731, 0.0
  %v3796 = vmax.f32 %v3732, 0.0
  %v3797 = vmax.f32 %v3733, 0.0
  %v3798 = vmax.f32 %v3734, 0.0
  %v3799 = vmax.f32 %v3735, 0.0
  %v3800 = vmax.f32 %v3736, 0.0
  %v3801 = vmax.f32 %v3737, 0.0
  %v3802 = vmax.f32 %v3738, 0.0
  %v3803 = vmax.f32 %v3739, 0.0
  %v3804 = vmax.f32 %v3740, 0.0
  %v3805 = vmax.f32 %v3741, 0.0
  %v3806 = vmax.f32 %v3742, 0.0
  %v3807 = vmax.f32 %v3743, 0.0
  %3808 = vst [vmem:[#allocation3] sm:$0xf] 0
  %3809 = vst [vmem:[#allocation3 + $0x4] sm:$0xf] 0
  %3810 = vst [vmem:[#allocation3 + $0x8] sm:$0x1] 0
  %3811 = vst [vmem:[#allocation3 + $0xd8] sm:$0xf] 0
  %3812 = vst [vmem:[#allocation3 + $0xdc] sm:$0xf] 0
  %3813 = vst [vmem:[#allocation3 + $0xe0] sm:$0x1] 0
  %s3814 = scalar_lea.vmem [#allocation3], 204
  %3815 = vst [vmem:[%s3814] sm:$0xf] 0
  %3816 = vst [vmem:[%s3814 + $0x4] sm:$0xf] 0
  %3817 = vst [vmem:[%s3814 + $0x8] sm:$0x1] 0
  %3818 = vst [vmem:[%s3814 + $0xd8] sm:$0xf] 0
  %3819 = vst [vmem:[%s3814 + $0xdc] sm:$0xf] 0
  %3820 = vst [vmem:[%s3814 + $0xe0] sm:$0x1] 0
  %v3821 = vpack.c.bf16 %v3745, %v3744
  %v3822 = vpack.c.bf16 %v3747, %v3746
  %v3823 = vpack.c.bf16 %v3749, %v3748
  %v3824 = vpack.c.bf16 %v3751, %v3750
  %v3825 = vpack.c.bf16 %v3753, %v3752
  %v3826 = vpack.c.bf16 %v3755, %v3754
  %v3827 = vpack.c.bf16 %v3757, %v3756
  %v3828 = vpack.c.bf16 %v3759, %v3758
  %v3829 = vpack.c.bf16 %v3761, %v3760
  %v3830 = vpack.c.bf16 %v3763, %v3762
  %v3831 = vpack.c.bf16 %v3765, %v3764
  %v3832 = vpack.c.bf16 %v3767, %v3766
  %v3833 = vpack.c.bf16 %v3769, %v3768
  %v3834 = vpack.c.bf16 %v3771, %v3770
  %v3835 = vpack.c.bf16 %v3773, %v3772
  %v3836 = vpack.c.bf16 %v3775, %v3774
  %v3837 = vpack.c.bf16 %v3777, %v3776
  %v3838 = vpack.c.bf16 %v3779, %v3778
  %v3839 = vpack.c.bf16 %v3781, %v3780
  %v3840 = vpack.c.bf16 %v3783, %v3782
  %v3841 = vpack.c.bf16 %v3785, %v3784
  %v3842 = vpack.c.bf16 %v3787, %v3786
  %v3843 = vpack.c.bf16 %v3789, %v3788
  %v3844 = vpack.c.bf16 %v3791, %v3790
  %v3845 = vpack.c.bf16 %v3793, %v3792
  %v3846 = vpack.c.bf16 %v3795, %v3794
  %v3847 = vpack.c.bf16 %v3797, %v3796
  %v3848 = vpack.c.bf16 %v3799, %v3798
  %v3849 = vpack.c.bf16 %v3801, %v3800
  %v3850 = vpack.c.bf16 %v3803, %v3802
  %v3851 = vpack.c.bf16 %v3805, %v3804
  %v3852 = vpack.c.bf16 %v3807, %v3806
  %v3854 = vshrl.u32 %v3821, 16
  %v3856 = vrot.slane %v3854, 7
  %v3857 = vshll.u32 %v3821, 16
  %v3859 = vor.u32 %v3856, %v3857
  %v3861 = vshrl.u32 %v3822, 16
  %v3863 = vrot.slane %v3861, 7
  %v3864 = vshll.u32 %v3822, 16
  %v3866 = vor.u32 %v3863, %v3864
  %v3868 = vshrl.u32 %v3823, 16
  %v3870 = vrot.slane %v3868, 7
  %v3871 = vshll.u32 %v3823, 16
  %v3873 = vor.u32 %v3870, %v3871
  %v3875 = vshrl.u32 %v3824, 16
  %v3877 = vrot.slane %v3875, 7
  %v3878 = vshll.u32 %v3824, 16
  %v3880 = vor.u32 %v3877, %v3878
  %v3882 = vshrl.u32 %v3825, 16
  %v3884 = vrot.slane %v3882, 7
  %v3885 = vshll.u32 %v3825, 16
  %v3887 = vor.u32 %v3884, %v3885
  %v3889 = vshrl.u32 %v3826, 16
  %v3891 = vrot.slane %v3889, 7
  %v3892 = vshll.u32 %v3826, 16
  %v3894 = vor.u32 %v3891, %v3892
  %v3896 = vshrl.u32 %v3827, 16
  %v3898 = vrot.slane %v3896, 7
  %v3899 = vshll.u32 %v3827, 16
  %v3901 = vor.u32 %v3898, %v3899
  %v3903 = vshrl.u32 %v3828, 16
  %v3905 = vrot.slane %v3903, 7
  %v3906 = vshll.u32 %v3828, 16
  %v3908 = vor.u32 %v3905, %v3906
  %v3910 = vshrl.u32 %v3829, 16
  %v3912 = vrot.slane %v3910, 7
  %v3913 = vshll.u32 %v3829, 16
  %v3915 = vor.u32 %v3912, %v3913
  %v3917 = vshrl.u32 %v3830, 16
  %v3919 = vrot.slane %v3917, 7
  %v3920 = vshll.u32 %v3830, 16
  %v3922 = vor.u32 %v3919, %v3920
  %v3924 = vshrl.u32 %v3831, 16
  %v3926 = vrot.slane %v3924, 7
  %v3927 = vshll.u32 %v3831, 16
  %v3929 = vor.u32 %v3926, %v3927
  %v3931 = vshrl.u32 %v3832, 16
  %v3933 = vrot.slane %v3931, 7
  %v3934 = vshll.u32 %v3832, 16
  %v3936 = vor.u32 %v3933, %v3934
  %v3938 = vshrl.u32 %v3833, 16
  %v3940 = vrot.slane %v3938, 7
  %v3941 = vshll.u32 %v3833, 16
  %v3943 = vor.u32 %v3940, %v3941
  %v3945 = vshrl.u32 %v3834, 16
  %v3947 = vrot.slane %v3945, 7
  %v3948 = vshll.u32 %v3834, 16
  %v3950 = vor.u32 %v3947, %v3948
  %v3952 = vshrl.u32 %v3835, 16
  %v3954 = vrot.slane %v3952, 7
  %v3955 = vshll.u32 %v3835, 16
  %v3957 = vor.u32 %v3954, %v3955
  %v3959 = vshrl.u32 %v3836, 16
  %v3961 = vrot.slane %v3959, 7
  %v3962 = vshll.u32 %v3836, 16
  %v3964 = vor.u32 %v3961, %v3962
  %v3966 = vshrl.u32 %v3837, 16
  %v3968 = vrot.slane %v3966, 7
  %v3969 = vshll.u32 %v3837, 16
  %v3971 = vor.u32 %v3968, %v3969
  %v3973 = vshrl.u32 %v3838, 16
  %v3975 = vrot.slane %v3973, 7
  %v3976 = vshll.u32 %v3838, 16
  %v3978 = vor.u32 %v3975, %v3976
  %v3980 = vshrl.u32 %v3839, 16
  %v3982 = vrot.slane %v3980, 7
  %v3983 = vshll.u32 %v3839, 16
  %v3985 = vor.u32 %v3982, %v3983
  %v3987 = vshrl.u32 %v3840, 16
  %v3989 = vrot.slane %v3987, 7
  %v3990 = vshll.u32 %v3840, 16
  %v3992 = vor.u32 %v3989, %v3990
  %v3994 = vshrl.u32 %v3841, 16
  %v3996 = vrot.slane %v3994, 7
  %v3997 = vshll.u32 %v3841, 16
  %v3999 = vor.u32 %v3996, %v3997
  %v4001 = vshrl.u32 %v3842, 16
  %v4003 = vrot.slane %v4001, 7
  %v4004 = vshll.u32 %v3842, 16
  %v4006 = vor.u32 %v4003, %v4004
  %v4008 = vshrl.u32 %v3843, 16
  %v4010 = vrot.slane %v4008, 7
  %v4011 = vshll.u32 %v3843, 16
  %v4013 = vor.u32 %v4010, %v4011
  %v4015 = vshrl.u32 %v3844, 16
  %v4017 = vrot.slane %v4015, 7
  %v4018 = vshll.u32 %v3844, 16
  %v4020 = vor.u32 %v4017, %v4018
  %v4022 = vshrl.u32 %v3845, 16
  %v4024 = vrot.slane %v4022, 7
  %v4025 = vshll.u32 %v3845, 16
  %v4027 = vor.u32 %v4024, %v4025
  %v4029 = vshrl.u32 %v3846, 16
  %v4031 = vrot.slane %v4029, 7
  %v4032 = vshll.u32 %v3846, 16
  %v4034 = vor.u32 %v4031, %v4032
  %v4036 = vshrl.u32 %v3847, 16
  %v4038 = vrot.slane %v4036, 7
  %v4039 = vshll.u32 %v3847, 16
  %v4041 = vor.u32 %v4038, %v4039
  %v4043 = vshrl.u32 %v3848, 16
  %v4045 = vrot.slane %v4043, 7
  %v4046 = vshll.u32 %v3848, 16
  %v4048 = vor.u32 %v4045, %v4046
  %v4050 = vshrl.u32 %v3849, 16
  %v4052 = vrot.slane %v4050, 7
  %v4053 = vshll.u32 %v3849, 16
  %v4055 = vor.u32 %v4052, %v4053
  %v4057 = vshrl.u32 %v3850, 16
  %v4059 = vrot.slane %v4057, 7
  %v4060 = vshll.u32 %v3850, 16
  %v4062 = vor.u32 %v4059, %v4060
  %v4064 = vshrl.u32 %v3851, 16
  %v4066 = vrot.slane %v4064, 7
  %v4067 = vshll.u32 %v3851, 16
  %v4069 = vor.u32 %v4066, %v4067
  %v4071 = vshrl.u32 %v3852, 16
  %v4073 = vrot.slane %v4071, 7
  %v4074 = vshll.u32 %v3852, 16
  %v4076 = vor.u32 %v4073, %v4074
  %v4141 = vsel %vm428, 0, %v3859
  %v4142 = vsel %vm428, 0, %v3866
  %v4143 = vsel %vm428, 0, %v3873
  %v4144 = vsel %vm428, 0, %v3880
  %v4145 = vsel %vm428, 0, %v3887
  %v4146 = vsel %vm428, 0, %v3894
  %v4147 = vsel %vm428, 0, %v3901
  %v4148 = vsel %vm428, 0, %v3908
  %v4149 = vsel %vm428, 0, %v3915
  %v4150 = vsel %vm428, 0, %v3922
  %v4151 = vsel %vm428, 0, %v3929
  %v4152 = vsel %vm428, 0, %v3936
  %v4153 = vsel %vm428, 0, %v3943
  %v4154 = vsel %vm428, 0, %v3950
  %v4155 = vsel %vm428, 0, %v3957
  %v4156 = vsel %vm428, 0, %v3964
  %v4157 = vsel %vm428, 0, %v3971
  %v4158 = vsel %vm428, 0, %v3978
  %v4159 = vsel %vm428, 0, %v3985
  %v4160 = vsel %vm428, 0, %v3992
  %v4161 = vsel %vm428, 0, %v3999
  %v4162 = vsel %vm428, 0, %v4006
  %v4163 = vsel %vm428, 0, %v4013
  %v4164 = vsel %vm428, 0, %v4020
  %v4165 = vsel %vm428, 0, %v4027
  %v4166 = vsel %vm428, 0, %v4034
  %v4167 = vsel %vm428, 0, %v4041
  %v4168 = vsel %vm428, 0, %v4048
  %v4169 = vsel %vm428, 0, %v4055
  %v4170 = vsel %vm428, 0, %v4062
  %v4171 = vsel %vm428, 0, %v4069
  %v4172 = vsel %vm428, 0, %v4076
  %v4173 = vsel %vm428, %v3856, 0
  %v4174 = vsel %vm428, %v3863, 0
  %v4175 = vsel %vm428, %v3870, 0
  %v4176 = vsel %vm428, %v3877, 0
  %v4177 = vsel %vm428, %v3884, 0
  %v4178 = vsel %vm428, %v3891, 0
  %v4179 = vsel %vm428, %v3898, 0
  %v4180 = vsel %vm428, %v3905, 0
  %v4181 = vsel %vm428, %v3912, 0
  %v4182 = vsel %vm428, %v3919, 0
  %v4183 = vsel %vm428, %v3926, 0
  %v4184 = vsel %vm428, %v3933, 0
  %v4185 = vsel %vm428, %v3940, 0
  %v4186 = vsel %vm428, %v3947, 0
  %v4187 = vsel %vm428, %v3954, 0
  %v4188 = vsel %vm428, %v3961, 0
  %v4189 = vsel %vm428, %v3968, 0
  %v4190 = vsel %vm428, %v3975, 0
  %v4191 = vsel %vm428, %v3982, 0
  %v4192 = vsel %vm428, %v3989, 0
  %v4193 = vsel %vm428, %v3996, 0
  %v4194 = vsel %vm428, %v4003, 0
  %v4195 = vsel %vm428, %v4010, 0
  %v4196 = vsel %vm428, %v4017, 0
  %v4197 = vsel %vm428, %v4024, 0
  %v4198 = vsel %vm428, %v4031, 0
  %v4199 = vsel %vm428, %v4038, 0
  %v4200 = vsel %vm428, %v4045, 0
  %v4201 = vsel %vm428, %v4052, 0
  %v4202 = vsel %vm428, %v4059, 0
  %v4203 = vsel %vm428, %v4066, 0
  %v4204 = vsel %vm428, %v4073, 0
  %v4269 = vunpack.c.l.b16 %v4141
  %v4270 = vunpack.c.h.b16 %v4141
  %v4271 = vunpack.c.l.b16 %v4173
  %v4272 = vunpack.c.l.b16 %v4142
  %v4273 = vunpack.c.h.b16 %v4142
  %v4274 = vunpack.c.l.b16 %v4174
  %v4275 = vunpack.c.l.b16 %v4143
  %v4276 = vunpack.c.h.b16 %v4143
  %v4277 = vunpack.c.l.b16 %v4175
  %v4278 = vunpack.c.l.b16 %v4144
  %v4279 = vunpack.c.h.b16 %v4144
  %v4280 = vunpack.c.l.b16 %v4176
  %v4281 = vunpack.c.l.b16 %v4145
  %v4282 = vunpack.c.h.b16 %v4145
  %v4283 = vunpack.c.l.b16 %v4177
  %v4284 = vunpack.c.l.b16 %v4146
  %v4285 = vunpack.c.h.b16 %v4146
  %v4286 = vunpack.c.l.b16 %v4178
  %v4287 = vunpack.c.l.b16 %v4147
  %v4288 = vunpack.c.h.b16 %v4147
  %v4289 = vunpack.c.l.b16 %v4179
  %v4290 = vunpack.c.l.b16 %v4148
  %v4291 = vunpack.c.h.b16 %v4148
  %v4292 = vunpack.c.l.b16 %v4180
  %v4293 = vunpack.c.l.b16 %v4149
  %v4294 = vunpack.c.h.b16 %v4149
  %v4295 = vunpack.c.l.b16 %v4181
  %v4296 = vunpack.c.l.b16 %v4150
  %v4297 = vunpack.c.h.b16 %v4150
  %v4298 = vunpack.c.l.b16 %v4182
  %v4299 = vunpack.c.l.b16 %v4151
  %v4300 = vunpack.c.h.b16 %v4151
  %v4301 = vunpack.c.l.b16 %v4183
  %v4302 = vunpack.c.l.b16 %v4152
  %v4303 = vunpack.c.h.b16 %v4152
  %v4304 = vunpack.c.l.b16 %v4184
  %v4305 = vunpack.c.l.b16 %v4153
  %v4306 = vunpack.c.h.b16 %v4153
  %v4307 = vunpack.c.l.b16 %v4185
  %v4308 = vunpack.c.l.b16 %v4154
  %v4309 = vunpack.c.h.b16 %v4154
  %v4310 = vunpack.c.l.b16 %v4186
  %v4311 = vunpack.c.l.b16 %v4155
  %v4312 = vunpack.c.h.b16 %v4155
  %v4313 = vunpack.c.l.b16 %v4187
  %v4314 = vunpack.c.l.b16 %v4156
  %v4315 = vunpack.c.h.b16 %v4156
  %v4316 = vunpack.c.l.b16 %v4188
  %v4317 = vunpack.c.l.b16 %v4157
  %v4318 = vunpack.c.h.b16 %v4157
  %v4319 = vunpack.c.l.b16 %v4189
  %v4320 = vunpack.c.l.b16 %v4158
  %v4321 = vunpack.c.h.b16 %v4158
  %v4322 = vunpack.c.l.b16 %v4190
  %v4323 = vunpack.c.l.b16 %v4159
  %v4324 = vunpack.c.h.b16 %v4159
  %v4325 = vunpack.c.l.b16 %v4191
  %v4326 = vunpack.c.l.b16 %v4160
  %v4327 = vunpack.c.h.b16 %v4160
  %v4328 = vunpack.c.l.b16 %v4192
  %v4329 = vunpack.c.l.b16 %v4161
  %v4330 = vunpack.c.h.b16 %v4161
  %v4331 = vunpack.c.l.b16 %v4193
  %v4332 = vunpack.c.l.b16 %v4162
  %v4333 = vunpack.c.h.b16 %v4162
  %v4334 = vunpack.c.l.b16 %v4194
  %v4335 = vunpack.c.l.b16 %v4163
  %v4336 = vunpack.c.h.b16 %v4163
  %v4337 = vunpack.c.l.b16 %v4195
  %v4338 = vunpack.c.l.b16 %v4164
  %v4339 = vunpack.c.h.b16 %v4164
  %v4340 = vunpack.c.l.b16 %v4196
  %v4341 = vunpack.c.l.b16 %v4165
  %v4342 = vunpack.c.h.b16 %v4165
  %v4343 = vunpack.c.l.b16 %v4197
  %v4344 = vunpack.c.l.b16 %v4166
  %v4345 = vunpack.c.h.b16 %v4166
  %v4346 = vunpack.c.l.b16 %v4198
  %v4347 = vunpack.c.l.b16 %v4167
  %v4348 = vunpack.c.h.b16 %v4167
  %v4349 = vunpack.c.l.b16 %v4199
  %v4350 = vunpack.c.l.b16 %v4168
  %v4351 = vunpack.c.h.b16 %v4168
  %v4352 = vunpack.c.l.b16 %v4200
  %v4353 = vunpack.c.l.b16 %v4169
  %v4354 = vunpack.c.h.b16 %v4169
  %v4355 = vunpack.c.l.b16 %v4201
  %v4356 = vunpack.c.l.b16 %v4170
  %v4357 = vunpack.c.h.b16 %v4170
  %v4358 = vunpack.c.l.b16 %v4202
  %v4359 = vunpack.c.l.b16 %v4171
  %v4360 = vunpack.c.h.b16 %v4171
  %v4361 = vunpack.c.l.b16 %v4203
  %v4362 = vunpack.c.l.b16 %v4172
  %v4363 = vunpack.c.h.b16 %v4172
  %v4364 = vunpack.c.l.b16 %v4204
  %v4365 = vpack.c.b16 %v4269, %v4269
  %v4366 = vpack.c.b16 %v4270, %v4270
  %v4367 = vpack.c.b16 %v4271, %v4271
  %v4368 = vpack.c.b16 %v4272, %v4272
  %v4369 = vpack.c.b16 %v4273, %v4273
  %v4370 = vpack.c.b16 %v4274, %v4274
  %v4371 = vpack.c.b16 %v4275, %v4275
  %v4372 = vpack.c.b16 %v4276, %v4276
  %v4373 = vpack.c.b16 %v4277, %v4277
  %v4374 = vpack.c.b16 %v4278, %v4278
  %v4375 = vpack.c.b16 %v4279, %v4279
  %v4376 = vpack.c.b16 %v4280, %v4280
  %v4377 = vpack.c.b16 %v4281, %v4281
  %v4378 = vpack.c.b16 %v4282, %v4282
  %v4379 = vpack.c.b16 %v4283, %v4283
  %v4380 = vpack.c.b16 %v4284, %v4284
  %v4381 = vpack.c.b16 %v4285, %v4285
  %v4382 = vpack.c.b16 %v4286, %v4286
  %v4383 = vpack.c.b16 %v4287, %v4287
  %v4384 = vpack.c.b16 %v4288, %v4288
  %v4385 = vpack.c.b16 %v4289, %v4289
  %v4386 = vpack.c.b16 %v4290, %v4290
  %v4387 = vpack.c.b16 %v4291, %v4291
  %v4388 = vpack.c.b16 %v4292, %v4292
  %v4389 = vpack.c.b16 %v4293, %v4293
  %v4390 = vpack.c.b16 %v4294, %v4294
  %v4391 = vpack.c.b16 %v4295, %v4295
  %v4392 = vpack.c.b16 %v4296, %v4296
  %v4393 = vpack.c.b16 %v4297, %v4297
  %v4394 = vpack.c.b16 %v4298, %v4298
  %v4395 = vpack.c.b16 %v4299, %v4299
  %v4396 = vpack.c.b16 %v4300, %v4300
  %v4397 = vpack.c.b16 %v4301, %v4301
  %v4398 = vpack.c.b16 %v4302, %v4302
  %v4399 = vpack.c.b16 %v4303, %v4303
  %v4400 = vpack.c.b16 %v4304, %v4304
  %v4401 = vpack.c.b16 %v4305, %v4305
  %v4402 = vpack.c.b16 %v4306, %v4306
  %v4403 = vpack.c.b16 %v4307, %v4307
  %v4404 = vpack.c.b16 %v4308, %v4308
  %v4405 = vpack.c.b16 %v4309, %v4309
  %v4406 = vpack.c.b16 %v4310, %v4310
  %v4407 = vpack.c.b16 %v4311, %v4311
  %v4408 = vpack.c.b16 %v4312, %v4312
  %v4409 = vpack.c.b16 %v4313, %v4313
  %v4410 = vpack.c.b16 %v4314, %v4314
  %v4411 = vpack.c.b16 %v4315, %v4315
  %v4412 = vpack.c.b16 %v4316, %v4316
  %v4413 = vpack.c.b16 %v4317, %v4317
  %v4414 = vpack.c.b16 %v4318, %v4318
  %v4415 = vpack.c.b16 %v4319, %v4319
  %v4416 = vpack.c.b16 %v4320, %v4320
  %v4417 = vpack.c.b16 %v4321, %v4321
  %v4418 = vpack.c.b16 %v4322, %v4322
  %v4419 = vpack.c.b16 %v4323, %v4323
  %v4420 = vpack.c.b16 %v4324, %v4324
  %v4421 = vpack.c.b16 %v4325, %v4325
  %v4422 = vpack.c.b16 %v4326, %v4326
  %v4423 = vpack.c.b16 %v4327, %v4327
  %v4424 = vpack.c.b16 %v4328, %v4328
  %v4425 = vpack.c.b16 %v4329, %v4329
  %v4426 = vpack.c.b16 %v4330, %v4330
  %v4427 = vpack.c.b16 %v4331, %v4331
  %v4428 = vpack.c.b16 %v4332, %v4332
  %v4429 = vpack.c.b16 %v4333, %v4333
  %v4430 = vpack.c.b16 %v4334, %v4334
  %v4431 = vpack.c.b16 %v4335, %v4335
  %v4432 = vpack.c.b16 %v4336, %v4336
  %v4433 = vpack.c.b16 %v4337, %v4337
  %v4434 = vpack.c.b16 %v4338, %v4338
  %v4435 = vpack.c.b16 %v4339, %v4339
  %v4436 = vpack.c.b16 %v4340, %v4340
  %v4437 = vpack.c.b16 %v4341, %v4341
  %v4438 = vpack.c.b16 %v4342, %v4342
  %v4439 = vpack.c.b16 %v4343, %v4343
  %v4440 = vpack.c.b16 %v4344, %v4344
  %v4441 = vpack.c.b16 %v4345, %v4345
  %v4442 = vpack.c.b16 %v4346, %v4346
  %v4443 = vpack.c.b16 %v4347, %v4347
  %v4444 = vpack.c.b16 %v4348, %v4348
  %v4445 = vpack.c.b16 %v4349, %v4349
  %v4446 = vpack.c.b16 %v4350, %v4350
  %v4447 = vpack.c.b16 %v4351, %v4351
  %v4448 = vpack.c.b16 %v4352, %v4352
  %v4449 = vpack.c.b16 %v4353, %v4353
  %v4450 = vpack.c.b16 %v4354, %v4354
  %v4451 = vpack.c.b16 %v4355, %v4355
  %v4452 = vpack.c.b16 %v4356, %v4356
  %v4453 = vpack.c.b16 %v4357, %v4357
  %v4454 = vpack.c.b16 %v4358, %v4358
  %v4455 = vpack.c.b16 %v4359, %v4359
  %v4456 = vpack.c.b16 %v4360, %v4360
  %v4457 = vpack.c.b16 %v4361, %v4361
  %v4458 = vpack.c.b16 %v4362, %v4362
  %v4459 = vpack.c.b16 %v4363, %v4363
  %v4460 = vpack.c.b16 %v4364, %v4364
  %s4557 = scalar_lea.vmem [#allocation3], 12
  %4558 = vst [vmem:[%s4557] sm:$0xf] %v4365
  %4559 = vst [vmem:[%s4557 + $0x4] sm:$0xf] %v4366
  %4560 = vst [vmem:[%s4557 + $0x8] sm:$0x1] %v4367
  %4561 = vst [vmem:[%s4557 + $0xc] sm:$0xf] %v4368
  %4562 = vst [vmem:[%s4557 + $0x10] sm:$0xf] %v4369
  %4563 = vst [vmem:[%s4557 + $0x14] sm:$0x1] %v4370
  %4564 = vst [vmem:[%s4557 + $0x18] sm:$0xf] %v4371
  %4565 = vst [vmem:[%s4557 + $0x1c] sm:$0xf] %v4372
  %4566 = vst [vmem:[%s4557 + $0x20] sm:$0x1] %v4373
  %4567 = vst [vmem:[%s4557 + $0x24] sm:$0xf] %v4374
  %4568 = vst [vmem:[%s4557 + $0x28] sm:$0xf] %v4375
  %4569 = vst [vmem:[%s4557 + $0x2c] sm:$0x1] %v4376
  %4570 = vst [vmem:[%s4557 + $0x30] sm:$0xf] %v4377
  %4571 = vst [vmem:[%s4557 + $0x34] sm:$0xf] %v4378
  %4572 = vst [vmem:[%s4557 + $0x38] sm:$0x1] %v4379
  %4573 = vst [vmem:[%s4557 + $0x3c] sm:$0xf] %v4380
  %4574 = vst [vmem:[%s4557 + $0x40] sm:$0xf] %v4381
  %4575 = vst [vmem:[%s4557 + $0x44] sm:$0x1] %v4382
  %4576 = vst [vmem:[%s4557 + $0x48] sm:$0xf] %v4383
  %4577 = vst [vmem:[%s4557 + $0x4c] sm:$0xf] %v4384
  %4578 = vst [vmem:[%s4557 + $0x50] sm:$0x1] %v4385
  %4579 = vst [vmem:[%s4557 + $0x54] sm:$0xf] %v4386
  %4580 = vst [vmem:[%s4557 + $0x58] sm:$0xf] %v4387
  %4581 = vst [vmem:[%s4557 + $0x5c] sm:$0x1] %v4388
  %4582 = vst [vmem:[%s4557 + $0x60] sm:$0xf] %v4389
  %4583 = vst [vmem:[%s4557 + $0x64] sm:$0xf] %v4390
  %4584 = vst [vmem:[%s4557 + $0x68] sm:$0x1] %v4391
  %4585 = vst [vmem:[%s4557 + $0x6c] sm:$0xf] %v4392
  %4586 = vst [vmem:[%s4557 + $0x70] sm:$0xf] %v4393
  %4587 = vst [vmem:[%s4557 + $0x74] sm:$0x1] %v4394
  %4588 = vst [vmem:[%s4557 + $0x78] sm:$0xf] %v4395
  %4589 = vst [vmem:[%s4557 + $0x7c] sm:$0xf] %v4396
  %4590 = vst [vmem:[%s4557 + $0x80] sm:$0x1] %v4397
  %4591 = vst [vmem:[%s4557 + $0x84] sm:$0xf] %v4398
  %4592 = vst [vmem:[%s4557 + $0x88] sm:$0xf] %v4399
  %4593 = vst [vmem:[%s4557 + $0x8c] sm:$0x1] %v4400
  %4594 = vst [vmem:[%s4557 + $0x90] sm:$0xf] %v4401
  %4595 = vst [vmem:[%s4557 + $0x94] sm:$0xf] %v4402
  %4596 = vst [vmem:[%s4557 + $0x98] sm:$0x1] %v4403
  %4597 = vst [vmem:[%s4557 + $0x9c] sm:$0xf] %v4404
  %4598 = vst [vmem:[%s4557 + $0xa0] sm:$0xf] %v4405
  %4599 = vst [vmem:[%s4557 + $0xa4] sm:$0x1] %v4406
  %4600 = vst [vmem:[%s4557 + $0xa8] sm:$0xf] %v4407
  %4601 = vst [vmem:[%s4557 + $0xac] sm:$0xf] %v4408
  %4602 = vst [vmem:[%s4557 + $0xb0] sm:$0x1] %v4409
  %4603 = vst [vmem:[%s4557 + $0xb4] sm:$0xf] %v4410
  %4604 = vst [vmem:[%s4557 + $0xb8] sm:$0xf] %v4411
  %4605 = vst [vmem:[%s4557 + $0xbc] sm:$0x1] %v4412
  %4606 = vst [vmem:[%s4557 + $0xd8] sm:$0xf] %v4413
  %4607 = vst [vmem:[%s4557 + $0xdc] sm:$0xf] %v4414
  %4608 = vst [vmem:[%s4557 + $0xe0] sm:$0x1] %v4415
  %4609 = vst [vmem:[%s4557 + $0xe4] sm:$0xf] %v4416
  %4610 = vst [vmem:[%s4557 + $0xe8] sm:$0xf] %v4417
  %4611 = vst [vmem:[%s4557 + $0xec] sm:$0x1] %v4418
  %4612 = vst [vmem:[%s4557 + $0xf0] sm:$0xf] %v4419
  %4613 = vst [vmem:[%s4557 + $0xf4] sm:$0xf] %v4420
  %4614 = vst [vmem:[%s4557 + $0xf8] sm:$0x1] %v4421
  %4615 = vst [vmem:[%s4557 + $0xfc] sm:$0xf] %v4422
  %4616 = vst [vmem:[%s4557 + $0x100] sm:$0xf] %v4423
  %4617 = vst [vmem:[%s4557 + $0x104] sm:$0x1] %v4424
  %4618 = vst [vmem:[%s4557 + $0x108] sm:$0xf] %v4425
  %4619 = vst [vmem:[%s4557 + $0x10c] sm:$0xf] %v4426
  %4620 = vst [vmem:[%s4557 + $0x110] sm:$0x1] %v4427
  %4621 = vst [vmem:[%s4557 + $0x114] sm:$0xf] %v4428
  %4622 = vst [vmem:[%s4557 + $0x118] sm:$0xf] %v4429
  %4623 = vst [vmem:[%s4557 + $0x11c] sm:$0x1] %v4430
  %4624 = vst [vmem:[%s4557 + $0x120] sm:$0xf] %v4431
  %4625 = vst [vmem:[%s4557 + $0x124] sm:$0xf] %v4432
  %4626 = vst [vmem:[%s4557 + $0x128] sm:$0x1] %v4433
  %4627 = vst [vmem:[%s4557 + $0x12c] sm:$0xf] %v4434
  %4628 = vst [vmem:[%s4557 + $0x130] sm:$0xf] %v4435
  %4629 = vst [vmem:[%s4557 + $0x134] sm:$0x1] %v4436
  %4630 = vst [vmem:[%s4557 + $0x138] sm:$0xf] %v4437
  %4631 = vst [vmem:[%s4557 + $0x13c] sm:$0xf] %v4438
  %4632 = vst [vmem:[%s4557 + $0x140] sm:$0x1] %v4439
  %4633 = vst [vmem:[%s4557 + $0x144] sm:$0xf] %v4440
  %4634 = vst [vmem:[%s4557 + $0x148] sm:$0xf] %v4441
  %4635 = vst [vmem:[%s4557 + $0x14c] sm:$0x1] %v4442
  %4636 = vst [vmem:[%s4557 + $0x150] sm:$0xf] %v4443
  %4637 = vst [vmem:[%s4557 + $0x154] sm:$0xf] %v4444
  %4638 = vst [vmem:[%s4557 + $0x158] sm:$0x1] %v4445
  %4639 = vst [vmem:[%s4557 + $0x15c] sm:$0xf] %v4446
  %4640 = vst [vmem:[%s4557 + $0x160] sm:$0xf] %v4447
  %4641 = vst [vmem:[%s4557 + $0x164] sm:$0x1] %v4448
  %4642 = vst [vmem:[%s4557 + $0x168] sm:$0xf] %v4449
  %4643 = vst [vmem:[%s4557 + $0x16c] sm:$0xf] %v4450
  %4644 = vst [vmem:[%s4557 + $0x170] sm:$0x1] %v4451
  %4645 = vst [vmem:[%s4557 + $0x174] sm:$0xf] %v4452
  %4646 = vst [vmem:[%s4557 + $0x178] sm:$0xf] %v4453
  %4647 = vst [vmem:[%s4557 + $0x17c] sm:$0x1] %v4454
  %4648 = vst [vmem:[%s4557 + $0x180] sm:$0xf] %v4455
  %4649 = vst [vmem:[%s4557 + $0x184] sm:$0xf] %v4456
  %4650 = vst [vmem:[%s4557 + $0x188] sm:$0x1] %v4457
  %4651 = vst [vmem:[%s4557 + $0x18c] sm:$0xf] %v4458
  %4652 = vst [vmem:[%s4557 + $0x190] sm:$0xf] %v4459
  %4653 = vst [vmem:[%s4557 + $0x194] sm:$0x1] %v4460
  %v4654 = vld [vmem:[#allocation3] sm:$0xf]
  %v4655 = vld [vmem:[#allocation3 + $0x4] sm:$0xf]
  %v4656 = vld [vmem:[#allocation3 + $0x8] sm:$0x1]
  %v4657 = vld [vmem:[#allocation3 + $0xc] sm:$0xf]
  %v4658 = vld [vmem:[#allocation3 + $0x10] sm:$0xf]
  %v4659 = vld [vmem:[#allocation3 + $0x14] sm:$0x1]
  %v4660 = vld [vmem:[#allocation3 + $0x18] sm:$0xf]
  %v4661 = vld [vmem:[#allocation3 + $0x1c] sm:$0xf]
  %v4662 = vld [vmem:[#allocation3 + $0x20] sm:$0x1]
  %v4663 = vld [vmem:[#allocation3 + $0x24] sm:$0xf]
  %v4664 = vld [vmem:[#allocation3 + $0x28] sm:$0xf]
  %v4665 = vld [vmem:[#allocation3 + $0x2c] sm:$0x1]
  %v4666 = vld [vmem:[#allocation3 + $0x30] sm:$0xf]
  %v4667 = vld [vmem:[#allocation3 + $0x34] sm:$0xf]
  %v4668 = vld [vmem:[#allocation3 + $0x38] sm:$0x1]
  %v4669 = vld [vmem:[#allocation3 + $0x3c] sm:$0xf]
  %v4670 = vld [vmem:[#allocation3 + $0x40] sm:$0xf]
  %v4671 = vld [vmem:[#allocation3 + $0x44] sm:$0x1]
  %v4672 = vld [vmem:[#allocation3 + $0x48] sm:$0xf]
  %v4673 = vld [vmem:[#allocation3 + $0x4c] sm:$0xf]
  %v4674 = vld [vmem:[#allocation3 + $0x50] sm:$0x1]
  %v4675 = vld [vmem:[#allocation3 + $0x54] sm:$0xf]
  %v4676 = vld [vmem:[#allocation3 + $0x58] sm:$0xf]
  %v4677 = vld [vmem:[#allocation3 + $0x5c] sm:$0x1]
  %v4678 = vld [vmem:[#allocation3 + $0x60] sm:$0xf]
  %v4679 = vld [vmem:[#allocation3 + $0x64] sm:$0xf]
  %v4680 = vld [vmem:[#allocation3 + $0x68] sm:$0x1]
  %v4681 = vld [vmem:[#allocation3 + $0x6c] sm:$0xf]
  %v4682 = vld [vmem:[#allocation3 + $0x70] sm:$0xf]
  %v4683 = vld [vmem:[#allocation3 + $0x74] sm:$0x1]
  %v4684 = vld [vmem:[#allocation3 + $0x78] sm:$0xf]
  %v4685 = vld [vmem:[#allocation3 + $0x7c] sm:$0xf]
  %v4686 = vld [vmem:[#allocation3 + $0x80] sm:$0x1]
  %v4687 = vld [vmem:[#allocation3 + $0x84] sm:$0xf]
  %v4688 = vld [vmem:[#allocation3 + $0x88] sm:$0xf]
  %v4689 = vld [vmem:[#allocation3 + $0x8c] sm:$0x1]
  %v4690 = vld [vmem:[#allocation3 + $0x90] sm:$0xf]
  %v4691 = vld [vmem:[#allocation3 + $0x94] sm:$0xf]
  %v4692 = vld [vmem:[#allocation3 + $0x98] sm:$0x1]
  %v4693 = vld [vmem:[#allocation3 + $0x9c] sm:$0xf]
  %v4694 = vld [vmem:[#allocation3 + $0xa0] sm:$0xf]
  %v4695 = vld [vmem:[#allocation3 + $0xa4] sm:$0x1]
  %v4696 = vld [vmem:[#allocation3 + $0xa8] sm:$0xf]
  %v4697 = vld [vmem:[#allocation3 + $0xac] sm:$0xf]
  %v4698 = vld [vmem:[#allocation3 + $0xb0] sm:$0x1]
  %v4699 = vld [vmem:[#allocation3 + $0xb4] sm:$0xf]
  %v4700 = vld [vmem:[#allocation3 + $0xb8] sm:$0xf]
  %v4701 = vld [vmem:[#allocation3 + $0xbc] sm:$0x1]
  %v4702 = vld [vmem:[#allocation3 + $0xc0] sm:$0xf]
  %v4703 = vld [vmem:[#allocation3 + $0xc4] sm:$0xf]
  %v4704 = vld [vmem:[#allocation3 + $0xc8] sm:$0x1]
  %v4705 = vld [vmem:[#allocation3 + $0xcc] sm:$0xf]
  %v4706 = vld [vmem:[#allocation3 + $0xd0] sm:$0xf]
  %v4707 = vld [vmem:[#allocation3 + $0xd4] sm:$0x1]
  %v4708 = vld [vmem:[#allocation3 + $0xd8] sm:$0xf]
  %v4709 = vld [vmem:[#allocation3 + $0xdc] sm:$0xf]
  %v4710 = vld [vmem:[#allocation3 + $0xe0] sm:$0x1]
  %v4711 = vld [vmem:[#allocation3 + $0xe4] sm:$0xf]
  %v4712 = vld [vmem:[#allocation3 + $0xe8] sm:$0xf]
  %v4713 = vld [vmem:[#allocation3 + $0xec] sm:$0x1]
  %v4714 = vld [vmem:[#allocation3 + $0xf0] sm:$0xf]
  %v4715 = vld [vmem:[#allocation3 + $0xf4] sm:$0xf]
  %v4716 = vld [vmem:[#allocation3 + $0xf8] sm:$0x1]
  %v4717 = vld [vmem:[#allocation3 + $0xfc] sm:$0xf]
  %v4718 = vld [vmem:[#allocation3 + $0x100] sm:$0xf]
  %v4719 = vld [vmem:[#allocation3 + $0x104] sm:$0x1]
  %v4720 = vld [vmem:[#allocation3 + $0x108] sm:$0xf]
  %v4721 = vld [vmem:[#allocation3 + $0x10c] sm:$0xf]
  %v4722 = vld [vmem:[#allocation3 + $0x110] sm:$0x1]
  %v4723 = vld [vmem:[#allocation3 + $0x114] sm:$0xf]
  %v4724 = vld [vmem:[#allocation3 + $0x118] sm:$0xf]
  %v4725 = vld [vmem:[#allocation3 + $0x11c] sm:$0x1]
  %v4726 = vld [vmem:[#allocation3 + $0x120] sm:$0xf]
  %v4727 = vld [vmem:[#allocation3 + $0x124] sm:$0xf]
  %v4728 = vld [vmem:[#allocation3 + $0x128] sm:$0x1]
  %v4729 = vld [vmem:[#allocation3 + $0x12c] sm:$0xf]
  %v4730 = vld [vmem:[#allocation3 + $0x130] sm:$0xf]
  %v4731 = vld [vmem:[#allocation3 + $0x134] sm:$0x1]
  %v4732 = vld [vmem:[#allocation3 + $0x138] sm:$0xf]
  %v4733 = vld [vmem:[#allocation3 + $0x13c] sm:$0xf]
  %v4734 = vld [vmem:[#allocation3 + $0x140] sm:$0x1]
  %v4735 = vld [vmem:[#allocation3 + $0x144] sm:$0xf]
  %v4736 = vld [vmem:[#allocation3 + $0x148] sm:$0xf]
  %v4737 = vld [vmem:[#allocation3 + $0x14c] sm:$0x1]
  %v4738 = vld [vmem:[#allocation3 + $0x150] sm:$0xf]
  %v4739 = vld [vmem:[#allocation3 + $0x154] sm:$0xf]
  %v4740 = vld [vmem:[#allocation3 + $0x158] sm:$0x1]
  %v4741 = vld [vmem:[#allocation3 + $0x15c] sm:$0xf]
  %v4742 = vld [vmem:[#allocation3 + $0x160] sm:$0xf]
  %v4743 = vld [vmem:[#allocation3 + $0x164] sm:$0x1]
  %v4744 = vld [vmem:[#allocation3 + $0x168] sm:$0xf]
  %v4745 = vld [vmem:[#allocation3 + $0x16c] sm:$0xf]
  %v4746 = vld [vmem:[#allocation3 + $0x170] sm:$0x1]
  %v4747 = vld [vmem:[#allocation3 + $0x174] sm:$0xf]
  %v4748 = vld [vmem:[#allocation3 + $0x178] sm:$0xf]
  %v4749 = vld [vmem:[#allocation3 + $0x17c] sm:$0x1]
  %v4750 = vld [vmem:[#allocation3 + $0x180] sm:$0xf]
  %v4751 = vld [vmem:[#allocation3 + $0x184] sm:$0xf]
  %v4752 = vld [vmem:[#allocation3 + $0x188] sm:$0x1]
  %v4753 = vld [vmem:[#allocation3 + $0x18c] sm:$0xf]
  %v4754 = vld [vmem:[#allocation3 + $0x190] sm:$0xf]
  %v4755 = vld [vmem:[#allocation3 + $0x194] sm:$0x1]
  %v4756 = vld [vmem:[#allocation3 + $0x198] sm:$0xf]
  %v4757 = vld [vmem:[#allocation3 + $0x19c] sm:$0xf]
  %v4758 = vld [vmem:[#allocation3 + $0x1a0] sm:$0x1]
  %v4759 = vld [vmem:[#allocation3 + $0x1a4] sm:$0xf]
  %v4760 = vld [vmem:[#allocation3 + $0x1a8] sm:$0xf]
  %v4761 = vld [vmem:[#allocation3 + $0x1ac] sm:$0x1]
  %v4826 = vunpack.c.l.b16 %v4654
  %v4827 = vunpack.c.l.b16 %v4655
  %v4828 = vunpack.c.l.b16 %v4657
  %v4829 = vunpack.c.l.b16 %v4658
  %v4830 = vunpack.c.l.b16 %v4660
  %v4831 = vunpack.c.l.b16 %v4661
  %v4832 = vunpack.c.l.b16 %v4663
  %v4833 = vunpack.c.l.b16 %v4664
  %v4834 = vunpack.c.l.b16 %v4666
  %v4835 = vunpack.c.l.b16 %v4667
  %v4836 = vunpack.c.l.b16 %v4669
  %v4837 = vunpack.c.l.b16 %v4670
  %v4838 = vunpack.c.l.b16 %v4672
  %v4839 = vunpack.c.l.b16 %v4673
  %v4840 = vunpack.c.l.b16 %v4675
  %v4841 = vunpack.c.l.b16 %v4676
  %v4842 = vunpack.c.l.b16 %v4678
  %v4843 = vunpack.c.l.b16 %v4679
  %v4844 = vunpack.c.l.b16 %v4681
  %v4845 = vunpack.c.l.b16 %v4682
  %v4846 = vunpack.c.l.b16 %v4684
  %v4847 = vunpack.c.l.b16 %v4685
  %v4848 = vunpack.c.l.b16 %v4687
  %v4849 = vunpack.c.l.b16 %v4688
  %v4850 = vunpack.c.l.b16 %v4690
  %v4851 = vunpack.c.l.b16 %v4691
  %v4852 = vunpack.c.l.b16 %v4693
  %v4853 = vunpack.c.l.b16 %v4694
  %v4854 = vunpack.c.l.b16 %v4696
  %v4855 = vunpack.c.l.b16 %v4697
  %v4856 = vunpack.c.l.b16 %v4699
  %v4857 = vunpack.c.l.b16 %v4700
  %v4858 = vunpack.c.l.b16 %v4708
  %v4859 = vunpack.c.l.b16 %v4709
  %v4860 = vunpack.c.l.b16 %v4711
  %v4861 = vunpack.c.l.b16 %v4712
  %v4862 = vunpack.c.l.b16 %v4714
  %v4863 = vunpack.c.l.b16 %v4715
  %v4864 = vunpack.c.l.b16 %v4717
  %v4865 = vunpack.c.l.b16 %v4718
  %v4866 = vunpack.c.l.b16 %v4720
  %v4867 = vunpack.c.l.b16 %v4721
  %v4868 = vunpack.c.l.b16 %v4723
  %v4869 = vunpack.c.l.b16 %v4724
  %v4870 = vunpack.c.l.b16 %v4726
  %v4871 = vunpack.c.l.b16 %v4727
  %v4872 = vunpack.c.l.b16 %v4729
  %v4873 = vunpack.c.l.b16 %v4730
  %v4874 = vunpack.c.l.b16 %v4732
  %v4875 = vunpack.c.l.b16 %v4733
  %v4876 = vunpack.c.l.b16 %v4735
  %v4877 = vunpack.c.l.b16 %v4736
  %v4878 = vunpack.c.l.b16 %v4738
  %v4879 = vunpack.c.l.b16 %v4739
  %v4880 = vunpack.c.l.b16 %v4741
  %v4881 = vunpack.c.l.b16 %v4742
  %v4882 = vunpack.c.l.b16 %v4744
  %v4883 = vunpack.c.l.b16 %v4745
  %v4884 = vunpack.c.l.b16 %v4747
  %v4885 = vunpack.c.l.b16 %v4748
  %v4886 = vunpack.c.l.b16 %v4750
  %v4887 = vunpack.c.l.b16 %v4751
  %v4888 = vunpack.c.l.b16 %v4753
  %v4889 = vunpack.c.l.b16 %v4754
  %v4890 = vpack.c.b16 %v4827, %v4826
  %v4891 = vpack.c.b16 %v4829, %v4828
  %v4892 = vpack.c.b16 %v4831, %v4830
  %v4893 = vpack.c.b16 %v4833, %v4832
  %v4894 = vpack.c.b16 %v4835, %v4834
  %v4895 = vpack.c.b16 %v4837, %v4836
  %v4896 = vpack.c.b16 %v4839, %v4838
  %v4897 = vpack.c.b16 %v4841, %v4840
  %v4898 = vpack.c.b16 %v4843, %v4842
  %v4899 = vpack.c.b16 %v4845, %v4844
  %v4900 = vpack.c.b16 %v4847, %v4846
  %v4901 = vpack.c.b16 %v4849, %v4848
  %v4902 = vpack.c.b16 %v4851, %v4850
  %v4903 = vpack.c.b16 %v4853, %v4852
  %v4904 = vpack.c.b16 %v4855, %v4854
  %v4905 = vpack.c.b16 %v4857, %v4856
  %v4906 = vpack.c.b16 %v4859, %v4858
  %v4907 = vpack.c.b16 %v4861, %v4860
  %v4908 = vpack.c.b16 %v4863, %v4862
  %v4909 = vpack.c.b16 %v4865, %v4864
  %v4910 = vpack.c.b16 %v4867, %v4866
  %v4911 = vpack.c.b16 %v4869, %v4868
  %v4912 = vpack.c.b16 %v4871, %v4870
  %v4913 = vpack.c.b16 %v4873, %v4872
  %v4914 = vpack.c.b16 %v4875, %v4874
  %v4915 = vpack.c.b16 %v4877, %v4876
  %v4916 = vpack.c.b16 %v4879, %v4878
  %v4917 = vpack.c.b16 %v4881, %v4880
  %v4918 = vpack.c.b16 %v4883, %v4882
  %v4919 = vpack.c.b16 %v4885, %v4884
  %v4920 = vpack.c.b16 %v4887, %v4886
  %v4921 = vpack.c.b16 %v4889, %v4888
  %v4986 = vunpack.c.l.b16 %v4656
  %v4987 = vunpack.c.l.b16 %v4659
  %v4988 = vunpack.c.l.b16 %v4662
  %v4989 = vunpack.c.l.b16 %v4665
  %v4990 = vunpack.c.l.b16 %v4668
  %v4991 = vunpack.c.l.b16 %v4671
  %v4992 = vunpack.c.l.b16 %v4674
  %v4993 = vunpack.c.l.b16 %v4677
  %v4994 = vunpack.c.l.b16 %v4680
  %v4995 = vunpack.c.l.b16 %v4683
  %v4996 = vunpack.c.l.b16 %v4686
  %v4997 = vunpack.c.l.b16 %v4689
  %v4998 = vunpack.c.l.b16 %v4692
  %v4999 = vunpack.c.l.b16 %v4695
  %v5000 = vunpack.c.l.b16 %v4698
  %v5001 = vunpack.c.l.b16 %v4701
  %v5002 = vunpack.c.l.b16 %v4710
  %v5003 = vunpack.c.l.b16 %v4713
  %v5004 = vunpack.c.l.b16 %v4716
  %v5005 = vunpack.c.l.b16 %v4719
  %v5006 = vunpack.c.l.b16 %v4722
  %v5007 = vunpack.c.l.b16 %v4725
  %v5008 = vunpack.c.l.b16 %v4728
  %v5009 = vunpack.c.l.b16 %v4731
  %v5010 = vunpack.c.l.b16 %v4734
  %v5011 = vunpack.c.l.b16 %v4737
  %v5012 = vunpack.c.l.b16 %v4740
  %v5013 = vunpack.c.l.b16 %v4743
  %v5014 = vunpack.c.l.b16 %v4746
  %v5015 = vunpack.c.l.b16 %v4749
  %v5016 = vunpack.c.l.b16 %v4752
  %v5017 = vunpack.c.l.b16 %v4755
  %v5018 = vpack.c.b16 %v4986, %v4986
  %v5019 = vpack.c.b16 %v4987, %v4987
  %v5020 = vpack.c.b16 %v4988, %v4988
  %v5021 = vpack.c.b16 %v4989, %v4989
  %v5022 = vpack.c.b16 %v4990, %v4990
  %v5023 = vpack.c.b16 %v4991, %v4991
  %v5024 = vpack.c.b16 %v4992, %v4992
  %v5025 = vpack.c.b16 %v4993, %v4993
  %v5026 = vpack.c.b16 %v4994, %v4994
  %v5027 = vpack.c.b16 %v4995, %v4995
  %v5028 = vpack.c.b16 %v4996, %v4996
  %v5029 = vpack.c.b16 %v4997, %v4997
  %v5030 = vpack.c.b16 %v4998, %v4998
  %v5031 = vpack.c.b16 %v4999, %v4999
  %v5032 = vpack.c.b16 %v5000, %v5000
  %v5033 = vpack.c.b16 %v5001, %v5001
  %v5034 = vpack.c.b16 %v5002, %v5002
  %v5035 = vpack.c.b16 %v5003, %v5003
  %v5036 = vpack.c.b16 %v5004, %v5004
  %v5037 = vpack.c.b16 %v5005, %v5005
  %v5038 = vpack.c.b16 %v5006, %v5006
  %v5039 = vpack.c.b16 %v5007, %v5007
  %v5040 = vpack.c.b16 %v5008, %v5008
  %v5041 = vpack.c.b16 %v5009, %v5009
  %v5042 = vpack.c.b16 %v5010, %v5010
  %v5043 = vpack.c.b16 %v5011, %v5011
  %v5044 = vpack.c.b16 %v5012, %v5012
  %v5045 = vpack.c.b16 %v5013, %v5013
  %v5046 = vpack.c.b16 %v5014, %v5014
  %v5047 = vpack.c.b16 %v5015, %v5015
  %v5048 = vpack.c.b16 %v5016, %v5016
  %v5049 = vpack.c.b16 %v5017, %v5017
  %v5051 = vshrl.u32 %v4890, 16
  %v5053 = vshll.u32 %v4890, 16
  %v5055 = vrot.slane %v5053, 1
  %v5056 = vor.u32 %v5051, %v5055
  %v5058 = vshll.u32 %v5018, 16
  %v5060 = vrot.slane %v5058, 1
  %v5061 = vsel %vm1306, %v5056, %v5060
  %v5063 = vshrl.u32 %v4891, 16
  %v5065 = vshll.u32 %v4891, 16
  %v5067 = vrot.slane %v5065, 1
  %v5068 = vor.u32 %v5063, %v5067
  %v5070 = vshll.u32 %v5019, 16
  %v5072 = vrot.slane %v5070, 1
  %v5073 = vsel %vm1306, %v5068, %v5072
  %v5075 = vshrl.u32 %v4892, 16
  %v5077 = vshll.u32 %v4892, 16
  %v5079 = vrot.slane %v5077, 1
  %v5080 = vor.u32 %v5075, %v5079
  %v5082 = vshll.u32 %v5020, 16
  %v5084 = vrot.slane %v5082, 1
  %v5085 = vsel %vm1306, %v5080, %v5084
  %v5087 = vshrl.u32 %v4893, 16
  %v5089 = vshll.u32 %v4893, 16
  %v5091 = vrot.slane %v5089, 1
  %v5092 = vor.u32 %v5087, %v5091
  %v5094 = vshll.u32 %v5021, 16
  %v5096 = vrot.slane %v5094, 1
  %v5097 = vsel %vm1306, %v5092, %v5096
  %v5099 = vshrl.u32 %v4894, 16
  %v5101 = vshll.u32 %v4894, 16
  %v5103 = vrot.slane %v5101, 1
  %v5104 = vor.u32 %v5099, %v5103
  %v5106 = vshll.u32 %v5022, 16
  %v5108 = vrot.slane %v5106, 1
  %v5109 = vsel %vm1306, %v5104, %v5108
  %v5111 = vshrl.u32 %v4895, 16
  %v5113 = vshll.u32 %v4895, 16
  %v5115 = vrot.slane %v5113, 1
  %v5116 = vor.u32 %v5111, %v5115
  %v5118 = vshll.u32 %v5023, 16
  %v5120 = vrot.slane %v5118, 1
  %v5121 = vsel %vm1306, %v5116, %v5120
  %v5123 = vshrl.u32 %v4896, 16
  %v5125 = vshll.u32 %v4896, 16
  %v5127 = vrot.slane %v5125, 1
  %v5128 = vor.u32 %v5123, %v5127
  %v5130 = vshll.u32 %v5024, 16
  %v5132 = vrot.slane %v5130, 1
  %v5133 = vsel %vm1306, %v5128, %v5132
  %v5135 = vshrl.u32 %v4897, 16
  %v5137 = vshll.u32 %v4897, 16
  %v5139 = vrot.slane %v5137, 1
  %v5140 = vor.u32 %v5135, %v5139
  %v5142 = vshll.u32 %v5025, 16
  %v5144 = vrot.slane %v5142, 1
  %v5145 = vsel %vm1306, %v5140, %v5144
  %v5147 = vshrl.u32 %v4898, 16
  %v5149 = vshll.u32 %v4898, 16
  %v5151 = vrot.slane %v5149, 1
  %v5152 = vor.u32 %v5147, %v5151
  %v5154 = vshll.u32 %v5026, 16
  %v5156 = vrot.slane %v5154, 1
  %v5157 = vsel %vm1306, %v5152, %v5156
  %v5159 = vshrl.u32 %v4899, 16
  %v5161 = vshll.u32 %v4899, 16
  %v5163 = vrot.slane %v5161, 1
  %v5164 = vor.u32 %v5159, %v5163
  %v5166 = vshll.u32 %v5027, 16
  %v5168 = vrot.slane %v5166, 1
  %v5169 = vsel %vm1306, %v5164, %v5168
  %v5171 = vshrl.u32 %v4900, 16
  %v5173 = vshll.u32 %v4900, 16
  %v5175 = vrot.slane %v5173, 1
  %v5176 = vor.u32 %v5171, %v5175
  %v5178 = vshll.u32 %v5028, 16
  %v5180 = vrot.slane %v5178, 1
  %v5181 = vsel %vm1306, %v5176, %v5180
  %v5183 = vshrl.u32 %v4901, 16
  %v5185 = vshll.u32 %v4901, 16
  %v5187 = vrot.slane %v5185, 1
  %v5188 = vor.u32 %v5183, %v5187
  %v5190 = vshll.u32 %v5029, 16
  %v5192 = vrot.slane %v5190, 1
  %v5193 = vsel %vm1306, %v5188, %v5192
  %v5195 = vshrl.u32 %v4902, 16
  %v5197 = vshll.u32 %v4902, 16
  %v5199 = vrot.slane %v5197, 1
  %v5200 = vor.u32 %v5195, %v5199
  %v5202 = vshll.u32 %v5030, 16
  %v5204 = vrot.slane %v5202, 1
  %v5205 = vsel %vm1306, %v5200, %v5204
  %v5207 = vshrl.u32 %v4903, 16
  %v5209 = vshll.u32 %v4903, 16
  %v5211 = vrot.slane %v5209, 1
  %v5212 = vor.u32 %v5207, %v5211
  %v5214 = vshll.u32 %v5031, 16
  %v5216 = vrot.slane %v5214, 1
  %v5217 = vsel %vm1306, %v5212, %v5216
  %v5219 = vshrl.u32 %v4904, 16
  %v5221 = vshll.u32 %v4904, 16
  %v5223 = vrot.slane %v5221, 1
  %v5224 = vor.u32 %v5219, %v5223
  %v5226 = vshll.u32 %v5032, 16
  %v5228 = vrot.slane %v5226, 1
  %v5229 = vsel %vm1306, %v5224, %v5228
  %v5231 = vshrl.u32 %v4905, 16
  %v5233 = vshll.u32 %v4905, 16
  %v5235 = vrot.slane %v5233, 1
  %v5236 = vor.u32 %v5231, %v5235
  %v5238 = vshll.u32 %v5033, 16
  %v5240 = vrot.slane %v5238, 1
  %v5241 = vsel %vm1306, %v5236, %v5240
  %v5243 = vshrl.u32 %v4906, 16
  %v5245 = vshll.u32 %v4906, 16
  %v5247 = vrot.slane %v5245, 1
  %v5248 = vor.u32 %v5243, %v5247
  %v5250 = vshll.u32 %v5034, 16
  %v5252 = vrot.slane %v5250, 1
  %v5253 = vsel %vm1306, %v5248, %v5252
  %v5255 = vshrl.u32 %v4907, 16
  %v5257 = vshll.u32 %v4907, 16
  %v5259 = vrot.slane %v5257, 1
  %v5260 = vor.u32 %v5255, %v5259
  %v5262 = vshll.u32 %v5035, 16
  %v5264 = vrot.slane %v5262, 1
  %v5265 = vsel %vm1306, %v5260, %v5264
  %v5267 = vshrl.u32 %v4908, 16
  %v5269 = vshll.u32 %v4908, 16
  %v5271 = vrot.slane %v5269, 1
  %v5272 = vor.u32 %v5267, %v5271
  %v5274 = vshll.u32 %v5036, 16
  %v5276 = vrot.slane %v5274, 1
  %v5277 = vsel %vm1306, %v5272, %v5276
  %v5279 = vshrl.u32 %v4909, 16
  %v5281 = vshll.u32 %v4909, 16
  %v5283 = vrot.slane %v5281, 1
  %v5284 = vor.u32 %v5279, %v5283
  %v5286 = vshll.u32 %v5037, 16
  %v5288 = vrot.slane %v5286, 1
  %v5289 = vsel %vm1306, %v5284, %v5288
  %v5291 = vshrl.u32 %v4910, 16
  %v5293 = vshll.u32 %v4910, 16
  %v5295 = vrot.slane %v5293, 1
  %v5296 = vor.u32 %v5291, %v5295
  %v5298 = vshll.u32 %v5038, 16
  %v5300 = vrot.slane %v5298, 1
  %v5301 = vsel %vm1306, %v5296, %v5300
  %v5303 = vshrl.u32 %v4911, 16
  %v5305 = vshll.u32 %v4911, 16
  %v5307 = vrot.slane %v5305, 1
  %v5308 = vor.u32 %v5303, %v5307
  %v5310 = vshll.u32 %v5039, 16
  %v5312 = vrot.slane %v5310, 1
  %v5313 = vsel %vm1306, %v5308, %v5312
  %v5315 = vshrl.u32 %v4912, 16
  %v5317 = vshll.u32 %v4912, 16
  %v5319 = vrot.slane %v5317, 1
  %v5320 = vor.u32 %v5315, %v5319
  %v5322 = vshll.u32 %v5040, 16
  %v5324 = vrot.slane %v5322, 1
  %v5325 = vsel %vm1306, %v5320, %v5324
  %v5327 = vshrl.u32 %v4913, 16
  %v5329 = vshll.u32 %v4913, 16
  %v5331 = vrot.slane %v5329, 1
  %v5332 = vor.u32 %v5327, %v5331
  %v5334 = vshll.u32 %v5041, 16
  %v5336 = vrot.slane %v5334, 1
  %v5337 = vsel %vm1306, %v5332, %v5336
  %v5339 = vshrl.u32 %v4914, 16
  %v5341 = vshll.u32 %v4914, 16
  %v5343 = vrot.slane %v5341, 1
  %v5344 = vor.u32 %v5339, %v5343
  %v5346 = vshll.u32 %v5042, 16
  %v5348 = vrot.slane %v5346, 1
  %v5349 = vsel %vm1306, %v5344, %v5348
  %v5351 = vshrl.u32 %v4915, 16
  %v5353 = vshll.u32 %v4915, 16
  %v5355 = vrot.slane %v5353, 1
  %v5356 = vor.u32 %v5351, %v5355
  %v5358 = vshll.u32 %v5043, 16
  %v5360 = vrot.slane %v5358, 1
  %v5361 = vsel %vm1306, %v5356, %v5360
  %v5363 = vshrl.u32 %v4916, 16
  %v5365 = vshll.u32 %v4916, 16
  %v5367 = vrot.slane %v5365, 1
  %v5368 = vor.u32 %v5363, %v5367
  %v5370 = vshll.u32 %v5044, 16
  %v5372 = vrot.slane %v5370, 1
  %v5373 = vsel %vm1306, %v5368, %v5372
  %v5375 = vshrl.u32 %v4917, 16
  %v5377 = vshll.u32 %v4917, 16
  %v5379 = vrot.slane %v5377, 1
  %v5380 = vor.u32 %v5375, %v5379
  %v5382 = vshll.u32 %v5045, 16
  %v5384 = vrot.slane %v5382, 1
  %v5385 = vsel %vm1306, %v5380, %v5384
  %v5387 = vshrl.u32 %v4918, 16
  %v5389 = vshll.u32 %v4918, 16
  %v5391 = vrot.slane %v5389, 1
  %v5392 = vor.u32 %v5387, %v5391
  %v5394 = vshll.u32 %v5046, 16
  %v5396 = vrot.slane %v5394, 1
  %v5397 = vsel %vm1306, %v5392, %v5396
  %v5399 = vshrl.u32 %v4919, 16
  %v5401 = vshll.u32 %v4919, 16
  %v5403 = vrot.slane %v5401, 1
  %v5404 = vor.u32 %v5399, %v5403
  %v5406 = vshll.u32 %v5047, 16
  %v5408 = vrot.slane %v5406, 1
  %v5409 = vsel %vm1306, %v5404, %v5408
  %v5411 = vshrl.u32 %v4920, 16
  %v5413 = vshll.u32 %v4920, 16
  %v5415 = vrot.slane %v5413, 1
  %v5416 = vor.u32 %v5411, %v5415
  %v5418 = vshll.u32 %v5048, 16
  %v5420 = vrot.slane %v5418, 1
  %v5421 = vsel %vm1306, %v5416, %v5420
  %v5423 = vshrl.u32 %v4921, 16
  %v5425 = vshll.u32 %v4921, 16
  %v5427 = vrot.slane %v5425, 1
  %v5428 = vor.u32 %v5423, %v5427
  %v5430 = vshll.u32 %v5049, 16
  %v5432 = vrot.slane %v5430, 1
  %v5433 = vsel %vm1306, %v5428, %v5432
  %v5466 = vrot.slane %v4890, 1
  %v5467 = vrot.slane %v5018, 1
  %v5468 = vsel %vm1755, %v5466, %v5467
  %v5469 = vrot.slane %v4891, 1
  %v5470 = vrot.slane %v5019, 1
  %v5471 = vsel %vm1755, %v5469, %v5470
  %v5472 = vrot.slane %v4892, 1
  %v5473 = vrot.slane %v5020, 1
  %v5474 = vsel %vm1755, %v5472, %v5473
  %v5475 = vrot.slane %v4893, 1
  %v5476 = vrot.slane %v5021, 1
  %v5477 = vsel %vm1755, %v5475, %v5476
  %v5478 = vrot.slane %v4894, 1
  %v5479 = vrot.slane %v5022, 1
  %v5480 = vsel %vm1755, %v5478, %v5479
  %v5481 = vrot.slane %v4895, 1
  %v5482 = vrot.slane %v5023, 1
  %v5483 = vsel %vm1755, %v5481, %v5482
  %v5484 = vrot.slane %v4896, 1
  %v5485 = vrot.slane %v5024, 1
  %v5486 = vsel %vm1755, %v5484, %v5485
  %v5487 = vrot.slane %v4897, 1
  %v5488 = vrot.slane %v5025, 1
  %v5489 = vsel %vm1755, %v5487, %v5488
  %v5490 = vrot.slane %v4898, 1
  %v5491 = vrot.slane %v5026, 1
  %v5492 = vsel %vm1755, %v5490, %v5491
  %v5493 = vrot.slane %v4899, 1
  %v5494 = vrot.slane %v5027, 1
  %v5495 = vsel %vm1755, %v5493, %v5494
  %v5496 = vrot.slane %v4900, 1
  %v5497 = vrot.slane %v5028, 1
  %v5498 = vsel %vm1755, %v5496, %v5497
  %v5499 = vrot.slane %v4901, 1
  %v5500 = vrot.slane %v5029, 1
  %v5501 = vsel %vm1755, %v5499, %v5500
  %v5502 = vrot.slane %v4902, 1
  %v5503 = vrot.slane %v5030, 1
  %v5504 = vsel %vm1755, %v5502, %v5503
  %v5505 = vrot.slane %v4903, 1
  %v5506 = vrot.slane %v5031, 1
  %v5507 = vsel %vm1755, %v5505, %v5506
  %v5508 = vrot.slane %v4904, 1
  %v5509 = vrot.slane %v5032, 1
  %v5510 = vsel %vm1755, %v5508, %v5509
  %v5511 = vrot.slane %v4905, 1
  %v5512 = vrot.slane %v5033, 1
  %v5513 = vsel %vm1755, %v5511, %v5512
  %v5514 = vrot.slane %v4906, 1
  %v5515 = vrot.slane %v5034, 1
  %v5516 = vsel %vm1755, %v5514, %v5515
  %v5517 = vrot.slane %v4907, 1
  %v5518 = vrot.slane %v5035, 1
  %v5519 = vsel %vm1755, %v5517, %v5518
  %v5520 = vrot.slane %v4908, 1
  %v5521 = vrot.slane %v5036, 1
  %v5522 = vsel %vm1755, %v5520, %v5521
  %v5523 = vrot.slane %v4909, 1
  %v5524 = vrot.slane %v5037, 1
  %v5525 = vsel %vm1755, %v5523, %v5524
  %v5526 = vrot.slane %v4910, 1
  %v5527 = vrot.slane %v5038, 1
  %v5528 = vsel %vm1755, %v5526, %v5527
  %v5529 = vrot.slane %v4911, 1
  %v5530 = vrot.slane %v5039, 1
  %v5531 = vsel %vm1755, %v5529, %v5530
  %v5532 = vrot.slane %v4912, 1
  %v5533 = vrot.slane %v5040, 1
  %v5534 = vsel %vm1755, %v5532, %v5533
  %v5535 = vrot.slane %v4913, 1
  %v5536 = vrot.slane %v5041, 1
  %v5537 = vsel %vm1755, %v5535, %v5536
  %v5538 = vrot.slane %v4914, 1
  %v5539 = vrot.slane %v5042, 1
  %v5540 = vsel %vm1755, %v5538, %v5539
  %v5541 = vrot.slane %v4915, 1
  %v5542 = vrot.slane %v5043, 1
  %v5543 = vsel %vm1755, %v5541, %v5542
  %v5544 = vrot.slane %v4916, 1
  %v5545 = vrot.slane %v5044, 1
  %v5546 = vsel %vm1755, %v5544, %v5545
  %v5547 = vrot.slane %v4917, 1
  %v5548 = vrot.slane %v5045, 1
  %v5549 = vsel %vm1755, %v5547, %v5548
  %v5550 = vrot.slane %v4918, 1
  %v5551 = vrot.slane %v5046, 1
  %v5552 = vsel %vm1755, %v5550, %v5551
  %v5553 = vrot.slane %v4919, 1
  %v5554 = vrot.slane %v5047, 1
  %v5555 = vsel %vm1755, %v5553, %v5554
  %v5556 = vrot.slane %v4920, 1
  %v5557 = vrot.slane %v5048, 1
  %v5558 = vsel %vm1755, %v5556, %v5557
  %v5559 = vrot.slane %v4921, 1
  %v5560 = vrot.slane %v5049, 1
  %v5561 = vsel %vm1755, %v5559, %v5560
  %v5598 = vunpack.c.l.b16 %v4702
  %v5599 = vunpack.c.l.b16 %v4703
  %v5600 = vunpack.c.l.b16 %v4756
  %v5601 = vunpack.c.l.b16 %v4757
  %v5602 = vpack.c.b16 %v5599, %v5598
  %v5603 = vpack.c.b16 %v5601, %v5600
  %v5608 = vunpack.c.l.b16 %v4704
  %v5609 = vunpack.c.l.b16 %v4758
  %v5610 = vpack.c.b16 %v5608, %v5608
  %v5611 = vpack.c.b16 %v5609, %v5609
  %v5613 = vshrl.u32 %v5602, 16
  %v5615 = vshll.u32 %v5602, 16
  %v5617 = vrot.slane %v5615, 1
  %v5618 = vor.u32 %v5613, %v5617
  %v5620 = vshll.u32 %v5610, 16
  %v5622 = vrot.slane %v5620, 1
  %v5623 = vsel %vm1306, %v5618, %v5622
  %v5625 = vshrl.u32 %v5603, 16
  %v5627 = vshll.u32 %v5603, 16
  %v5629 = vrot.slane %v5627, 1
  %v5630 = vor.u32 %v5625, %v5629
  %v5632 = vshll.u32 %v5611, 16
  %v5634 = vrot.slane %v5632, 1
  %v5635 = vsel %vm1306, %v5630, %v5634
  %v5638 = vrot.slane %v5602, 1
  %v5639 = vrot.slane %v5610, 1
  %v5640 = vsel %vm1755, %v5638, %v5639
  %v5641 = vrot.slane %v5603, 1
  %v5642 = vrot.slane %v5611, 1
  %v5643 = vsel %vm1755, %v5641, %v5642
  %v5650 = vunpack.c.l.b16 %v4705
  %v5651 = vunpack.c.l.b16 %v4706
  %v5652 = vunpack.c.l.b16 %v4759
  %v5653 = vunpack.c.l.b16 %v4760
  %v5654 = vpack.c.b16 %v5651, %v5650
  %v5655 = vpack.c.b16 %v5653, %v5652
  %v5660 = vunpack.c.l.b16 %v4707
  %v5661 = vunpack.c.l.b16 %v4761
  %v5662 = vpack.c.b16 %v5660, %v5660
  %v5663 = vpack.c.b16 %v5661, %v5661
  %v5665 = vshrl.u32 %v5654, 16
  %v5667 = vshll.u32 %v5654, 16
  %v5669 = vrot.slane %v5667, 1
  %v5670 = vor.u32 %v5665, %v5669
  %v5672 = vshll.u32 %v5662, 16
  %v5674 = vrot.slane %v5672, 1
  %v5675 = vsel %vm1306, %v5670, %v5674
  %v5677 = vshrl.u32 %v5655, 16
  %v5679 = vshll.u32 %v5655, 16
  %v5681 = vrot.slane %v5679, 1
  %v5682 = vor.u32 %v5677, %v5681
  %v5684 = vshll.u32 %v5663, 16
  %v5686 = vrot.slane %v5684, 1
  %v5687 = vsel %vm1306, %v5682, %v5686
  %v5690 = vrot.slane %v5654, 1
  %v5691 = vrot.slane %v5662, 1
  %v5692 = vsel %vm1755, %v5690, %v5691
  %v5693 = vrot.slane %v5655, 1
  %v5694 = vrot.slane %v5663, 1
  %v5695 = vsel %vm1755, %v5693, %v5694
  %v5698 = vld [vmem:[%s4] sm:$0xf]
  %v5699 = vld [vmem:[%s4 + $0x4] sm:$0xf]
  %v5700 = vld [vmem:[%s4 + $0x8] sm:$0xf]
  %v5701 = vld [vmem:[%s4 + $0xc] sm:$0xf]
  %v5702 = vld [vmem:[%s4 + $0x10] sm:$0xf]
  %v5703 = vld [vmem:[%s4 + $0x14] sm:$0xf]
  %v5704 = vld [vmem:[%s4 + $0x18] sm:$0xf]
  %v5705 = vld [vmem:[%s4 + $0x1c] sm:$0xf]
  %v5706 = vld [vmem:[%s4 + $0x20] sm:$0xf]
  %v5707 = vld [vmem:[%s4 + $0x24] sm:$0xf]
  %v5708 = vld [vmem:[%s4 + $0x28] sm:$0xf]
  %v5709 = vld [vmem:[%s4 + $0x2c] sm:$0xf]
  %v5710 = vld [vmem:[%s4 + $0x30] sm:$0xf]
  %v5711 = vld [vmem:[%s4 + $0x34] sm:$0xf]
  %v5712 = vld [vmem:[%s4 + $0x38] sm:$0xf]
  %v5713 = vld [vmem:[%s4 + $0x3c] sm:$0xf]
  %v5714 = vld [vmem:[%s4 + $0x40] sm:$0xf]
  %v5715 = vld [vmem:[%s4 + $0x44] sm:$0xf]
  %v5716 = vld [vmem:[%s4 + $0x48] sm:$0xf]
  %v5717 = vld [vmem:[%s4 + $0x4c] sm:$0xf]
  %v5718 = vld [vmem:[%s4 + $0x50] sm:$0xf]
  %v5719 = vld [vmem:[%s4 + $0x54] sm:$0xf]
  %v5720 = vld [vmem:[%s4 + $0x58] sm:$0xf]
  %v5721 = vld [vmem:[%s4 + $0x5c] sm:$0xf]
  %v5722 = vld [vmem:[%s4 + $0x60] sm:$0xf]
  %v5723 = vld [vmem:[%s4 + $0x64] sm:$0xf]
  %v5724 = vld [vmem:[%s4 + $0x68] sm:$0xf]
  %v5725 = vld [vmem:[%s4 + $0x6c] sm:$0xf]
  %v5726 = vld [vmem:[%s4 + $0x70] sm:$0xf]
  %v5727 = vld [vmem:[%s4 + $0x74] sm:$0xf]
  %v5728 = vld [vmem:[%s4 + $0x78] sm:$0xf]
  %v5729 = vld [vmem:[%s4 + $0x7c] sm:$0xf]
  %v5730 = vld [vmem:[%s4 + $0x80] sm:$0xf]
  %v5731 = vld [vmem:[%s4 + $0x84] sm:$0xf]
  %v5732 = vld [vmem:[%s4 + $0x88] sm:$0xf]
  %v5733 = vld [vmem:[%s4 + $0x8c] sm:$0xf]
  %v5734 = vld [vmem:[%s4 + $0x90] sm:$0xf]
  %v5735 = vld [vmem:[%s4 + $0x94] sm:$0xf]
  %v5736 = vld [vmem:[%s4 + $0x98] sm:$0xf]
  %v5737 = vld [vmem:[%s4 + $0x9c] sm:$0xf]
  %v5738 = vld [vmem:[%s4 + $0xa0] sm:$0xf]
  %v5739 = vld [vmem:[%s4 + $0xa4] sm:$0xf]
  %v5740 = vld [vmem:[%s4 + $0xa8] sm:$0xf]
  %v5741 = vld [vmem:[%s4 + $0xac] sm:$0xf]
  %v5742 = vld [vmem:[%s4 + $0xb0] sm:$0xf]
  %v5743 = vld [vmem:[%s4 + $0xb4] sm:$0xf]
  %v5744 = vld [vmem:[%s4 + $0xb8] sm:$0xf]
  %v5745 = vld [vmem:[%s4 + $0xbc] sm:$0xf]
  %v5746 = vld [vmem:[%s4 + $0xc0] sm:$0xf]
  %v5747 = vld [vmem:[%s4 + $0xc4] sm:$0xf]
  %v5748 = vld [vmem:[%s4 + $0xc8] sm:$0xf]
  %v5749 = vld [vmem:[%s4 + $0xcc] sm:$0xf]
  %v5750 = vld [vmem:[%s4 + $0xd0] sm:$0xf]
  %v5751 = vld [vmem:[%s4 + $0xd4] sm:$0xf]
  %v5752 = vld [vmem:[%s4 + $0xd8] sm:$0xf]
  %v5753 = vld [vmem:[%s4 + $0xdc] sm:$0xf]
  %v5754 = vld [vmem:[%s4 + $0xe0] sm:$0xf]
  %v5755 = vld [vmem:[%s4 + $0xe4] sm:$0xf]
  %v5756 = vld [vmem:[%s4 + $0xe8] sm:$0xf]
  %v5757 = vld [vmem:[%s4 + $0xec] sm:$0xf]
  %v5758 = vld [vmem:[%s4 + $0xf0] sm:$0xf]
  %v5759 = vld [vmem:[%s4 + $0xf4] sm:$0xf]
  %v5760 = vld [vmem:[%s4 + $0xf8] sm:$0xf]
  %v5761 = vld [vmem:[%s4 + $0xfc] sm:$0xf]
  %v5762 = vld [vmem:[%s4 + $0x100] sm:$0xf]
  %v5763 = vld [vmem:[%s4 + $0x104] sm:$0xf]
  %v5764 = vld [vmem:[%s4 + $0x108] sm:$0xf]
  %v5765 = vld [vmem:[%s4 + $0x10c] sm:$0xf]
  %v5766 = vld [vmem:[%s4 + $0x110] sm:$0xf]
  %v5767 = vld [vmem:[%s4 + $0x114] sm:$0xf]
  %v5768 = vld [vmem:[%s4 + $0x118] sm:$0xf]
  %v5769 = vld [vmem:[%s4 + $0x11c] sm:$0xf]
  %v5770 = vld [vmem:[%s4 + $0x120] sm:$0xf]
  %v5771 = vld [vmem:[%s4 + $0x124] sm:$0xf]
  %v5772 = vld [vmem:[%s4 + $0x128] sm:$0xf]
  %v5773 = vld [vmem:[%s4 + $0x12c] sm:$0xf]
  %v5774 = vld [vmem:[%s4 + $0x130] sm:$0xf]
  %v5775 = vld [vmem:[%s4 + $0x134] sm:$0xf]
  %v5776 = vld [vmem:[%s4 + $0x138] sm:$0xf]
  %v5777 = vld [vmem:[%s4 + $0x13c] sm:$0xf]
  %v5778 = vld [vmem:[%s4 + $0x140] sm:$0xf]
  %v5779 = vld [vmem:[%s4 + $0x144] sm:$0xf]
  %v5780 = vld [vmem:[%s4 + $0x148] sm:$0xf]
  %v5781 = vld [vmem:[%s4 + $0x14c] sm:$0xf]
  %v5782 = vld [vmem:[%s4 + $0x150] sm:$0xf]
  %v5783 = vld [vmem:[%s4 + $0x154] sm:$0xf]
  %v5784 = vld [vmem:[%s4 + $0x158] sm:$0xf]
  %v5785 = vld [vmem:[%s4 + $0x15c] sm:$0xf]
  %v5786 = vld [vmem:[%s4 + $0x160] sm:$0xf]
  %v5787 = vld [vmem:[%s4 + $0x164] sm:$0xf]
  %v5788 = vld [vmem:[%s4 + $0x168] sm:$0xf]
  %v5789 = vld [vmem:[%s4 + $0x16c] sm:$0xf]
  %v5790 = vld [vmem:[%s4 + $0x170] sm:$0xf]
  %v5791 = vld [vmem:[%s4 + $0x174] sm:$0xf]
  %v5792 = vld [vmem:[%s4 + $0x178] sm:$0xf]
  %v5793 = vld [vmem:[%s4 + $0x17c] sm:$0xf]
  %v5794 = vld [vmem:[%s4 + $0x180] sm:$0xf]
  %v5795 = vld [vmem:[%s4 + $0x184] sm:$0xf]
  %v5796 = vld [vmem:[%s4 + $0x188] sm:$0xf]
  %v5797 = vld [vmem:[%s4 + $0x18c] sm:$0xf]
  %v5798 = vld [vmem:[%s4 + $0x190] sm:$0xf]
  %v5799 = vld [vmem:[%s4 + $0x194] sm:$0xf]
  %v5800 = vld [vmem:[%s4 + $0x198] sm:$0xf]
  %v5801 = vld [vmem:[%s4 + $0x19c] sm:$0xf]
  %v5802 = vld [vmem:[%s4 + $0x1a0] sm:$0xf]
  %v5803 = vld [vmem:[%s4 + $0x1a4] sm:$0xf]
  %v5804 = vld [vmem:[%s4 + $0x1a8] sm:$0xf]
  %v5805 = vld [vmem:[%s4 + $0x1ac] sm:$0xf]
  %v5806 = vld [vmem:[%s4 + $0x1b0] sm:$0xf]
  %v5807 = vld [vmem:[%s4 + $0x1b4] sm:$0xf]
  %v5808 = vld [vmem:[%s4 + $0x1b8] sm:$0xf]
  %v5809 = vld [vmem:[%s4 + $0x1bc] sm:$0xf]
  %v5810 = vld [vmem:[%s4 + $0x1c0] sm:$0xf]
  %v5811 = vld [vmem:[%s4 + $0x1c4] sm:$0xf]
  %v5812 = vld [vmem:[%s4 + $0x1c8] sm:$0xf]
  %v5813 = vld [vmem:[%s4 + $0x1cc] sm:$0xf]
  %v5814 = vld [vmem:[%s4 + $0x1d0] sm:$0xf]
  %v5815 = vld [vmem:[%s4 + $0x1d4] sm:$0xf]
  %v5816 = vld [vmem:[%s4 + $0x1d8] sm:$0xf]
  %v5817 = vld [vmem:[%s4 + $0x1dc] sm:$0xf]
  %v5818 = vld [vmem:[%s4 + $0x1e0] sm:$0xf]
  %v5819 = vld [vmem:[%s4 + $0x1e4] sm:$0xf]
  %v5820 = vld [vmem:[%s4 + $0x1e8] sm:$0xf]
  %v5821 = vld [vmem:[%s4 + $0x1ec] sm:$0xf]
  %v5822 = vld [vmem:[%s4 + $0x1f0] sm:$0xf]
  %v5823 = vld [vmem:[%s4 + $0x1f4] sm:$0xf]
  %v5824 = vld [vmem:[%s4 + $0x1f8] sm:$0xf]
  %v5825 = vld [vmem:[%s4 + $0x1fc] sm:$0xf]
  %v5826 = vld [vmem:[%s4 + $0x200] sm:$0xf]
  %v5827 = vld [vmem:[%s4 + $0x204] sm:$0xf]
  %v5828 = vld [vmem:[%s4 + $0x208] sm:$0xf]
  %v5829 = vld [vmem:[%s4 + $0x20c] sm:$0xf]
  %v5830 = vld [vmem:[%s4 + $0x210] sm:$0xf]
  %v5831 = vld [vmem:[%s4 + $0x214] sm:$0xf]
  %v5832 = vld [vmem:[%s4 + $0x218] sm:$0xf]
  %v5833 = vld [vmem:[%s4 + $0x21c] sm:$0xf]
  %v5834 = vld [vmem:[%s4 + $0x220] sm:$0xf]
  %v5835 = vld [vmem:[%s4 + $0x224] sm:$0xf]
  %v5836 = vld [vmem:[%s4 + $0x228] sm:$0xf]
  %v5837 = vld [vmem:[%s4 + $0x22c] sm:$0xf]
  %v5838 = vld [vmem:[%s4 + $0x230] sm:$0xf]
  %v5839 = vld [vmem:[%s4 + $0x234] sm:$0xf]
  %v5840 = vld [vmem:[%s4 + $0x238] sm:$0xf]
  %v5841 = vld [vmem:[%s4 + $0x23c] sm:$0xf]
  %v5986 = vunpack.c.l.b16 %v5698
  %v5987 = vunpack.c.l.b16 %v5699
  %v5988 = vunpack.c.l.b16 %v5700
  %v5989 = vunpack.c.l.b16 %v5701
  %v5990 = vunpack.c.l.b16 %v5702
  %v5991 = vunpack.c.l.b16 %v5703
  %v5992 = vunpack.c.l.b16 %v5704
  %v5993 = vunpack.c.l.b16 %v5705
  %v5994 = vunpack.c.l.b16 %v5706
  %v5995 = vunpack.c.l.b16 %v5707
  %v5996 = vunpack.c.l.b16 %v5708
  %v5997 = vunpack.c.l.b16 %v5709
  %v5998 = vunpack.c.l.b16 %v5710
  %v5999 = vunpack.c.l.b16 %v5711
  %v6000 = vunpack.c.l.b16 %v5712
  %v6001 = vunpack.c.l.b16 %v5713
  %v6002 = vunpack.c.l.b16 %v5714
  %v6003 = vunpack.c.l.b16 %v5715
  %v6004 = vunpack.c.l.b16 %v5716
  %v6005 = vunpack.c.l.b16 %v5717
  %v6006 = vunpack.c.l.b16 %v5718
  %v6007 = vunpack.c.l.b16 %v5719
  %v6008 = vunpack.c.l.b16 %v5720
  %v6009 = vunpack.c.l.b16 %v5721
  %v6010 = vunpack.c.l.b16 %v5722
  %v6011 = vunpack.c.l.b16 %v5723
  %v6012 = vunpack.c.l.b16 %v5724
  %v6013 = vunpack.c.l.b16 %v5725
  %v6014 = vunpack.c.l.b16 %v5726
  %v6015 = vunpack.c.l.b16 %v5727
  %v6016 = vunpack.c.l.b16 %v5728
  %v6017 = vunpack.c.l.b16 %v5729
  %v6018 = vunpack.c.l.b16 %v5730
  %v6019 = vunpack.c.l.b16 %v5731
  %v6020 = vunpack.c.l.b16 %v5732
  %v6021 = vunpack.c.l.b16 %v5733
  %v6022 = vunpack.c.l.b16 %v5734
  %v6023 = vunpack.c.l.b16 %v5735
  %v6024 = vunpack.c.l.b16 %v5736
  %v6025 = vunpack.c.l.b16 %v5737
  %v6026 = vunpack.c.l.b16 %v5738
  %v6027 = vunpack.c.l.b16 %v5739
  %v6028 = vunpack.c.l.b16 %v5740
  %v6029 = vunpack.c.l.b16 %v5741
  %v6030 = vunpack.c.l.b16 %v5742
  %v6031 = vunpack.c.l.b16 %v5743
  %v6032 = vunpack.c.l.b16 %v5744
  %v6033 = vunpack.c.l.b16 %v5745
  %v6034 = vunpack.c.l.b16 %v5746
  %v6035 = vunpack.c.l.b16 %v5747
  %v6036 = vunpack.c.l.b16 %v5748
  %v6037 = vunpack.c.l.b16 %v5749
  %v6038 = vunpack.c.l.b16 %v5750
  %v6039 = vunpack.c.l.b16 %v5751
  %v6040 = vunpack.c.l.b16 %v5752
  %v6041 = vunpack.c.l.b16 %v5753
  %v6042 = vunpack.c.l.b16 %v5754
  %v6043 = vunpack.c.l.b16 %v5755
  %v6044 = vunpack.c.l.b16 %v5756
  %v6045 = vunpack.c.l.b16 %v5757
  %v6046 = vunpack.c.l.b16 %v5758
  %v6047 = vunpack.c.l.b16 %v5759
  %v6048 = vunpack.c.l.b16 %v5760
  %v6049 = vunpack.c.l.b16 %v5761
  %v6050 = vunpack.c.l.b16 %v5762
  %v6051 = vunpack.c.l.b16 %v5763
  %v6052 = vunpack.c.l.b16 %v5764
  %v6053 = vunpack.c.l.b16 %v5765
  %v6054 = vunpack.c.l.b16 %v5766
  %v6055 = vunpack.c.l.b16 %v5767
  %v6056 = vunpack.c.l.b16 %v5768
  %v6057 = vunpack.c.l.b16 %v5769
  %v6058 = vunpack.c.l.b16 %v5770
  %v6059 = vunpack.c.l.b16 %v5771
  %v6060 = vunpack.c.l.b16 %v5772
  %v6061 = vunpack.c.l.b16 %v5773
  %v6062 = vunpack.c.l.b16 %v5774
  %v6063 = vunpack.c.l.b16 %v5775
  %v6064 = vunpack.c.l.b16 %v5776
  %v6065 = vunpack.c.l.b16 %v5777
  %v6066 = vunpack.c.l.b16 %v5778
  %v6067 = vunpack.c.l.b16 %v5779
  %v6068 = vunpack.c.l.b16 %v5780
  %v6069 = vunpack.c.l.b16 %v5781
  %v6070 = vunpack.c.l.b16 %v5782
  %v6071 = vunpack.c.l.b16 %v5783
  %v6072 = vunpack.c.l.b16 %v5784
  %v6073 = vunpack.c.l.b16 %v5785
  %v6074 = vunpack.c.l.b16 %v5786
  %v6075 = vunpack.c.l.b16 %v5787
  %v6076 = vunpack.c.l.b16 %v5788
  %v6077 = vunpack.c.l.b16 %v5789
  %v6078 = vunpack.c.l.b16 %v5790
  %v6079 = vunpack.c.l.b16 %v5791
  %v6080 = vunpack.c.l.b16 %v5792
  %v6081 = vunpack.c.l.b16 %v5793
  %v6082 = vunpack.c.l.b16 %v5794
  %v6083 = vunpack.c.l.b16 %v5795
  %v6084 = vunpack.c.l.b16 %v5796
  %v6085 = vunpack.c.l.b16 %v5797
  %v6086 = vunpack.c.l.b16 %v5798
  %v6087 = vunpack.c.l.b16 %v5799
  %v6088 = vunpack.c.l.b16 %v5800
  %v6089 = vunpack.c.l.b16 %v5801
  %v6090 = vunpack.c.l.b16 %v5802
  %v6091 = vunpack.c.l.b16 %v5803
  %v6092 = vunpack.c.l.b16 %v5804
  %v6093 = vunpack.c.l.b16 %v5805
  %v6094 = vunpack.c.l.b16 %v5806
  %v6095 = vunpack.c.l.b16 %v5807
  %v6096 = vunpack.c.l.b16 %v5808
  %v6097 = vunpack.c.l.b16 %v5809
  %v6098 = vunpack.c.l.b16 %v5810
  %v6099 = vunpack.c.l.b16 %v5811
  %v6100 = vunpack.c.l.b16 %v5812
  %v6101 = vunpack.c.l.b16 %v5813
  %v6102 = vunpack.c.l.b16 %v5814
  %v6103 = vunpack.c.l.b16 %v5815
  %v6104 = vunpack.c.l.b16 %v5816
  %v6105 = vunpack.c.l.b16 %v5817
  %v6106 = vunpack.c.l.b16 %v5818
  %v6107 = vunpack.c.l.b16 %v5819
  %v6108 = vunpack.c.l.b16 %v5820
  %v6109 = vunpack.c.l.b16 %v5821
  %v6110 = vunpack.c.l.b16 %v5822
  %v6111 = vunpack.c.l.b16 %v5823
  %v6112 = vunpack.c.l.b16 %v5824
  %v6113 = vunpack.c.l.b16 %v5825
  %v6114 = vunpack.c.l.b16 %v5826
  %v6115 = vunpack.c.l.b16 %v5827
  %v6116 = vunpack.c.l.b16 %v5828
  %v6117 = vunpack.c.l.b16 %v5829
  %v6118 = vunpack.c.l.b16 %v5830
  %v6119 = vunpack.c.l.b16 %v5831
  %v6120 = vunpack.c.l.b16 %v5832
  %v6121 = vunpack.c.l.b16 %v5833
  %v6122 = vunpack.c.l.b16 %v5834
  %v6123 = vunpack.c.l.b16 %v5835
  %v6124 = vunpack.c.l.b16 %v5836
  %v6125 = vunpack.c.l.b16 %v5837
  %v6126 = vunpack.c.l.b16 %v5838
  %v6127 = vunpack.c.l.b16 %v5839
  %v6128 = vunpack.c.l.b16 %v5840
  %v6129 = vunpack.c.l.b16 %v5841
  %v6130 = vpack.c.b16 %v5987, %v5986
  %v6131 = vpack.c.b16 %v5989, %v5988
  %v6132 = vpack.c.b16 %v5991, %v5990
  %v6133 = vpack.c.b16 %v5993, %v5992
  %v6134 = vpack.c.b16 %v5995, %v5994
  %v6135 = vpack.c.b16 %v5997, %v5996
  %v6136 = vpack.c.b16 %v5999, %v5998
  %v6137 = vpack.c.b16 %v6001, %v6000
  %v6138 = vpack.c.b16 %v6003, %v6002
  %v6139 = vpack.c.b16 %v6005, %v6004
  %v6140 = vpack.c.b16 %v6007, %v6006
  %v6141 = vpack.c.b16 %v6009, %v6008
  %v6142 = vpack.c.b16 %v6011, %v6010
  %v6143 = vpack.c.b16 %v6013, %v6012
  %v6144 = vpack.c.b16 %v6015, %v6014
  %v6145 = vpack.c.b16 %v6017, %v6016
  %v6146 = vpack.c.b16 %v6019, %v6018
  %v6147 = vpack.c.b16 %v6021, %v6020
  %v6148 = vpack.c.b16 %v6023, %v6022
  %v6149 = vpack.c.b16 %v6025, %v6024
  %v6150 = vpack.c.b16 %v6027, %v6026
  %v6151 = vpack.c.b16 %v6029, %v6028
  %v6152 = vpack.c.b16 %v6031, %v6030
  %v6153 = vpack.c.b16 %v6033, %v6032
  %v6154 = vpack.c.b16 %v6035, %v6034
  %v6155 = vpack.c.b16 %v6037, %v6036
  %v6156 = vpack.c.b16 %v6039, %v6038
  %v6157 = vpack.c.b16 %v6041, %v6040
  %v6158 = vpack.c.b16 %v6043, %v6042
  %v6159 = vpack.c.b16 %v6045, %v6044
  %v6160 = vpack.c.b16 %v6047, %v6046
  %v6161 = vpack.c.b16 %v6049, %v6048
  %v6162 = vpack.c.b16 %v6051, %v6050
  %v6163 = vpack.c.b16 %v6053, %v6052
  %v6164 = vpack.c.b16 %v6055, %v6054
  %v6165 = vpack.c.b16 %v6057, %v6056
  %v6166 = vpack.c.b16 %v6059, %v6058
  %v6167 = vpack.c.b16 %v6061, %v6060
  %v6168 = vpack.c.b16 %v6063, %v6062
  %v6169 = vpack.c.b16 %v6065, %v6064
  %v6170 = vpack.c.b16 %v6067, %v6066
  %v6171 = vpack.c.b16 %v6069, %v6068
  %v6172 = vpack.c.b16 %v6071, %v6070
  %v6173 = vpack.c.b16 %v6073, %v6072
  %v6174 = vpack.c.b16 %v6075, %v6074
  %v6175 = vpack.c.b16 %v6077, %v6076
  %v6176 = vpack.c.b16 %v6079, %v6078
  %v6177 = vpack.c.b16 %v6081, %v6080
  %v6178 = vpack.c.b16 %v6083, %v6082
  %v6179 = vpack.c.b16 %v6085, %v6084
  %v6180 = vpack.c.b16 %v6087, %v6086
  %v6181 = vpack.c.b16 %v6089, %v6088
  %v6182 = vpack.c.b16 %v6091, %v6090
  %v6183 = vpack.c.b16 %v6093, %v6092
  %v6184 = vpack.c.b16 %v6095, %v6094
  %v6185 = vpack.c.b16 %v6097, %v6096
  %v6186 = vpack.c.b16 %v6099, %v6098
  %v6187 = vpack.c.b16 %v6101, %v6100
  %v6188 = vpack.c.b16 %v6103, %v6102
  %v6189 = vpack.c.b16 %v6105, %v6104
  %v6190 = vpack.c.b16 %v6107, %v6106
  %v6191 = vpack.c.b16 %v6109, %v6108
  %v6192 = vpack.c.b16 %v6111, %v6110
  %v6193 = vpack.c.b16 %v6113, %v6112
  %v6194 = vpack.c.b16 %v6115, %v6114
  %v6195 = vpack.c.b16 %v6117, %v6116
  %v6196 = vpack.c.b16 %v6119, %v6118
  %v6197 = vpack.c.b16 %v6121, %v6120
  %v6198 = vpack.c.b16 %v6123, %v6122
  %v6199 = vpack.c.b16 %v6125, %v6124
  %v6200 = vpack.c.b16 %v6127, %v6126
  %v6201 = vpack.c.b16 %v6129, %v6128
  %6274 = vmatprep.subr.bf16.mxu0 0
  %6275 = vmatpush1.bf16.msra.mxu0 %v6130
  %6276 = vmatprep.subr.bf16.mxu0 0
  %6277 = vmatpush1.bf16.msra.mxu0 %v6131
  %6278 = vmatprep.subr.bf16.mxu0 0
  %6279 = vmatpush1.bf16.msra.mxu0 %v6132
  %6280 = vmatprep.subr.bf16.mxu0 0
  %6281 = vmatpush1.bf16.msra.mxu0 %v6133
  %6282 = vmatprep.subr.bf16.mxu0 0
  %6283 = vmatpush1.bf16.msra.mxu0 %v6134
  %6284 = vmatprep.subr.bf16.mxu0 0
  %6285 = vmatpush1.bf16.msra.mxu0 %v6135
  %6286 = vmatprep.subr.bf16.mxu0 0
  %6287 = vmatpush1.bf16.msra.mxu0 %v6136
  %6288 = vmatprep.subr.bf16.mxu0 0
  %6289 = vmatpush1.bf16.msra.mxu0 %v6137
  %6290 = vmatprep.subr.bf16.mxu0 0
  %6291 = vmatpush1.bf16.msra.mxu0 %v6138
  %6292 = vmatprep.subr.bf16.mxu0 0
  %6293 = vmatpush1.bf16.msra.mxu0 %v6139
  %6294 = vmatprep.subr.bf16.mxu0 0
  %6295 = vmatpush1.bf16.msra.mxu0 %v6140
  %6296 = vmatprep.subr.bf16.mxu0 0
  %6297 = vmatpush1.bf16.msra.mxu0 %v6141
  %6298 = vmatprep.subr.bf16.mxu0 0
  %6299 = vmatpush1.bf16.msra.mxu0 %v6142
  %6300 = vmatprep.subr.bf16.mxu0 0
  %6301 = vmatpush1.bf16.msra.mxu0 %v6143
  %6302 = vmatprep.subr.bf16.mxu0 0
  %6303 = vmatpush1.bf16.msra.mxu0 %v6144
  %6304 = vmatprep.subr.bf16.mxu0 0
  %6305 = vmatpush1.bf16.msra.mxu0 %v6145
  %6306 = vmatprep.mubr.bf16.mxu0 %v5061
  %6307 = vmatmul.mubr.bf16.gmra.mrb[0].mxu0 %v4890
  %v6308 = vpop.f32.mrb[0].mxu0
  %v6309 = vadd.f32 0.0, %v6308
  %v6310 = vpop.f32.mrb[0].mxu0
  %v6311 = vpop.f32.mrb[0].mxu0
  %v6312 = vadd.f32 0.0, %v6311
  %v6313 = vpop.f32.mrb[0].mxu0
  %6314 = vmatprep.mubr.bf16.mxu0 %v5073
  %6315 = vmatmul.mubr.bf16.gmra.mrb[0].mxu0 %v4891
  %v6316 = vpop.f32.mrb[0].mxu0
  %v6317 = vadd.f32 0.0, %v6316
  %v6318 = vpop.f32.mrb[0].mxu0
  %v6319 = vpop.f32.mrb[0].mxu0
  %v6320 = vadd.f32 0.0, %v6319
  %v6321 = vpop.f32.mrb[0].mxu0
  %6322 = vmatprep.mubr.bf16.mxu0 %v5085
  %6323 = vmatmul.mubr.bf16.gmra.mrb[0].mxu0 %v4892
  %v6324 = vpop.f32.mrb[0].mxu0
  %v6325 = vadd.f32 0.0, %v6324
  %v6326 = vpop.f32.mrb[0].mxu0
  %v6327 = vpop.f32.mrb[0].mxu0
  %v6328 = vadd.f32 0.0, %v6327
  %v6329 = vpop.f32.mrb[0].mxu0
  %6330 = vmatprep.mubr.bf16.mxu0 %v5097
  %6331 = vmatmul.mubr.bf16.gmra.mrb[0].mxu0 %v4893
  %v6332 = vpop.f32.mrb[0].mxu0
  %v6333 = vadd.f32 0.0, %v6332
  %v6334 = vpop.f32.mrb[0].mxu0
  %v6335 = vpop.f32.mrb[0].mxu0
  %v6336 = vadd.f32 0.0, %v6335
  %v6337 = vpop.f32.mrb[0].mxu0
  %6338 = vmatprep.mubr.bf16.mxu0 %v5109
  %6339 = vmatmul.mubr.bf16.gmra.mrb[0].mxu0 %v4894
  %v6340 = vpop.f32.mrb[0].mxu0
  %v6341 = vadd.f32 0.0, %v6340
  %v6342 = vpop.f32.mrb[0].mxu0
  %v6343 = vpop.f32.mrb[0].mxu0
  %v6344 = vadd.f32 0.0, %v6343
  %v6345 = vpop.f32.mrb[0].mxu0
  %6346 = vmatprep.mubr.bf16.mxu0 %v5121
  %6347 = vmatmul.mubr.bf16.gmra.mrb[0].mxu0 %v4895
  %v6348 = vpop.f32.mrb[0].mxu0
  %v6349 = vadd.f32 0.0, %v6348
  %v6350 = vpop.f32.mrb[0].mxu0
  %v6351 = vpop.f32.mrb[0].mxu0
  %v6352 = vadd.f32 0.0, %v6351
  %v6353 = vpop.f32.mrb[0].mxu0
  %6354 = vmatprep.mubr.bf16.mxu0 %v5133
  %6355 = vmatmul.mubr.bf16.gmra.mrb[0].mxu0 %v4896
  %v6356 = vpop.f32.mrb[0].mxu0
  %v6357 = vadd.f32 0.0, %v6356
  %v6358 = vpop.f32.mrb[0].mxu0
  %v6359 = vpop.f32.mrb[0].mxu0
  %v6360 = vadd.f32 0.0, %v6359
  %v6361 = vpop.f32.mrb[0].mxu0
  %6362 = vmatprep.mubr.bf16.mxu0 %v5145
  %6363 = vmatmul.mubr.bf16.gmra.mrb[0].mxu0 %v4897
  %v6364 = vpop.f32.mrb[0].mxu0
  %v6365 = vadd.f32 0.0, %v6364
  %v6366 = vpop.f32.mrb[0].mxu0
  %v6367 = vpop.f32.mrb[0].mxu0
  %v6368 = vadd.f32 0.0, %v6367
  %v6369 = vpop.f32.mrb[0].mxu0
  %6370 = vmatprep.mubr.bf16.mxu0 %v5157
  %6371 = vmatmul.mubr.bf16.gmra.mrb[0].mxu0 %v4898
  %v6372 = vpop.f32.mrb[0].mxu0
  %v6373 = vadd.f32 0.0, %v6372
  %v6374 = vpop.f32.mrb[0].mxu0
  %v6375 = vpop.f32.mrb[0].mxu0
  %v6376 = vadd.f32 0.0, %v6375
  %v6377 = vpop.f32.mrb[0].mxu0
  %6378 = vmatprep.mubr.bf16.mxu0 %v5169
  %6379 = vmatmul.mubr.bf16.gmra.mrb[0].mxu0 %v4899
  %v6380 = vpop.f32.mrb[0].mxu0
  %v6381 = vadd.f32 0.0, %v6380
  %v6382 = vpop.f32.mrb[0].mxu0
  %v6383 = vpop.f32.mrb[0].mxu0
  %v6384 = vadd.f32 0.0, %v6383
  %v6385 = vpop.f32.mrb[0].mxu0
  %6386 = vmatprep.mubr.bf16.mxu0 %v5181
  %6387 = vmatmul.mubr.bf16.gmra.mrb[0].mxu0 %v4900
  %v6388 = vpop.f32.mrb[0].mxu0
  %v6389 = vadd.f32 0.0, %v6388
  %v6390 = vpop.f32.mrb[0].mxu0
  %v6391 = vpop.f32.mrb[0].mxu0
  %v6392 = vadd.f32 0.0, %v6391
  %v6393 = vpop.f32.mrb[0].mxu0
  %6394 = vmatprep.mubr.bf16.mxu0 %v5193
  %6395 = vmatmul.mubr.bf16.gmra.mrb[0].mxu0 %v4901
  %v6396 = vpop.f32.mrb[0].mxu0
  %v6397 = vadd.f32 0.0, %v6396
  %v6398 = vpop.f32.mrb[0].mxu0
  %v6399 = vpop.f32.mrb[0].mxu0
  %v6400 = vadd.f32 0.0, %v6399
  %v6401 = vpop.f32.mrb[0].mxu0
  %6402 = vmatprep.mubr.bf16.mxu0 %v5205
  %6403 = vmatmul.mubr.bf16.gmra.mrb[0].mxu0 %v4902
  %v6404 = vpop.f32.mrb[0].mxu0
  %v6405 = vadd.f32 0.0, %v6404
  %v6406 = vpop.f32.mrb[0].mxu0
  %v6407 = vpop.f32.mrb[0].mxu0
  %v6408 = vadd.f32 0.0, %v6407
  %v6409 = vpop.f32.mrb[0].mxu0
  %6410 = vmatprep.mubr.bf16.mxu0 %v5217
  %6411 = vmatmul.mubr.bf16.gmra.mrb[0].mxu0 %v4903
  %v6412 = vpop.f32.mrb[0].mxu0
  %v6413 = vadd.f32 0.0, %v6412
  %v6414 = vpop.f32.mrb[0].mxu0
  %v6415 = vpop.f32.mrb[0].mxu0
  %v6416 = vadd.f32 0.0, %v6415
  %v6417 = vpop.f32.mrb[0].mxu0
  %6418 = vmatprep.mubr.bf16.mxu0 %v5229
  %6419 = vmatmul.mubr.bf16.gmra.mrb[0].mxu0 %v4904
  %v6420 = vpop.f32.mrb[0].mxu0
  %v6421 = vadd.f32 0.0, %v6420
  %v6422 = vpop.f32.mrb[0].mxu0
  %v6423 = vpop.f32.mrb[0].mxu0
  %v6424 = vadd.f32 0.0, %v6423
  %v6425 = vpop.f32.mrb[0].mxu0
  %6426 = vmatprep.mubr.bf16.mxu0 %v5241
  %6427 = vmatmul.mubr.bf16.gmra.mrb[0].mxu0 %v4905
  %v6428 = vpop.f32.mrb[0].mxu0
  %v6429 = vadd.f32 0.0, %v6428
  %v6430 = vpop.f32.mrb[0].mxu0
  %v6431 = vpop.f32.mrb[0].mxu0
  %v6432 = vadd.f32 0.0, %v6431
  %v6433 = vpop.f32.mrb[0].mxu0
  %6434 = vmatprep.mubr.bf16.mxu0 %v5253
  %6435 = vmatmul.mubr.bf16.gmra.mrb[0].mxu0 %v4906
  %v6436 = vpop.f32.mrb[0].mxu0
  %v6437 = vadd.f32 0.0, %v6436
  %v6438 = vpop.f32.mrb[0].mxu0
  %v6439 = vpop.f32.mrb[0].mxu0
  %v6440 = vadd.f32 0.0, %v6439
  %v6441 = vpop.f32.mrb[0].mxu0
  %6442 = vmatprep.mubr.bf16.mxu0 %v5265
  %6443 = vmatmul.mubr.bf16.gmra.mrb[0].mxu0 %v4907
  %v6444 = vpop.f32.mrb[0].mxu0
  %v6445 = vadd.f32 0.0, %v6444
  %v6446 = vpop.f32.mrb[0].mxu0
  %v6447 = vpop.f32.mrb[0].mxu0
  %v6448 = vadd.f32 0.0, %v6447
  %v6449 = vpop.f32.mrb[0].mxu0
  %6450 = vmatprep.mubr.bf16.mxu0 %v5277
  %6451 = vmatmul.mubr.bf16.gmra.mrb[0].mxu0 %v4908
  %v6452 = vpop.f32.mrb[0].mxu0
  %v6453 = vadd.f32 0.0, %v6452
  %v6454 = vpop.f32.mrb[0].mxu0
  %v6455 = vpop.f32.mrb[0].mxu0
  %v6456 = vadd.f32 0.0, %v6455
  %v6457 = vpop.f32.mrb[0].mxu0
  %6458 = vmatprep.mubr.bf16.mxu0 %v5289
  %6459 = vmatmul.mubr.bf16.gmra.mrb[0].mxu0 %v4909
  %v6460 = vpop.f32.mrb[0].mxu0
  %v6461 = vadd.f32 0.0, %v6460
  %v6462 = vpop.f32.mrb[0].mxu0
  %v6463 = vpop.f32.mrb[0].mxu0
  %v6464 = vadd.f32 0.0, %v6463
  %v6465 = vpop.f32.mrb[0].mxu0
  %6466 = vmatprep.mubr.bf16.mxu0 %v5301
  %6467 = vmatmul.mubr.bf16.gmra.mrb[0].mxu0 %v4910
  %v6468 = vpop.f32.mrb[0].mxu0
  %v6469 = vadd.f32 0.0, %v6468
  %v6470 = vpop.f32.mrb[0].mxu0
  %v6471 = vpop.f32.mrb[0].mxu0
  %v6472 = vadd.f32 0.0, %v6471
  %v6473 = vpop.f32.mrb[0].mxu0
  %6474 = vmatprep.mubr.bf16.mxu0 %v5313
  %6475 = vmatmul.mubr.bf16.gmra.mrb[0].mxu0 %v4911
  %v6476 = vpop.f32.mrb[0].mxu0
  %v6477 = vadd.f32 0.0, %v6476
  %v6478 = vpop.f32.mrb[0].mxu0
  %v6479 = vpop.f32.mrb[0].mxu0
  %v6480 = vadd.f32 0.0, %v6479
  %v6481 = vpop.f32.mrb[0].mxu0
  %6482 = vmatprep.mubr.bf16.mxu0 %v5325
  %6483 = vmatmul.mubr.bf16.gmra.mrb[0].mxu0 %v4912
  %v6484 = vpop.f32.mrb[0].mxu0
  %v6485 = vadd.f32 0.0, %v6484
  %v6486 = vpop.f32.mrb[0].mxu0
  %v6487 = vpop.f32.mrb[0].mxu0
  %v6488 = vadd.f32 0.0, %v6487
  %v6489 = vpop.f32.mrb[0].mxu0
  %6490 = vmatprep.mubr.bf16.mxu0 %v5337
  %6491 = vmatmul.mubr.bf16.gmra.mrb[0].mxu0 %v4913
  %v6492 = vpop.f32.mrb[0].mxu0
  %v6493 = vadd.f32 0.0, %v6492
  %v6494 = vpop.f32.mrb[0].mxu0
  %v6495 = vpop.f32.mrb[0].mxu0
  %v6496 = vadd.f32 0.0, %v6495
  %v6497 = vpop.f32.mrb[0].mxu0
  %6498 = vmatprep.mubr.bf16.mxu0 %v5349
  %6499 = vmatmul.mubr.bf16.gmra.mrb[0].mxu0 %v4914
  %v6500 = vpop.f32.mrb[0].mxu0
  %v6501 = vadd.f32 0.0, %v6500
  %v6502 = vpop.f32.mrb[0].mxu0
  %v6503 = vpop.f32.mrb[0].mxu0
  %v6504 = vadd.f32 0.0, %v6503
  %v6505 = vpop.f32.mrb[0].mxu0
  %6506 = vmatprep.mubr.bf16.mxu0 %v5361
  %6507 = vmatmul.mubr.bf16.gmra.mrb[0].mxu0 %v4915
  %v6508 = vpop.f32.mrb[0].mxu0
  %v6509 = vadd.f32 0.0, %v6508
  %v6510 = vpop.f32.mrb[0].mxu0
  %v6511 = vpop.f32.mrb[0].mxu0
  %v6512 = vadd.f32 0.0, %v6511
  %v6513 = vpop.f32.mrb[0].mxu0
  %6514 = vmatprep.mubr.bf16.mxu0 %v5373
  %6515 = vmatmul.mubr.bf16.gmra.mrb[0].mxu0 %v4916
  %v6516 = vpop.f32.mrb[0].mxu0
  %v6517 = vadd.f32 0.0, %v6516
  %v6518 = vpop.f32.mrb[0].mxu0
  %v6519 = vpop.f32.mrb[0].mxu0
  %v6520 = vadd.f32 0.0, %v6519
  %v6521 = vpop.f32.mrb[0].mxu0
  %6522 = vmatprep.mubr.bf16.mxu0 %v5385
  %6523 = vmatmul.mubr.bf16.gmra.mrb[0].mxu0 %v4917
  %v6524 = vpop.f32.mrb[0].mxu0
  %v6525 = vadd.f32 0.0, %v6524
  %v6526 = vpop.f32.mrb[0].mxu0
  %v6527 = vpop.f32.mrb[0].mxu0
  %v6528 = vadd.f32 0.0, %v6527
  %v6529 = vpop.f32.mrb[0].mxu0
  %6530 = vmatprep.mubr.bf16.mxu0 %v5397
  %6531 = vmatmul.mubr.bf16.gmra.mrb[0].mxu0 %v4918
  %v6532 = vpop.f32.mrb[0].mxu0
  %v6533 = vadd.f32 0.0, %v6532
  %v6534 = vpop.f32.mrb[0].mxu0
  %v6535 = vpop.f32.mrb[0].mxu0
  %v6536 = vadd.f32 0.0, %v6535
  %v6537 = vpop.f32.mrb[0].mxu0
  %6538 = vmatprep.mubr.bf16.mxu0 %v5409
  %6539 = vmatmul.mubr.bf16.gmra.mrb[0].mxu0 %v4919
  %v6540 = vpop.f32.mrb[0].mxu0
  %v6541 = vadd.f32 0.0, %v6540
  %v6542 = vpop.f32.mrb[0].mxu0
  %v6543 = vpop.f32.mrb[0].mxu0
  %v6544 = vadd.f32 0.0, %v6543
  %v6545 = vpop.f32.mrb[0].mxu0
  %6546 = vmatprep.mubr.bf16.mxu0 %v5421
  %6547 = vmatmul.mubr.bf16.gmra.mrb[0].mxu0 %v4920
  %v6548 = vpop.f32.mrb[0].mxu0
  %v6549 = vadd.f32 0.0, %v6548
  %v6550 = vpop.f32.mrb[0].mxu0
  %v6551 = vpop.f32.mrb[0].mxu0
  %v6552 = vadd.f32 0.0, %v6551
  %v6553 = vpop.f32.mrb[0].mxu0
  %6554 = vmatprep.mubr.bf16.mxu0 %v5433
  %6555 = vmatmul.mubr.bf16.gmra.mrb[0].mxu0 %v4921
  %v6556 = vpop.f32.mrb[0].mxu0
  %v6557 = vadd.f32 0.0, %v6556
  %v6558 = vpop.f32.mrb[0].mxu0
  %v6559 = vpop.f32.mrb[0].mxu0
  %v6560 = vadd.f32 0.0, %v6559
  %v6561 = vpop.f32.mrb[0].mxu0
  %6562 = vdwg.mxu0
  %6563 = vmatprep.subr.bf16.mxu0 0
  %6564 = vmatpush1.bf16.msra.mxu0 %v6146
  %6565 = vmatprep.subr.bf16.mxu0 0
  %6566 = vmatpush1.bf16.msra.mxu0 %v6147
  %6567 = vmatprep.subr.bf16.mxu0 0
  %6568 = vmatpush1.bf16.msra.mxu0 %v6148
  %6569 = vmatprep.subr.bf16.mxu0 0
  %6570 = vmatpush1.bf16.msra.mxu0 %v6149
  %6571 = vmatprep.subr.bf16.mxu0 0
  %6572 = vmatpush1.bf16.msra.mxu0 %v6150
  %6573 = vmatprep.subr.bf16.mxu0 0
  %6574 = vmatpush1.bf16.msra.mxu0 %v6151
  %6575 = vmatprep.subr.bf16.mxu0 0
  %6576 = vmatpush1.bf16.msra.mxu0 %v6152
  %6577 = vmatprep.subr.bf16.mxu0 0
  %6578 = vmatpush1.bf16.msra.mxu0 %v6153
  %6579 = vmatprep.subr.bf16.mxu0 0
  %6580 = vmatpush1.bf16.msra.mxu0 %v6154
  %6581 = vmatprep.subr.bf16.mxu0 0
  %6582 = vmatpush1.bf16.msra.mxu0 %v6155
  %6583 = vmatprep.subr.bf16.mxu0 0
  %6584 = vmatpush1.bf16.msra.mxu0 %v6156
  %6585 = vmatprep.subr.bf16.mxu0 0
  %6586 = vmatpush1.bf16.msra.mxu0 %v6157
  %6587 = vmatprep.subr.bf16.mxu0 0
  %6588 = vmatpush1.bf16.msra.mxu0 %v6158
  %6589 = vmatprep.subr.bf16.mxu0 0
  %6590 = vmatpush1.bf16.msra.mxu0 %v6159
  %6591 = vmatprep.subr.bf16.mxu0 0
  %6592 = vmatpush1.bf16.msra.mxu0 %v6160
  %6593 = vmatprep.subr.bf16.mxu0 0
  %6594 = vmatpush1.bf16.msra.mxu0 %v6161
  %6595 = vmatprep.mubr.bf16.mxu0 %v4891
  %6596 = vmatmul.mubr.bf16.gmra.mrb[0].mxu0 %v5468
  %v6597 = vpop.f32.mrb[0].mxu0
  %v6598 = vadd.f32 %v6309, %v6597
  %v6599 = vpop.f32.mrb[0].mxu0
  %v6600 = vpop.f32.mrb[0].mxu0
  %v6601 = vadd.f32 %v6312, %v6600
  %v6602 = vpop.f32.mrb[0].mxu0
  %6603 = vmatprep.mubr.bf16.mxu0 %v4892
  %6604 = vmatmul.mubr.bf16.gmra.mrb[0].mxu0 %v5471
  %v6605 = vpop.f32.mrb[0].mxu0
  %v6606 = vadd.f32 %v6317, %v6605
  %v6607 = vpop.f32.mrb[0].mxu0
  %v6608 = vpop.f32.mrb[0].mxu0
  %v6609 = vadd.f32 %v6320, %v6608
  %v6610 = vpop.f32.mrb[0].mxu0
  %6611 = vmatprep.mubr.bf16.mxu0 %v4893
  %6612 = vmatmul.mubr.bf16.gmra.mrb[0].mxu0 %v5474
  %v6613 = vpop.f32.mrb[0].mxu0
  %v6614 = vadd.f32 %v6325, %v6613
  %v6615 = vpop.f32.mrb[0].mxu0
  %v6616 = vpop.f32.mrb[0].mxu0
  %v6617 = vadd.f32 %v6328, %v6616
  %v6618 = vpop.f32.mrb[0].mxu0
  %6619 = vmatprep.mubr.bf16.mxu0 %v4894
  %6620 = vmatmul.mubr.bf16.gmra.mrb[0].mxu0 %v5477
  %v6621 = vpop.f32.mrb[0].mxu0
  %v6622 = vadd.f32 %v6333, %v6621
  %v6623 = vpop.f32.mrb[0].mxu0
  %v6624 = vpop.f32.mrb[0].mxu0
  %v6625 = vadd.f32 %v6336, %v6624
  %v6626 = vpop.f32.mrb[0].mxu0
  %6627 = vmatprep.mubr.bf16.mxu0 %v4895
  %6628 = vmatmul.mubr.bf16.gmra.mrb[0].mxu0 %v5480
  %v6629 = vpop.f32.mrb[0].mxu0
  %v6630 = vadd.f32 %v6341, %v6629
  %v6631 = vpop.f32.mrb[0].mxu0
  %v6632 = vpop.f32.mrb[0].mxu0
  %v6633 = vadd.f32 %v6344, %v6632
  %v6634 = vpop.f32.mrb[0].mxu0
  %6635 = vmatprep.mubr.bf16.mxu0 %v4896
  %6636 = vmatmul.mubr.bf16.gmra.mrb[0].mxu0 %v5483
  %v6637 = vpop.f32.mrb[0].mxu0
  %v6638 = vadd.f32 %v6349, %v6637
  %v6639 = vpop.f32.mrb[0].mxu0
  %v6640 = vpop.f32.mrb[0].mxu0
  %v6641 = vadd.f32 %v6352, %v6640
  %v6642 = vpop.f32.mrb[0].mxu0
  %6643 = vmatprep.mubr.bf16.mxu0 %v4897
  %6644 = vmatmul.mubr.bf16.gmra.mrb[0].mxu0 %v5486
  %v6645 = vpop.f32.mrb[0].mxu0
  %v6646 = vadd.f32 %v6357, %v6645
  %v6647 = vpop.f32.mrb[0].mxu0
  %v6648 = vpop.f32.mrb[0].mxu0
  %v6649 = vadd.f32 %v6360, %v6648
  %v6650 = vpop.f32.mrb[0].mxu0
  %6651 = vmatprep.mubr.bf16.mxu0 %v4898
  %6652 = vmatmul.mubr.bf16.gmra.mrb[0].mxu0 %v5489
  %v6653 = vpop.f32.mrb[0].mxu0
  %v6654 = vadd.f32 %v6365, %v6653
  %v6655 = vpop.f32.mrb[0].mxu0
  %v6656 = vpop.f32.mrb[0].mxu0
  %v6657 = vadd.f32 %v6368, %v6656
  %v6658 = vpop.f32.mrb[0].mxu0
  %6659 = vmatprep.mubr.bf16.mxu0 %v4899
  %6660 = vmatmul.mubr.bf16.gmra.mrb[0].mxu0 %v5492
  %v6661 = vpop.f32.mrb[0].mxu0
  %v6662 = vadd.f32 %v6373, %v6661
  %v6663 = vpop.f32.mrb[0].mxu0
  %v6664 = vpop.f32.mrb[0].mxu0
  %v6665 = vadd.f32 %v6376, %v6664
  %v6666 = vpop.f32.mrb[0].mxu0
  %6667 = vmatprep.mubr.bf16.mxu0 %v4900
  %6668 = vmatmul.mubr.bf16.gmra.mrb[0].mxu0 %v5495
  %v6669 = vpop.f32.mrb[0].mxu0
  %v6670 = vadd.f32 %v6381, %v6669
  %v6671 = vpop.f32.mrb[0].mxu0
  %v6672 = vpop.f32.mrb[0].mxu0
  %v6673 = vadd.f32 %v6384, %v6672
  %v6674 = vpop.f32.mrb[0].mxu0
  %6675 = vmatprep.mubr.bf16.mxu0 %v4901
  %6676 = vmatmul.mubr.bf16.gmra.mrb[0].mxu0 %v5498
  %v6677 = vpop.f32.mrb[0].mxu0
  %v6678 = vadd.f32 %v6389, %v6677
  %v6679 = vpop.f32.mrb[0].mxu0
  %v6680 = vpop.f32.mrb[0].mxu0
  %v6681 = vadd.f32 %v6392, %v6680
  %v6682 = vpop.f32.mrb[0].mxu0
  %6683 = vmatprep.mubr.bf16.mxu0 %v4902
  %6684 = vmatmul.mubr.bf16.gmra.mrb[0].mxu0 %v5501
  %v6685 = vpop.f32.mrb[0].mxu0
  %v6686 = vadd.f32 %v6397, %v6685
  %v6687 = vpop.f32.mrb[0].mxu0
  %v6688 = vpop.f32.mrb[0].mxu0
  %v6689 = vadd.f32 %v6400, %v6688
  %v6690 = vpop.f32.mrb[0].mxu0
  %6691 = vmatprep.mubr.bf16.mxu0 %v4903
  %6692 = vmatmul.mubr.bf16.gmra.mrb[0].mxu0 %v5504
  %v6693 = vpop.f32.mrb[0].mxu0
  %v6694 = vadd.f32 %v6405, %v6693
  %v6695 = vpop.f32.mrb[0].mxu0
  %v6696 = vpop.f32.mrb[0].mxu0
  %v6697 = vadd.f32 %v6408, %v6696
  %v6698 = vpop.f32.mrb[0].mxu0
  %6699 = vmatprep.mubr.bf16.mxu0 %v4904
  %6700 = vmatmul.mubr.bf16.gmra.mrb[0].mxu0 %v5507
  %v6701 = vpop.f32.mrb[0].mxu0
  %v6702 = vadd.f32 %v6413, %v6701
  %v6703 = vpop.f32.mrb[0].mxu0
  %v6704 = vpop.f32.mrb[0].mxu0
  %v6705 = vadd.f32 %v6416, %v6704
  %v6706 = vpop.f32.mrb[0].mxu0
  %6707 = vmatprep.mubr.bf16.mxu0 %v4905
  %6708 = vmatmul.mubr.bf16.gmra.mrb[0].mxu0 %v5510
  %v6709 = vpop.f32.mrb[0].mxu0
  %v6710 = vadd.f32 %v6421, %v6709
  %v6711 = vpop.f32.mrb[0].mxu0
  %v6712 = vpop.f32.mrb[0].mxu0
  %v6713 = vadd.f32 %v6424, %v6712
  %v6714 = vpop.f32.mrb[0].mxu0
  %6715 = vmatprep.mubr.bf16.mxu0 %v5602
  %6716 = vmatmul.mubr.bf16.gmra.mrb[0].mxu0 %v5513
  %v6717 = vpop.f32.mrb[0].mxu0
  %v6718 = vadd.f32 %v6429, %v6717
  %v6719 = vpop.f32.mrb[0].mxu0
  %v6720 = vpop.f32.mrb[0].mxu0
  %v6721 = vadd.f32 %v6432, %v6720
  %v6722 = vpop.f32.mrb[0].mxu0
  %6723 = vmatprep.mubr.bf16.mxu0 %v4907
  %6724 = vmatmul.mubr.bf16.gmra.mrb[0].mxu0 %v5516
  %v6725 = vpop.f32.mrb[0].mxu0
  %v6726 = vadd.f32 %v6437, %v6725
  %v6727 = vpop.f32.mrb[0].mxu0
  %v6728 = vpop.f32.mrb[0].mxu0
  %v6729 = vadd.f32 %v6440, %v6728
  %v6730 = vpop.f32.mrb[0].mxu0
  %6731 = vmatprep.mubr.bf16.mxu0 %v4908
  %6732 = vmatmul.mubr.bf16.gmra.mrb[0].mxu0 %v5519
  %v6733 = vpop.f32.mrb[0].mxu0
  %v6734 = vadd.f32 %v6445, %v6733
  %v6735 = vpop.f32.mrb[0].mxu0
  %v6736 = vpop.f32.mrb[0].mxu0
  %v6737 = vadd.f32 %v6448, %v6736
  %v6738 = vpop.f32.mrb[0].mxu0
  %6739 = vmatprep.mubr.bf16.mxu0 %v4909
  %6740 = vmatmul.mubr.bf16.gmra.mrb[0].mxu0 %v5522
  %v6741 = vpop.f32.mrb[0].mxu0
  %v6742 = vadd.f32 %v6453, %v6741
  %v6743 = vpop.f32.mrb[0].mxu0
  %v6744 = vpop.f32.mrb[0].mxu0
  %v6745 = vadd.f32 %v6456, %v6744
  %v6746 = vpop.f32.mrb[0].mxu0
  %6747 = vmatprep.mubr.bf16.mxu0 %v4910
  %6748 = vmatmul.mubr.bf16.gmra.mrb[0].mxu0 %v5525
  %v6749 = vpop.f32.mrb[0].mxu0
  %v6750 = vadd.f32 %v6461, %v6749
  %v6751 = vpop.f32.mrb[0].mxu0
  %v6752 = vpop.f32.mrb[0].mxu0
  %v6753 = vadd.f32 %v6464, %v6752
  %v6754 = vpop.f32.mrb[0].mxu0
  %6755 = vmatprep.mubr.bf16.mxu0 %v4911
  %6756 = vmatmul.mubr.bf16.gmra.mrb[0].mxu0 %v5528
  %v6757 = vpop.f32.mrb[0].mxu0
  %v6758 = vadd.f32 %v6469, %v6757
  %v6759 = vpop.f32.mrb[0].mxu0
  %v6760 = vpop.f32.mrb[0].mxu0
  %v6761 = vadd.f32 %v6472, %v6760
  %v6762 = vpop.f32.mrb[0].mxu0
  %6763 = vmatprep.mubr.bf16.mxu0 %v4912
  %6764 = vmatmul.mubr.bf16.gmra.mrb[0].mxu0 %v5531
  %v6765 = vpop.f32.mrb[0].mxu0
  %v6766 = vadd.f32 %v6477, %v6765
  %v6767 = vpop.f32.mrb[0].mxu0
  %v6768 = vpop.f32.mrb[0].mxu0
  %v6769 = vadd.f32 %v6480, %v6768
  %v6770 = vpop.f32.mrb[0].mxu0
  %6771 = vmatprep.mubr.bf16.mxu0 %v4913
  %6772 = vmatmul.mubr.bf16.gmra.mrb[0].mxu0 %v5534
  %v6773 = vpop.f32.mrb[0].mxu0
  %v6774 = vadd.f32 %v6485, %v6773
  %v6775 = vpop.f32.mrb[0].mxu0
  %v6776 = vpop.f32.mrb[0].mxu0
  %v6777 = vadd.f32 %v6488, %v6776
  %v6778 = vpop.f32.mrb[0].mxu0
  %6779 = vmatprep.mubr.bf16.mxu0 %v4914
  %6780 = vmatmul.mubr.bf16.gmra.mrb[0].mxu0 %v5537
  %v6781 = vpop.f32.mrb[0].mxu0
  %v6782 = vadd.f32 %v6493, %v6781
  %v6783 = vpop.f32.mrb[0].mxu0
  %v6784 = vpop.f32.mrb[0].mxu0
  %v6785 = vadd.f32 %v6496, %v6784
  %v6786 = vpop.f32.mrb[0].mxu0
  %6787 = vmatprep.mubr.bf16.mxu0 %v4915
  %6788 = vmatmul.mubr.bf16.gmra.mrb[0].mxu0 %v5540
  %v6789 = vpop.f32.mrb[0].mxu0
  %v6790 = vadd.f32 %v6501, %v6789
  %v6791 = vpop.f32.mrb[0].mxu0
  %v6792 = vpop.f32.mrb[0].mxu0
  %v6793 = vadd.f32 %v6504, %v6792
  %v6794 = vpop.f32.mrb[0].mxu0
  %6795 = vmatprep.mubr.bf16.mxu0 %v4916
  %6796 = vmatmul.mubr.bf16.gmra.mrb[0].mxu0 %v5543
  %v6797 = vpop.f32.mrb[0].mxu0
  %v6798 = vadd.f32 %v6509, %v6797
  %v6799 = vpop.f32.mrb[0].mxu0
  %v6800 = vpop.f32.mrb[0].mxu0
  %v6801 = vadd.f32 %v6512, %v6800
  %v6802 = vpop.f32.mrb[0].mxu0
  %6803 = vmatprep.mubr.bf16.mxu0 %v4917
  %6804 = vmatmul.mubr.bf16.gmra.mrb[0].mxu0 %v5546
  %v6805 = vpop.f32.mrb[0].mxu0
  %v6806 = vadd.f32 %v6517, %v6805
  %v6807 = vpop.f32.mrb[0].mxu0
  %v6808 = vpop.f32.mrb[0].mxu0
  %v6809 = vadd.f32 %v6520, %v6808
  %v6810 = vpop.f32.mrb[0].mxu0
  %6811 = vmatprep.mubr.bf16.mxu0 %v4918
  %6812 = vmatmul.mubr.bf16.gmra.mrb[0].mxu0 %v5549
  %v6813 = vpop.f32.mrb[0].mxu0
  %v6814 = vadd.f32 %v6525, %v6813
  %v6815 = vpop.f32.mrb[0].mxu0
  %v6816 = vpop.f32.mrb[0].mxu0
  %v6817 = vadd.f32 %v6528, %v6816
  %v6818 = vpop.f32.mrb[0].mxu0
  %6819 = vmatprep.mubr.bf16.mxu0 %v4919
  %6820 = vmatmul.mubr.bf16.gmra.mrb[0].mxu0 %v5552
  %v6821 = vpop.f32.mrb[0].mxu0
  %v6822 = vadd.f32 %v6533, %v6821
  %v6823 = vpop.f32.mrb[0].mxu0
  %v6824 = vpop.f32.mrb[0].mxu0
  %v6825 = vadd.f32 %v6536, %v6824
  %v6826 = vpop.f32.mrb[0].mxu0
  %6827 = vmatprep.mubr.bf16.mxu0 %v4920
  %6828 = vmatmul.mubr.bf16.gmra.mrb[0].mxu0 %v5555
  %v6829 = vpop.f32.mrb[0].mxu0
  %v6830 = vadd.f32 %v6541, %v6829
  %v6831 = vpop.f32.mrb[0].mxu0
  %v6832 = vpop.f32.mrb[0].mxu0
  %v6833 = vadd.f32 %v6544, %v6832
  %v6834 = vpop.f32.mrb[0].mxu0
  %6835 = vmatprep.mubr.bf16.mxu0 %v4921
  %6836 = vmatmul.mubr.bf16.gmra.mrb[0].mxu0 %v5558
  %v6837 = vpop.f32.mrb[0].mxu0
  %v6838 = vadd.f32 %v6549, %v6837
  %v6839 = vpop.f32.mrb[0].mxu0
  %v6840 = vpop.f32.mrb[0].mxu0
  %v6841 = vadd.f32 %v6552, %v6840
  %v6842 = vpop.f32.mrb[0].mxu0
  %6843 = vmatprep.mubr.bf16.mxu0 %v5603
  %6844 = vmatmul.mubr.bf16.gmra.mrb[0].mxu0 %v5561
  %v6845 = vpop.f32.mrb[0].mxu0
  %v6846 = vadd.f32 %v6557, %v6845
  %v6847 = vpop.f32.mrb[0].mxu0
  %v6848 = vpop.f32.mrb[0].mxu0
  %v6849 = vadd.f32 %v6560, %v6848
  %v6850 = vpop.f32.mrb[0].mxu0
  %6851 = vdwg.mxu0
  %6852 = vmatprep.subr.bf16.mxu0 0
  %6853 = vmatpush1.bf16.msra.mxu0 %v6162
  %6854 = vmatprep.subr.bf16.mxu0 0
  %6855 = vmatpush1.bf16.msra.mxu0 %v6163
  %6856 = vmatprep.subr.bf16.mxu0 0
  %6857 = vmatpush1.bf16.msra.mxu0 %v6164
  %6858 = vmatprep.subr.bf16.mxu0 0
  %6859 = vmatpush1.bf16.msra.mxu0 %v6165
  %6860 = vmatprep.subr.bf16.mxu0 0
  %6861 = vmatpush1.bf16.msra.mxu0 %v6166
  %6862 = vmatprep.subr.bf16.mxu0 0
  %6863 = vmatpush1.bf16.msra.mxu0 %v6167
  %6864 = vmatprep.subr.bf16.mxu0 0
  %6865 = vmatpush1.bf16.msra.mxu0 %v6168
  %6866 = vmatprep.subr.bf16.mxu0 0
  %6867 = vmatpush1.bf16.msra.mxu0 %v6169
  %6868 = vmatprep.subr.bf16.mxu0 0
  %6869 = vmatpush1.bf16.msra.mxu0 %v6170
  %6870 = vmatprep.subr.bf16.mxu0 0
  %6871 = vmatpush1.bf16.msra.mxu0 %v6171
  %6872 = vmatprep.subr.bf16.mxu0 0
  %6873 = vmatpush1.bf16.msra.mxu0 %v6172
  %6874 = vmatprep.subr.bf16.mxu0 0
  %6875 = vmatpush1.bf16.msra.mxu0 %v6173
  %6876 = vmatprep.subr.bf16.mxu0 0
  %6877 = vmatpush1.bf16.msra.mxu0 %v6174
  %6878 = vmatprep.subr.bf16.mxu0 0
  %6879 = vmatpush1.bf16.msra.mxu0 %v6175
  %6880 = vmatprep.subr.bf16.mxu0 0
  %6881 = vmatpush1.bf16.msra.mxu0 %v6176
  %6882 = vmatprep.subr.bf16.mxu0 0
  %6883 = vmatpush1.bf16.msra.mxu0 %v6177
  %6884 = vmatprep.mubr.bf16.mxu0 %v5471
  %6885 = vmatmul.mubr.bf16.gmra.mrb[0].mxu0 %v5073
  %v6886 = vpop.f32.mrb[0].mxu0
  %v6887 = vadd.f32 %v6598, %v6886
  %v6888 = vpop.f32.mrb[0].mxu0
  %v6889 = vpop.f32.mrb[0].mxu0
  %v6890 = vadd.f32 %v6601, %v6889
  %v6891 = vpop.f32.mrb[0].mxu0
  %6892 = vmatprep.mubr.bf16.mxu0 %v5474
  %6893 = vmatmul.mubr.bf16.gmra.mrb[0].mxu0 %v5085
  %v6894 = vpop.f32.mrb[0].mxu0
  %v6895 = vadd.f32 %v6606, %v6894
  %v6896 = vpop.f32.mrb[0].mxu0
  %v6897 = vpop.f32.mrb[0].mxu0
  %v6898 = vadd.f32 %v6609, %v6897
  %v6899 = vpop.f32.mrb[0].mxu0
  %6900 = vmatprep.mubr.bf16.mxu0 %v5477
  %6901 = vmatmul.mubr.bf16.gmra.mrb[0].mxu0 %v5097
  %v6902 = vpop.f32.mrb[0].mxu0
  %v6903 = vadd.f32 %v6614, %v6902
  %v6904 = vpop.f32.mrb[0].mxu0
  %v6905 = vpop.f32.mrb[0].mxu0
  %v6906 = vadd.f32 %v6617, %v6905
  %v6907 = vpop.f32.mrb[0].mxu0
  %6908 = vmatprep.mubr.bf16.mxu0 %v5480
  %6909 = vmatmul.mubr.bf16.gmra.mrb[0].mxu0 %v5109
  %v6910 = vpop.f32.mrb[0].mxu0
  %v6911 = vadd.f32 %v6622, %v6910
  %v6912 = vpop.f32.mrb[0].mxu0
  %v6913 = vpop.f32.mrb[0].mxu0
  %v6914 = vadd.f32 %v6625, %v6913
  %v6915 = vpop.f32.mrb[0].mxu0
  %6916 = vmatprep.mubr.bf16.mxu0 %v5483
  %6917 = vmatmul.mubr.bf16.gmra.mrb[0].mxu0 %v5121
  %v6918 = vpop.f32.mrb[0].mxu0
  %v6919 = vadd.f32 %v6630, %v6918
  %v6920 = vpop.f32.mrb[0].mxu0
  %v6921 = vpop.f32.mrb[0].mxu0
  %v6922 = vadd.f32 %v6633, %v6921
  %v6923 = vpop.f32.mrb[0].mxu0
  %6924 = vmatprep.mubr.bf16.mxu0 %v5486
  %6925 = vmatmul.mubr.bf16.gmra.mrb[0].mxu0 %v5133
  %v6926 = vpop.f32.mrb[0].mxu0
  %v6927 = vadd.f32 %v6638, %v6926
  %v6928 = vpop.f32.mrb[0].mxu0
  %v6929 = vpop.f32.mrb[0].mxu0
  %v6930 = vadd.f32 %v6641, %v6929
  %v6931 = vpop.f32.mrb[0].mxu0
  %6932 = vmatprep.mubr.bf16.mxu0 %v5489
  %6933 = vmatmul.mubr.bf16.gmra.mrb[0].mxu0 %v5145
  %v6934 = vpop.f32.mrb[0].mxu0
  %v6935 = vadd.f32 %v6646, %v6934
  %v6936 = vpop.f32.mrb[0].mxu0
  %v6937 = vpop.f32.mrb[0].mxu0
  %v6938 = vadd.f32 %v6649, %v6937
  %v6939 = vpop.f32.mrb[0].mxu0
  %6940 = vmatprep.mubr.bf16.mxu0 %v5492
  %6941 = vmatmul.mubr.bf16.gmra.mrb[0].mxu0 %v5157
  %v6942 = vpop.f32.mrb[0].mxu0
  %v6943 = vadd.f32 %v6654, %v6942
  %v6944 = vpop.f32.mrb[0].mxu0
  %v6945 = vpop.f32.mrb[0].mxu0
  %v6946 = vadd.f32 %v6657, %v6945
  %v6947 = vpop.f32.mrb[0].mxu0
  %6948 = vmatprep.mubr.bf16.mxu0 %v5495
  %6949 = vmatmul.mubr.bf16.gmra.mrb[0].mxu0 %v5169
  %v6950 = vpop.f32.mrb[0].mxu0
  %v6951 = vadd.f32 %v6662, %v6950
  %v6952 = vpop.f32.mrb[0].mxu0
  %v6953 = vpop.f32.mrb[0].mxu0
  %v6954 = vadd.f32 %v6665, %v6953
  %v6955 = vpop.f32.mrb[0].mxu0
  %6956 = vmatprep.mubr.bf16.mxu0 %v5498
  %6957 = vmatmul.mubr.bf16.gmra.mrb[0].mxu0 %v5181
  %v6958 = vpop.f32.mrb[0].mxu0
  %v6959 = vadd.f32 %v6670, %v6958
  %v6960 = vpop.f32.mrb[0].mxu0
  %v6961 = vpop.f32.mrb[0].mxu0
  %v6962 = vadd.f32 %v6673, %v6961
  %v6963 = vpop.f32.mrb[0].mxu0
  %6964 = vmatprep.mubr.bf16.mxu0 %v5501
  %6965 = vmatmul.mubr.bf16.gmra.mrb[0].mxu0 %v5193
  %v6966 = vpop.f32.mrb[0].mxu0
  %v6967 = vadd.f32 %v6678, %v6966
  %v6968 = vpop.f32.mrb[0].mxu0
  %v6969 = vpop.f32.mrb[0].mxu0
  %v6970 = vadd.f32 %v6681, %v6969
  %v6971 = vpop.f32.mrb[0].mxu0
  %6972 = vmatprep.mubr.bf16.mxu0 %v5504
  %6973 = vmatmul.mubr.bf16.gmra.mrb[0].mxu0 %v5205
  %v6974 = vpop.f32.mrb[0].mxu0
  %v6975 = vadd.f32 %v6686, %v6974
  %v6976 = vpop.f32.mrb[0].mxu0
  %v6977 = vpop.f32.mrb[0].mxu0
  %v6978 = vadd.f32 %v6689, %v6977
  %v6979 = vpop.f32.mrb[0].mxu0
  %6980 = vmatprep.mubr.bf16.mxu0 %v5507
  %6981 = vmatmul.mubr.bf16.gmra.mrb[0].mxu0 %v5217
  %v6982 = vpop.f32.mrb[0].mxu0
  %v6983 = vadd.f32 %v6694, %v6982
  %v6984 = vpop.f32.mrb[0].mxu0
  %v6985 = vpop.f32.mrb[0].mxu0
  %v6986 = vadd.f32 %v6697, %v6985
  %v6987 = vpop.f32.mrb[0].mxu0
  %6988 = vmatprep.mubr.bf16.mxu0 %v5510
  %6989 = vmatmul.mubr.bf16.gmra.mrb[0].mxu0 %v5229
  %v6990 = vpop.f32.mrb[0].mxu0
  %v6991 = vadd.f32 %v6702, %v6990
  %v6992 = vpop.f32.mrb[0].mxu0
  %v6993 = vpop.f32.mrb[0].mxu0
  %v6994 = vadd.f32 %v6705, %v6993
  %v6995 = vpop.f32.mrb[0].mxu0
  %6996 = vmatprep.mubr.bf16.mxu0 %v5513
  %6997 = vmatmul.mubr.bf16.gmra.mrb[0].mxu0 %v5241
  %v6998 = vpop.f32.mrb[0].mxu0
  %v6999 = vadd.f32 %v6710, %v6998
  %v7000 = vpop.f32.mrb[0].mxu0
  %v7001 = vpop.f32.mrb[0].mxu0
  %v7002 = vadd.f32 %v6713, %v7001
  %v7003 = vpop.f32.mrb[0].mxu0
  %7004 = vmatprep.mubr.bf16.mxu0 %v5640
  %7005 = vmatmul.mubr.bf16.gmra.mrb[0].mxu0 %v5623
  %v7006 = vpop.f32.mrb[0].mxu0
  %v7007 = vadd.f32 %v6718, %v7006
  %v7008 = vpop.f32.mrb[0].mxu0
  %v7009 = vpop.f32.mrb[0].mxu0
  %v7010 = vadd.f32 %v6721, %v7009
  %v7011 = vpop.f32.mrb[0].mxu0
  %7012 = vmatprep.mubr.bf16.mxu0 %v5519
  %7013 = vmatmul.mubr.bf16.gmra.mrb[0].mxu0 %v5265
  %v7014 = vpop.f32.mrb[0].mxu0
  %v7015 = vadd.f32 %v6726, %v7014
  %v7016 = vpop.f32.mrb[0].mxu0
  %v7017 = vpop.f32.mrb[0].mxu0
  %v7018 = vadd.f32 %v6729, %v7017
  %v7019 = vpop.f32.mrb[0].mxu0
  %7020 = vmatprep.mubr.bf16.mxu0 %v5522
  %7021 = vmatmul.mubr.bf16.gmra.mrb[0].mxu0 %v5277
  %v7022 = vpop.f32.mrb[0].mxu0
  %v7023 = vadd.f32 %v6734, %v7022
  %v7024 = vpop.f32.mrb[0].mxu0
  %v7025 = vpop.f32.mrb[0].mxu0
  %v7026 = vadd.f32 %v6737, %v7025
  %v7027 = vpop.f32.mrb[0].mxu0
  %7028 = vmatprep.mubr.bf16.mxu0 %v5525
  %7029 = vmatmul.mubr.bf16.gmra.mrb[0].mxu0 %v5289
  %v7030 = vpop.f32.mrb[0].mxu0
  %v7031 = vadd.f32 %v6742, %v7030
  %v7032 = vpop.f32.mrb[0].mxu0
  %v7033 = vpop.f32.mrb[0].mxu0
  %v7034 = vadd.f32 %v6745, %v7033
  %v7035 = vpop.f32.mrb[0].mxu0
  %7036 = vmatprep.mubr.bf16.mxu0 %v5528
  %7037 = vmatmul.mubr.bf16.gmra.mrb[0].mxu0 %v5301
  %v7038 = vpop.f32.mrb[0].mxu0
  %v7039 = vadd.f32 %v6750, %v7038
  %v7040 = vpop.f32.mrb[0].mxu0
  %v7041 = vpop.f32.mrb[0].mxu0
  %v7042 = vadd.f32 %v6753, %v7041
  %v7043 = vpop.f32.mrb[0].mxu0
  %7044 = vmatprep.mubr.bf16.mxu0 %v5531
  %7045 = vmatmul.mubr.bf16.gmra.mrb[0].mxu0 %v5313
  %v7046 = vpop.f32.mrb[0].mxu0
  %v7047 = vadd.f32 %v6758, %v7046
  %v7048 = vpop.f32.mrb[0].mxu0
  %v7049 = vpop.f32.mrb[0].mxu0
  %v7050 = vadd.f32 %v6761, %v7049
  %v7051 = vpop.f32.mrb[0].mxu0
  %7052 = vmatprep.mubr.bf16.mxu0 %v5534
  %7053 = vmatmul.mubr.bf16.gmra.mrb[0].mxu0 %v5325
  %v7054 = vpop.f32.mrb[0].mxu0
  %v7055 = vadd.f32 %v6766, %v7054
  %v7056 = vpop.f32.mrb[0].mxu0
  %v7057 = vpop.f32.mrb[0].mxu0
  %v7058 = vadd.f32 %v6769, %v7057
  %v7059 = vpop.f32.mrb[0].mxu0
  %7060 = vmatprep.mubr.bf16.mxu0 %v5537
  %7061 = vmatmul.mubr.bf16.gmra.mrb[0].mxu0 %v5337
  %v7062 = vpop.f32.mrb[0].mxu0
  %v7063 = vadd.f32 %v6774, %v7062
  %v7064 = vpop.f32.mrb[0].mxu0
  %v7065 = vpop.f32.mrb[0].mxu0
  %v7066 = vadd.f32 %v6777, %v7065
  %v7067 = vpop.f32.mrb[0].mxu0
  %7068 = vmatprep.mubr.bf16.mxu0 %v5540
  %7069 = vmatmul.mubr.bf16.gmra.mrb[0].mxu0 %v5349
  %v7070 = vpop.f32.mrb[0].mxu0
  %v7071 = vadd.f32 %v6782, %v7070
  %v7072 = vpop.f32.mrb[0].mxu0
  %v7073 = vpop.f32.mrb[0].mxu0
  %v7074 = vadd.f32 %v6785, %v7073
  %v7075 = vpop.f32.mrb[0].mxu0
  %7076 = vmatprep.mubr.bf16.mxu0 %v5543
  %7077 = vmatmul.mubr.bf16.gmra.mrb[0].mxu0 %v5361
  %v7078 = vpop.f32.mrb[0].mxu0
  %v7079 = vadd.f32 %v6790, %v7078
  %v7080 = vpop.f32.mrb[0].mxu0
  %v7081 = vpop.f32.mrb[0].mxu0
  %v7082 = vadd.f32 %v6793, %v7081
  %v7083 = vpop.f32.mrb[0].mxu0
  %7084 = vmatprep.mubr.bf16.mxu0 %v5546
  %7085 = vmatmul.mubr.bf16.gmra.mrb[0].mxu0 %v5373
  %v7086 = vpop.f32.mrb[0].mxu0
  %v7087 = vadd.f32 %v6798, %v7086
  %v7088 = vpop.f32.mrb[0].mxu0
  %v7089 = vpop.f32.mrb[0].mxu0
  %v7090 = vadd.f32 %v6801, %v7089
  %v7091 = vpop.f32.mrb[0].mxu0
  %7092 = vmatprep.mubr.bf16.mxu0 %v5549
  %7093 = vmatmul.mubr.bf16.gmra.mrb[0].mxu0 %v5385
  %v7094 = vpop.f32.mrb[0].mxu0
  %v7095 = vadd.f32 %v6806, %v7094
  %v7096 = vpop.f32.mrb[0].mxu0
  %v7097 = vpop.f32.mrb[0].mxu0
  %v7098 = vadd.f32 %v6809, %v7097
  %v7099 = vpop.f32.mrb[0].mxu0
  %7100 = vmatprep.mubr.bf16.mxu0 %v5552
  %7101 = vmatmul.mubr.bf16.gmra.mrb[0].mxu0 %v5397
  %v7102 = vpop.f32.mrb[0].mxu0
  %v7103 = vadd.f32 %v6814, %v7102
  %v7104 = vpop.f32.mrb[0].mxu0
  %v7105 = vpop.f32.mrb[0].mxu0
  %v7106 = vadd.f32 %v6817, %v7105
  %v7107 = vpop.f32.mrb[0].mxu0
  %7108 = vmatprep.mubr.bf16.mxu0 %v5555
  %7109 = vmatmul.mubr.bf16.gmra.mrb[0].mxu0 %v5409
  %v7110 = vpop.f32.mrb[0].mxu0
  %v7111 = vadd.f32 %v6822, %v7110
  %v7112 = vpop.f32.mrb[0].mxu0
  %v7113 = vpop.f32.mrb[0].mxu0
  %v7114 = vadd.f32 %v6825, %v7113
  %v7115 = vpop.f32.mrb[0].mxu0
  %7116 = vmatprep.mubr.bf16.mxu0 %v5558
  %7117 = vmatmul.mubr.bf16.gmra.mrb[0].mxu0 %v5421
  %v7118 = vpop.f32.mrb[0].mxu0
  %v7119 = vadd.f32 %v6830, %v7118
  %v7120 = vpop.f32.mrb[0].mxu0
  %v7121 = vpop.f32.mrb[0].mxu0
  %v7122 = vadd.f32 %v6833, %v7121
  %v7123 = vpop.f32.mrb[0].mxu0
  %7124 = vmatprep.mubr.bf16.mxu0 %v5561
  %7125 = vmatmul.mubr.bf16.gmra.mrb[0].mxu0 %v5433
  %v7126 = vpop.f32.mrb[0].mxu0
  %v7127 = vadd.f32 %v6838, %v7126
  %v7128 = vpop.f32.mrb[0].mxu0
  %v7129 = vpop.f32.mrb[0].mxu0
  %v7130 = vadd.f32 %v6841, %v7129
  %v7131 = vpop.f32.mrb[0].mxu0
  %7132 = vmatprep.mubr.bf16.mxu0 %v5643
  %7133 = vmatmul.mubr.bf16.gmra.mrb[0].mxu0 %v5635
  %v7134 = vpop.f32.mrb[0].mxu0
  %v7135 = vadd.f32 %v6846, %v7134
  %v7136 = vpop.f32.mrb[0].mxu0
  %v7137 = vpop.f32.mrb[0].mxu0
  %v7138 = vadd.f32 %v6849, %v7137
  %v7139 = vpop.f32.mrb[0].mxu0
  %7140 = vdwg.mxu0
  %7141 = vmatprep.subr.bf16.mxu0 0
  %7142 = vmatpush1.bf16.msra.mxu0 %v6178
  %7143 = vmatprep.subr.bf16.mxu0 0
  %7144 = vmatpush1.bf16.msra.mxu0 %v6179
  %7145 = vmatprep.subr.bf16.mxu0 0
  %7146 = vmatpush1.bf16.msra.mxu0 %v6180
  %7147 = vmatprep.subr.bf16.mxu0 0
  %7148 = vmatpush1.bf16.msra.mxu0 %v6181
  %7149 = vmatprep.subr.bf16.mxu0 0
  %7150 = vmatpush1.bf16.msra.mxu0 %v6182
  %7151 = vmatprep.subr.bf16.mxu0 0
  %7152 = vmatpush1.bf16.msra.mxu0 %v6183
  %7153 = vmatprep.subr.bf16.mxu0 0
  %7154 = vmatpush1.bf16.msra.mxu0 %v6184
  %7155 = vmatprep.subr.bf16.mxu0 0
  %7156 = vmatpush1.bf16.msra.mxu0 %v6185
  %7157 = vmatprep.subr.bf16.mxu0 0
  %7158 = vmatpush1.bf16.msra.mxu0 %v6186
  %7159 = vmatprep.subr.bf16.mxu0 0
  %7160 = vmatpush1.bf16.msra.mxu0 %v6187
  %7161 = vmatprep.subr.bf16.mxu0 0
  %7162 = vmatpush1.bf16.msra.mxu0 %v6188
  %7163 = vmatprep.subr.bf16.mxu0 0
  %7164 = vmatpush1.bf16.msra.mxu0 %v6189
  %7165 = vmatprep.subr.bf16.mxu0 0
  %7166 = vmatpush1.bf16.msra.mxu0 %v6190
  %7167 = vmatprep.subr.bf16.mxu0 0
  %7168 = vmatpush1.bf16.msra.mxu0 %v6191
  %7169 = vmatprep.subr.bf16.mxu0 0
  %7170 = vmatpush1.bf16.msra.mxu0 %v6192
  %7171 = vmatprep.subr.bf16.mxu0 0
  %7172 = vmatpush1.bf16.msra.mxu0 %v6193
  %7173 = vmatprep.mubr.bf16.mxu0 %v5085
  %7174 = vmatmul.mubr.bf16.gmra.mrb[0].mxu0 %v4892
  %v7175 = vpop.f32.mrb[0].mxu0
  %v7176 = vadd.f32 %v6887, %v7175
  %v7177 = vpop.f32.mrb[0].mxu0
  %v7178 = vpop.f32.mrb[0].mxu0
  %v7179 = vadd.f32 %v6890, %v7178
  %v7180 = vpop.f32.mrb[0].mxu0
  %7181 = vmatprep.mubr.bf16.mxu0 %v5097
  %7182 = vmatmul.mubr.bf16.gmra.mrb[0].mxu0 %v4893
  %v7183 = vpop.f32.mrb[0].mxu0
  %v7184 = vadd.f32 %v6895, %v7183
  %v7185 = vpop.f32.mrb[0].mxu0
  %v7186 = vpop.f32.mrb[0].mxu0
  %v7187 = vadd.f32 %v6898, %v7186
  %v7188 = vpop.f32.mrb[0].mxu0
  %7189 = vmatprep.mubr.bf16.mxu0 %v5109
  %7190 = vmatmul.mubr.bf16.gmra.mrb[0].mxu0 %v4894
  %v7191 = vpop.f32.mrb[0].mxu0
  %v7192 = vadd.f32 %v6903, %v7191
  %v7193 = vpop.f32.mrb[0].mxu0
  %v7194 = vpop.f32.mrb[0].mxu0
  %v7195 = vadd.f32 %v6906, %v7194
  %v7196 = vpop.f32.mrb[0].mxu0
  %7197 = vmatprep.mubr.bf16.mxu0 %v5121
  %7198 = vmatmul.mubr.bf16.gmra.mrb[0].mxu0 %v4895
  %v7199 = vpop.f32.mrb[0].mxu0
  %v7200 = vadd.f32 %v6911, %v7199
  %v7201 = vpop.f32.mrb[0].mxu0
  %v7202 = vpop.f32.mrb[0].mxu0
  %v7203 = vadd.f32 %v6914, %v7202
  %v7204 = vpop.f32.mrb[0].mxu0
  %7205 = vmatprep.mubr.bf16.mxu0 %v5133
  %7206 = vmatmul.mubr.bf16.gmra.mrb[0].mxu0 %v4896
  %v7207 = vpop.f32.mrb[0].mxu0
  %v7208 = vadd.f32 %v6919, %v7207
  %v7209 = vpop.f32.mrb[0].mxu0
  %v7210 = vpop.f32.mrb[0].mxu0
  %v7211 = vadd.f32 %v6922, %v7210
  %v7212 = vpop.f32.mrb[0].mxu0
  %7213 = vmatprep.mubr.bf16.mxu0 %v5145
  %7214 = vmatmul.mubr.bf16.gmra.mrb[0].mxu0 %v4897
  %v7215 = vpop.f32.mrb[0].mxu0
  %v7216 = vadd.f32 %v6927, %v7215
  %v7217 = vpop.f32.mrb[0].mxu0
  %v7218 = vpop.f32.mrb[0].mxu0
  %v7219 = vadd.f32 %v6930, %v7218
  %v7220 = vpop.f32.mrb[0].mxu0
  %7221 = vmatprep.mubr.bf16.mxu0 %v5157
  %7222 = vmatmul.mubr.bf16.gmra.mrb[0].mxu0 %v4898
  %v7223 = vpop.f32.mrb[0].mxu0
  %v7224 = vadd.f32 %v6935, %v7223
  %v7225 = vpop.f32.mrb[0].mxu0
  %v7226 = vpop.f32.mrb[0].mxu0
  %v7227 = vadd.f32 %v6938, %v7226
  %v7228 = vpop.f32.mrb[0].mxu0
  %7229 = vmatprep.mubr.bf16.mxu0 %v5169
  %7230 = vmatmul.mubr.bf16.gmra.mrb[0].mxu0 %v4899
  %v7231 = vpop.f32.mrb[0].mxu0
  %v7232 = vadd.f32 %v6943, %v7231
  %v7233 = vpop.f32.mrb[0].mxu0
  %v7234 = vpop.f32.mrb[0].mxu0
  %v7235 = vadd.f32 %v6946, %v7234
  %v7236 = vpop.f32.mrb[0].mxu0
  %7237 = vmatprep.mubr.bf16.mxu0 %v5181
  %7238 = vmatmul.mubr.bf16.gmra.mrb[0].mxu0 %v4900
  %v7239 = vpop.f32.mrb[0].mxu0
  %v7240 = vadd.f32 %v6951, %v7239
  %v7241 = vpop.f32.mrb[0].mxu0
  %v7242 = vpop.f32.mrb[0].mxu0
  %v7243 = vadd.f32 %v6954, %v7242
  %v7244 = vpop.f32.mrb[0].mxu0
  %7245 = vmatprep.mubr.bf16.mxu0 %v5193
  %7246 = vmatmul.mubr.bf16.gmra.mrb[0].mxu0 %v4901
  %v7247 = vpop.f32.mrb[0].mxu0
  %v7248 = vadd.f32 %v6959, %v7247
  %v7249 = vpop.f32.mrb[0].mxu0
  %v7250 = vpop.f32.mrb[0].mxu0
  %v7251 = vadd.f32 %v6962, %v7250
  %v7252 = vpop.f32.mrb[0].mxu0
  %7253 = vmatprep.mubr.bf16.mxu0 %v5205
  %7254 = vmatmul.mubr.bf16.gmra.mrb[0].mxu0 %v4902
  %v7255 = vpop.f32.mrb[0].mxu0
  %v7256 = vadd.f32 %v6967, %v7255
  %v7257 = vpop.f32.mrb[0].mxu0
  %v7258 = vpop.f32.mrb[0].mxu0
  %v7259 = vadd.f32 %v6970, %v7258
  %v7260 = vpop.f32.mrb[0].mxu0
  %7261 = vmatprep.mubr.bf16.mxu0 %v5217
  %7262 = vmatmul.mubr.bf16.gmra.mrb[0].mxu0 %v4903
  %v7263 = vpop.f32.mrb[0].mxu0
  %v7264 = vadd.f32 %v6975, %v7263
  %v7265 = vpop.f32.mrb[0].mxu0
  %v7266 = vpop.f32.mrb[0].mxu0
  %v7267 = vadd.f32 %v6978, %v7266
  %v7268 = vpop.f32.mrb[0].mxu0
  %7269 = vmatprep.mubr.bf16.mxu0 %v5229
  %7270 = vmatmul.mubr.bf16.gmra.mrb[0].mxu0 %v4904
  %v7271 = vpop.f32.mrb[0].mxu0
  %v7272 = vadd.f32 %v6983, %v7271
  %v7273 = vpop.f32.mrb[0].mxu0
  %v7274 = vpop.f32.mrb[0].mxu0
  %v7275 = vadd.f32 %v6986, %v7274
  %v7276 = vpop.f32.mrb[0].mxu0
  %7277 = vmatprep.mubr.bf16.mxu0 %v5241
  %7278 = vmatmul.mubr.bf16.gmra.mrb[0].mxu0 %v4905
  %v7279 = vpop.f32.mrb[0].mxu0
  %v7280 = vadd.f32 %v6991, %v7279
  %v7281 = vpop.f32.mrb[0].mxu0
  %v7282 = vpop.f32.mrb[0].mxu0
  %v7283 = vadd.f32 %v6994, %v7282
  %v7284 = vpop.f32.mrb[0].mxu0
  %7285 = vmatprep.mubr.bf16.mxu0 %v5623
  %7286 = vmatmul.mubr.bf16.gmra.mrb[0].mxu0 %v5602
  %v7287 = vpop.f32.mrb[0].mxu0
  %v7288 = vadd.f32 %v6999, %v7287
  %v7289 = vpop.f32.mrb[0].mxu0
  %v7290 = vpop.f32.mrb[0].mxu0
  %v7291 = vadd.f32 %v7002, %v7290
  %v7292 = vpop.f32.mrb[0].mxu0
  %7293 = vmatprep.mubr.bf16.mxu0 %v5675
  %7294 = vmatmul.mubr.bf16.gmra.mrb[0].mxu0 %v5654
  %v7295 = vpop.f32.mrb[0].mxu0
  %v7296 = vadd.f32 %v7007, %v7295
  %v7297 = vpop.f32.mrb[0].mxu0
  %v7298 = vpop.f32.mrb[0].mxu0
  %v7299 = vadd.f32 %v7010, %v7298
  %v7300 = vpop.f32.mrb[0].mxu0
  %7301 = vmatprep.mubr.bf16.mxu0 %v5277
  %7302 = vmatmul.mubr.bf16.gmra.mrb[0].mxu0 %v4908
  %v7303 = vpop.f32.mrb[0].mxu0
  %v7304 = vadd.f32 %v7015, %v7303
  %v7305 = vpop.f32.mrb[0].mxu0
  %v7306 = vpop.f32.mrb[0].mxu0
  %v7307 = vadd.f32 %v7018, %v7306
  %v7308 = vpop.f32.mrb[0].mxu0
  %7309 = vmatprep.mubr.bf16.mxu0 %v5289
  %7310 = vmatmul.mubr.bf16.gmra.mrb[0].mxu0 %v4909
  %v7311 = vpop.f32.mrb[0].mxu0
  %v7312 = vadd.f32 %v7023, %v7311
  %v7313 = vpop.f32.mrb[0].mxu0
  %v7314 = vpop.f32.mrb[0].mxu0
  %v7315 = vadd.f32 %v7026, %v7314
  %v7316 = vpop.f32.mrb[0].mxu0
  %7317 = vmatprep.mubr.bf16.mxu0 %v5301
  %7318 = vmatmul.mubr.bf16.gmra.mrb[0].mxu0 %v4910
  %v7319 = vpop.f32.mrb[0].mxu0
  %v7320 = vadd.f32 %v7031, %v7319
  %v7321 = vpop.f32.mrb[0].mxu0
  %v7322 = vpop.f32.mrb[0].mxu0
  %v7323 = vadd.f32 %v7034, %v7322
  %v7324 = vpop.f32.mrb[0].mxu0
  %7325 = vmatprep.mubr.bf16.mxu0 %v5313
  %7326 = vmatmul.mubr.bf16.gmra.mrb[0].mxu0 %v4911
  %v7327 = vpop.f32.mrb[0].mxu0
  %v7328 = vadd.f32 %v7039, %v7327
  %v7329 = vpop.f32.mrb[0].mxu0
  %v7330 = vpop.f32.mrb[0].mxu0
  %v7331 = vadd.f32 %v7042, %v7330
  %v7332 = vpop.f32.mrb[0].mxu0
  %7333 = vmatprep.mubr.bf16.mxu0 %v5325
  %7334 = vmatmul.mubr.bf16.gmra.mrb[0].mxu0 %v4912
  %v7335 = vpop.f32.mrb[0].mxu0
  %v7336 = vadd.f32 %v7047, %v7335
  %v7337 = vpop.f32.mrb[0].mxu0
  %v7338 = vpop.f32.mrb[0].mxu0
  %v7339 = vadd.f32 %v7050, %v7338
  %v7340 = vpop.f32.mrb[0].mxu0
  %7341 = vmatprep.mubr.bf16.mxu0 %v5337
  %7342 = vmatmul.mubr.bf16.gmra.mrb[0].mxu0 %v4913
  %v7343 = vpop.f32.mrb[0].mxu0
  %v7344 = vadd.f32 %v7055, %v7343
  %v7345 = vpop.f32.mrb[0].mxu0
  %v7346 = vpop.f32.mrb[0].mxu0
  %v7347 = vadd.f32 %v7058, %v7346
  %v7348 = vpop.f32.mrb[0].mxu0
  %7349 = vmatprep.mubr.bf16.mxu0 %v5349
  %7350 = vmatmul.mubr.bf16.gmra.mrb[0].mxu0 %v4914
  %v7351 = vpop.f32.mrb[0].mxu0
  %v7352 = vadd.f32 %v7063, %v7351
  %v7353 = vpop.f32.mrb[0].mxu0
  %v7354 = vpop.f32.mrb[0].mxu0
  %v7355 = vadd.f32 %v7066, %v7354
  %v7356 = vpop.f32.mrb[0].mxu0
  %7357 = vmatprep.mubr.bf16.mxu0 %v5361
  %7358 = vmatmul.mubr.bf16.gmra.mrb[0].mxu0 %v4915
  %v7359 = vpop.f32.mrb[0].mxu0
  %v7360 = vadd.f32 %v7071, %v7359
  %v7361 = vpop.f32.mrb[0].mxu0
  %v7362 = vpop.f32.mrb[0].mxu0
  %v7363 = vadd.f32 %v7074, %v7362
  %v7364 = vpop.f32.mrb[0].mxu0
  %7365 = vmatprep.mubr.bf16.mxu0 %v5373
  %7366 = vmatmul.mubr.bf16.gmra.mrb[0].mxu0 %v4916
  %v7367 = vpop.f32.mrb[0].mxu0
  %v7368 = vadd.f32 %v7079, %v7367
  %v7369 = vpop.f32.mrb[0].mxu0
  %v7370 = vpop.f32.mrb[0].mxu0
  %v7371 = vadd.f32 %v7082, %v7370
  %v7372 = vpop.f32.mrb[0].mxu0
  %7373 = vmatprep.mubr.bf16.mxu0 %v5385
  %7374 = vmatmul.mubr.bf16.gmra.mrb[0].mxu0 %v4917
  %v7375 = vpop.f32.mrb[0].mxu0
  %v7376 = vadd.f32 %v7087, %v7375
  %v7377 = vpop.f32.mrb[0].mxu0
  %v7378 = vpop.f32.mrb[0].mxu0
  %v7379 = vadd.f32 %v7090, %v7378
  %v7380 = vpop.f32.mrb[0].mxu0
  %7381 = vmatprep.mubr.bf16.mxu0 %v5397
  %7382 = vmatmul.mubr.bf16.gmra.mrb[0].mxu0 %v4918
  %v7383 = vpop.f32.mrb[0].mxu0
  %v7384 = vadd.f32 %v7095, %v7383
  %v7385 = vpop.f32.mrb[0].mxu0
  %v7386 = vpop.f32.mrb[0].mxu0
  %v7387 = vadd.f32 %v7098, %v7386
  %v7388 = vpop.f32.mrb[0].mxu0
  %7389 = vmatprep.mubr.bf16.mxu0 %v5409
  %7390 = vmatmul.mubr.bf16.gmra.mrb[0].mxu0 %v4919
  %v7391 = vpop.f32.mrb[0].mxu0
  %v7392 = vadd.f32 %v7103, %v7391
  %v7393 = vpop.f32.mrb[0].mxu0
  %v7394 = vpop.f32.mrb[0].mxu0
  %v7395 = vadd.f32 %v7106, %v7394
  %v7396 = vpop.f32.mrb[0].mxu0
  %7397 = vmatprep.mubr.bf16.mxu0 %v5421
  %7398 = vmatmul.mubr.bf16.gmra.mrb[0].mxu0 %v4920
  %v7399 = vpop.f32.mrb[0].mxu0
  %v7400 = vadd.f32 %v7111, %v7399
  %v7401 = vpop.f32.mrb[0].mxu0
  %v7402 = vpop.f32.mrb[0].mxu0
  %v7403 = vadd.f32 %v7114, %v7402
  %v7404 = vpop.f32.mrb[0].mxu0
  %7405 = vmatprep.mubr.bf16.mxu0 %v5433
  %7406 = vmatmul.mubr.bf16.gmra.mrb[0].mxu0 %v4921
  %v7407 = vpop.f32.mrb[0].mxu0
  %v7408 = vadd.f32 %v7119, %v7407
  %v7409 = vpop.f32.mrb[0].mxu0
  %v7410 = vpop.f32.mrb[0].mxu0
  %v7411 = vadd.f32 %v7122, %v7410
  %v7412 = vpop.f32.mrb[0].mxu0
  %7413 = vmatprep.mubr.bf16.mxu0 %v5635
  %7414 = vmatmul.mubr.bf16.gmra.mrb[0].mxu0 %v5603
  %v7415 = vpop.f32.mrb[0].mxu0
  %v7416 = vadd.f32 %v7127, %v7415
  %v7417 = vpop.f32.mrb[0].mxu0
  %v7418 = vpop.f32.mrb[0].mxu0
  %v7419 = vadd.f32 %v7130, %v7418
  %v7420 = vpop.f32.mrb[0].mxu0
  %7421 = vmatprep.mubr.bf16.mxu0 %v5687
  %7422 = vmatmul.mubr.bf16.gmra.mrb[0].mxu0 %v5655
  %v7423 = vpop.f32.mrb[0].mxu0
  %v7424 = vadd.f32 %v7135, %v7423
  %v7425 = vpop.f32.mrb[0].mxu0
  %v7426 = vpop.f32.mrb[0].mxu0
  %v7427 = vadd.f32 %v7138, %v7426
  %v7428 = vpop.f32.mrb[0].mxu0
  %7429 = vdwg.mxu0
  %7430 = vmatprep.subr.bf16.mxu0 0
  %7431 = vmatpush1.bf16.msra.mxu0 %v6194
  %7432 = vmatprep.subr.bf16.mxu0 0
  %7433 = vmatpush1.bf16.msra.mxu0 %v6195
  %7434 = vmatprep.subr.bf16.mxu0 0
  %7435 = vmatpush1.bf16.msra.mxu0 %v6196
  %7436 = vmatprep.subr.bf16.mxu0 0
  %7437 = vmatpush1.bf16.msra.mxu0 %v6197
  %7438 = vmatprep.subr.bf16.mxu0 0
  %7439 = vmatpush1.bf16.msra.mxu0 %v6198
  %7440 = vmatprep.subr.bf16.mxu0 0
  %7441 = vmatpush1.bf16.msra.mxu0 %v6199
  %7442 = vmatprep.subr.bf16.mxu0 0
  %7443 = vmatpush1.bf16.msra.mxu0 %v6200
  %7444 = vmatprep.subr.bf16.mxu0 0
  %7445 = vmatpush1.bf16.msra.mxu0 %v6201
  %7446 = vmatprep.subr.bf16.mxu0 0
  %7447 = vmatpush1.bf16.msra.mxu0 0
  %7448 = vmatprep.subr.bf16.mxu0 0
  %7449 = vmatpush1.bf16.msra.mxu0 0
  %7450 = vmatprep.subr.bf16.mxu0 0
  %7451 = vmatpush1.bf16.msra.mxu0 0
  %7452 = vmatprep.subr.bf16.mxu0 0
  %7453 = vmatpush1.bf16.msra.mxu0 0
  %7454 = vmatprep.subr.bf16.mxu0 0
  %7455 = vmatpush1.bf16.msra.mxu0 0
  %7456 = vmatprep.subr.bf16.mxu0 0
  %7457 = vmatpush1.bf16.msra.mxu0 0
  %7458 = vmatprep.subr.bf16.mxu0 0
  %7459 = vmatpush1.bf16.msra.mxu0 0
  %7460 = vmatprep.subr.bf16.mxu0 0
  %7461 = vmatpush1.bf16.msra.mxu0 0
  %7462 = vmatprep.mubr.bf16.mxu0 0
  %7463 = vmatmul.mubr.bf16.gmra.mrb[0].mxu0 %v5474
  %v7464 = vpop.f32.mrb[0].mxu0
  %v7465 = vadd.f32 %v7176, %v7464
  %v7466 = vpop.f32.mrb[0].mxu0
  %v7467 = vpop.f32.mrb[0].mxu0
  %v7468 = vadd.f32 %v7179, %v7467
  %v7469 = vpop.f32.mrb[0].mxu0
  %7470 = vmatprep.mubr.bf16.mxu0 0
  %7471 = vmatmul.mubr.bf16.gmra.mrb[0].mxu0 %v5477
  %v7472 = vpop.f32.mrb[0].mxu0
  %v7473 = vadd.f32 %v7184, %v7472
  %v7474 = vpop.f32.mrb[0].mxu0
  %v7475 = vpop.f32.mrb[0].mxu0
  %v7476 = vadd.f32 %v7187, %v7475
  %v7477 = vpop.f32.mrb[0].mxu0
  %7478 = vmatprep.mubr.bf16.mxu0 0
  %7479 = vmatmul.mubr.bf16.gmra.mrb[0].mxu0 %v5480
  %v7480 = vpop.f32.mrb[0].mxu0
  %v7481 = vadd.f32 %v7192, %v7480
  %v7482 = vpop.f32.mrb[0].mxu0
  %v7483 = vpop.f32.mrb[0].mxu0
  %v7484 = vadd.f32 %v7195, %v7483
  %v7485 = vpop.f32.mrb[0].mxu0
  %7486 = vmatprep.mubr.bf16.mxu0 0
  %7487 = vmatmul.mubr.bf16.gmra.mrb[0].mxu0 %v5483
  %v7488 = vpop.f32.mrb[0].mxu0
  %v7489 = vadd.f32 %v7200, %v7488
  %v7490 = vpop.f32.mrb[0].mxu0
  %v7491 = vpop.f32.mrb[0].mxu0
  %v7492 = vadd.f32 %v7203, %v7491
  %v7493 = vpop.f32.mrb[0].mxu0
  %7494 = vmatprep.mubr.bf16.mxu0 0
  %7495 = vmatmul.mubr.bf16.gmra.mrb[0].mxu0 %v5486
  %v7496 = vpop.f32.mrb[0].mxu0
  %v7497 = vadd.f32 %v7208, %v7496
  %v7498 = vpop.f32.mrb[0].mxu0
  %v7499 = vpop.f32.mrb[0].mxu0
  %v7500 = vadd.f32 %v7211, %v7499
  %v7501 = vpop.f32.mrb[0].mxu0
  %7502 = vmatprep.mubr.bf16.mxu0 0
  %7503 = vmatmul.mubr.bf16.gmra.mrb[0].mxu0 %v5489
  %v7504 = vpop.f32.mrb[0].mxu0
  %v7505 = vadd.f32 %v7216, %v7504
  %v7506 = vpop.f32.mrb[0].mxu0
  %v7507 = vpop.f32.mrb[0].mxu0
  %v7508 = vadd.f32 %v7219, %v7507
  %v7509 = vpop.f32.mrb[0].mxu0
  %7510 = vmatprep.mubr.bf16.mxu0 0
  %7511 = vmatmul.mubr.bf16.gmra.mrb[0].mxu0 %v5492
  %v7512 = vpop.f32.mrb[0].mxu0
  %v7513 = vadd.f32 %v7224, %v7512
  %v7514 = vpop.f32.mrb[0].mxu0
  %v7515 = vpop.f32.mrb[0].mxu0
  %v7516 = vadd.f32 %v7227, %v7515
  %v7517 = vpop.f32.mrb[0].mxu0
  %7518 = vmatprep.mubr.bf16.mxu0 0
  %7519 = vmatmul.mubr.bf16.gmra.mrb[0].mxu0 %v5495
  %v7520 = vpop.f32.mrb[0].mxu0
  %v7521 = vadd.f32 %v7232, %v7520
  %v7522 = vpop.f32.mrb[0].mxu0
  %v7523 = vpop.f32.mrb[0].mxu0
  %v7524 = vadd.f32 %v7235, %v7523
  %v7525 = vpop.f32.mrb[0].mxu0
  %7526 = vmatprep.mubr.bf16.mxu0 0
  %7527 = vmatmul.mubr.bf16.gmra.mrb[0].mxu0 %v5498
  %v7528 = vpop.f32.mrb[0].mxu0
  %v7529 = vadd.f32 %v7240, %v7528
  %v7530 = vpop.f32.mrb[0].mxu0
  %v7531 = vpop.f32.mrb[0].mxu0
  %v7532 = vadd.f32 %v7243, %v7531
  %v7533 = vpop.f32.mrb[0].mxu0
  %7534 = vmatprep.mubr.bf16.mxu0 0
  %7535 = vmatmul.mubr.bf16.gmra.mrb[0].mxu0 %v5501
  %v7536 = vpop.f32.mrb[0].mxu0
  %v7537 = vadd.f32 %v7248, %v7536
  %v7538 = vpop.f32.mrb[0].mxu0
  %v7539 = vpop.f32.mrb[0].mxu0
  %v7540 = vadd.f32 %v7251, %v7539
  %v7541 = vpop.f32.mrb[0].mxu0
  %7542 = vmatprep.mubr.bf16.mxu0 0
  %7543 = vmatmul.mubr.bf16.gmra.mrb[0].mxu0 %v5504
  %v7544 = vpop.f32.mrb[0].mxu0
  %v7545 = vadd.f32 %v7256, %v7544
  %v7546 = vpop.f32.mrb[0].mxu0
  %v7547 = vpop.f32.mrb[0].mxu0
  %v7548 = vadd.f32 %v7259, %v7547
  %v7549 = vpop.f32.mrb[0].mxu0
  %7550 = vmatprep.mubr.bf16.mxu0 0
  %7551 = vmatmul.mubr.bf16.gmra.mrb[0].mxu0 %v5507
  %v7552 = vpop.f32.mrb[0].mxu0
  %v7553 = vadd.f32 %v7264, %v7552
  %v7554 = vpop.f32.mrb[0].mxu0
  %v7555 = vpop.f32.mrb[0].mxu0
  %v7556 = vadd.f32 %v7267, %v7555
  %v7557 = vpop.f32.mrb[0].mxu0
  %7558 = vmatprep.mubr.bf16.mxu0 0
  %7559 = vmatmul.mubr.bf16.gmra.mrb[0].mxu0 %v5510
  %v7560 = vpop.f32.mrb[0].mxu0
  %v7561 = vadd.f32 %v7272, %v7560
  %v7562 = vpop.f32.mrb[0].mxu0
  %v7563 = vpop.f32.mrb[0].mxu0
  %v7564 = vadd.f32 %v7275, %v7563
  %v7565 = vpop.f32.mrb[0].mxu0
  %7566 = vmatprep.mubr.bf16.mxu0 0
  %7567 = vmatmul.mubr.bf16.gmra.mrb[0].mxu0 %v5513
  %v7568 = vpop.f32.mrb[0].mxu0
  %v7569 = vadd.f32 %v7280, %v7568
  %v7570 = vpop.f32.mrb[0].mxu0
  %v7571 = vpop.f32.mrb[0].mxu0
  %v7572 = vadd.f32 %v7283, %v7571
  %v7573 = vpop.f32.mrb[0].mxu0
  %7574 = vmatprep.mubr.bf16.mxu0 0
  %7575 = vmatmul.mubr.bf16.gmra.mrb[0].mxu0 %v5640
  %v7576 = vpop.f32.mrb[0].mxu0
  %v7577 = vadd.f32 %v7288, %v7576
  %v7578 = vpop.f32.mrb[0].mxu0
  %v7579 = vpop.f32.mrb[0].mxu0
  %v7580 = vadd.f32 %v7291, %v7579
  %v7581 = vpop.f32.mrb[0].mxu0
  %7582 = vmatprep.mubr.bf16.mxu0 0
  %7583 = vmatmul.mubr.bf16.gmra.mrb[0].mxu0 %v5692
  %v7584 = vpop.f32.mrb[0].mxu0
  %v7585 = vadd.f32 %v7296, %v7584
  %v7586 = vpop.f32.mrb[0].mxu0
  %v7587 = vpop.f32.mrb[0].mxu0
  %v7588 = vadd.f32 %v7299, %v7587
  %v7589 = vpop.f32.mrb[0].mxu0
  %7590 = vmatprep.mubr.bf16.mxu0 0
  %7591 = vmatmul.mubr.bf16.gmra.mrb[0].mxu0 %v5522
  %v7592 = vpop.f32.mrb[0].mxu0
  %v7593 = vadd.f32 %v7304, %v7592
  %v7594 = vpop.f32.mrb[0].mxu0
  %v7595 = vpop.f32.mrb[0].mxu0
  %v7596 = vadd.f32 %v7307, %v7595
  %v7597 = vpop.f32.mrb[0].mxu0
  %7598 = vmatprep.mubr.bf16.mxu0 0
  %7599 = vmatmul.mubr.bf16.gmra.mrb[0].mxu0 %v5525
  %v7600 = vpop.f32.mrb[0].mxu0
  %v7601 = vadd.f32 %v7312, %v7600
  %v7602 = vpop.f32.mrb[0].mxu0
  %v7603 = vpop.f32.mrb[0].mxu0
  %v7604 = vadd.f32 %v7315, %v7603
  %v7605 = vpop.f32.mrb[0].mxu0
  %7606 = vmatprep.mubr.bf16.mxu0 0
  %7607 = vmatmul.mubr.bf16.gmra.mrb[0].mxu0 %v5528
  %v7608 = vpop.f32.mrb[0].mxu0
  %v7609 = vadd.f32 %v7320, %v7608
  %v7610 = vpop.f32.mrb[0].mxu0
  %v7611 = vpop.f32.mrb[0].mxu0
  %v7612 = vadd.f32 %v7323, %v7611
  %v7613 = vpop.f32.mrb[0].mxu0
  %7614 = vmatprep.mubr.bf16.mxu0 0
  %7615 = vmatmul.mubr.bf16.gmra.mrb[0].mxu0 %v5531
  %v7616 = vpop.f32.mrb[0].mxu0
  %v7617 = vadd.f32 %v7328, %v7616
  %v7618 = vpop.f32.mrb[0].mxu0
  %v7619 = vpop.f32.mrb[0].mxu0
  %v7620 = vadd.f32 %v7331, %v7619
  %v7621 = vpop.f32.mrb[0].mxu0
  %7622 = vmatprep.mubr.bf16.mxu0 0
  %7623 = vmatmul.mubr.bf16.gmra.mrb[0].mxu0 %v5534
  %v7624 = vpop.f32.mrb[0].mxu0
  %v7625 = vadd.f32 %v7336, %v7624
  %v7626 = vpop.f32.mrb[0].mxu0
  %v7627 = vpop.f32.mrb[0].mxu0
  %v7628 = vadd.f32 %v7339, %v7627
  %v7629 = vpop.f32.mrb[0].mxu0
  %7630 = vmatprep.mubr.bf16.mxu0 0
  %7631 = vmatmul.mubr.bf16.gmra.mrb[0].mxu0 %v5537
  %v7632 = vpop.f32.mrb[0].mxu0
  %v7633 = vadd.f32 %v7344, %v7632
  %v7634 = vpop.f32.mrb[0].mxu0
  %v7635 = vpop.f32.mrb[0].mxu0
  %v7636 = vadd.f32 %v7347, %v7635
  %v7637 = vpop.f32.mrb[0].mxu0
  %7638 = vmatprep.mubr.bf16.mxu0 0
  %7639 = vmatmul.mubr.bf16.gmra.mrb[0].mxu0 %v5540
  %v7640 = vpop.f32.mrb[0].mxu0
  %v7641 = vadd.f32 %v7352, %v7640
  %v7642 = vpop.f32.mrb[0].mxu0
  %v7643 = vpop.f32.mrb[0].mxu0
  %v7644 = vadd.f32 %v7355, %v7643
  %v7645 = vpop.f32.mrb[0].mxu0
  %7646 = vmatprep.mubr.bf16.mxu0 0
  %7647 = vmatmul.mubr.bf16.gmra.mrb[0].mxu0 %v5543
  %v7648 = vpop.f32.mrb[0].mxu0
  %v7649 = vadd.f32 %v7360, %v7648
  %v7650 = vpop.f32.mrb[0].mxu0
  %v7651 = vpop.f32.mrb[0].mxu0
  %v7652 = vadd.f32 %v7363, %v7651
  %v7653 = vpop.f32.mrb[0].mxu0
  %7654 = vmatprep.mubr.bf16.mxu0 0
  %7655 = vmatmul.mubr.bf16.gmra.mrb[0].mxu0 %v5546
  %v7656 = vpop.f32.mrb[0].mxu0
  %v7657 = vadd.f32 %v7368, %v7656
  %v7658 = vpop.f32.mrb[0].mxu0
  %v7659 = vpop.f32.mrb[0].mxu0
  %v7660 = vadd.f32 %v7371, %v7659
  %v7661 = vpop.f32.mrb[0].mxu0
  %7662 = vmatprep.mubr.bf16.mxu0 0
  %7663 = vmatmul.mubr.bf16.gmra.mrb[0].mxu0 %v5549
  %v7664 = vpop.f32.mrb[0].mxu0
  %v7665 = vadd.f32 %v7376, %v7664
  %v7666 = vpop.f32.mrb[0].mxu0
  %v7667 = vpop.f32.mrb[0].mxu0
  %v7668 = vadd.f32 %v7379, %v7667
  %v7669 = vpop.f32.mrb[0].mxu0
  %7670 = vmatprep.mubr.bf16.mxu0 0
  %7671 = vmatmul.mubr.bf16.gmra.mrb[0].mxu0 %v5552
  %v7672 = vpop.f32.mrb[0].mxu0
  %v7673 = vadd.f32 %v7384, %v7672
  %v7674 = vpop.f32.mrb[0].mxu0
  %v7675 = vpop.f32.mrb[0].mxu0
  %v7676 = vadd.f32 %v7387, %v7675
  %v7677 = vpop.f32.mrb[0].mxu0
  %7678 = vmatprep.mubr.bf16.mxu0 0
  %7679 = vmatmul.mubr.bf16.gmra.mrb[0].mxu0 %v5555
  %v7680 = vpop.f32.mrb[0].mxu0
  %v7681 = vadd.f32 %v7392, %v7680
  %v7682 = vpop.f32.mrb[0].mxu0
  %v7683 = vpop.f32.mrb[0].mxu0
  %v7684 = vadd.f32 %v7395, %v7683
  %v7685 = vpop.f32.mrb[0].mxu0
  %7686 = vmatprep.mubr.bf16.mxu0 0
  %7687 = vmatmul.mubr.bf16.gmra.mrb[0].mxu0 %v5558
  %v7688 = vpop.f32.mrb[0].mxu0
  %v7689 = vadd.f32 %v7400, %v7688
  %v7690 = vpop.f32.mrb[0].mxu0
  %v7691 = vpop.f32.mrb[0].mxu0
  %v7692 = vadd.f32 %v7403, %v7691
  %v7693 = vpop.f32.mrb[0].mxu0
  %7694 = vmatprep.mubr.bf16.mxu0 0
  %7695 = vmatmul.mubr.bf16.gmra.mrb[0].mxu0 %v5561
  %v7696 = vpop.f32.mrb[0].mxu0
  %v7697 = vadd.f32 %v7408, %v7696
  %v7698 = vpop.f32.mrb[0].mxu0
  %v7699 = vpop.f32.mrb[0].mxu0
  %v7700 = vadd.f32 %v7411, %v7699
  %v7701 = vpop.f32.mrb[0].mxu0
  %7702 = vmatprep.mubr.bf16.mxu0 0
  %7703 = vmatmul.mubr.bf16.gmra.mrb[0].mxu0 %v5643
  %v7704 = vpop.f32.mrb[0].mxu0
  %v7705 = vadd.f32 %v7416, %v7704
  %v7706 = vpop.f32.mrb[0].mxu0
  %v7707 = vpop.f32.mrb[0].mxu0
  %v7708 = vadd.f32 %v7419, %v7707
  %v7709 = vpop.f32.mrb[0].mxu0
  %7710 = vmatprep.mubr.bf16.mxu0 0
  %7711 = vmatmul.mubr.bf16.gmra.mrb[0].mxu0 %v5695
  %v7712 = vpop.f32.mrb[0].mxu0
  %v7713 = vadd.f32 %v7424, %v7712
  %v7714 = vpop.f32.mrb[0].mxu0
  %v7715 = vpop.f32.mrb[0].mxu0
  %v7716 = vadd.f32 %v7427, %v7715
  %v7717 = vpop.f32.mrb[0].mxu0
  %7718 = vdwg.mxu0
  %v7719 = vld [vmem:[%s5] sm:$0x1]
  %v7720 = vld [vmem:[%s6] sm:$0x1]
  %v7721 = vadd.f32 %v7465, %v7468
  %v7722 = vadd.f32 %v7721, %v7473
  %v7723 = vadd.f32 %v7722, %v7476
  %v7724 = vadd.f32 %v7723, %v7481
  %v7725 = vadd.f32 %v7724, %v7484
  %v7726 = vadd.f32 %v7725, %v7489
  %v7727 = vadd.f32 %v7726, %v7492
  %v7728 = vadd.f32 %v7727, %v7497
  %v7729 = vadd.f32 %v7728, %v7500
  %v7730 = vadd.f32 %v7729, %v7505
  %v7731 = vadd.f32 %v7730, %v7508
  %v7732 = vadd.f32 %v7731, %v7513
  %v7733 = vadd.f32 %v7732, %v7516
  %v7734 = vadd.f32 %v7733, %v7521
  %v7735 = vadd.f32 %v7734, %v7524
  %v7736 = vadd.f32 %v7735, %v7529
  %v7737 = vadd.f32 %v7736, %v7532
  %v7738 = vadd.f32 %v7737, %v7537
  %v7739 = vadd.f32 %v7738, %v7540
  %v7740 = vadd.f32 %v7739, %v7545
  %v7741 = vadd.f32 %v7740, %v7548
  %v7742 = vadd.f32 %v7741, %v7553
  %v7743 = vadd.f32 %v7742, %v7556
  %v7744 = vadd.f32 %v7743, %v7561
  %v7745 = vadd.f32 %v7744, %v7564
  %v7746 = vadd.f32 %v7745, %v7569
  %v7747 = vadd.f32 %v7746, %v7572
  %v7748 = vadd.f32 %v7747, %v7577
  %v7749 = vadd.f32 %v7748, %v7580
  %v7750 = vadd.f32 %v7749, %v7585
  %v7751 = vadd.f32 %v7750, %v7588
  %v7752 = vadd.f32 %v7751, %v7593
  %v7753 = vadd.f32 %v7752, %v7596
  %v7754 = vadd.f32 %v7753, %v7601
  %v7755 = vadd.f32 %v7754, %v7604
  %v7756 = vadd.f32 %v7755, %v7609
  %v7757 = vadd.f32 %v7756, %v7612
  %v7758 = vadd.f32 %v7757, %v7617
  %v7759 = vadd.f32 %v7758, %v7620
  %v7760 = vadd.f32 %v7759, %v7625
  %v7761 = vadd.f32 %v7760, %v7628
  %v7762 = vadd.f32 %v7761, %v7633
  %v7763 = vadd.f32 %v7762, %v7636
  %v7764 = vadd.f32 %v7763, %v7641
  %v7765 = vadd.f32 %v7764, %v7644
  %v7766 = vadd.f32 %v7765, %v7649
  %v7767 = vadd.f32 %v7766, %v7652
  %v7768 = vadd.f32 %v7767, %v7657
  %v7769 = vadd.f32 %v7768, %v7660
  %v7770 = vadd.f32 %v7769, %v7665
  %v7771 = vadd.f32 %v7770, %v7668
  %v7772 = vadd.f32 %v7771, %v7673
  %v7773 = vadd.f32 %v7772, %v7676
  %v7774 = vadd.f32 %v7773, %v7681
  %v7775 = vadd.f32 %v7774, %v7684
  %v7776 = vadd.f32 %v7775, %v7689
  %v7777 = vadd.f32 %v7776, %v7692
  %v7778 = vadd.f32 %v7777, %v7697
  %v7779 = vadd.f32 %v7778, %v7700
  %v7780 = vadd.f32 %v7779, %v7705
  %v7781 = vadd.f32 %v7780, %v7708
  %v7782 = vadd.f32 %v7781, %v7713
  %v7783 = vadd.f32 %v7782, %v7716
  %v7784 = vrot.slane %v7783, 4
  %v7785 = vadd.f32 %v7783, %v7784
  %v7786 = vrot.slane %v7785, 2
  %v7787 = vadd.f32 %v7785, %v7786
  %v7788 = vrot.slane %v7787, 1
  %v7789 = vadd.f32 %v7787, %v7788
  %v7790 = vmul.f32 %v7789, 0.001953125
  %v7791 = vsub.f32 %v7465, %v7790
  %v7792 = vsub.f32 %v7468, %v7790
  %v7793 = vsub.f32 %v7473, %v7790
  %v7794 = vsub.f32 %v7476, %v7790
  %v7795 = vsub.f32 %v7481, %v7790
  %v7796 = vsub.f32 %v7484, %v7790
  %v7797 = vsub.f32 %v7489, %v7790
  %v7798 = vsub.f32 %v7492, %v7790
  %v7799 = vsub.f32 %v7497, %v7790
  %v7800 = vsub.f32 %v7500, %v7790
  %v7801 = vsub.f32 %v7505, %v7790
  %v7802 = vsub.f32 %v7508, %v7790
  %v7803 = vsub.f32 %v7513, %v7790
  %v7804 = vsub.f32 %v7516, %v7790
  %v7805 = vsub.f32 %v7521, %v7790
  %v7806 = vsub.f32 %v7524, %v7790
  %v7807 = vsub.f32 %v7529, %v7790
  %v7808 = vsub.f32 %v7532, %v7790
  %v7809 = vsub.f32 %v7537, %v7790
  %v7810 = vsub.f32 %v7540, %v7790
  %v7811 = vsub.f32 %v7545, %v7790
  %v7812 = vsub.f32 %v7548, %v7790
  %v7813 = vsub.f32 %v7553, %v7790
  %v7814 = vsub.f32 %v7556, %v7790
  %v7815 = vsub.f32 %v7561, %v7790
  %v7816 = vsub.f32 %v7564, %v7790
  %v7817 = vsub.f32 %v7569, %v7790
  %v7818 = vsub.f32 %v7572, %v7790
  %v7819 = vsub.f32 %v7577, %v7790
  %v7820 = vsub.f32 %v7580, %v7790
  %v7821 = vsub.f32 %v7585, %v7790
  %v7822 = vsub.f32 %v7588, %v7790
  %v7823 = vsub.f32 %v7593, %v7790
  %v7824 = vsub.f32 %v7596, %v7790
  %v7825 = vsub.f32 %v7601, %v7790
  %v7826 = vsub.f32 %v7604, %v7790
  %v7827 = vsub.f32 %v7609, %v7790
  %v7828 = vsub.f32 %v7612, %v7790
  %v7829 = vsub.f32 %v7617, %v7790
  %v7830 = vsub.f32 %v7620, %v7790
  %v7831 = vsub.f32 %v7625, %v7790
  %v7832 = vsub.f32 %v7628, %v7790
  %v7833 = vsub.f32 %v7633, %v7790
  %v7834 = vsub.f32 %v7636, %v7790
  %v7835 = vsub.f32 %v7641, %v7790
  %v7836 = vsub.f32 %v7644, %v7790
  %v7837 = vsub.f32 %v7649, %v7790
  %v7838 = vsub.f32 %v7652, %v7790
  %v7839 = vsub.f32 %v7657, %v7790
  %v7840 = vsub.f32 %v7660, %v7790
  %v7841 = vsub.f32 %v7665, %v7790
  %v7842 = vsub.f32 %v7668, %v7790
  %v7843 = vsub.f32 %v7673, %v7790
  %v7844 = vsub.f32 %v7676, %v7790
  %v7845 = vsub.f32 %v7681, %v7790
  %v7846 = vsub.f32 %v7684, %v7790
  %v7847 = vsub.f32 %v7689, %v7790
  %v7848 = vsub.f32 %v7692, %v7790
  %v7849 = vsub.f32 %v7697, %v7790
  %v7850 = vsub.f32 %v7700, %v7790
  %v7851 = vsub.f32 %v7705, %v7790
  %v7852 = vsub.f32 %v7708, %v7790
  %v7853 = vsub.f32 %v7713, %v7790
  %v7854 = vsub.f32 %v7716, %v7790
  %v7855 = vmul.f32 %v7791, %v7791
  %v7856 = vmul.f32 %v7792, %v7792
  %v7857 = vmul.f32 %v7793, %v7793
  %v7858 = vmul.f32 %v7794, %v7794
  %v7859 = vmul.f32 %v7795, %v7795
  %v7860 = vmul.f32 %v7796, %v7796
  %v7861 = vmul.f32 %v7797, %v7797
  %v7862 = vmul.f32 %v7798, %v7798
  %v7863 = vmul.f32 %v7799, %v7799
  %v7864 = vmul.f32 %v7800, %v7800
  %v7865 = vmul.f32 %v7801, %v7801
  %v7866 = vmul.f32 %v7802, %v7802
  %v7867 = vmul.f32 %v7803, %v7803
  %v7868 = vmul.f32 %v7804, %v7804
  %v7869 = vmul.f32 %v7805, %v7805
  %v7870 = vmul.f32 %v7806, %v7806
  %v7871 = vmul.f32 %v7807, %v7807
  %v7872 = vmul.f32 %v7808, %v7808
  %v7873 = vmul.f32 %v7809, %v7809
  %v7874 = vmul.f32 %v7810, %v7810
  %v7875 = vmul.f32 %v7811, %v7811
  %v7876 = vmul.f32 %v7812, %v7812
  %v7877 = vmul.f32 %v7813, %v7813
  %v7878 = vmul.f32 %v7814, %v7814
  %v7879 = vmul.f32 %v7815, %v7815
  %v7880 = vmul.f32 %v7816, %v7816
  %v7881 = vmul.f32 %v7817, %v7817
  %v7882 = vmul.f32 %v7818, %v7818
  %v7883 = vmul.f32 %v7819, %v7819
  %v7884 = vmul.f32 %v7820, %v7820
  %v7885 = vmul.f32 %v7821, %v7821
  %v7886 = vmul.f32 %v7822, %v7822
  %v7887 = vmul.f32 %v7823, %v7823
  %v7888 = vmul.f32 %v7824, %v7824
  %v7889 = vmul.f32 %v7825, %v7825
  %v7890 = vmul.f32 %v7826, %v7826
  %v7891 = vmul.f32 %v7827, %v7827
  %v7892 = vmul.f32 %v7828, %v7828
  %v7893 = vmul.f32 %v7829, %v7829
  %v7894 = vmul.f32 %v7830, %v7830
  %v7895 = vmul.f32 %v7831, %v7831
  %v7896 = vmul.f32 %v7832, %v7832
  %v7897 = vmul.f32 %v7833, %v7833
  %v7898 = vmul.f32 %v7834, %v7834
  %v7899 = vmul.f32 %v7835, %v7835
  %v7900 = vmul.f32 %v7836, %v7836
  %v7901 = vmul.f32 %v7837, %v7837
  %v7902 = vmul.f32 %v7838, %v7838
  %v7903 = vmul.f32 %v7839, %v7839
  %v7904 = vmul.f32 %v7840, %v7840
  %v7905 = vmul.f32 %v7841, %v7841
  %v7906 = vmul.f32 %v7842, %v7842
  %v7907 = vmul.f32 %v7843, %v7843
  %v7908 = vmul.f32 %v7844, %v7844
  %v7909 = vmul.f32 %v7845, %v7845
  %v7910 = vmul.f32 %v7846, %v7846
  %v7911 = vmul.f32 %v7847, %v7847
  %v7912 = vmul.f32 %v7848, %v7848
  %v7913 = vmul.f32 %v7849, %v7849
  %v7914 = vmul.f32 %v7850, %v7850
  %v7915 = vmul.f32 %v7851, %v7851
  %v7916 = vmul.f32 %v7852, %v7852
  %v7917 = vmul.f32 %v7853, %v7853
  %v7918 = vmul.f32 %v7854, %v7854
  %v7919 = vadd.f32 %v7855, %v7856
  %v7920 = vadd.f32 %v7919, %v7857
  %v7921 = vadd.f32 %v7920, %v7858
  %v7922 = vadd.f32 %v7921, %v7859
  %v7923 = vadd.f32 %v7922, %v7860
  %v7924 = vadd.f32 %v7923, %v7861
  %v7925 = vadd.f32 %v7924, %v7862
  %v7926 = vadd.f32 %v7925, %v7863
  %v7927 = vadd.f32 %v7926, %v7864
  %v7928 = vadd.f32 %v7927, %v7865
  %v7929 = vadd.f32 %v7928, %v7866
  %v7930 = vadd.f32 %v7929, %v7867
  %v7931 = vadd.f32 %v7930, %v7868
  %v7932 = vadd.f32 %v7931, %v7869
  %v7933 = vadd.f32 %v7932, %v7870
  %v7934 = vadd.f32 %v7933, %v7871
  %v7935 = vadd.f32 %v7934, %v7872
  %v7936 = vadd.f32 %v7935, %v7873
  %v7937 = vadd.f32 %v7936, %v7874
  %v7938 = vadd.f32 %v7937, %v7875
  %v7939 = vadd.f32 %v7938, %v7876
  %v7940 = vadd.f32 %v7939, %v7877
  %v7941 = vadd.f32 %v7940, %v7878
  %v7942 = vadd.f32 %v7941, %v7879
  %v7943 = vadd.f32 %v7942, %v7880
  %v7944 = vadd.f32 %v7943, %v7881
  %v7945 = vadd.f32 %v7944, %v7882
  %v7946 = vadd.f32 %v7945, %v7883
  %v7947 = vadd.f32 %v7946, %v7884
  %v7948 = vadd.f32 %v7947, %v7885
  %v7949 = vadd.f32 %v7948, %v7886
  %v7950 = vadd.f32 %v7949, %v7887
  %v7951 = vadd.f32 %v7950, %v7888
  %v7952 = vadd.f32 %v7951, %v7889
  %v7953 = vadd.f32 %v7952, %v7890
  %v7954 = vadd.f32 %v7953, %v7891
  %v7955 = vadd.f32 %v7954, %v7892
  %v7956 = vadd.f32 %v7955, %v7893
  %v7957 = vadd.f32 %v7956, %v7894
  %v7958 = vadd.f32 %v7957, %v7895
  %v7959 = vadd.f32 %v7958, %v7896
  %v7960 = vadd.f32 %v7959, %v7897
  %v7961 = vadd.f32 %v7960, %v7898
  %v7962 = vadd.f32 %v7961, %v7899
  %v7963 = vadd.f32 %v7962, %v7900
  %v7964 = vadd.f32 %v7963, %v7901
  %v7965 = vadd.f32 %v7964, %v7902
  %v7966 = vadd.f32 %v7965, %v7903
  %v7967 = vadd.f32 %v7966, %v7904
  %v7968 = vadd.f32 %v7967, %v7905
  %v7969 = vadd.f32 %v7968, %v7906
  %v7970 = vadd.f32 %v7969, %v7907
  %v7971 = vadd.f32 %v7970, %v7908
  %v7972 = vadd.f32 %v7971, %v7909
  %v7973 = vadd.f32 %v7972, %v7910
  %v7974 = vadd.f32 %v7973, %v7911
  %v7975 = vadd.f32 %v7974, %v7912
  %v7976 = vadd.f32 %v7975, %v7913
  %v7977 = vadd.f32 %v7976, %v7914
  %v7978 = vadd.f32 %v7977, %v7915
  %v7979 = vadd.f32 %v7978, %v7916
  %v7980 = vadd.f32 %v7979, %v7917
  %v7981 = vadd.f32 %v7980, %v7918
  %v7982 = vrot.slane %v7981, 4
  %v7983 = vadd.f32 %v7981, %v7982
  %v7984 = vrot.slane %v7983, 2
  %v7985 = vadd.f32 %v7983, %v7984
  %v7986 = vrot.slane %v7985, 1
  %v7987 = vadd.f32 %v7985, %v7986
  %v7988 = vmul.f32 %v7987, 0.001953125
  %v7989 = vadd.f32 %v7988, 1e-05
  %v7990 = vrsqrt.pop %v7989
  %v7991 = vmul.f32 %v7719, %v7990
  %v7993 = vlaneseq
  %v7994 = vshrl.u32 %v7993, 7
  %v7995 = vsub.s32 0, %v7994
  %v7996 = vrot.slane %v7991, %v7995
  %v7998 = vmul.f32 %v7791, %v7996
  %v7999 = vmul.f32 %v7792, %v7996
  %v8000 = vmul.f32 %v7793, %v7996
  %v8001 = vmul.f32 %v7794, %v7996
  %v8002 = vmul.f32 %v7795, %v7996
  %v8003 = vmul.f32 %v7796, %v7996
  %v8004 = vmul.f32 %v7797, %v7996
  %v8005 = vmul.f32 %v7798, %v7996
  %v8006 = vmul.f32 %v7799, %v7996
  %v8007 = vmul.f32 %v7800, %v7996
  %v8008 = vmul.f32 %v7801, %v7996
  %v8009 = vmul.f32 %v7802, %v7996
  %v8010 = vmul.f32 %v7803, %v7996
  %v8011 = vmul.f32 %v7804, %v7996
  %v8012 = vmul.f32 %v7805, %v7996
  %v8013 = vmul.f32 %v7806, %v7996
  %v8014 = vmul.f32 %v7807, %v7996
  %v8015 = vmul.f32 %v7808, %v7996
  %v8016 = vmul.f32 %v7809, %v7996
  %v8017 = vmul.f32 %v7810, %v7996
  %v8018 = vmul.f32 %v7811, %v7996
  %v8019 = vmul.f32 %v7812, %v7996
  %v8020 = vmul.f32 %v7813, %v7996
  %v8021 = vmul.f32 %v7814, %v7996
  %v8022 = vmul.f32 %v7815, %v7996
  %v8023 = vmul.f32 %v7816, %v7996
  %v8024 = vmul.f32 %v7817, %v7996
  %v8025 = vmul.f32 %v7818, %v7996
  %v8026 = vmul.f32 %v7819, %v7996
  %v8027 = vmul.f32 %v7820, %v7996
  %v8028 = vmul.f32 %v7821, %v7996
  %v8029 = vmul.f32 %v7822, %v7996
  %v8030 = vmul.f32 %v7823, %v7996
  %v8031 = vmul.f32 %v7824, %v7996
  %v8032 = vmul.f32 %v7825, %v7996
  %v8033 = vmul.f32 %v7826, %v7996
  %v8034 = vmul.f32 %v7827, %v7996
  %v8035 = vmul.f32 %v7828, %v7996
  %v8036 = vmul.f32 %v7829, %v7996
  %v8037 = vmul.f32 %v7830, %v7996
  %v8038 = vmul.f32 %v7831, %v7996
  %v8039 = vmul.f32 %v7832, %v7996
  %v8040 = vmul.f32 %v7833, %v7996
  %v8041 = vmul.f32 %v7834, %v7996
  %v8042 = vmul.f32 %v7835, %v7996
  %v8043 = vmul.f32 %v7836, %v7996
  %v8044 = vmul.f32 %v7837, %v7996
  %v8045 = vmul.f32 %v7838, %v7996
  %v8046 = vmul.f32 %v7839, %v7996
  %v8047 = vmul.f32 %v7840, %v7996
  %v8048 = vmul.f32 %v7841, %v7996
  %v8049 = vmul.f32 %v7842, %v7996
  %v8050 = vmul.f32 %v7843, %v7996
  %v8051 = vmul.f32 %v7844, %v7996
  %v8052 = vmul.f32 %v7845, %v7996
  %v8053 = vmul.f32 %v7846, %v7996
  %v8054 = vmul.f32 %v7847, %v7996
  %v8055 = vmul.f32 %v7848, %v7996
  %v8056 = vmul.f32 %v7849, %v7996
  %v8057 = vmul.f32 %v7850, %v7996
  %v8058 = vmul.f32 %v7851, %v7996
  %v8059 = vmul.f32 %v7852, %v7996
  %v8060 = vmul.f32 %v7853, %v7996
  %v8061 = vmul.f32 %v7854, %v7996
  %v8063 = vlaneseq
  %v8064 = vshrl.u32 %v8063, 7
  %v8065 = vsub.s32 0, %v8064
  %v8066 = vrot.slane %v7720, %v8065
  %v8068 = vadd.f32 %v7998, %v8066
  %v8069 = vadd.f32 %v7999, %v8066
  %v8070 = vadd.f32 %v8000, %v8066
  %v8071 = vadd.f32 %v8001, %v8066
  %v8072 = vadd.f32 %v8002, %v8066
  %v8073 = vadd.f32 %v8003, %v8066
  %v8074 = vadd.f32 %v8004, %v8066
  %v8075 = vadd.f32 %v8005, %v8066
  %v8076 = vadd.f32 %v8006, %v8066
  %v8077 = vadd.f32 %v8007, %v8066
  %v8078 = vadd.f32 %v8008, %v8066
  %v8079 = vadd.f32 %v8009, %v8066
  %v8080 = vadd.f32 %v8010, %v8066
  %v8081 = vadd.f32 %v8011, %v8066
  %v8082 = vadd.f32 %v8012, %v8066
  %v8083 = vadd.f32 %v8013, %v8066
  %v8084 = vadd.f32 %v8014, %v8066
  %v8085 = vadd.f32 %v8015, %v8066
  %v8086 = vadd.f32 %v8016, %v8066
  %v8087 = vadd.f32 %v8017, %v8066
  %v8088 = vadd.f32 %v8018, %v8066
  %v8089 = vadd.f32 %v8019, %v8066
  %v8090 = vadd.f32 %v8020, %v8066
  %v8091 = vadd.f32 %v8021, %v8066
  %v8092 = vadd.f32 %v8022, %v8066
  %v8093 = vadd.f32 %v8023, %v8066
  %v8094 = vadd.f32 %v8024, %v8066
  %v8095 = vadd.f32 %v8025, %v8066
  %v8096 = vadd.f32 %v8026, %v8066
  %v8097 = vadd.f32 %v8027, %v8066
  %v8098 = vadd.f32 %v8028, %v8066
  %v8099 = vadd.f32 %v8029, %v8066
  %v8100 = vadd.f32 %v8030, %v8066
  %v8101 = vadd.f32 %v8031, %v8066
  %v8102 = vadd.f32 %v8032, %v8066
  %v8103 = vadd.f32 %v8033, %v8066
  %v8104 = vadd.f32 %v8034, %v8066
  %v8105 = vadd.f32 %v8035, %v8066
  %v8106 = vadd.f32 %v8036, %v8066
  %v8107 = vadd.f32 %v8037, %v8066
  %v8108 = vadd.f32 %v8038, %v8066
  %v8109 = vadd.f32 %v8039, %v8066
  %v8110 = vadd.f32 %v8040, %v8066
  %v8111 = vadd.f32 %v8041, %v8066
  %v8112 = vadd.f32 %v8042, %v8066
  %v8113 = vadd.f32 %v8043, %v8066
  %v8114 = vadd.f32 %v8044, %v8066
  %v8115 = vadd.f32 %v8045, %v8066
  %v8116 = vadd.f32 %v8046, %v8066
  %v8117 = vadd.f32 %v8047, %v8066
  %v8118 = vadd.f32 %v8048, %v8066
  %v8119 = vadd.f32 %v8049, %v8066
  %v8120 = vadd.f32 %v8050, %v8066
  %v8121 = vadd.f32 %v8051, %v8066
  %v8122 = vadd.f32 %v8052, %v8066
  %v8123 = vadd.f32 %v8053, %v8066
  %v8124 = vadd.f32 %v8054, %v8066
  %v8125 = vadd.f32 %v8055, %v8066
  %v8126 = vadd.f32 %v8056, %v8066
  %v8127 = vadd.f32 %v8057, %v8066
  %v8128 = vadd.f32 %v8058, %v8066
  %v8129 = vadd.f32 %v8059, %v8066
  %v8130 = vadd.f32 %v8060, %v8066
  %v8131 = vadd.f32 %v8061, %v8066
  %v8132 = vmax.f32 %v8068, 0.0
  %v8133 = vmax.f32 %v8069, 0.0
  %v8134 = vmax.f32 %v8070, 0.0
  %v8135 = vmax.f32 %v8071, 0.0
  %v8136 = vmax.f32 %v8072, 0.0
  %v8137 = vmax.f32 %v8073, 0.0
  %v8138 = vmax.f32 %v8074, 0.0
  %v8139 = vmax.f32 %v8075, 0.0
  %v8140 = vmax.f32 %v8076, 0.0
  %v8141 = vmax.f32 %v8077, 0.0
  %v8142 = vmax.f32 %v8078, 0.0
  %v8143 = vmax.f32 %v8079, 0.0
  %v8144 = vmax.f32 %v8080, 0.0
  %v8145 = vmax.f32 %v8081, 0.0
  %v8146 = vmax.f32 %v8082, 0.0
  %v8147 = vmax.f32 %v8083, 0.0
  %v8148 = vmax.f32 %v8084, 0.0
  %v8149 = vmax.f32 %v8085, 0.0
  %v8150 = vmax.f32 %v8086, 0.0
  %v8151 = vmax.f32 %v8087, 0.0
  %v8152 = vmax.f32 %v8088, 0.0
  %v8153 = vmax.f32 %v8089, 0.0
  %v8154 = vmax.f32 %v8090, 0.0
  %v8155 = vmax.f32 %v8091, 0.0
  %v8156 = vmax.f32 %v8092, 0.0
  %v8157 = vmax.f32 %v8093, 0.0
  %v8158 = vmax.f32 %v8094, 0.0
  %v8159 = vmax.f32 %v8095, 0.0
  %v8160 = vmax.f32 %v8096, 0.0
  %v8161 = vmax.f32 %v8097, 0.0
  %v8162 = vmax.f32 %v8098, 0.0
  %v8163 = vmax.f32 %v8099, 0.0
  %v8164 = vmax.f32 %v8100, 0.0
  %v8165 = vmax.f32 %v8101, 0.0
  %v8166 = vmax.f32 %v8102, 0.0
  %v8167 = vmax.f32 %v8103, 0.0
  %v8168 = vmax.f32 %v8104, 0.0
  %v8169 = vmax.f32 %v8105, 0.0
  %v8170 = vmax.f32 %v8106, 0.0
  %v8171 = vmax.f32 %v8107, 0.0
  %v8172 = vmax.f32 %v8108, 0.0
  %v8173 = vmax.f32 %v8109, 0.0
  %v8174 = vmax.f32 %v8110, 0.0
  %v8175 = vmax.f32 %v8111, 0.0
  %v8176 = vmax.f32 %v8112, 0.0
  %v8177 = vmax.f32 %v8113, 0.0
  %v8178 = vmax.f32 %v8114, 0.0
  %v8179 = vmax.f32 %v8115, 0.0
  %v8180 = vmax.f32 %v8116, 0.0
  %v8181 = vmax.f32 %v8117, 0.0
  %v8182 = vmax.f32 %v8118, 0.0
  %v8183 = vmax.f32 %v8119, 0.0
  %v8184 = vmax.f32 %v8120, 0.0
  %v8185 = vmax.f32 %v8121, 0.0
  %v8186 = vmax.f32 %v8122, 0.0
  %v8187 = vmax.f32 %v8123, 0.0
  %v8188 = vmax.f32 %v8124, 0.0
  %v8189 = vmax.f32 %v8125, 0.0
  %v8190 = vmax.f32 %v8126, 0.0
  %v8191 = vmax.f32 %v8127, 0.0
  %v8192 = vmax.f32 %v8128, 0.0
  %v8193 = vmax.f32 %v8129, 0.0
  %v8194 = vmax.f32 %v8130, 0.0
  %v8195 = vmax.f32 %v8131, 0.0
  %8196 = vst.msk [vmem:[%s7] sm:$0xff] %vm2457, %v8132
  %8197 = vst.msk [vmem:[%s7 + $0x8] sm:$0xff] %vm2457, %v8133
  %8198 = vst.msk [vmem:[%s7 + $0x10] sm:$0xff] %vm2457, %v8134
  %8199 = vst.msk [vmem:[%s7 + $0x18] sm:$0xff] %vm2457, %v8135
  %8200 = vst.msk [vmem:[%s7 + $0x20] sm:$0xff] %vm2457, %v8136
  %8201 = vst.msk [vmem:[%s7 + $0x28] sm:$0xff] %vm2457, %v8137
  %8202 = vst.msk [vmem:[%s7 + $0x30] sm:$0xff] %vm2457, %v8138
  %8203 = vst.msk [vmem:[%s7 + $0x38] sm:$0xff] %vm2457, %v8139
  %8204 = vst.msk [vmem:[%s7 + $0x40] sm:$0xff] %vm2457, %v8140
  %8205 = vst.msk [vmem:[%s7 + $0x48] sm:$0xff] %vm2457, %v8141
  %8206 = vst.msk [vmem:[%s7 + $0x50] sm:$0xff] %vm2457, %v8142
  %8207 = vst.msk [vmem:[%s7 + $0x58] sm:$0xff] %vm2457, %v8143
  %8208 = vst.msk [vmem:[%s7 + $0x60] sm:$0xff] %vm2457, %v8144
  %8209 = vst.msk [vmem:[%s7 + $0x68] sm:$0xff] %vm2457, %v8145
  %8210 = vst.msk [vmem:[%s7 + $0x70] sm:$0xff] %vm2457, %v8146
  %8211 = vst.msk [vmem:[%s7 + $0x78] sm:$0xff] %vm2457, %v8147
  %8212 = vst.msk [vmem:[%s7 + $0x80] sm:$0xff] %vm2457, %v8148
  %8213 = vst.msk [vmem:[%s7 + $0x88] sm:$0xff] %vm2457, %v8149
  %8214 = vst.msk [vmem:[%s7 + $0x90] sm:$0xff] %vm2457, %v8150
  %8215 = vst.msk [vmem:[%s7 + $0x98] sm:$0xff] %vm2457, %v8151
  %8216 = vst.msk [vmem:[%s7 + $0xa0] sm:$0xff] %vm2457, %v8152
  %8217 = vst.msk [vmem:[%s7 + $0xa8] sm:$0xff] %vm2457, %v8153
  %8218 = vst.msk [vmem:[%s7 + $0xb0] sm:$0xff] %vm2457, %v8154
  %8219 = vst.msk [vmem:[%s7 + $0xb8] sm:$0xff] %vm2457, %v8155
  %8220 = vst.msk [vmem:[%s7 + $0xc0] sm:$0xff] %vm2457, %v8156
  %8221 = vst.msk [vmem:[%s7 + $0xc8] sm:$0xff] %vm2457, %v8157
  %8222 = vst.msk [vmem:[%s7 + $0xd0] sm:$0xff] %vm2457, %v8158
  %8223 = vst.msk [vmem:[%s7 + $0xd8] sm:$0xff] %vm2457, %v8159
  %8224 = vst.msk [vmem:[%s7 + $0xe0] sm:$0xff] %vm2457, %v8160
  %8225 = vst.msk [vmem:[%s7 + $0xe8] sm:$0xff] %vm2457, %v8161
  %8226 = vst.msk [vmem:[%s7 + $0xf0] sm:$0xff] %vm2457, %v8162
  %8227 = vst.msk [vmem:[%s7 + $0xf8] sm:$0xff] %vm2457, %v8163
  %8228 = vst.msk [vmem:[%s7 + $0x100] sm:$0xff] %vm2457, %v8164
  %8229 = vst.msk [vmem:[%s7 + $0x108] sm:$0xff] %vm2457, %v8165
  %8230 = vst.msk [vmem:[%s7 + $0x110] sm:$0xff] %vm2457, %v8166
  %8231 = vst.msk [vmem:[%s7 + $0x118] sm:$0xff] %vm2457, %v8167
  %8232 = vst.msk [vmem:[%s7 + $0x120] sm:$0xff] %vm2457, %v8168
  %8233 = vst.msk [vmem:[%s7 + $0x128] sm:$0xff] %vm2457, %v8169
  %8234 = vst.msk [vmem:[%s7 + $0x130] sm:$0xff] %vm2457, %v8170
  %8235 = vst.msk [vmem:[%s7 + $0x138] sm:$0xff] %vm2457, %v8171
  %8236 = vst.msk [vmem:[%s7 + $0x140] sm:$0xff] %vm2457, %v8172
  %8237 = vst.msk [vmem:[%s7 + $0x148] sm:$0xff] %vm2457, %v8173
  %8238 = vst.msk [vmem:[%s7 + $0x150] sm:$0xff] %vm2457, %v8174
  %8239 = vst.msk [vmem:[%s7 + $0x158] sm:$0xff] %vm2457, %v8175
  %8240 = vst.msk [vmem:[%s7 + $0x160] sm:$0xff] %vm2457, %v8176
  %8241 = vst.msk [vmem:[%s7 + $0x168] sm:$0xff] %vm2457, %v8177
  %8242 = vst.msk [vmem:[%s7 + $0x170] sm:$0xff] %vm2457, %v8178
  %8243 = vst.msk [vmem:[%s7 + $0x178] sm:$0xff] %vm2457, %v8179
  %8244 = vst.msk [vmem:[%s7 + $0x180] sm:$0xff] %vm2457, %v8180
  %8245 = vst.msk [vmem:[%s7 + $0x188] sm:$0xff] %vm2457, %v8181
  %8246 = vst.msk [vmem:[%s7 + $0x190] sm:$0xff] %vm2457, %v8182
  %8247 = vst.msk [vmem:[%s7 + $0x198] sm:$0xff] %vm2457, %v8183
  %8248 = vst.msk [vmem:[%s7 + $0x1a0] sm:$0xff] %vm2457, %v8184
  %8249 = vst.msk [vmem:[%s7 + $0x1a8] sm:$0xff] %vm2457, %v8185
  %8250 = vst.msk [vmem:[%s7 + $0x1b0] sm:$0xff] %vm2457, %v8186
  %8251 = vst.msk [vmem:[%s7 + $0x1b8] sm:$0xff] %vm2457, %v8187
  %8252 = vst.msk [vmem:[%s7 + $0x1c0] sm:$0xff] %vm2457, %v8188
  %8253 = vst.msk [vmem:[%s7 + $0x1c8] sm:$0xff] %vm2457, %v8189
  %8254 = vst.msk [vmem:[%s7 + $0x1d0] sm:$0xff] %vm2457, %v8190
  %8255 = vst.msk [vmem:[%s7 + $0x1d8] sm:$0xff] %vm2457, %v8191
  %8256 = vst.msk [vmem:[%s7 + $0x1e0] sm:$0xff] %vm2457, %v8192
  %8257 = vst.msk [vmem:[%s7 + $0x1e8] sm:$0xff] %vm2457, %v8193
  %8258 = vst.msk [vmem:[%s7 + $0x1f0] sm:$0xff] %vm2457, %v8194
  %8259 = vst.msk [vmem:[%s7 + $0x1f8] sm:$0xff] %vm2457, %v8195
  // Predicated region
  $region30: #{tpu_custom_call.1} parent=0 // pred_check
    _
  $region31: #{tpu_custom_call.1} parent=0 // pred_check_branch
    %8261 = sbr.rel (0) target = $region33
  $region32: #{tpu_custom_call.1} parent=0 // pred_region
    _
  $region33: #{tpu_custom_call.1} parent=0 // pred_fallthru
    _
  // Predicated region
  $region34: #{tpu_custom_call.1} parent=0 // pred_check
    _
  $region35: #{tpu_custom_call.1} parent=0 // pred_check_branch
    %8263 = sbr.rel (0) target = $region37
  $region36: #{tpu_custom_call.1} parent=0 // pred_region
    _
  $region37: #{tpu_custom_call.1} parent=0 // pred_fallthru
    _

</llo_original>
